<compile_context>
chip_gen: v7x
topology: tpu7x:2x2x1
jax: 0.10.0
libtpu: 0.0.40
codegen_flags: <defaults>
</compile_context>

<pallas_src>
import functools
import math

import jax
import jax.numpy as jnp
from jax.experimental import pallas as pl
from jax.experimental.pallas import tpu as pltpu

# f32-accurate matmuls/convs everywhere (kernel trace, interpret mode, reference).
jax.config.update("jax_default_matmul_precision", "highest")

EPS = 1e-5  # nn.LayerNorm default eps


def _layer_norm(x, gamma, beta):
    # x: (rows, D), gamma/beta: (1, D); biased variance like torch.nn.LayerNorm
    mean = jnp.mean(x, axis=-1, keepdims=True)
    var = jnp.mean(jnp.square(x - mean), axis=-1, keepdims=True)
    return (x - mean) * jax.lax.rsqrt(var + EPS) * gamma + beta


def cross_attention_kernel(
        x_ref,       # (1, 3C, HW)  [prompts half1 ; prompts half2 ; raw key]
        q_ref,       # (1, C, HW)   raw query
        mask_ref,    # (9, HW)      f32 boundary masks, tap = kh*3 + kw
        wconv_ref,   # (9, 3C, 3C)  per-tap block-diag(conv_k1, conv_k1, conv_k2)
        bconv_ref,   # (3C, 1)      [bc1 ; bc1 ; bc2]
        wmlp_ref,    # (2, HW, E)   [mlp1.W^T ; mlp2.W^T]
        bmlp_ref,    # (2, E)       [mlp1.b ; mlp2.b]
        ln_e_ref,    # (4, E)       [g1, be1, g2, be2]
        ln_hw_ref,   # (6, HW)      [g3, be3, g4, be4, g5, be5]
        out_ref,     # (1, 2C, HW)
        *, spatial_w):
    C3, HW = x_ref.shape[1], x_ref.shape[2]
    C = C3 // 3
    E = wmlp_ref.shape[2]
    cdt = x_ref.dtype                      # MXU operand dtype (f32 or bf16)

    x = x_ref[0]                           # (3C, HW)

    # --- 3x3 "same" convs: im2col formed in-kernel (9 shifted, masked matmuls) ---
    conv = None
    for tap in range(9):                   # static unroll
        dh, dw = tap // 3 - 1, tap % 3 - 1
        d = dh * spatial_w + dw
        shifted = x if d == 0 else jnp.roll(x, -d, axis=1)
        if dh == 0 and dw == 0:
            xs = shifted                   # centre tap: mask is all ones
        else:
            xs = shifted * mask_ref[tap:tap + 1, :].astype(cdt)
        contrib = jnp.dot(wconv_ref[tap].astype(cdt), xs,
                          preferred_element_type=jnp.float32)
        conv = contrib if conv is None else conv + contrib
    conv = conv + bconv_ref[...]           # (3C, HW) f32 = [p1_conv ; p2_conv ; key_conv]

    # --- mlp1/mlp2 + LayerNorm over embed_dim (query & raw key) -----------------
    q_in = q_ref[0]                        # (C, HW)
    k_in = x[2 * C:3 * C, :]               # (C, HW) raw key (from stacked input)
    q_e = _layer_norm(
        jnp.dot(q_in, wmlp_ref[0].astype(cdt),
                preferred_element_type=jnp.float32) + bmlp_ref[0:1, :],
        ln_e_ref[0:1, :], ln_e_ref[1:2, :])                  # (C, E)
    k_e = _layer_norm(
        jnp.dot(k_in, wmlp_ref[1].astype(cdt),
                preferred_element_type=jnp.float32) + bmlp_ref[1:2, :],
        ln_e_ref[2:3, :], ln_e_ref[3:4, :])                  # (C, E)

    # --- single-head attention weights (shared by the three applications) -------
    scores = jax.lax.dot_general(
        q_e.astype(cdt), k_e.astype(cdt), (((1,), (1,)), ((), ())),
        preferred_element_type=jnp.float32) * (1.0 / math.sqrt(E))
    scores = scores - jnp.max(scores, axis=-1, keepdims=True)
    expd = jnp.exp(scores)
    attn = expd / jnp.sum(expd, axis=-1, keepdims=True)      # exact softmax (C, C)

    # --- attention applications + residual LayerNorms ---------------------------
    attn_c = attn.astype(cdt)
    p1c = conv[0 * C:1 * C, :]
    p2c = conv[1 * C:2 * C, :]
    kc = conv[2 * C:3 * C, :]
    a1 = jnp.dot(attn_c, p1c.astype(cdt), preferred_element_type=jnp.float32)
    a2 = jnp.dot(attn_c, p2c.astype(cdt), preferred_element_type=jnp.float32)
    ak = jnp.dot(attn_c, kc.astype(cdt), preferred_element_type=jnp.float32)

    r12 = jnp.concatenate([p1c + a1, p2c + a2], axis=0)      # (2C, HW)
    p_out = _layer_norm(r12, ln_hw_ref[0:1, :], ln_hw_ref[1:2, :])        # LN3
    key_out = _layer_norm(kc + ak, ln_hw_ref[2:3, :], ln_hw_ref[3:4, :])  # LN4
    final = _layer_norm(p_out + jnp.concatenate([key_out, key_out], axis=0),
                        ln_hw_ref[4:5, :], ln_hw_ref[5:6, :])             # LN5
    out_ref[0] = final.astype(out_ref.dtype)                 # single lane-dense store


# ------------------------------- wrapper -------------------------------------

def _tap_masks(H, W):
    """(9, H*W) f32 validity masks for the 3x3 'same'-conv taps (tap = kh*3+kw)."""
    h = jnp.arange(H * W, dtype=jnp.int32) // W
    w = jnp.arange(H * W, dtype=jnp.int32) % W
    rows = []
    for kh in range(3):
        for kw in range(3):
            dh, dw = kh - 1, kw - 1
            ok = (h + dh >= 0) & (h + dh < H) & (w + dw >= 0) & (w + dw < W)
            rows.append(ok.astype(jnp.float32))
    return jnp.stack(rows, axis=0)


def _vmem_limit_bytes():
    """Generation-aware VMEM budget (~3/4 of physical, 100 MiB cap)."""
    try:
        cap = int(pltpu.get_tpu_info().vmem_capacity_bytes)
    except Exception:                       # interpret mode / unknown chip
        cap = 64 * 1024 * 1024
    return int(min(cap * 3 // 4, 100 * 1024 * 1024))


def cross_attention_forward(prompts, query, key, params,
                            compute_dtype=jnp.float32):
    """prompts: (B, 2C, H, W); query/key: (B, C, H, W) -> (B, 2C, H, W), NCHW."""
    B, C, H, W = query.shape
    Pc = prompts.shape[1]
    assert Pc == 2 * C
    HW = H * W

    # Raw stacked inputs (no wrapper-side im2col -> no 9x HBM inflation).
    x_all = jnp.concatenate([prompts[:, :C], prompts[:, C:], key], axis=1)
    x_all = x_all.reshape(B, 3 * C, HW).astype(compute_dtype)
    q_flat = query.reshape(B, C, HW).astype(compute_dtype)
    mask = _tap_masks(H, W)

    wconv = params["wconv"].astype(compute_dtype)
    wmlp = params["wmlp"].astype(compute_dtype)
    weights = [wconv, params["bconv"], wmlp, params["bmlp"],
               params["ln_e"], params["ln_hw"]]

    def _bcast_spec(arr):
        nd = arr.ndim
        return pl.BlockSpec(arr.shape, lambda b, nd=nd: (0,) * nd)

    in_specs = [
        pl.BlockSpec((1, 3 * C, HW), lambda b: (b, 0, 0)),   # stacked raw inputs
        pl.BlockSpec((1, C, HW), lambda b: (b, 0, 0)),       # raw query
        _bcast_spec(mask),
    ] + [_bcast_spec(w) for w in weights]

    kernel = functools.partial(cross_attention_kernel, spatial_w=W)
    out = pl.pallas_call(
        kernel,
        out_shape=jax.ShapeDtypeStruct((B, Pc, HW), jnp.float32),
        grid=(B,),
        in_specs=in_specs,
        out_specs=pl.BlockSpec((1, Pc, HW), lambda b: (b, 0, 0)),
        compiler_params=pltpu.CompilerParams(
            dimension_semantics=("parallel",),            # B splits across v7x TCs
            vmem_limit_bytes=_vmem_limit_bytes()),
    )(x_all, q_flat, mask, *weights)

    return out.reshape(B, Pc, H, W)


# ----------------------------- parameter setup ------------------------------

def init_params(key, in_features, in_channels, embed_dim):
    ks = jax.random.split(key, 18)
    n = lambda k, shape, s=0.1: jax.random.normal(k, shape, jnp.float32) * s
    return {
        "wc1": n(ks[0], (in_channels, in_channels, 3, 3)),
        "bc1": n(ks[1], (in_channels,)),
        "wc2": n(ks[2], (in_channels, in_channels, 3, 3)),
        "bc2": n(ks[3], (in_channels,)),
        "wm1": n(ks[4], (embed_dim, in_features), 1.0 / math.sqrt(in_features)),
        "bm1": n(ks[5], (embed_dim,)),
        "wm2": n(ks[6], (embed_dim, in_features), 1.0 / math.sqrt(in_features)),
        "bm2": n(ks[7], (embed_dim,)),
        "g1": 1.0 + n(ks[8], (embed_dim,)),  "be1": n(ks[9], (embed_dim,)),
        "g2": 1.0 + n(ks[10], (embed_dim,)), "be2": n(ks[11], (embed_dim,)),
        "g3": 1.0 + n(ks[12], (in_features,)), "be3": n(ks[13], (in_features,)),
        "g4": 1.0 + n(ks[14], (in_features,)), "be4": n(ks[15], (in_features,)),
        "g5": 1.0 + n(ks[16], (in_features,)), "be5": n(ks[17], (in_features,)),
    }


def pack_kernel_params(raw):
    C = raw["wc1"].shape[0]
    taps = []
    for kh in range(3):
        for kw in range(3):
            w1 = raw["wc1"][:, :, kh, kw]           # (Cout, Cin)
            w2 = raw["wc2"][:, :, kh, kw]
            blk = jnp.zeros((3 * C, 3 * C), jnp.float32)
            blk = blk.at[0:C, 0:C].set(w1)
            blk = blk.at[C:2 * C, C:2 * C].set(w1)  # conv_k1 shared by both halves
            blk = blk.at[2 * C:, 2 * C:].set(w2)
            taps.append(blk)
    return {
        "wconv": jnp.stack(taps, axis=0),                                   # (9, 3C, 3C)
        "bconv": jnp.concatenate([raw["bc1"], raw["bc1"],
                                  raw["bc2"]]).reshape(3 * C, 1),           # (3C, 1)
        "wmlp": jnp.stack([raw["wm1"].T, raw["wm2"].T], axis=0),            # (2, HW, E)
        "bmlp": jnp.stack([raw["bm1"], raw["bm2"]], axis=0),                # (2, E)
        "ln_e": jnp.stack([raw["g1"], raw["be1"], raw["g2"], raw["be2"]], 0),
        "ln_hw": jnp.stack([raw["g3"], raw["be3"], raw["g4"], raw["be4"],
                            raw["g5"], raw["be5"]], 0),
    }


# --------------------------- pure-JAX reference -----------------------------

def reference_forward(prompts, query, key, raw):
    B, C, H, W = query.shape
    Pc = prompts.shape[1]
    HW = H * W
    E = raw["wm1"].shape[0]

    def conv(x, w, b):
        y = jax.lax.conv_general_dilated(
            x, w, (1, 1), "SAME", dimension_numbers=("NCHW", "OIHW", "NCHW"))
        return y + b[None, :, None, None]

    def ln(x, g, b):
        mu = x.mean(-1, keepdims=True)
        var = ((x - mu) ** 2).mean(-1, keepdims=True)
        return (x - mu) / jnp.sqrt(var + EPS) * g + b

    p1 = conv(prompts[:, :C], raw["wc1"], raw["bc1"])
    p2 = conv(prompts[:, C:], raw["wc1"], raw["bc1"])
    prompts_c = jnp.concatenate([p1, p2], 1).reshape(B, Pc, HW)
    key_conv = conv(key, raw["wc2"], raw["bc2"]).reshape(B, C, HW)

    q = query.reshape(B, C, HW)
    k = key.reshape(B, C, HW)
    q_e = ln(q @ raw["wm1"].T + raw["bm1"], raw["g1"], raw["be1"])
    k_e = ln(k @ raw["wm2"].T + raw["bm2"], raw["g2"], raw["be2"])

    attn = jax.nn.softmax(
        jnp.einsum("bqe,bke->bqk", q_e, k_e) / math.sqrt(E), axis=-1)

    po1 = jnp.einsum("bqk,bkd->bqd", attn, prompts_c[:, :C])
    po2 = jnp.einsum("bqk,bkd->bqd", attn, prompts_c[:, C:])
    p_out = ln(prompts_c + jnp.concatenate([po1, po2], 1), raw["g3"], raw["be3"])
    key_out = ln(key_conv + jnp.einsum("bqk,bkd->bqd", attn, key_conv),
                 raw["g4"], raw["be4"])
    p_out = p_out.at[:, :C].add(key_out)
    p_out = p_out.at[:, C:].add(key_out)
    p_out = ln(p_out, raw["g5"], raw["be5"])
    return p_out.reshape(B, Pc, H, W)


# --------------------------------- main --------------------------------------

if __name__ == "__main__":
    # HW = 16*16 = 256 and embed_dim = 128 -> lane-dense slabs and stores.
    B, C, H, W = 2, 4, 16, 16        # in_channels = C, in_features = H*W
    embed_dim = 128
    in_features = H * W

    root = jax.random.PRNGKey(0)
    k_p, k_q, k_k, k_w = jax.random.split(root, 4)
    prompts = jax.random.normal(k_p, (B, 2 * C, H, W), jnp.float32)
    query = jax.random.normal(k_q, (B, C, H, W), jnp.float32)
    key = jax.random.normal(k_k, (B, C, H, W), jnp.float32)

    raw = init_params(k_w, in_features, C, embed_dim)
    params = pack_kernel_params(raw)
    ref = reference_forward(prompts, query, key, raw)

    # f32 path: tight numerical check against the pure-JAX reference.
    out = jax.block_until_ready(cross_attention_forward(prompts, query, key, params))
    assert out.shape == (B, 2 * C, H, W)
    if not jnp.allclose(out, ref, atol=2e-3, rtol=2e-3):
        max_err = float(jnp.max(jnp.abs(out - ref)))
        raise AssertionError(f"f32 kernel mismatch vs reference, max_err={max_err}")

    # bf16 MXU-operand path (production mode): loose check — the bound reflects
    # bf16 operand quantization vs the f32 reference, not kernel structure.
    out_bf16 = jax.block_until_ready(
        cross_attention_forward(prompts, query, key, params,
                                compute_dtype=jnp.bfloat16))
    err_bf16 = float(jnp.max(jnp.abs(out_bf16 - ref)))
    if not err_bf16 < 0.25:
        raise AssertionError(f"bf16 kernel mismatch vs reference, max_err={err_bf16}")

    print("KERNEL_OK")
</pallas_src>

<mosaic_0001>
module attributes {stable_mosaic.version = 11 : i64} {
  func.func @cross_attention_kernel(%arg0: i32, %arg1: memref<1x12x256xf32, #tpu.memory_space<vmem>>, %arg2: memref<1x4x256xf32, #tpu.memory_space<vmem>>, %arg3: memref<9x256xf32, #tpu.memory_space<vmem>>, %arg4: memref<9x12x12xf32, #tpu.memory_space<vmem>>, %arg5: memref<12x1xf32, #tpu.memory_space<vmem>>, %arg6: memref<2x256x128xf32, #tpu.memory_space<vmem>>, %arg7: memref<2x128xf32, #tpu.memory_space<vmem>>, %arg8: memref<4x128xf32, #tpu.memory_space<vmem>>, %arg9: memref<6x256xf32, #tpu.memory_space<vmem>>, %arg10: memref<1x8x256xf32, #tpu.memory_space<vmem>>) attributes {dimension_semantics = [#tpu.dimension_semantics<parallel>], iteration_bounds = array<i64: 2>, scalar_prefetch = 0 : i64, scratch_operands = 0 : i64, tpu.core_type = #tpu.core_type<tc>, window_params = [{transform_indices = @transform_0, window_bounds = array<i64: 1, 12, 256>}, {transform_indices = @transform_1, window_bounds = array<i64: 1, 4, 256>}, {pipeline_mode = #tpu.pipeline_mode<synchronous>, transform_indices = @transform_2, window_bounds = array<i64: 9, 256>}, {pipeline_mode = #tpu.pipeline_mode<synchronous>, transform_indices = @transform_3, window_bounds = array<i64: 9, 12, 12>}, {pipeline_mode = #tpu.pipeline_mode<synchronous>, transform_indices = @transform_4, window_bounds = array<i64: 12, 1>}, {pipeline_mode = #tpu.pipeline_mode<synchronous>, transform_indices = @transform_5, window_bounds = array<i64: 2, 256, 128>}, {pipeline_mode = #tpu.pipeline_mode<synchronous>, transform_indices = @transform_6, window_bounds = array<i64: 2, 128>}, {pipeline_mode = #tpu.pipeline_mode<synchronous>, transform_indices = @transform_7, window_bounds = array<i64: 4, 128>}, {pipeline_mode = #tpu.pipeline_mode<synchronous>, transform_indices = @transform_8, window_bounds = array<i64: 6, 256>}, {transform_indices = @transform_9, window_bounds = array<i64: 1, 8, 256>}]} {
    %c0 = arith.constant 0 : index
    %c0_0 = arith.constant 0 : index
    %c0_1 = arith.constant 0 : index
    %0 = vector.load %arg1[%c0, %c0_0, %c0_1] : memref<1x12x256xf32, #tpu.memory_space<vmem>>, vector<1x12x256xf32>
    %1 = vector.shape_cast %0 : vector<1x12x256xf32> to vector<12x256xf32>
    %2 = vector.extract_strided_slice %1 {offsets = [0, 239], sizes = [12, 17], strides = [1, 1]} : vector<12x256xf32> to vector<12x17xf32>
    %3 = vector.extract_strided_slice %1 {offsets = [0, 0], sizes = [12, 239], strides = [1, 1]} : vector<12x256xf32> to vector<12x239xf32>
    %4 = tpu.concatenate %2, %3 in 1 : vector<12x17xf32>, vector<12x239xf32> -> vector<12x256xf32>
    %c0_2 = arith.constant 0 : index
    %c0_3 = arith.constant 0 : index
    %5 = vector.load %arg3[%c0_2, %c0_3] : memref<9x256xf32, #tpu.memory_space<vmem>>, vector<1x256xf32>
    %6 = vector.broadcast %5 : vector<1x256xf32> to vector<12x256xf32>
    %7 = arith.mulf %4, %6 : vector<12x256xf32>
    %c0_4 = arith.constant 0 : index
    %c0_5 = arith.constant 0 : index
    %c0_6 = arith.constant 0 : index
    %8 = vector.load %arg4[%c0_4, %c0_5, %c0_6] : memref<9x12x12xf32, #tpu.memory_space<vmem>>, vector<1x12x12xf32>
    %9 = vector.shape_cast %8 : vector<1x12x12xf32> to vector<12x12xf32>
    %cst = arith.constant dense<0.000000e+00> : vector<12x256xf32>
    %10 = tpu.matmul %9, %7, %cst {dimension_numbers = #tpu.dot_dimension_numbers<[1], [0], [0], [1], [0, 0, 1, 1], [], []>, precision = #tpu.contract_precision<fp32>} : vector<12x12xf32>, vector<12x256xf32>, vector<12x256xf32> -> vector<12x256xf32>
    %11 = vector.extract_strided_slice %1 {offsets = [0, 240], sizes = [12, 16], strides = [1, 1]} : vector<12x256xf32> to vector<12x16xf32>
    %12 = vector.extract_strided_slice %1 {offsets = [0, 0], sizes = [12, 240], strides = [1, 1]} : vector<12x256xf32> to vector<12x240xf32>
    %13 = tpu.concatenate %11, %12 in 1 : vector<12x16xf32>, vector<12x240xf32> -> vector<12x256xf32>
    %c1 = arith.constant 1 : index
    %c0_7 = arith.constant 0 : index
    %14 = vector.load %arg3[%c1, %c0_7] : memref<9x256xf32, #tpu.memory_space<vmem>>, vector<1x256xf32>
    %15 = vector.broadcast %14 : vector<1x256xf32> to vector<12x256xf32>
    %16 = arith.mulf %13, %15 : vector<12x256xf32>
    %c1_8 = arith.constant 1 : index
    %c0_9 = arith.constant 0 : index
    %c0_10 = arith.constant 0 : index
    %17 = vector.load %arg4[%c1_8, %c0_9, %c0_10] : memref<9x12x12xf32, #tpu.memory_space<vmem>>, vector<1x12x12xf32>
    %18 = vector.shape_cast %17 : vector<1x12x12xf32> to vector<12x12xf32>
    %cst_11 = arith.constant dense<0.000000e+00> : vector<12x256xf32>
    %19 = tpu.matmul %18, %16, %cst_11 {dimension_numbers = #tpu.dot_dimension_numbers<[1], [0], [0], [1], [0, 0, 1, 1], [], []>, precision = #tpu.contract_precision<fp32>} : vector<12x12xf32>, vector<12x256xf32>, vector<12x256xf32> -> vector<12x256xf32>
    %20 = arith.addf %10, %19 : vector<12x256xf32>
    %21 = vector.extract_strided_slice %1 {offsets = [0, 241], sizes = [12, 15], strides = [1, 1]} : vector<12x256xf32> to vector<12x15xf32>
    %22 = vector.extract_strided_slice %1 {offsets = [0, 0], sizes = [12, 241], strides = [1, 1]} : vector<12x256xf32> to vector<12x241xf32>
    %23 = tpu.concatenate %21, %22 in 1 : vector<12x15xf32>, vector<12x241xf32> -> vector<12x256xf32>
    %c2 = arith.constant 2 : index
    %c0_12 = arith.constant 0 : index
    %24 = vector.load %arg3[%c2, %c0_12] : memref<9x256xf32, #tpu.memory_space<vmem>>, vector<1x256xf32>
    %25 = vector.broadcast %24 : vector<1x256xf32> to vector<12x256xf32>
    %26 = arith.mulf %23, %25 : vector<12x256xf32>
    %c2_13 = arith.constant 2 : index
    %c0_14 = arith.constant 0 : index
    %c0_15 = arith.constant 0 : index
    %27 = vector.load %arg4[%c2_13, %c0_14, %c0_15] : memref<9x12x12xf32, #tpu.memory_space<vmem>>, vector<1x12x12xf32>
    %28 = vector.shape_cast %27 : vector<1x12x12xf32> to vector<12x12xf32>
    %cst_16 = arith.constant dense<0.000000e+00> : vector<12x256xf32>
    %29 = tpu.matmul %28, %26, %cst_16 {dimension_numbers = #tpu.dot_dimension_numbers<[1], [0], [0], [1], [0, 0, 1, 1], [], []>, precision = #tpu.contract_precision<fp32>} : vector<12x12xf32>, vector<12x256xf32>, vector<12x256xf32> -> vector<12x256xf32>
    %30 = arith.addf %20, %29 : vector<12x256xf32>
    %31 = vector.extract_strided_slice %1 {offsets = [0, 255], sizes = [12, 1], strides = [1, 1]} : vector<12x256xf32> to vector<12x1xf32>
    %32 = vector.extract_strided_slice %1 {offsets = [0, 0], sizes = [12, 255], strides = [1, 1]} : vector<12x256xf32> to vector<12x255xf32>
    %33 = tpu.concatenate %31, %32 in 1 : vector<12x1xf32>, vector<12x255xf32> -> vector<12x256xf32>
    %c3 = arith.constant 3 : index
    %c0_17 = arith.constant 0 : index
    %34 = vector.load %arg3[%c3, %c0_17] : memref<9x256xf32, #tpu.memory_space<vmem>>, vector<1x256xf32>
    %35 = vector.broadcast %34 : vector<1x256xf32> to vector<12x256xf32>
    %36 = arith.mulf %33, %35 : vector<12x256xf32>
    %c3_18 = arith.constant 3 : index
    %c0_19 = arith.constant 0 : index
    %c0_20 = arith.constant 0 : index
    %37 = vector.load %arg4[%c3_18, %c0_19, %c0_20] : memref<9x12x12xf32, #tpu.memory_space<vmem>>, vector<1x12x12xf32>
    %38 = vector.shape_cast %37 : vector<1x12x12xf32> to vector<12x12xf32>
    %cst_21 = arith.constant dense<0.000000e+00> : vector<12x256xf32>
    %39 = tpu.matmul %38, %36, %cst_21 {dimension_numbers = #tpu.dot_dimension_numbers<[1], [0], [0], [1], [0, 0, 1, 1], [], []>, precision = #tpu.contract_precision<fp32>} : vector<12x12xf32>, vector<12x256xf32>, vector<12x256xf32> -> vector<12x256xf32>
    %40 = arith.addf %30, %39 : vector<12x256xf32>
    %c4 = arith.constant 4 : index
    %c0_22 = arith.constant 0 : index
    %c0_23 = arith.constant 0 : index
    %41 = vector.load %arg4[%c4, %c0_22, %c0_23] : memref<9x12x12xf32, #tpu.memory_space<vmem>>, vector<1x12x12xf32>
    %42 = vector.shape_cast %41 : vector<1x12x12xf32> to vector<12x12xf32>
    %cst_24 = arith.constant dense<0.000000e+00> : vector<12x256xf32>
    %43 = tpu.matmul %42, %1, %cst_24 {dimension_numbers = #tpu.dot_dimension_numbers<[1], [0], [0], [1], [0, 0, 1, 1], [], []>, precision = #tpu.contract_precision<fp32>} : vector<12x12xf32>, vector<12x256xf32>, vector<12x256xf32> -> vector<12x256xf32>
    %44 = arith.addf %40, %43 : vector<12x256xf32>
    %45 = vector.extract_strided_slice %1 {offsets = [0, 1], sizes = [12, 255], strides = [1, 1]} : vector<12x256xf32> to vector<12x255xf32>
    %46 = vector.extract_strided_slice %1 {offsets = [0, 0], sizes = [12, 1], strides = [1, 1]} : vector<12x256xf32> to vector<12x1xf32>
    %47 = tpu.concatenate %45, %46 in 1 : vector<12x255xf32>, vector<12x1xf32> -> vector<12x256xf32>
    %c5 = arith.constant 5 : index
    %c0_25 = arith.constant 0 : index
    %48 = vector.load %arg3[%c5, %c0_25] : memref<9x256xf32, #tpu.memory_space<vmem>>, vector<1x256xf32>
    %49 = vector.broadcast %48 : vector<1x256xf32> to vector<12x256xf32>
    %50 = arith.mulf %47, %49 : vector<12x256xf32>
    %c5_26 = arith.constant 5 : index
    %c0_27 = arith.constant 0 : index
    %c0_28 = arith.constant 0 : index
    %51 = vector.load %arg4[%c5_26, %c0_27, %c0_28] : memref<9x12x12xf32, #tpu.memory_space<vmem>>, vector<1x12x12xf32>
    %52 = vector.shape_cast %51 : vector<1x12x12xf32> to vector<12x12xf32>
    %cst_29 = arith.constant dense<0.000000e+00> : vector<12x256xf32>
    %53 = tpu.matmul %52, %50, %cst_29 {dimension_numbers = #tpu.dot_dimension_numbers<[1], [0], [0], [1], [0, 0, 1, 1], [], []>, precision = #tpu.contract_precision<fp32>} : vector<12x12xf32>, vector<12x256xf32>, vector<12x256xf32> -> vector<12x256xf32>
    %54 = arith.addf %44, %53 : vector<12x256xf32>
    %55 = vector.extract_strided_slice %1 {offsets = [0, 15], sizes = [12, 241], strides = [1, 1]} : vector<12x256xf32> to vector<12x241xf32>
    %56 = vector.extract_strided_slice %1 {offsets = [0, 0], sizes = [12, 15], strides = [1, 1]} : vector<12x256xf32> to vector<12x15xf32>
    %57 = tpu.concatenate %55, %56 in 1 : vector<12x241xf32>, vector<12x15xf32> -> vector<12x256xf32>
    %c6 = arith.constant 6 : index
    %c0_30 = arith.constant 0 : index
    %58 = vector.load %arg3[%c6, %c0_30] : memref<9x256xf32, #tpu.memory_space<vmem>>, vector<1x256xf32>
    %59 = vector.broadcast %58 : vector<1x256xf32> to vector<12x256xf32>
    %60 = arith.mulf %57, %59 : vector<12x256xf32>
    %c6_31 = arith.constant 6 : index
    %c0_32 = arith.constant 0 : index
    %c0_33 = arith.constant 0 : index
    %61 = vector.load %arg4[%c6_31, %c0_32, %c0_33] : memref<9x12x12xf32, #tpu.memory_space<vmem>>, vector<1x12x12xf32>
    %62 = vector.shape_cast %61 : vector<1x12x12xf32> to vector<12x12xf32>
    %cst_34 = arith.constant dense<0.000000e+00> : vector<12x256xf32>
    %63 = tpu.matmul %62, %60, %cst_34 {dimension_numbers = #tpu.dot_dimension_numbers<[1], [0], [0], [1], [0, 0, 1, 1], [], []>, precision = #tpu.contract_precision<fp32>} : vector<12x12xf32>, vector<12x256xf32>, vector<12x256xf32> -> vector<12x256xf32>
    %64 = arith.addf %54, %63 : vector<12x256xf32>
    %65 = vector.extract_strided_slice %1 {offsets = [0, 16], sizes = [12, 240], strides = [1, 1]} : vector<12x256xf32> to vector<12x240xf32>
    %66 = vector.extract_strided_slice %1 {offsets = [0, 0], sizes = [12, 16], strides = [1, 1]} : vector<12x256xf32> to vector<12x16xf32>
    %67 = tpu.concatenate %65, %66 in 1 : vector<12x240xf32>, vector<12x16xf32> -> vector<12x256xf32>
    %c7 = arith.constant 7 : index
    %c0_35 = arith.constant 0 : index
    %68 = vector.load %arg3[%c7, %c0_35] : memref<9x256xf32, #tpu.memory_space<vmem>>, vector<1x256xf32>
    %69 = vector.broadcast %68 : vector<1x256xf32> to vector<12x256xf32>
    %70 = arith.mulf %67, %69 : vector<12x256xf32>
    %c7_36 = arith.constant 7 : index
    %c0_37 = arith.constant 0 : index
    %c0_38 = arith.constant 0 : index
    %71 = vector.load %arg4[%c7_36, %c0_37, %c0_38] : memref<9x12x12xf32, #tpu.memory_space<vmem>>, vector<1x12x12xf32>
    %72 = vector.shape_cast %71 : vector<1x12x12xf32> to vector<12x12xf32>
    %cst_39 = arith.constant dense<0.000000e+00> : vector<12x256xf32>
    %73 = tpu.matmul %72, %70, %cst_39 {dimension_numbers = #tpu.dot_dimension_numbers<[1], [0], [0], [1], [0, 0, 1, 1], [], []>, precision = #tpu.contract_precision<fp32>} : vector<12x12xf32>, vector<12x256xf32>, vector<12x256xf32> -> vector<12x256xf32>
    %74 = arith.addf %64, %73 : vector<12x256xf32>
    %75 = vector.extract_strided_slice %1 {offsets = [0, 17], sizes = [12, 239], strides = [1, 1]} : vector<12x256xf32> to vector<12x239xf32>
    %76 = vector.extract_strided_slice %1 {offsets = [0, 0], sizes = [12, 17], strides = [1, 1]} : vector<12x256xf32> to vector<12x17xf32>
    %77 = tpu.concatenate %75, %76 in 1 : vector<12x239xf32>, vector<12x17xf32> -> vector<12x256xf32>
    %c8 = arith.constant 8 : index
    %c0_40 = arith.constant 0 : index
    %78 = vector.load %arg3[%c8, %c0_40] : memref<9x256xf32, #tpu.memory_space<vmem>>, vector<1x256xf32>
    %79 = vector.broadcast %78 : vector<1x256xf32> to vector<12x256xf32>
    %80 = arith.mulf %77, %79 : vector<12x256xf32>
    %c8_41 = arith.constant 8 : index
    %c0_42 = arith.constant 0 : index
    %c0_43 = arith.constant 0 : index
    %81 = vector.load %arg4[%c8_41, %c0_42, %c0_43] : memref<9x12x12xf32, #tpu.memory_space<vmem>>, vector<1x12x12xf32>
    %82 = vector.shape_cast %81 : vector<1x12x12xf32> to vector<12x12xf32>
    %cst_44 = arith.constant dense<0.000000e+00> : vector<12x256xf32>
    %83 = tpu.matmul %82, %80, %cst_44 {dimension_numbers = #tpu.dot_dimension_numbers<[1], [0], [0], [1], [0, 0, 1, 1], [], []>, precision = #tpu.contract_precision<fp32>} : vector<12x12xf32>, vector<12x256xf32>, vector<12x256xf32> -> vector<12x256xf32>
    %84 = arith.addf %74, %83 : vector<12x256xf32>
    %c0_45 = arith.constant 0 : index
    %c0_46 = arith.constant 0 : index
    %85 = vector.load %arg5[%c0_45, %c0_46] : memref<12x1xf32, #tpu.memory_space<vmem>>, vector<12x1xf32>
    %86 = vector.broadcast %85 : vector<12x1xf32> to vector<12x256xf32>
    %87 = arith.addf %84, %86 : vector<12x256xf32>
    %c0_47 = arith.constant 0 : index
    %c0_48 = arith.constant 0 : index
    %c0_49 = arith.constant 0 : index
    %88 = vector.load %arg2[%c0_47, %c0_48, %c0_49] : memref<1x4x256xf32, #tpu.memory_space<vmem>>, vector<1x4x256xf32>
    %89 = vector.shape_cast %88 : vector<1x4x256xf32> to vector<4x256xf32>
    %90 = vector.extract_strided_slice %1 {offsets = [8, 0], sizes = [4, 256], strides = [1, 1]} : vector<12x256xf32> to vector<4x256xf32>
    %c0_50 = arith.constant 0 : index
    %c0_51 = arith.constant 0 : index
    %c0_52 = arith.constant 0 : index
    %91 = vector.load %arg6[%c0_50, %c0_51, %c0_52] : memref<2x256x128xf32, #tpu.memory_space<vmem>>, vector<1x256x128xf32>
    %92 = vector.shape_cast %91 : vector<1x256x128xf32> to vector<256x128xf32>
    %cst_53 = arith.constant dense<0.000000e+00> : vector<4x128xf32>
    %93 = tpu.matmul %89, %92, %cst_53 {dimension_numbers = #tpu.dot_dimension_numbers<[1], [0], [0], [1], [0, 0, 1, 1], [], []>, precision = #tpu.contract_precision<fp32>} : vector<4x256xf32>, vector<256x128xf32>, vector<4x128xf32> -> vector<4x128xf32>
    %c0_54 = arith.constant 0 : index
    %c0_55 = arith.constant 0 : index
    %94 = vector.load %arg7[%c0_54, %c0_55] : memref<2x128xf32, #tpu.memory_space<vmem>>, vector<1x128xf32>
    %95 = vector.broadcast %94 : vector<1x128xf32> to vector<4x128xf32>
    %96 = arith.addf %93, %95 : vector<4x128xf32>
    %c0_56 = arith.constant 0 : index
    %c0_57 = arith.constant 0 : index
    %97 = vector.load %arg8[%c0_56, %c0_57] : memref<4x128xf32, #tpu.memory_space<vmem>>, vector<1x128xf32>
    %c1_58 = arith.constant 1 : index
    %c0_59 = arith.constant 0 : index
    %98 = vector.load %arg8[%c1_58, %c0_59] : memref<4x128xf32, #tpu.memory_space<vmem>>, vector<1x128xf32>
    %cst_60 = arith.constant dense<0.000000e+00> : vector<4xf32>
    %99 = vector.multi_reduction <add>, %96, %cst_60 [1] : vector<4x128xf32> to vector<4xf32>
    %100 = vector.shape_cast %99 : vector<4xf32> to vector<4x1xf32>
    %cst_61 = arith.constant 1.280000e+02 : f32
    %101 = vector.broadcast %cst_61 : f32 to vector<4x1xf32>
    %102 = arith.divf %100, %101 : vector<4x1xf32>
    %103 = vector.broadcast %102 : vector<4x1xf32> to vector<4x128xf32>
    %104 = arith.subf %96, %103 : vector<4x128xf32>
    %105 = arith.mulf %104, %104 : vector<4x128xf32>
    %cst_62 = arith.constant dense<0.000000e+00> : vector<4xf32>
    %106 = vector.multi_reduction <add>, %105, %cst_62 [1] : vector<4x128xf32> to vector<4xf32>
    %107 = vector.shape_cast %106 : vector<4xf32> to vector<4x1xf32>
    %cst_63 = arith.constant 1.280000e+02 : f32
    %108 = vector.broadcast %cst_63 : f32 to vector<4x1xf32>
    %109 = arith.divf %107, %108 : vector<4x1xf32>
    %110 = vector.broadcast %102 : vector<4x1xf32> to vector<4x128xf32>
    %111 = arith.subf %96, %110 : vector<4x128xf32>
    %cst_64 = arith.constant 9.99999974E-6 : f32
    %112 = vector.broadcast %cst_64 : f32 to vector<4x1xf32>
    %113 = arith.addf %109, %112 : vector<4x1xf32>
    %114 = math.rsqrt %113 : vector<4x1xf32>
    %115 = vector.broadcast %114 : vector<4x1xf32> to vector<4x128xf32>
    %116 = arith.mulf %111, %115 : vector<4x128xf32>
    %117 = vector.broadcast %97 : vector<1x128xf32> to vector<4x128xf32>
    %118 = arith.mulf %116, %117 : vector<4x128xf32>
    %119 = vector.broadcast %98 : vector<1x128xf32> to vector<4x128xf32>
    %120 = arith.addf %118, %119 : vector<4x128xf32>
    %c1_65 = arith.constant 1 : index
    %c0_66 = arith.constant 0 : index
    %c0_67 = arith.constant 0 : index
    %121 = vector.load %arg6[%c1_65, %c0_66, %c0_67] : memref<2x256x128xf32, #tpu.memory_space<vmem>>, vector<1x256x128xf32>
    %122 = vector.shape_cast %121 : vector<1x256x128xf32> to vector<256x128xf32>
    %cst_68 = arith.constant dense<0.000000e+00> : vector<4x128xf32>
    %123 = tpu.matmul %90, %122, %cst_68 {dimension_numbers = #tpu.dot_dimension_numbers<[1], [0], [0], [1], [0, 0, 1, 1], [], []>, precision = #tpu.contract_precision<fp32>} : vector<4x256xf32>, vector<256x128xf32>, vector<4x128xf32> -> vector<4x128xf32>
    %c1_69 = arith.constant 1 : index
    %c0_70 = arith.constant 0 : index
    %124 = vector.load %arg7[%c1_69, %c0_70] : memref<2x128xf32, #tpu.memory_space<vmem>>, vector<1x128xf32>
    %125 = vector.broadcast %124 : vector<1x128xf32> to vector<4x128xf32>
    %126 = arith.addf %123, %125 : vector<4x128xf32>
    %c2_71 = arith.constant 2 : index
    %c0_72 = arith.constant 0 : index
    %127 = vector.load %arg8[%c2_71, %c0_72] : memref<4x128xf32, #tpu.memory_space<vmem>>, vector<1x128xf32>
    %c3_73 = arith.constant 3 : index
    %c0_74 = arith.constant 0 : index
    %128 = vector.load %arg8[%c3_73, %c0_74] : memref<4x128xf32, #tpu.memory_space<vmem>>, vector<1x128xf32>
    %cst_75 = arith.constant dense<0.000000e+00> : vector<4xf32>
    %129 = vector.multi_reduction <add>, %126, %cst_75 [1] : vector<4x128xf32> to vector<4xf32>
    %130 = vector.shape_cast %129 : vector<4xf32> to vector<4x1xf32>
    %cst_76 = arith.constant 1.280000e+02 : f32
    %131 = vector.broadcast %cst_76 : f32 to vector<4x1xf32>
    %132 = arith.divf %130, %131 : vector<4x1xf32>
    %133 = vector.broadcast %132 : vector<4x1xf32> to vector<4x128xf32>
    %134 = arith.subf %126, %133 : vector<4x128xf32>
    %135 = arith.mulf %134, %134 : vector<4x128xf32>
    %cst_77 = arith.constant dense<0.000000e+00> : vector<4xf32>
    %136 = vector.multi_reduction <add>, %135, %cst_77 [1] : vector<4x128xf32> to vector<4xf32>
    %137 = vector.shape_cast %136 : vector<4xf32> to vector<4x1xf32>
    %cst_78 = arith.constant 1.280000e+02 : f32
    %138 = vector.broadcast %cst_78 : f32 to vector<4x1xf32>
    %139 = arith.divf %137, %138 : vector<4x1xf32>
    %140 = vector.broadcast %132 : vector<4x1xf32> to vector<4x128xf32>
    %141 = arith.subf %126, %140 : vector<4x128xf32>
    %cst_79 = arith.constant 9.99999974E-6 : f32
    %142 = vector.broadcast %cst_79 : f32 to vector<4x1xf32>
    %143 = arith.addf %139, %142 : vector<4x1xf32>
    %144 = math.rsqrt %143 : vector<4x1xf32>
    %145 = vector.broadcast %144 : vector<4x1xf32> to vector<4x128xf32>
    %146 = arith.mulf %141, %145 : vector<4x128xf32>
    %147 = vector.broadcast %127 : vector<1x128xf32> to vector<4x128xf32>
    %148 = arith.mulf %146, %147 : vector<4x128xf32>
    %149 = vector.broadcast %128 : vector<1x128xf32> to vector<4x128xf32>
    %150 = arith.addf %148, %149 : vector<4x128xf32>
    %cst_80 = arith.constant dense<0.000000e+00> : vector<4x4xf32>
    %151 = tpu.matmul %120, %150, %cst_80 {dimension_numbers = #tpu.dot_dimension_numbers<[1], [1], [0], [0], [0, 0, 1, 0], [], []>, precision = #tpu.contract_precision<fp32>} : vector<4x128xf32>, vector<4x128xf32>, vector<4x4xf32> -> vector<4x4xf32>
    %cst_81 = arith.constant 0.0883883461 : f32
    %152 = vector.broadcast %cst_81 : f32 to vector<4x4xf32>
    %153 = arith.mulf %151, %152 : vector<4x4xf32>
    %cst_82 = arith.constant dense<0xFF800000> : vector<4xf32>
    %154 = vector.multi_reduction <maximumf>, %153, %cst_82 [1] : vector<4x4xf32> to vector<4xf32>
    %155 = vector.shape_cast %154 : vector<4xf32> to vector<4x1xf32>
    %156 = vector.broadcast %155 : vector<4x1xf32> to vector<4x4xf32>
    %157 = arith.subf %153, %156 : vector<4x4xf32>
    %158 = math.exp %157 : vector<4x4xf32>
    %cst_83 = arith.constant dense<0.000000e+00> : vector<4xf32>
    %159 = vector.multi_reduction <add>, %158, %cst_83 [1] : vector<4x4xf32> to vector<4xf32>
    %160 = vector.shape_cast %159 : vector<4xf32> to vector<4x1xf32>
    %161 = vector.broadcast %160 : vector<4x1xf32> to vector<4x4xf32>
    %162 = arith.divf %158, %161 : vector<4x4xf32>
    %163 = vector.extract_strided_slice %87 {offsets = [0, 0], sizes = [4, 256], strides = [1, 1]} : vector<12x256xf32> to vector<4x256xf32>
    %164 = vector.extract_strided_slice %87 {offsets = [4, 0], sizes = [4, 256], strides = [1, 1]} : vector<12x256xf32> to vector<4x256xf32>
    %165 = vector.extract_strided_slice %87 {offsets = [8, 0], sizes = [4, 256], strides = [1, 1]} : vector<12x256xf32> to vector<4x256xf32>
    %cst_84 = arith.constant dense<0.000000e+00> : vector<4x256xf32>
    %166 = tpu.matmul %162, %163, %cst_84 {dimension_numbers = #tpu.dot_dimension_numbers<[1], [0], [0], [1], [0, 0, 1, 1], [], []>, precision = #tpu.contract_precision<fp32>} : vector<4x4xf32>, vector<4x256xf32>, vector<4x256xf32> -> vector<4x256xf32>
    %cst_85 = arith.constant dense<0.000000e+00> : vector<4x256xf32>
    %167 = tpu.matmul %162, %164, %cst_85 {dimension_numbers = #tpu.dot_dimension_numbers<[1], [0], [0], [1], [0, 0, 1, 1], [], []>, precision = #tpu.contract_precision<fp32>} : vector<4x4xf32>, vector<4x256xf32>, vector<4x256xf32> -> vector<4x256xf32>
    %cst_86 = arith.constant dense<0.000000e+00> : vector<4x256xf32>
    %168 = tpu.matmul %162, %165, %cst_86 {dimension_numbers = #tpu.dot_dimension_numbers<[1], [0], [0], [1], [0, 0, 1, 1], [], []>, precision = #tpu.contract_precision<fp32>} : vector<4x4xf32>, vector<4x256xf32>, vector<4x256xf32> -> vector<4x256xf32>
    %169 = arith.addf %163, %166 : vector<4x256xf32>
    %170 = arith.addf %164, %167 : vector<4x256xf32>
    %171 = tpu.concatenate %169, %170 in 0 : vector<4x256xf32>, vector<4x256xf32> -> vector<8x256xf32>
    %c0_87 = arith.constant 0 : index
    %c0_88 = arith.constant 0 : index
    %172 = vector.load %arg9[%c0_87, %c0_88] : memref<6x256xf32, #tpu.memory_space<vmem>>, vector<1x256xf32>
    %c1_89 = arith.constant 1 : index
    %c0_90 = arith.constant 0 : index
    %173 = vector.load %arg9[%c1_89, %c0_90] : memref<6x256xf32, #tpu.memory_space<vmem>>, vector<1x256xf32>
    %cst_91 = arith.constant dense<0.000000e+00> : vector<8xf32>
    %174 = vector.multi_reduction <add>, %171, %cst_91 [1] : vector<8x256xf32> to vector<8xf32>
    %175 = vector.shape_cast %174 : vector<8xf32> to vector<8x1xf32>
    %cst_92 = arith.constant 2.560000e+02 : f32
    %176 = vector.broadcast %cst_92 : f32 to vector<8x1xf32>
    %177 = arith.divf %175, %176 : vector<8x1xf32>
    %178 = vector.broadcast %177 : vector<8x1xf32> to vector<8x256xf32>
    %179 = arith.subf %171, %178 : vector<8x256xf32>
    %180 = arith.mulf %179, %179 : vector<8x256xf32>
    %cst_93 = arith.constant dense<0.000000e+00> : vector<8xf32>
    %181 = vector.multi_reduction <add>, %180, %cst_93 [1] : vector<8x256xf32> to vector<8xf32>
    %182 = vector.shape_cast %181 : vector<8xf32> to vector<8x1xf32>
    %cst_94 = arith.constant 2.560000e+02 : f32
    %183 = vector.broadcast %cst_94 : f32 to vector<8x1xf32>
    %184 = arith.divf %182, %183 : vector<8x1xf32>
    %185 = vector.broadcast %177 : vector<8x1xf32> to vector<8x256xf32>
    %186 = arith.subf %171, %185 : vector<8x256xf32>
    %cst_95 = arith.constant 9.99999974E-6 : f32
    %187 = vector.broadcast %cst_95 : f32 to vector<8x1xf32>
    %188 = arith.addf %184, %187 : vector<8x1xf32>
    %189 = math.rsqrt %188 : vector<8x1xf32>
    %190 = vector.broadcast %189 : vector<8x1xf32> to vector<8x256xf32>
    %191 = arith.mulf %186, %190 : vector<8x256xf32>
    %192 = vector.broadcast %172 : vector<1x256xf32> to vector<8x256xf32>
    %193 = arith.mulf %191, %192 : vector<8x256xf32>
    %194 = vector.broadcast %173 : vector<1x256xf32> to vector<8x256xf32>
    %195 = arith.addf %193, %194 : vector<8x256xf32>
    %196 = arith.addf %165, %168 : vector<4x256xf32>
    %c2_96 = arith.constant 2 : index
    %c0_97 = arith.constant 0 : index
    %197 = vector.load %arg9[%c2_96, %c0_97] : memref<6x256xf32, #tpu.memory_space<vmem>>, vector<1x256xf32>
    %c3_98 = arith.constant 3 : index
    %c0_99 = arith.constant 0 : index
    %198 = vector.load %arg9[%c3_98, %c0_99] : memref<6x256xf32, #tpu.memory_space<vmem>>, vector<1x256xf32>
    %cst_100 = arith.constant dense<0.000000e+00> : vector<4xf32>
    %199 = vector.multi_reduction <add>, %196, %cst_100 [1] : vector<4x256xf32> to vector<4xf32>
    %200 = vector.shape_cast %199 : vector<4xf32> to vector<4x1xf32>
    %cst_101 = arith.constant 2.560000e+02 : f32
    %201 = vector.broadcast %cst_101 : f32 to vector<4x1xf32>
    %202 = arith.divf %200, %201 : vector<4x1xf32>
    %203 = vector.broadcast %202 : vector<4x1xf32> to vector<4x256xf32>
    %204 = arith.subf %196, %203 : vector<4x256xf32>
    %205 = arith.mulf %204, %204 : vector<4x256xf32>
    %cst_102 = arith.constant dense<0.000000e+00> : vector<4xf32>
    %206 = vector.multi_reduction <add>, %205, %cst_102 [1] : vector<4x256xf32> to vector<4xf32>
    %207 = vector.shape_cast %206 : vector<4xf32> to vector<4x1xf32>
    %cst_103 = arith.constant 2.560000e+02 : f32
    %208 = vector.broadcast %cst_103 : f32 to vector<4x1xf32>
    %209 = arith.divf %207, %208 : vector<4x1xf32>
    %210 = vector.broadcast %202 : vector<4x1xf32> to vector<4x256xf32>
    %211 = arith.subf %196, %210 : vector<4x256xf32>
    %cst_104 = arith.constant 9.99999974E-6 : f32
    %212 = vector.broadcast %cst_104 : f32 to vector<4x1xf32>
    %213 = arith.addf %209, %212 : vector<4x1xf32>
    %214 = math.rsqrt %213 : vector<4x1xf32>
    %215 = vector.broadcast %214 : vector<4x1xf32> to vector<4x256xf32>
    %216 = arith.mulf %211, %215 : vector<4x256xf32>
    %217 = vector.broadcast %197 : vector<1x256xf32> to vector<4x256xf32>
    %218 = arith.mulf %216, %217 : vector<4x256xf32>
    %219 = vector.broadcast %198 : vector<1x256xf32> to vector<4x256xf32>
    %220 = arith.addf %218, %219 : vector<4x256xf32>
    %221 = tpu.concatenate %220, %220 in 0 : vector<4x256xf32>, vector<4x256xf32> -> vector<8x256xf32>
    %222 = arith.addf %195, %221 : vector<8x256xf32>
    %c4_105 = arith.constant 4 : index
    %c0_106 = arith.constant 0 : index
    %223 = vector.load %arg9[%c4_105, %c0_106] : memref<6x256xf32, #tpu.memory_space<vmem>>, vector<1x256xf32>
    %c5_107 = arith.constant 5 : index
    %c0_108 = arith.constant 0 : index
    %224 = vector.load %arg9[%c5_107, %c0_108] : memref<6x256xf32, #tpu.memory_space<vmem>>, vector<1x256xf32>
    %cst_109 = arith.constant dense<0.000000e+00> : vector<8xf32>
    %225 = vector.multi_reduction <add>, %222, %cst_109 [1] : vector<8x256xf32> to vector<8xf32>
    %226 = vector.shape_cast %225 : vector<8xf32> to vector<8x1xf32>
    %cst_110 = arith.constant 2.560000e+02 : f32
    %227 = vector.broadcast %cst_110 : f32 to vector<8x1xf32>
    %228 = arith.divf %226, %227 : vector<8x1xf32>
    %229 = vector.broadcast %228 : vector<8x1xf32> to vector<8x256xf32>
    %230 = arith.subf %222, %229 : vector<8x256xf32>
    %231 = arith.mulf %230, %230 : vector<8x256xf32>
    %cst_111 = arith.constant dense<0.000000e+00> : vector<8xf32>
    %232 = vector.multi_reduction <add>, %231, %cst_111 [1] : vector<8x256xf32> to vector<8xf32>
    %233 = vector.shape_cast %232 : vector<8xf32> to vector<8x1xf32>
    %cst_112 = arith.constant 2.560000e+02 : f32
    %234 = vector.broadcast %cst_112 : f32 to vector<8x1xf32>
    %235 = arith.divf %233, %234 : vector<8x1xf32>
    %236 = vector.broadcast %228 : vector<8x1xf32> to vector<8x256xf32>
    %237 = arith.subf %222, %236 : vector<8x256xf32>
    %cst_113 = arith.constant 9.99999974E-6 : f32
    %238 = vector.broadcast %cst_113 : f32 to vector<8x1xf32>
    %239 = arith.addf %235, %238 : vector<8x1xf32>
    %240 = math.rsqrt %239 : vector<8x1xf32>
    %241 = vector.broadcast %240 : vector<8x1xf32> to vector<8x256xf32>
    %242 = arith.mulf %237, %241 : vector<8x256xf32>
    %243 = vector.broadcast %223 : vector<1x256xf32> to vector<8x256xf32>
    %244 = arith.mulf %242, %243 : vector<8x256xf32>
    %245 = vector.broadcast %224 : vector<1x256xf32> to vector<8x256xf32>
    %246 = arith.addf %244, %245 : vector<8x256xf32>
    %c0_114 = arith.constant 0 : index
    %c0_115 = arith.constant 0 : index
    %c0_116 = arith.constant 0 : index
    %247 = vector.load %arg10[%c0_114, %c0_115, %c0_116] : memref<1x8x256xf32, #tpu.memory_space<vmem>>, vector<1x8x256xf32>
    %248 = vector.shape_cast %247 : vector<1x8x256xf32> to vector<8x256xf32>
    %249 = vector.shape_cast %246 : vector<8x256xf32> to vector<1x8x256xf32>
    tpu.vector_store %arg10[%c0_114, %c0_115, %c0_116], %249 {strides = array<i32>} : memref<1x8x256xf32, #tpu.memory_space<vmem>>, vector<1x8x256xf32>,
    return
  }
  func.func @transform_0(%arg0: i32) -> (i32, i32, i32) {
    %c0_i32 = arith.constant 0 : i32
    %c0_i32_0 = arith.constant 0 : i32
    %c0_i32_1 = arith.constant 0 : i32
    return %arg0, %c0_i32, %c0_i32_0 : i32, i32, i32
  }
  func.func @transform_1(%arg0: i32) -> (i32, i32, i32) {
    %c0_i32 = arith.constant 0 : i32
    %c0_i32_0 = arith.constant 0 : i32
    %c0_i32_1 = arith.constant 0 : i32
    return %arg0, %c0_i32, %c0_i32_0 : i32, i32, i32
  }
  func.func @transform_2(%arg0: i32) -> (i32, i32) {
    %c0_i32 = arith.constant 0 : i32
    %c0_i32_0 = arith.constant 0 : i32
    %c0_i32_1 = arith.constant 0 : i32
    return %c0_i32, %c0_i32_0 : i32, i32
  }
  func.func @transform_3(%arg0: i32) -> (i32, i32, i32) {
    %c0_i32 = arith.constant 0 : i32
    %c0_i32_0 = arith.constant 0 : i32
    %c0_i32_1 = arith.constant 0 : i32
    %c0_i32_2 = arith.constant 0 : i32
    return %c0_i32, %c0_i32_0, %c0_i32_1 : i32, i32, i32
  }
  func.func @transform_4(%arg0: i32) -> (i32, i32) {
    %c0_i32 = arith.constant 0 : i32
    %c0_i32_0 = arith.constant 0 : i32
    %c0_i32_1 = arith.constant 0 : i32
    return %c0_i32, %c0_i32_0 : i32, i32
  }
  func.func @transform_5(%arg0: i32) -> (i32, i32, i32) {
    %c0_i32 = arith.constant 0 : i32
    %c0_i32_0 = arith.constant 0 : i32
    %c0_i32_1 = arith.constant 0 : i32
    %c0_i32_2 = arith.constant 0 : i32
    return %c0_i32, %c0_i32_0, %c0_i32_1 : i32, i32, i32
  }
  func.func @transform_6(%arg0: i32) -> (i32, i32) {
    %c0_i32 = arith.constant 0 : i32
    %c0_i32_0 = arith.constant 0 : i32
    %c0_i32_1 = arith.constant 0 : i32
    return %c0_i32, %c0_i32_0 : i32, i32
  }
  func.func @transform_7(%arg0: i32) -> (i32, i32) {
    %c0_i32 = arith.constant 0 : i32
    %c0_i32_0 = arith.constant 0 : i32
    %c0_i32_1 = arith.constant 0 : i32
    return %c0_i32, %c0_i32_0 : i32, i32
  }
  func.func @transform_8(%arg0: i32) -> (i32, i32) {
    %c0_i32 = arith.constant 0 : i32
    %c0_i32_0 = arith.constant 0 : i32
    %c0_i32_1 = arith.constant 0 : i32
    return %c0_i32, %c0_i32_0 : i32, i32
  }
  func.func @transform_9(%arg0: i32) -> (i32, i32, i32) {
    %c0_i32 = arith.constant 0 : i32
    %c0_i32_0 = arith.constant 0 : i32
    %c0_i32_1 = arith.constant 0 : i32
    return %arg0, %c0_i32, %c0_i32_0 : i32, i32, i32
  }
}

</mosaic_0001>

<llo_original>
// kernel: tpu_custom_call.1
$region0: #{tpu_custom_call.1}
  #allocation0 [shape = 'u32[]', space=smem, size = 0x4, offset = 0x4, fixed_abs, tag = 'smem constant byte address 0x4 - core index']
  #allocation1 [shape = 'u32[144,128]{1,0:T(1,128)}', space=vmem, size = 0x12000, scoped, tag = 'internal scratch']
  %s0 = inlined_call_operand.vmem [shape: f32[2,12,256], index: 0, kind: input, shape index: {}]
  %s1 = inlined_call_operand.vmem [shape: f32[2,4,256], index: 1, kind: input, shape index: {}]
  %s2 = inlined_call_operand.vmem [shape: f32[9,256], index: 2, kind: input, shape index: {}]
  %s3 = inlined_call_operand.hbm [shape: f32[9,12,12], index: 3, kind: input, shape index: {}]
  %s4 = inlined_call_operand.vmem [shape: f32[12,1], index: 4, kind: input, shape index: {}]
  %s5 = inlined_call_operand.hbm [shape: f32[2,256,128], index: 5, kind: input, shape index: {}]
  %s6 = inlined_call_operand.vmem [shape: f32[2,128], index: 6, kind: input, shape index: {}]
  %s7 = inlined_call_operand.vmem [shape: f32[4,128], index: 7, kind: input, shape index: {}]
  %s8 = inlined_call_operand.vmem [shape: f32[6,256], index: 8, kind: input, shape index: {}]
  %s9 = inlined_call_operand.hbm [shape: f32[2,8,256], index: 9, kind: output, shape index: {}]
  %s10 = sld [smem:[#allocation0]]
  $region77: #{tpu_custom_call.1} parent=0
    _
  %s12 = ssub.s32 1, %s10
  %s13 = scalar_select 0, %s12, %s10
  $region1: #{tpu_custom_call.1} parent=0
    #allocation2 [shape = 'u8[73728]{0}', space=vmem, size = 0x12000, scoped, tag = 'input window, operand 3, single buffered']
    #allocation3 [shape = 's32[2]{0}', space=sflag, size = 0x8, scoped, tag = 'scoped memory for tpu_custom_call.1']
    #allocation4 [shape = 's32[2]{0}', space=sflag, size = 0x8, scoped, tag = 'scoped memory for tpu_custom_call.1']
    #allocation5 [shape = 'u8[262144]{0}', space=vmem, size = 0x40000, scoped, tag = 'input window, operand 5, single buffered']
    #allocation6 [shape = 's32[1]{0}', space=sflag, size = 0x4, scoped, tag = 'scoped memory for tpu_custom_call.1']
    #allocation7 [shape = 'u8[16384]{0}', space=vmem, size = 0x4000, scoped, tag = 'output window, operand 0']
    %14 = vsyncpa [#allocation3], 0
    %15 = vsyncpa [#allocation6], 0
    %16 = vsyncpa [#allocation4], 0
    %s17 = scalar_lea.sflag [#allocation4], 1
    %18 = vsyncpa %s17, 0
    loop: start=0, step=1, limit=4
    $region2: #{tpu_custom_call.1} parent=1 // loop_pre_header
      _
    $region3: #{tpu_custom_call.1} parent=1 // loop_header
      %s20 = sphi 0, %s24
      %p21 = scmp.ge.s32.totalorder %s20, 4
      %s30 = sphi 0, %s32
      %s33 = sphi 0, %s30
      %s34 = sphi 0, %s33
      %s50 = sphi 0, %s34
      %s56 = sphi 0, %s58
      %s59 = sphi 0, %s56
      %s60 = sphi 0, %s59
      %s76 = sphi 0, %s60
      %s80 = sphi 0, %s80
      %s82 = sphi 0, %s80
      %s83 = sphi 0, %s82
      %s97 = sphi 0, %s83
      %s101 = sphi 0, %s101
      %s103 = sphi 0, %s101
      %s104 = sphi 0, %s103
      %s118 = sphi 0, %s104
      %s122 = sphi 0, %s122
      %s124 = sphi 0, %s122
      %s125 = sphi 0, %s124
      %s139 = sphi 0, %s125
      %s143 = sphi 0, %s143
      %s145 = sphi 0, %s143
      %s146 = sphi 0, %s145
      %s160 = sphi 0, %s146
      %s164 = sphi 0, %s164
      %s166 = sphi 0, %s164
      %s167 = sphi 0, %s166
      %s181 = sphi 0, %s167
      %s185 = sphi 0, %s185
      %s187 = sphi 0, %s185
      %s188 = sphi 0, %s187
      %s202 = sphi 0, %s188
      %s206 = sphi 0, %s206
      %s208 = sphi 0, %s206
      %s209 = sphi 0, %s208
      %s223 = sphi 0, %s209
      %s229 = sphi 0, %s231
      %s232 = sphi 0, %s229
      %s233 = sphi 0, %s232
      %s249 = sphi 0, %s233
    $region4: #{tpu_custom_call.1} parent=1 // loop_header_branch
      %23 = sbr.rel (%p21) target = $region8
    $region5: #{tpu_custom_call.1} parent=1 // loop_body
      %s25 = ssub.s32 %s20, 1
      %s26 = ssub.s32 %s20, 2
      %s27 = sadd.s32 %s20, 1
      %s28 = ssub.s32 %s20, %s27
      %p29 = scmp.eq.s32.totalorder %s28, 0
      %s31 = sadd.s32 %s30, 1
      %s32 = scalar_select %p29, %s30, %s31
      %p35 = pneg %p29
      %p36 = scmp.eq.s32.totalorder %s20, 1
      %p37 = por %p35, %p36
      %p38 = scmp.ne.s32.totalorder %s30, %s33
      %p39 = scmp.eq.s32.totalorder %s20, 0
      %p40 = por %p38, %p39
      %p41 = scmp.ne.s32.totalorder %s30, %s33
      %p42 = scmp.eq.s32.totalorder %s25, 1
      %p43 = por %p41, %p42
      %p44 = scmp.ne.s32.totalorder %s33, %s34
      %p45 = scmp.eq.s32.totalorder %s25, 0
      %p46 = por %p44, %p45
      %p47 = scmp.ne.s32.totalorder %s33, %s34
      %p48 = scmp.eq.s32.totalorder %s26, 1
      %p49 = por %p47, %p48
      %p51 = scmp.ne.s32.totalorder %s34, %s50
      %p52 = scmp.eq.s32.totalorder %s26, 0
      %p53 = por %p51, %p52
      %s54 = ssub.s32 %s20, %s27
      %p55 = scmp.eq.s32.totalorder %s54, 0
      %s57 = sadd.s32 %s56, 1
      %s58 = scalar_select %p55, %s56, %s57
      %p61 = pneg %p55
      %p62 = scmp.eq.s32.totalorder %s20, 1
      %p63 = por %p61, %p62
      %p64 = scmp.ne.s32.totalorder %s56, %s59
      %p65 = scmp.eq.s32.totalorder %s20, 0
      %p66 = por %p64, %p65
      %p67 = scmp.ne.s32.totalorder %s56, %s59
      %p68 = scmp.eq.s32.totalorder %s25, 1
      %p69 = por %p67, %p68
      %p70 = scmp.ne.s32.totalorder %s59, %s60
      %p71 = scmp.eq.s32.totalorder %s25, 0
      %p72 = por %p70, %p71
      %p73 = scmp.ne.s32.totalorder %s59, %s60
      %p74 = scmp.eq.s32.totalorder %s26, 1
      %p75 = por %p73, %p74
      %p77 = scmp.ne.s32.totalorder %s60, %s76
      %p78 = scmp.eq.s32.totalorder %s26, 0
      %p79 = por %p77, %p78
      %s81 = sadd.s32 %s80, 1
      %p84 = scmp.eq.s32.totalorder %s20, 1
      %p85 = scmp.ne.s32.totalorder %s80, %s82
      %p86 = scmp.eq.s32.totalorder %s20, 0
      %p87 = por %p85, %p86
      %p88 = scmp.ne.s32.totalorder %s80, %s82
      %p89 = scmp.eq.s32.totalorder %s25, 1
      %p90 = por %p88, %p89
      %p91 = scmp.ne.s32.totalorder %s82, %s83
      %p92 = scmp.eq.s32.totalorder %s25, 0
      %p93 = por %p91, %p92
      %p94 = scmp.ne.s32.totalorder %s82, %s83
      %p95 = scmp.eq.s32.totalorder %s26, 1
      %p96 = por %p94, %p95
      %p98 = scmp.ne.s32.totalorder %s83, %s97
      %p99 = scmp.eq.s32.totalorder %s26, 0
      %p100 = por %p98, %p99
      %s102 = sadd.s32 %s101, 1
      %p105 = scmp.eq.s32.totalorder %s20, 1
      %p106 = scmp.ne.s32.totalorder %s101, %s103
      %p107 = scmp.eq.s32.totalorder %s20, 0
      %p108 = por %p106, %p107
      %p109 = scmp.ne.s32.totalorder %s101, %s103
      %p110 = scmp.eq.s32.totalorder %s25, 1
      %p111 = por %p109, %p110
      %p112 = scmp.ne.s32.totalorder %s103, %s104
      %p113 = scmp.eq.s32.totalorder %s25, 0
      %p114 = por %p112, %p113
      %p115 = scmp.ne.s32.totalorder %s103, %s104
      %p116 = scmp.eq.s32.totalorder %s26, 1
      %p117 = por %p115, %p116
      %p119 = scmp.ne.s32.totalorder %s104, %s118
      %p120 = scmp.eq.s32.totalorder %s26, 0
      %p121 = por %p119, %p120
      %s123 = sadd.s32 %s122, 1
      %p126 = scmp.eq.s32.totalorder %s20, 1
      %p127 = scmp.ne.s32.totalorder %s122, %s124
      %p128 = scmp.eq.s32.totalorder %s20, 0
      %p129 = por %p127, %p128
      %p130 = scmp.ne.s32.totalorder %s122, %s124
      %p131 = scmp.eq.s32.totalorder %s25, 1
      %p132 = por %p130, %p131
      %p133 = scmp.ne.s32.totalorder %s124, %s125
      %p134 = scmp.eq.s32.totalorder %s25, 0
      %p135 = por %p133, %p134
      %p136 = scmp.ne.s32.totalorder %s124, %s125
      %p137 = scmp.eq.s32.totalorder %s26, 1
      %p138 = por %p136, %p137
      %p140 = scmp.ne.s32.totalorder %s125, %s139
      %p141 = scmp.eq.s32.totalorder %s26, 0
      %p142 = por %p140, %p141
      %s144 = sadd.s32 %s143, 1
      %p147 = scmp.eq.s32.totalorder %s20, 1
      %p148 = scmp.ne.s32.totalorder %s143, %s145
      %p149 = scmp.eq.s32.totalorder %s20, 0
      %p150 = por %p148, %p149
      %p151 = scmp.ne.s32.totalorder %s143, %s145
      %p152 = scmp.eq.s32.totalorder %s25, 1
      %p153 = por %p151, %p152
      %p154 = scmp.ne.s32.totalorder %s145, %s146
      %p155 = scmp.eq.s32.totalorder %s25, 0
      %p156 = por %p154, %p155
      %p157 = scmp.ne.s32.totalorder %s145, %s146
      %p158 = scmp.eq.s32.totalorder %s26, 1
      %p159 = por %p157, %p158
      %p161 = scmp.ne.s32.totalorder %s146, %s160
      %p162 = scmp.eq.s32.totalorder %s26, 0
      %p163 = por %p161, %p162
      %s165 = sadd.s32 %s164, 1
      %p168 = scmp.eq.s32.totalorder %s20, 1
      %p169 = scmp.ne.s32.totalorder %s164, %s166
      %p170 = scmp.eq.s32.totalorder %s20, 0
      %p171 = por %p169, %p170
      %p172 = scmp.ne.s32.totalorder %s164, %s166
      %p173 = scmp.eq.s32.totalorder %s25, 1
      %p174 = por %p172, %p173
      %p175 = scmp.ne.s32.totalorder %s166, %s167
      %p176 = scmp.eq.s32.totalorder %s25, 0
      %p177 = por %p175, %p176
      %p178 = scmp.ne.s32.totalorder %s166, %s167
      %p179 = scmp.eq.s32.totalorder %s26, 1
      %p180 = por %p178, %p179
      %p182 = scmp.ne.s32.totalorder %s167, %s181
      %p183 = scmp.eq.s32.totalorder %s26, 0
      %p184 = por %p182, %p183
      %s186 = sadd.s32 %s185, 1
      %p189 = scmp.eq.s32.totalorder %s20, 1
      %p190 = scmp.ne.s32.totalorder %s185, %s187
      %p191 = scmp.eq.s32.totalorder %s20, 0
      %p192 = por %p190, %p191
      %p193 = scmp.ne.s32.totalorder %s185, %s187
      %p194 = scmp.eq.s32.totalorder %s25, 1
      %p195 = por %p193, %p194
      %p196 = scmp.ne.s32.totalorder %s187, %s188
      %p197 = scmp.eq.s32.totalorder %s25, 0
      %p198 = por %p196, %p197
      %p199 = scmp.ne.s32.totalorder %s187, %s188
      %p200 = scmp.eq.s32.totalorder %s26, 1
      %p201 = por %p199, %p200
      %p203 = scmp.ne.s32.totalorder %s188, %s202
      %p204 = scmp.eq.s32.totalorder %s26, 0
      %p205 = por %p203, %p204
      %s207 = sadd.s32 %s206, 1
      %p210 = scmp.eq.s32.totalorder %s20, 1
      %p211 = scmp.ne.s32.totalorder %s206, %s208
      %p212 = scmp.eq.s32.totalorder %s20, 0
      %p213 = por %p211, %p212
      %p214 = scmp.ne.s32.totalorder %s206, %s208
      %p215 = scmp.eq.s32.totalorder %s25, 1
      %p216 = por %p214, %p215
      %p217 = scmp.ne.s32.totalorder %s208, %s209
      %p218 = scmp.eq.s32.totalorder %s25, 0
      %p219 = por %p217, %p218
      %p220 = scmp.ne.s32.totalorder %s208, %s209
      %p221 = scmp.eq.s32.totalorder %s26, 1
      %p222 = por %p220, %p221
      %p224 = scmp.ne.s32.totalorder %s209, %s223
      %p225 = scmp.eq.s32.totalorder %s26, 0
      %p226 = por %p224, %p225
      %s227 = ssub.s32 %s20, %s27
      %p228 = scmp.eq.s32.totalorder %s227, 0
      %s230 = sadd.s32 %s229, 1
      %s231 = scalar_select %p228, %s229, %s230
      %p234 = pneg %p228
      %p235 = scmp.eq.s32.totalorder %s20, 1
      %p236 = por %p234, %p235
      %p237 = scmp.ne.s32.totalorder %s229, %s232
      %p238 = scmp.eq.s32.totalorder %s20, 0
      %p239 = por %p237, %p238
      %p240 = scmp.ne.s32.totalorder %s229, %s232
      %p241 = scmp.eq.s32.totalorder %s25, 1
      %p242 = por %p240, %p241
      %p243 = scmp.ne.s32.totalorder %s232, %s233
      %p244 = scmp.eq.s32.totalorder %s25, 0
      %p245 = por %p243, %p244
      %p246 = scmp.ne.s32.totalorder %s232, %s233
      %p247 = scmp.eq.s32.totalorder %s26, 1
      %p248 = por %p246, %p247
      %p250 = scmp.ne.s32.totalorder %s233, %s249
      %p251 = scmp.eq.s32.totalorder %s26, 0
      %p252 = por %p250, %p251
      %p253 = scmp.le.s32.totalorder 1, %s20
      %p254 = scmp.lt.s32.totalorder %s20, 3
      %p255 = pnand %p253, %p254
      %p256 = pneg %p255
      // Predicated region
      $region9: #{tpu_custom_call.1} parent=5 // pred_check
        _
      $region10: #{tpu_custom_call.1} parent=5 // pred_check_branch
        %258 = sbr.rel (%p255) target = $region12
      $region11: #{tpu_custom_call.1} parent=5 // pred_region
        %s259 = ssub.s32 %s20, 1
        // Predicated region
        $region13: #{tpu_custom_call.1} parent=11 // pred_check
          %p260 = pneg %p93
        $region14: #{tpu_custom_call.1} parent=11 // pred_check_branch
          %262 = sbr.rel (%p260) target = $region16
        $region15: #{tpu_custom_call.1} parent=11 // pred_region
          _
        $region16: #{tpu_custom_call.1} parent=11 // pred_fallthru
          _
        // Predicated region
        $region17: #{tpu_custom_call.1} parent=11 // pred_check
          %p263 = pneg %p114
        $region18: #{tpu_custom_call.1} parent=11 // pred_check_branch
          %265 = sbr.rel (%p263) target = $region20
        $region19: #{tpu_custom_call.1} parent=11 // pred_region
          %s267 = ssub.s32 2304, 2304
          %268 = vsyncadd [#allocation3], %s267
          %s269 = sshll.u32 [#allocation2], 4
          %s270 = int_to_ptr.vmem [resolvable:$true] %s269
          %275 = dma.hbm_to_vmem [thread:$0]  %s3, 2304, %s270, [#allocation3], 128, 128, 8
        $region20: #{tpu_custom_call.1} parent=11 // pred_fallthru
          _
        // Predicated region
        $region21: #{tpu_custom_call.1} parent=11 // pred_check
          %p276 = pneg %p135
        $region22: #{tpu_custom_call.1} parent=11 // pred_check_branch
          %278 = sbr.rel (%p276) target = $region24
        $region23: #{tpu_custom_call.1} parent=11 // pred_region
          _
        $region24: #{tpu_custom_call.1} parent=11 // pred_fallthru
          _
        // Predicated region
        $region25: #{tpu_custom_call.1} parent=11 // pred_check
          %p279 = pneg %p156
        $region26: #{tpu_custom_call.1} parent=11 // pred_check_branch
          %281 = sbr.rel (%p279) target = $region28
        $region27: #{tpu_custom_call.1} parent=11 // pred_region
          %s283 = ssub.s32 8192, 8192
          %284 = vsyncadd [#allocation6], %s283
          %s285 = sshll.u32 [#allocation5], 4
          %s286 = int_to_ptr.vmem [resolvable:$true] %s285
          %291 = dma.hbm_to_vmem [thread:$0]  %s5, 8192, %s286, [#allocation6], 128, 128, 8
        $region28: #{tpu_custom_call.1} parent=11 // pred_fallthru
          _
        // Predicated region
        $region29: #{tpu_custom_call.1} parent=11 // pred_check
          %p292 = pneg %p177
        $region30: #{tpu_custom_call.1} parent=11 // pred_check_branch
          %294 = sbr.rel (%p292) target = $region32
        $region31: #{tpu_custom_call.1} parent=11 // pred_region
          _
        $region32: #{tpu_custom_call.1} parent=11 // pred_fallthru
          _
        // Predicated region
        $region33: #{tpu_custom_call.1} parent=11 // pred_check
          %p295 = pneg %p198
        $region34: #{tpu_custom_call.1} parent=11 // pred_check_branch
          %297 = sbr.rel (%p295) target = $region36
        $region35: #{tpu_custom_call.1} parent=11 // pred_region
          _
        $region36: #{tpu_custom_call.1} parent=11 // pred_fallthru
          _
        // Predicated region
        $region37: #{tpu_custom_call.1} parent=11 // pred_check
          %p298 = pneg %p219
        $region38: #{tpu_custom_call.1} parent=11 // pred_check_branch
          %300 = sbr.rel (%p298) target = $region40
        $region39: #{tpu_custom_call.1} parent=11 // pred_region
          _
        $region40: #{tpu_custom_call.1} parent=11 // pred_fallthru
          _
      $region12: #{tpu_custom_call.1} parent=5 // pred_fallthru
        _
      %p301 = scmp.lt.s32.totalorder %s20, 2
      // Predicated region
      $region41: #{tpu_custom_call.1} parent=5 // pred_check
        %p302 = pneg %p301
      $region42: #{tpu_custom_call.1} parent=5 // pred_check_branch
        %304 = sbr.rel (%p302) target = $region44
      $region43: #{tpu_custom_call.1} parent=5 // pred_region
        // Predicated region
        $region45: #{tpu_custom_call.1} parent=43 // pred_check
          %p305 = pneg %p40
        $region46: #{tpu_custom_call.1} parent=43 // pred_check_branch
          %307 = sbr.rel (%p305) target = $region48
        $region47: #{tpu_custom_call.1} parent=43 // pred_region
          %p308 = scmp.lt.s32.totalorder %s20, 1
          %s309 = scalar_select %p308, %s20, 1
          %s310 = smul.addr %s309, 4
          %s311 = smul.addr %s310, 8
          %s312 = scalar_lea.vmem %s0, %s311
        $region48: #{tpu_custom_call.1} parent=43 // pred_fallthru
          _
        // Predicated region
        $region49: #{tpu_custom_call.1} parent=43 // pred_check
          %p313 = pneg %p66
        $region50: #{tpu_custom_call.1} parent=43 // pred_check_branch
          %315 = sbr.rel (%p313) target = $region52
        $region51: #{tpu_custom_call.1} parent=43 // pred_region
          %p316 = scmp.lt.s32.totalorder %s20, 1
          %s317 = scalar_select %p316, %s20, 1
          %s318 = smul.addr %s317, 2
          %s319 = smul.addr %s318, 4
          %s320 = scalar_lea.vmem %s1, %s319
        $region52: #{tpu_custom_call.1} parent=43 // pred_fallthru
          _
      $region44: #{tpu_custom_call.1} parent=5 // pred_fallthru
        _
      %p321 = scmp.le.s32.totalorder 1, %s20
      %p322 = scmp.lt.s32.totalorder %s20, 3
      %p323 = pnand %p321, %p322
      %p324 = pneg %p323
      // Predicated region
      $region53: #{tpu_custom_call.1} parent=5 // pred_check
        _
      $region54: #{tpu_custom_call.1} parent=5 // pred_check_branch
        %326 = sbr.rel (%p323) target = $region56
      $region55: #{tpu_custom_call.1} parent=5 // pred_region
        %s327 = ssub.s32 %s20, 1
        // Predicated region
        $region57: #{tpu_custom_call.1} parent=55 // pred_check
          %p328 = pneg %p114
        $region58: #{tpu_custom_call.1} parent=55 // pred_check_branch
          %330 = sbr.rel (%p328) target = $region60
        $region59: #{tpu_custom_call.1} parent=55 // pred_region
          %331 = dma.done [#allocation3], 2304
        $region60: #{tpu_custom_call.1} parent=55 // pred_fallthru
          _
        // Predicated region
        $region61: #{tpu_custom_call.1} parent=55 // pred_check
          %p332 = pneg %p156
        $region62: #{tpu_custom_call.1} parent=55 // pred_check_branch
          %334 = sbr.rel (%p332) target = $region64
        $region63: #{tpu_custom_call.1} parent=55 // pred_region
          %335 = dma.done [#allocation6], 8192
        $region64: #{tpu_custom_call.1} parent=55 // pred_fallthru
          _
        %p336 = scmp.lt.s32.totalorder %s25, 1
        %s337 = scalar_select %p336, %s25, 1
        %s338 = smul.addr %s337, 4
        %s339 = smul.addr %s338, 8
        %s340 = scalar_lea.vmem %s0, %s339
        %p341 = pneg %p46
        %p342 = pneg %p43
        %p343 = scmp.lt.s32.totalorder %s25, 1
        %s344 = scalar_select %p343, %s25, 1
        %s345 = smul.addr %s344, 2
        %s346 = smul.addr %s345, 4
        %s347 = scalar_lea.vmem %s1, %s346
        %p348 = pneg %p72
        %p349 = pneg %p69
        %p350 = pneg %p93
        %p351 = pneg %p90
        %p352 = pneg %p114
        %p353 = pneg %p111
        %p354 = pneg %p135
        %p355 = pneg %p132
        %p356 = pneg %p156
        %p357 = pneg %p153
        %p358 = pneg %p177
        %p359 = pneg %p174
        %p360 = pneg %p198
        %p361 = pneg %p195
        %p362 = pneg %p219
        %p363 = pneg %p216
        %p364 = pneg %p245
        %p365 = pneg %p242
        %s366 = sand.u32 %s232, 1
        %s367 = scalar_lea.sflag [#allocation4], %s366
        %s368 = sand.u32 %s232, 1
        %s369 = smul.addr %s368, 16
        %s370 = scalar_lea.vmem [#allocation7], %s369
        %p371 = scmp.lt.s32.totalorder %s25, 1
        %s372 = scalar_select %p371, %s25, 1
        %s373 = smul.addr %s372, 4
        %s374 = smul.addr %s373, 8
        %s375 = scalar_lea.vmem %s0, %s374
        %p376 = scmp.lt.s32.totalorder %s25, 1
        %s377 = scalar_select %p376, %s25, 1
        %s378 = smul.addr %s377, 2
        %s379 = smul.addr %s378, 4
        %s380 = scalar_lea.vmem %s1, %s379
        %v381 = vld [vmem:[%s375] sm:$0xff]
        %v382 = vld [vmem:[%s375 + $0x8] sm:$0xff]
        %v383 = vld [vmem:[%s375 + $0x10] sm:$0xf]
        %v384 = vld [vmem:[%s375 + $0x18] sm:$0xf]
        %387 = vrot.lane.b32.xlu0 %v382, 17
        %v388 = vpop.permute.xlu0 %387
        %389 = vrot.lane.b32.xlu0 %v384, 17
        %v390 = vpop.permute.xlu0 %389
        %395 = vrot.lane.b32.xlu0 %v381, 17
        %v396 = vpop.permute.xlu0 %395
        %397 = vrot.lane.b32.xlu0 %v383, 17
        %v398 = vpop.permute.xlu0 %397
        %vm399 = vcmask 138240
        %v400 = vsel %vm399, %v396, %v388
        %v401 = vsel %vm399, %v398, %v390
        %v406 = vsel %vm399, %v388, %v396
        %v407 = vsel %vm399, %v390, %v398
        %v408 = vld [vmem:[%s2] ss:$8 sm:$0x3]
        %v410 = vlaneseq
        %v411 = vshrl.u32 %v410, 7
        %v412 = vsub.s32 0, %v411
        %v413 = vrot.slane %v408, %v412
        %v414 = vlaneseq
        %v415 = vshrl.u32 %v414, 7
        %v416 = vsub.s32 1, %v415
        %v417 = vrot.slane %v408, %v416
        %v420 = vmul.f32 %v406, %v413
        %v421 = vmul.f32 %v400, %v417
        %v422 = vmul.f32 %v407, %v413
        %v423 = vmul.f32 %v401, %v417
        %v424 = vld [vmem:[#allocation2] sm:$0xff]
        %v425 = vld [vmem:[#allocation2 + $0x8] sm:$0xf]
        %426 = vrot.lane.b32.xlu0 %v382, 16
        %v427 = vpop.permute.xlu0 %426
        %428 = vrot.lane.b32.xlu0 %v384, 16
        %v429 = vpop.permute.xlu0 %428
        %432 = vrot.lane.b32.xlu0 %v381, 16
        %v433 = vpop.permute.xlu0 %432
        %434 = vrot.lane.b32.xlu0 %v383, 16
        %v435 = vpop.permute.xlu0 %434
        %vm436 = vcmask 130048
        %v437 = vsel %vm436, %v433, %v427
        %v438 = vsel %vm436, %v435, %v429
        %v443 = vsel %vm436, %v427, %v433
        %v444 = vsel %vm436, %v429, %v435
        %s445 = scalar_lea.vmem %s2, 1
        %v446 = vld [vmem:[%s445] ss:$8 sm:$0x3]
        %v448 = vlaneseq
        %v449 = vshrl.u32 %v448, 7
        %v450 = vsub.s32 0, %v449
        %v451 = vrot.slane %v446, %v450
        %v452 = vlaneseq
        %v453 = vshrl.u32 %v452, 7
        %v454 = vsub.s32 1, %v453
        %v455 = vrot.slane %v446, %v454
        %v458 = vmul.f32 %v443, %v451
        %v459 = vmul.f32 %v437, %v455
        %v460 = vmul.f32 %v444, %v451
        %v461 = vmul.f32 %v438, %v455
        %s462 = scalar_lea.vmem [#allocation2], 16
        %v463 = vld [vmem:[%s462] sm:$0xff]
        %v464 = vld [vmem:[%s462 + $0x8] sm:$0xf]
        %vm465 = vcmask 97280
        %v467 = vsel %vm465, %v463, 0
        %v470 = vsel %vm465, %v464, 0
        %vm472 = vcmask 1043456
        %v474 = vsel %vm472, %v460, 0
        %v477 = vsel %vm472, %v461, 0
        %v479 = vand.u32 %v459, 4294901760
        %480 = vmatprep.subr.mxu0 %v479
        %v481 = vand.u32 %v458, 4294901760
        %482 = vmatpush1.msra.mxu0 %v481
        %v483 = vand.u32 %v477, 4294901760
        %484 = vmatprep.subr.mxu0 %v483
        %v485 = vand.u32 %v474, 4294901760
        %486 = vmatpush1.msra.mxu0 %v485
        %487 = vmatprep.subr.mxu0 0.0
        %488 = vmatpush1.msra.mxu0 0.0
        %489 = vmatprep.subr.mxu0 0.0
        %490 = vmatpush1.msra.mxu0 0.0
        %491 = vmatprep.subr.mxu0 0.0
        %492 = vmatpush1.msra.mxu0 0.0
        %493 = vmatprep.subr.mxu0 0.0
        %494 = vmatpush1.msra.mxu0 0.0
        %495 = vmatprep.subr.mxu0 0.0
        %496 = vmatpush1.msra.mxu0 0.0
        %497 = vmatprep.subr.mxu0 0.0
        %498 = vmatpush1.msra.mxu0 0.0
        %499 = vmatprep.subr.mxu0 0.0
        %500 = vmatpush1.msra.mxu0 0.0
        %501 = vmatprep.subr.mxu0 0.0
        %502 = vmatpush1.msra.mxu0 0.0
        %503 = vmatprep.subr.mxu0 0.0
        %504 = vmatpush1.msra.mxu0 0.0
        %505 = vmatprep.subr.mxu0 0.0
        %506 = vmatpush1.msra.mxu0 0.0
        %507 = vmatprep.subr.mxu0 0.0
        %508 = vmatpush1.msra.mxu0 0.0
        %509 = vmatprep.subr.mxu0 0.0
        %510 = vmatpush1.msra.mxu0 0.0
        %511 = vmatprep.subr.mxu0 0.0
        %512 = vmatpush1.msra.mxu0 0.0
        %513 = vmatprep.subr.mxu0 0.0
        %514 = vmatpush1.msra.mxu0 0.0
        %515 = vmatprep.subr.mxu0 0.0
        %516 = vmatpush1.msra.mxu0 0.0
        %517 = vmatprep.subr.mxu0 0.0
        %518 = vmatpush1.msra.mxu0 0.0
        %519 = vmatprep.subr.mxu0 0.0
        %520 = vmatpush1.msra.mxu0 0.0
        %521 = vmatprep.subr.mxu0 0.0
        %522 = vmatpush1.msra.mxu0 0.0
        %523 = vmatprep.subr.mxu0 0.0
        %524 = vmatpush1.msra.mxu0 0.0
        %525 = vmatprep.subr.mxu0 0.0
        %526 = vmatpush1.msra.mxu0 0.0
        %527 = vmatprep.subr.mxu0 0.0
        %528 = vmatpush1.msra.mxu0 0.0
        %529 = vmatprep.subr.mxu0 0.0
        %530 = vmatpush1.msra.mxu0 0.0
        %531 = vmatprep.subr.mxu0 0.0
        %532 = vmatpush1.msra.mxu0 0.0
        %533 = vmatprep.subr.mxu0 0.0
        %534 = vmatpush1.msra.mxu0 0.0
        %535 = vmatprep.subr.mxu0 0.0
        %536 = vmatpush1.msra.mxu0 0.0
        %537 = vmatprep.subr.mxu0 0.0
        %538 = vmatpush1.msra.mxu0 0.0
        %539 = vmatprep.subr.mxu0 0.0
        %540 = vmatpush1.msra.mxu0 0.0
        %541 = vmatprep.subr.mxu0 0.0
        %542 = vmatpush1.msra.mxu0 0.0
        %543 = vmatprep.subr.mxu0 0.0
        %544 = vmatpush1.msra.mxu0 0.0
        %545 = vmatprep.subr.mxu0 0.0
        %546 = vmatpush1.msra.mxu0 0.0
        %547 = vmatprep.mubr.f32.mxu0 0.0
        %v548 = vand.u32 %v467, 4294901760
        %v549 = vsub.f32 %v467, %v548
        %v550 = vand.u32 %v549, 4294901760
        %v551 = vsub.f32 %v549, %v550
        %v552 = vand.u32 %v551, 4294901760
        %553 = vmatmul.mubr.f32.gmra.mrb[0].mxu0 %v552
        %v554 = vpop.f32.mrb[0].mxu0
        %v555 = vadd.f32 0.0, %v554
        %v556 = vpop.f32.mrb[0].mxu0
        %v557 = vadd.f32 0.0, %v556
        %558 = vmatprep.mubr.f32.mxu0 0.0
        %v559 = vand.u32 %v470, 4294901760
        %v560 = vsub.f32 %v470, %v559
        %v561 = vand.u32 %v560, 4294901760
        %v562 = vsub.f32 %v560, %v561
        %v563 = vand.u32 %v562, 4294901760
        %564 = vmatmul.mubr.f32.gmra.mrb[0].mxu0 %v563
        %v565 = vpop.f32.mrb[0].mxu0
        %v566 = vadd.f32 0.0, %v565
        %v567 = vpop.f32.mrb[0].mxu0
        %v568 = vadd.f32 0.0, %v567
        %569 = vdwg.mxu0
        %v570 = vand.u32 %v459, 4294901760
        %v571 = vsub.f32 %v459, %v570
        %v572 = vand.u32 %v571, 4294901760
        %v573 = vsub.f32 %v571, %v572
        %v574 = vand.u32 %v573, 4294901760
        %575 = vmatprep.subr.mxu0 %v574
        %v576 = vand.u32 %v458, 4294901760
        %v577 = vsub.f32 %v458, %v576
        %v578 = vand.u32 %v577, 4294901760
        %v579 = vsub.f32 %v577, %v578
        %v580 = vand.u32 %v579, 4294901760
        %581 = vmatpush1.msra.mxu0 %v580
        %v582 = vand.u32 %v477, 4294901760
        %v583 = vsub.f32 %v477, %v582
        %v584 = vand.u32 %v583, 4294901760
        %v585 = vsub.f32 %v583, %v584
        %v586 = vand.u32 %v585, 4294901760
        %587 = vmatprep.subr.mxu0 %v586
        %v588 = vand.u32 %v474, 4294901760
        %v589 = vsub.f32 %v474, %v588
        %v590 = vand.u32 %v589, 4294901760
        %v591 = vsub.f32 %v589, %v590
        %v592 = vand.u32 %v591, 4294901760
        %593 = vmatpush1.msra.mxu0 %v592
        %594 = vmatprep.subr.mxu0 0.0
        %595 = vmatpush1.msra.mxu0 0.0
        %596 = vmatprep.subr.mxu0 0.0
        %597 = vmatpush1.msra.mxu0 0.0
        %598 = vmatprep.subr.mxu0 0.0
        %599 = vmatpush1.msra.mxu0 0.0
        %600 = vmatprep.subr.mxu0 0.0
        %601 = vmatpush1.msra.mxu0 0.0
        %602 = vmatprep.subr.mxu0 0.0
        %603 = vmatpush1.msra.mxu0 0.0
        %604 = vmatprep.subr.mxu0 0.0
        %605 = vmatpush1.msra.mxu0 0.0
        %606 = vmatprep.subr.mxu0 0.0
        %607 = vmatpush1.msra.mxu0 0.0
        %608 = vmatprep.subr.mxu0 0.0
        %609 = vmatpush1.msra.mxu0 0.0
        %610 = vmatprep.subr.mxu0 0.0
        %611 = vmatpush1.msra.mxu0 0.0
        %612 = vmatprep.subr.mxu0 0.0
        %613 = vmatpush1.msra.mxu0 0.0
        %614 = vmatprep.subr.mxu0 0.0
        %615 = vmatpush1.msra.mxu0 0.0
        %616 = vmatprep.subr.mxu0 0.0
        %617 = vmatpush1.msra.mxu0 0.0
        %618 = vmatprep.subr.mxu0 0.0
        %619 = vmatpush1.msra.mxu0 0.0
        %620 = vmatprep.subr.mxu0 0.0
        %621 = vmatpush1.msra.mxu0 0.0
        %622 = vmatprep.subr.mxu0 0.0
        %623 = vmatpush1.msra.mxu0 0.0
        %624 = vmatprep.subr.mxu0 0.0
        %625 = vmatpush1.msra.mxu0 0.0
        %626 = vmatprep.subr.mxu0 0.0
        %627 = vmatpush1.msra.mxu0 0.0
        %628 = vmatprep.subr.mxu0 0.0
        %629 = vmatpush1.msra.mxu0 0.0
        %630 = vmatprep.subr.mxu0 0.0
        %631 = vmatpush1.msra.mxu0 0.0
        %632 = vmatprep.subr.mxu0 0.0
        %633 = vmatpush1.msra.mxu0 0.0
        %634 = vmatprep.subr.mxu0 0.0
        %635 = vmatpush1.msra.mxu0 0.0
        %636 = vmatprep.subr.mxu0 0.0
        %637 = vmatpush1.msra.mxu0 0.0
        %638 = vmatprep.subr.mxu0 0.0
        %639 = vmatpush1.msra.mxu0 0.0
        %640 = vmatprep.subr.mxu0 0.0
        %641 = vmatpush1.msra.mxu0 0.0
        %642 = vmatprep.subr.mxu0 0.0
        %643 = vmatpush1.msra.mxu0 0.0
        %644 = vmatprep.subr.mxu0 0.0
        %645 = vmatpush1.msra.mxu0 0.0
        %646 = vmatprep.subr.mxu0 0.0
        %647 = vmatpush1.msra.mxu0 0.0
        %648 = vmatprep.subr.mxu0 0.0
        %649 = vmatpush1.msra.mxu0 0.0
        %650 = vmatprep.subr.mxu0 0.0
        %651 = vmatpush1.msra.mxu0 0.0
        %652 = vmatprep.subr.mxu0 0.0
        %653 = vmatpush1.msra.mxu0 0.0
        %654 = vmatprep.mubr.f32.mxu0 0.0
        %v655 = vand.u32 %v467, 4294901760
        %656 = vmatmul.mubr.f32.gmra.mrb[0].mxu0 %v655
        %v657 = vpop.f32.mrb[0].mxu0
        %v658 = vadd.f32 %v555, %v657
        %v659 = vpop.f32.mrb[0].mxu0
        %v660 = vadd.f32 %v557, %v659
        %661 = vmatprep.mubr.f32.mxu0 0.0
        %v662 = vand.u32 %v470, 4294901760
        %663 = vmatmul.mubr.f32.gmra.mrb[0].mxu0 %v662
        %v664 = vpop.f32.mrb[0].mxu0
        %v665 = vadd.f32 %v566, %v664
        %v666 = vpop.f32.mrb[0].mxu0
        %v667 = vadd.f32 %v568, %v666
        %668 = vdwg.mxu0
        %v669 = vand.u32 %v459, 4294901760
        %v670 = vsub.f32 %v459, %v669
        %671 = vmatprep.subr.mxu0 %v670
        %v672 = vand.u32 %v458, 4294901760
        %v673 = vsub.f32 %v458, %v672
        %674 = vmatpush1.msra.mxu0 %v673
        %v675 = vand.u32 %v477, 4294901760
        %v676 = vsub.f32 %v477, %v675
        %677 = vmatprep.subr.mxu0 %v676
        %v678 = vand.u32 %v474, 4294901760
        %v679 = vsub.f32 %v474, %v678
        %680 = vmatpush1.msra.mxu0 %v679
        %681 = vmatprep.subr.mxu0 0.0
        %682 = vmatpush1.msra.mxu0 0.0
        %683 = vmatprep.subr.mxu0 0.0
        %684 = vmatpush1.msra.mxu0 0.0
        %685 = vmatprep.subr.mxu0 0.0
        %686 = vmatpush1.msra.mxu0 0.0
        %687 = vmatprep.subr.mxu0 0.0
        %688 = vmatpush1.msra.mxu0 0.0
        %689 = vmatprep.subr.mxu0 0.0
        %690 = vmatpush1.msra.mxu0 0.0
        %691 = vmatprep.subr.mxu0 0.0
        %692 = vmatpush1.msra.mxu0 0.0
        %693 = vmatprep.subr.mxu0 0.0
        %694 = vmatpush1.msra.mxu0 0.0
        %695 = vmatprep.subr.mxu0 0.0
        %696 = vmatpush1.msra.mxu0 0.0
        %697 = vmatprep.subr.mxu0 0.0
        %698 = vmatpush1.msra.mxu0 0.0
        %699 = vmatprep.subr.mxu0 0.0
        %700 = vmatpush1.msra.mxu0 0.0
        %701 = vmatprep.subr.mxu0 0.0
        %702 = vmatpush1.msra.mxu0 0.0
        %703 = vmatprep.subr.mxu0 0.0
        %704 = vmatpush1.msra.mxu0 0.0
        %705 = vmatprep.subr.mxu0 0.0
        %706 = vmatpush1.msra.mxu0 0.0
        %707 = vmatprep.subr.mxu0 0.0
        %708 = vmatpush1.msra.mxu0 0.0
        %709 = vmatprep.subr.mxu0 0.0
        %710 = vmatpush1.msra.mxu0 0.0
        %711 = vmatprep.subr.mxu0 0.0
        %712 = vmatpush1.msra.mxu0 0.0
        %713 = vmatprep.subr.mxu0 0.0
        %714 = vmatpush1.msra.mxu0 0.0
        %715 = vmatprep.subr.mxu0 0.0
        %716 = vmatpush1.msra.mxu0 0.0
        %717 = vmatprep.subr.mxu0 0.0
        %718 = vmatpush1.msra.mxu0 0.0
        %719 = vmatprep.subr.mxu0 0.0
        %720 = vmatpush1.msra.mxu0 0.0
        %721 = vmatprep.subr.mxu0 0.0
        %722 = vmatpush1.msra.mxu0 0.0
        %723 = vmatprep.subr.mxu0 0.0
        %724 = vmatpush1.msra.mxu0 0.0
        %725 = vmatprep.subr.mxu0 0.0
        %726 = vmatpush1.msra.mxu0 0.0
        %727 = vmatprep.subr.mxu0 0.0
        %728 = vmatpush1.msra.mxu0 0.0
        %729 = vmatprep.subr.mxu0 0.0
        %730 = vmatpush1.msra.mxu0 0.0
        %731 = vmatprep.subr.mxu0 0.0
        %732 = vmatpush1.msra.mxu0 0.0
        %733 = vmatprep.subr.mxu0 0.0
        %734 = vmatpush1.msra.mxu0 0.0
        %735 = vmatprep.subr.mxu0 0.0
        %736 = vmatpush1.msra.mxu0 0.0
        %737 = vmatprep.subr.mxu0 0.0
        %738 = vmatpush1.msra.mxu0 0.0
        %739 = vmatprep.subr.mxu0 0.0
        %740 = vmatpush1.msra.mxu0 0.0
        %741 = vmatprep.mubr.f32.mxu0 0.0
        %v742 = vand.u32 %v467, 4294901760
        %v743 = vsub.f32 %v467, %v742
        %744 = vmatmul.mubr.f32.gmra.mrb[0].mxu0 %v743
        %v745 = vpop.f32.mrb[0].mxu0
        %v746 = vadd.f32 %v658, %v745
        %v747 = vpop.f32.mrb[0].mxu0
        %v748 = vadd.f32 %v660, %v747
        %749 = vmatprep.mubr.f32.mxu0 0.0
        %v750 = vand.u32 %v470, 4294901760
        %v751 = vsub.f32 %v470, %v750
        %752 = vmatmul.mubr.f32.gmra.mrb[0].mxu0 %v751
        %v753 = vpop.f32.mrb[0].mxu0
        %v754 = vadd.f32 %v665, %v753
        %v755 = vpop.f32.mrb[0].mxu0
        %v756 = vadd.f32 %v667, %v755
        %757 = vdwg.mxu0
        %v758 = vand.u32 %v459, 4294901760
        %759 = vmatprep.subr.mxu0 %v758
        %v760 = vand.u32 %v458, 4294901760
        %761 = vmatpush1.msra.mxu0 %v760
        %v762 = vand.u32 %v477, 4294901760
        %763 = vmatprep.subr.mxu0 %v762
        %v764 = vand.u32 %v474, 4294901760
        %765 = vmatpush1.msra.mxu0 %v764
        %766 = vmatprep.subr.mxu0 0.0
        %767 = vmatpush1.msra.mxu0 0.0
        %768 = vmatprep.subr.mxu0 0.0
        %769 = vmatpush1.msra.mxu0 0.0
        %770 = vmatprep.subr.mxu0 0.0
        %771 = vmatpush1.msra.mxu0 0.0
        %772 = vmatprep.subr.mxu0 0.0
        %773 = vmatpush1.msra.mxu0 0.0
        %774 = vmatprep.subr.mxu0 0.0
        %775 = vmatpush1.msra.mxu0 0.0
        %776 = vmatprep.subr.mxu0 0.0
        %777 = vmatpush1.msra.mxu0 0.0
        %778 = vmatprep.subr.mxu0 0.0
        %779 = vmatpush1.msra.mxu0 0.0
        %780 = vmatprep.subr.mxu0 0.0
        %781 = vmatpush1.msra.mxu0 0.0
        %782 = vmatprep.subr.mxu0 0.0
        %783 = vmatpush1.msra.mxu0 0.0
        %784 = vmatprep.subr.mxu0 0.0
        %785 = vmatpush1.msra.mxu0 0.0
        %786 = vmatprep.subr.mxu0 0.0
        %787 = vmatpush1.msra.mxu0 0.0
        %788 = vmatprep.subr.mxu0 0.0
        %789 = vmatpush1.msra.mxu0 0.0
        %790 = vmatprep.subr.mxu0 0.0
        %791 = vmatpush1.msra.mxu0 0.0
        %792 = vmatprep.subr.mxu0 0.0
        %793 = vmatpush1.msra.mxu0 0.0
        %794 = vmatprep.subr.mxu0 0.0
        %795 = vmatpush1.msra.mxu0 0.0
        %796 = vmatprep.subr.mxu0 0.0
        %797 = vmatpush1.msra.mxu0 0.0
        %798 = vmatprep.subr.mxu0 0.0
        %799 = vmatpush1.msra.mxu0 0.0
        %800 = vmatprep.subr.mxu0 0.0
        %801 = vmatpush1.msra.mxu0 0.0
        %802 = vmatprep.subr.mxu0 0.0
        %803 = vmatpush1.msra.mxu0 0.0
        %804 = vmatprep.subr.mxu0 0.0
        %805 = vmatpush1.msra.mxu0 0.0
        %806 = vmatprep.subr.mxu0 0.0
        %807 = vmatpush1.msra.mxu0 0.0
        %808 = vmatprep.subr.mxu0 0.0
        %809 = vmatpush1.msra.mxu0 0.0
        %810 = vmatprep.subr.mxu0 0.0
        %811 = vmatpush1.msra.mxu0 0.0
        %812 = vmatprep.subr.mxu0 0.0
        %813 = vmatpush1.msra.mxu0 0.0
        %814 = vmatprep.subr.mxu0 0.0
        %815 = vmatpush1.msra.mxu0 0.0
        %816 = vmatprep.subr.mxu0 0.0
        %817 = vmatpush1.msra.mxu0 0.0
        %818 = vmatprep.subr.mxu0 0.0
        %819 = vmatpush1.msra.mxu0 0.0
        %820 = vmatprep.subr.mxu0 0.0
        %821 = vmatpush1.msra.mxu0 0.0
        %822 = vmatprep.subr.mxu0 0.0
        %823 = vmatpush1.msra.mxu0 0.0
        %824 = vmatprep.subr.mxu0 0.0
        %825 = vmatpush1.msra.mxu0 0.0
        %826 = vmatprep.mubr.f32.mxu0 0.0
        %v827 = vand.u32 %v467, 4294901760
        %v828 = vsub.f32 %v467, %v827
        %v829 = vand.u32 %v828, 4294901760
        %830 = vmatmul.mubr.f32.gmra.mrb[0].mxu0 %v829
        %v831 = vpop.f32.mrb[0].mxu0
        %v832 = vadd.f32 %v746, %v831
        %v833 = vpop.f32.mrb[0].mxu0
        %v834 = vadd.f32 %v748, %v833
        %835 = vmatprep.mubr.f32.mxu0 0.0
        %v836 = vand.u32 %v470, 4294901760
        %v837 = vsub.f32 %v470, %v836
        %v838 = vand.u32 %v837, 4294901760
        %839 = vmatmul.mubr.f32.gmra.mrb[0].mxu0 %v838
        %v840 = vpop.f32.mrb[0].mxu0
        %v841 = vadd.f32 %v754, %v840
        %v842 = vpop.f32.mrb[0].mxu0
        %v843 = vadd.f32 %v756, %v842
        %844 = vdwg.mxu0
        %v845 = vand.u32 %v459, 4294901760
        %v846 = vsub.f32 %v459, %v845
        %v847 = vand.u32 %v846, 4294901760
        %848 = vmatprep.subr.mxu0 %v847
        %v849 = vand.u32 %v458, 4294901760
        %v850 = vsub.f32 %v458, %v849
        %v851 = vand.u32 %v850, 4294901760
        %852 = vmatpush1.msra.mxu0 %v851
        %v853 = vand.u32 %v477, 4294901760
        %v854 = vsub.f32 %v477, %v853
        %v855 = vand.u32 %v854, 4294901760
        %856 = vmatprep.subr.mxu0 %v855
        %v857 = vand.u32 %v474, 4294901760
        %v858 = vsub.f32 %v474, %v857
        %v859 = vand.u32 %v858, 4294901760
        %860 = vmatpush1.msra.mxu0 %v859
        %861 = vmatprep.subr.mxu0 0.0
        %862 = vmatpush1.msra.mxu0 0.0
        %863 = vmatprep.subr.mxu0 0.0
        %864 = vmatpush1.msra.mxu0 0.0
        %865 = vmatprep.subr.mxu0 0.0
        %866 = vmatpush1.msra.mxu0 0.0
        %867 = vmatprep.subr.mxu0 0.0
        %868 = vmatpush1.msra.mxu0 0.0
        %869 = vmatprep.subr.mxu0 0.0
        %870 = vmatpush1.msra.mxu0 0.0
        %871 = vmatprep.subr.mxu0 0.0
        %872 = vmatpush1.msra.mxu0 0.0
        %873 = vmatprep.subr.mxu0 0.0
        %874 = vmatpush1.msra.mxu0 0.0
        %875 = vmatprep.subr.mxu0 0.0
        %876 = vmatpush1.msra.mxu0 0.0
        %877 = vmatprep.subr.mxu0 0.0
        %878 = vmatpush1.msra.mxu0 0.0
        %879 = vmatprep.subr.mxu0 0.0
        %880 = vmatpush1.msra.mxu0 0.0
        %881 = vmatprep.subr.mxu0 0.0
        %882 = vmatpush1.msra.mxu0 0.0
        %883 = vmatprep.subr.mxu0 0.0
        %884 = vmatpush1.msra.mxu0 0.0
        %885 = vmatprep.subr.mxu0 0.0
        %886 = vmatpush1.msra.mxu0 0.0
        %887 = vmatprep.subr.mxu0 0.0
        %888 = vmatpush1.msra.mxu0 0.0
        %889 = vmatprep.subr.mxu0 0.0
        %890 = vmatpush1.msra.mxu0 0.0
        %891 = vmatprep.subr.mxu0 0.0
        %892 = vmatpush1.msra.mxu0 0.0
        %893 = vmatprep.subr.mxu0 0.0
        %894 = vmatpush1.msra.mxu0 0.0
        %895 = vmatprep.subr.mxu0 0.0
        %896 = vmatpush1.msra.mxu0 0.0
        %897 = vmatprep.subr.mxu0 0.0
        %898 = vmatpush1.msra.mxu0 0.0
        %899 = vmatprep.subr.mxu0 0.0
        %900 = vmatpush1.msra.mxu0 0.0
        %901 = vmatprep.subr.mxu0 0.0
        %902 = vmatpush1.msra.mxu0 0.0
        %903 = vmatprep.subr.mxu0 0.0
        %904 = vmatpush1.msra.mxu0 0.0
        %905 = vmatprep.subr.mxu0 0.0
        %906 = vmatpush1.msra.mxu0 0.0
        %907 = vmatprep.subr.mxu0 0.0
        %908 = vmatpush1.msra.mxu0 0.0
        %909 = vmatprep.subr.mxu0 0.0
        %910 = vmatpush1.msra.mxu0 0.0
        %911 = vmatprep.subr.mxu0 0.0
        %912 = vmatpush1.msra.mxu0 0.0
        %913 = vmatprep.subr.mxu0 0.0
        %914 = vmatpush1.msra.mxu0 0.0
        %915 = vmatprep.subr.mxu0 0.0
        %916 = vmatpush1.msra.mxu0 0.0
        %917 = vmatprep.subr.mxu0 0.0
        %918 = vmatpush1.msra.mxu0 0.0
        %919 = vmatprep.subr.mxu0 0.0
        %920 = vmatpush1.msra.mxu0 0.0
        %921 = vmatprep.mubr.f32.mxu0 0.0
        %v922 = vand.u32 %v467, 4294901760
        %923 = vmatmul.mubr.f32.gmra.mrb[0].mxu0 %v922
        %v924 = vpop.f32.mrb[0].mxu0
        %v925 = vadd.f32 %v832, %v924
        %v926 = vpop.f32.mrb[0].mxu0
        %v927 = vadd.f32 %v834, %v926
        %928 = vmatprep.mubr.f32.mxu0 0.0
        %v929 = vand.u32 %v470, 4294901760
        %930 = vmatmul.mubr.f32.gmra.mrb[0].mxu0 %v929
        %v931 = vpop.f32.mrb[0].mxu0
        %v932 = vadd.f32 %v841, %v931
        %v933 = vpop.f32.mrb[0].mxu0
        %v934 = vadd.f32 %v843, %v933
        %935 = vdwg.mxu0
        %v936 = vand.u32 %v459, 4294901760
        %937 = vmatprep.subr.mxu0 %v936
        %v938 = vand.u32 %v458, 4294901760
        %939 = vmatpush1.msra.mxu0 %v938
        %v940 = vand.u32 %v477, 4294901760
        %941 = vmatprep.subr.mxu0 %v940
        %v942 = vand.u32 %v474, 4294901760
        %943 = vmatpush1.msra.mxu0 %v942
        %944 = vmatprep.subr.mxu0 0.0
        %945 = vmatpush1.msra.mxu0 0.0
        %946 = vmatprep.subr.mxu0 0.0
        %947 = vmatpush1.msra.mxu0 0.0
        %948 = vmatprep.subr.mxu0 0.0
        %949 = vmatpush1.msra.mxu0 0.0
        %950 = vmatprep.subr.mxu0 0.0
        %951 = vmatpush1.msra.mxu0 0.0
        %952 = vmatprep.subr.mxu0 0.0
        %953 = vmatpush1.msra.mxu0 0.0
        %954 = vmatprep.subr.mxu0 0.0
        %955 = vmatpush1.msra.mxu0 0.0
        %956 = vmatprep.subr.mxu0 0.0
        %957 = vmatpush1.msra.mxu0 0.0
        %958 = vmatprep.subr.mxu0 0.0
        %959 = vmatpush1.msra.mxu0 0.0
        %960 = vmatprep.subr.mxu0 0.0
        %961 = vmatpush1.msra.mxu0 0.0
        %962 = vmatprep.subr.mxu0 0.0
        %963 = vmatpush1.msra.mxu0 0.0
        %964 = vmatprep.subr.mxu0 0.0
        %965 = vmatpush1.msra.mxu0 0.0
        %966 = vmatprep.subr.mxu0 0.0
        %967 = vmatpush1.msra.mxu0 0.0
        %968 = vmatprep.subr.mxu0 0.0
        %969 = vmatpush1.msra.mxu0 0.0
        %970 = vmatprep.subr.mxu0 0.0
        %971 = vmatpush1.msra.mxu0 0.0
        %972 = vmatprep.subr.mxu0 0.0
        %973 = vmatpush1.msra.mxu0 0.0
        %974 = vmatprep.subr.mxu0 0.0
        %975 = vmatpush1.msra.mxu0 0.0
        %976 = vmatprep.subr.mxu0 0.0
        %977 = vmatpush1.msra.mxu0 0.0
        %978 = vmatprep.subr.mxu0 0.0
        %979 = vmatpush1.msra.mxu0 0.0
        %980 = vmatprep.subr.mxu0 0.0
        %981 = vmatpush1.msra.mxu0 0.0
        %982 = vmatprep.subr.mxu0 0.0
        %983 = vmatpush1.msra.mxu0 0.0
        %984 = vmatprep.subr.mxu0 0.0
        %985 = vmatpush1.msra.mxu0 0.0
        %986 = vmatprep.subr.mxu0 0.0
        %987 = vmatpush1.msra.mxu0 0.0
        %988 = vmatprep.subr.mxu0 0.0
        %989 = vmatpush1.msra.mxu0 0.0
        %990 = vmatprep.subr.mxu0 0.0
        %991 = vmatpush1.msra.mxu0 0.0
        %992 = vmatprep.subr.mxu0 0.0
        %993 = vmatpush1.msra.mxu0 0.0
        %994 = vmatprep.subr.mxu0 0.0
        %995 = vmatpush1.msra.mxu0 0.0
        %996 = vmatprep.subr.mxu0 0.0
        %997 = vmatpush1.msra.mxu0 0.0
        %998 = vmatprep.subr.mxu0 0.0
        %999 = vmatpush1.msra.mxu0 0.0
        %1000 = vmatprep.subr.mxu0 0.0
        %1001 = vmatpush1.msra.mxu0 0.0
        %1002 = vmatprep.subr.mxu0 0.0
        %1003 = vmatpush1.msra.mxu0 0.0
        %1004 = vmatprep.mubr.f32.mxu0 0.0
        %v1005 = vand.u32 %v467, 4294901760
        %1006 = vmatmul.mubr.f32.gmra.mrb[0].mxu0 %v1005
        %v1007 = vpop.f32.mrb[0].mxu0
        %v1008 = vadd.f32 %v925, %v1007
        %v1009 = vpop.f32.mrb[0].mxu0
        %v1010 = vadd.f32 %v927, %v1009
        %1011 = vmatprep.mubr.f32.mxu0 0.0
        %v1012 = vand.u32 %v470, 4294901760
        %1013 = vmatmul.mubr.f32.gmra.mrb[0].mxu0 %v1012
        %v1014 = vpop.f32.mrb[0].mxu0
        %v1015 = vadd.f32 %v932, %v1014
        %v1016 = vpop.f32.mrb[0].mxu0
        %v1017 = vadd.f32 %v934, %v1016
        %1018 = vdwg.mxu0
        %v1020 = vsel %vm465, %v424, 0
        %v1023 = vsel %vm465, %v425, 0
        %v1026 = vsel %vm472, %v422, 0
        %v1029 = vsel %vm472, %v423, 0
        %v1031 = vand.u32 %v421, 4294901760
        %1032 = vmatprep.subr.mxu0 %v1031
        %v1033 = vand.u32 %v420, 4294901760
        %1034 = vmatpush1.msra.mxu0 %v1033
        %v1035 = vand.u32 %v1029, 4294901760
        %1036 = vmatprep.subr.mxu0 %v1035
        %v1037 = vand.u32 %v1026, 4294901760
        %1038 = vmatpush1.msra.mxu0 %v1037
        %1039 = vmatprep.subr.mxu0 0.0
        %1040 = vmatpush1.msra.mxu0 0.0
        %1041 = vmatprep.subr.mxu0 0.0
        %1042 = vmatpush1.msra.mxu0 0.0
        %1043 = vmatprep.subr.mxu0 0.0
        %1044 = vmatpush1.msra.mxu0 0.0
        %1045 = vmatprep.subr.mxu0 0.0
        %1046 = vmatpush1.msra.mxu0 0.0
        %1047 = vmatprep.subr.mxu0 0.0
        %1048 = vmatpush1.msra.mxu0 0.0
        %1049 = vmatprep.subr.mxu0 0.0
        %1050 = vmatpush1.msra.mxu0 0.0
        %1051 = vmatprep.subr.mxu0 0.0
        %1052 = vmatpush1.msra.mxu0 0.0
        %1053 = vmatprep.subr.mxu0 0.0
        %1054 = vmatpush1.msra.mxu0 0.0
        %1055 = vmatprep.subr.mxu0 0.0
        %1056 = vmatpush1.msra.mxu0 0.0
        %1057 = vmatprep.subr.mxu0 0.0
        %1058 = vmatpush1.msra.mxu0 0.0
        %1059 = vmatprep.subr.mxu0 0.0
        %1060 = vmatpush1.msra.mxu0 0.0
        %1061 = vmatprep.subr.mxu0 0.0
        %1062 = vmatpush1.msra.mxu0 0.0
        %1063 = vmatprep.subr.mxu0 0.0
        %1064 = vmatpush1.msra.mxu0 0.0
        %1065 = vmatprep.subr.mxu0 0.0
        %1066 = vmatpush1.msra.mxu0 0.0
        %1067 = vmatprep.subr.mxu0 0.0
        %1068 = vmatpush1.msra.mxu0 0.0
        %1069 = vmatprep.subr.mxu0 0.0
        %1070 = vmatpush1.msra.mxu0 0.0
        %1071 = vmatprep.subr.mxu0 0.0
        %1072 = vmatpush1.msra.mxu0 0.0
        %1073 = vmatprep.subr.mxu0 0.0
        %1074 = vmatpush1.msra.mxu0 0.0
        %1075 = vmatprep.subr.mxu0 0.0
        %1076 = vmatpush1.msra.mxu0 0.0
        %1077 = vmatprep.subr.mxu0 0.0
        %1078 = vmatpush1.msra.mxu0 0.0
        %1079 = vmatprep.subr.mxu0 0.0
        %1080 = vmatpush1.msra.mxu0 0.0
        %1081 = vmatprep.subr.mxu0 0.0
        %1082 = vmatpush1.msra.mxu0 0.0
        %1083 = vmatprep.subr.mxu0 0.0
        %1084 = vmatpush1.msra.mxu0 0.0
        %1085 = vmatprep.subr.mxu0 0.0
        %1086 = vmatpush1.msra.mxu0 0.0
        %1087 = vmatprep.subr.mxu0 0.0
        %1088 = vmatpush1.msra.mxu0 0.0
        %1089 = vmatprep.subr.mxu0 0.0
        %1090 = vmatpush1.msra.mxu0 0.0
        %1091 = vmatprep.subr.mxu0 0.0
        %1092 = vmatpush1.msra.mxu0 0.0
        %1093 = vmatprep.subr.mxu0 0.0
        %1094 = vmatpush1.msra.mxu0 0.0
        %1095 = vmatprep.subr.mxu0 0.0
        %1096 = vmatpush1.msra.mxu0 0.0
        %1097 = vmatprep.subr.mxu0 0.0
        %1098 = vmatpush1.msra.mxu0 0.0
        %1099 = vmatprep.mubr.f32.mxu0 0.0
        %v1100 = vand.u32 %v1020, 4294901760
        %v1101 = vsub.f32 %v1020, %v1100
        %v1102 = vand.u32 %v1101, 4294901760
        %v1103 = vsub.f32 %v1101, %v1102
        %v1104 = vand.u32 %v1103, 4294901760
        %1105 = vmatmul.mubr.f32.gmra.mrb[0].mxu0 %v1104
        %v1106 = vpop.f32.mrb[0].mxu0
        %v1107 = vadd.f32 %v1008, %v1106
        %v1108 = vpop.f32.mrb[0].mxu0
        %v1109 = vadd.f32 %v1010, %v1108
        %1110 = vmatprep.mubr.f32.mxu0 0.0
        %v1111 = vand.u32 %v1023, 4294901760
        %v1112 = vsub.f32 %v1023, %v1111
        %v1113 = vand.u32 %v1112, 4294901760
        %v1114 = vsub.f32 %v1112, %v1113
        %v1115 = vand.u32 %v1114, 4294901760
        %1116 = vmatmul.mubr.f32.gmra.mrb[0].mxu0 %v1115
        %v1117 = vpop.f32.mrb[0].mxu0
        %v1118 = vadd.f32 %v1015, %v1117
        %v1119 = vpop.f32.mrb[0].mxu0
        %v1120 = vadd.f32 %v1017, %v1119
        %1121 = vdwg.mxu0
        %v1122 = vand.u32 %v421, 4294901760
        %v1123 = vsub.f32 %v421, %v1122
        %v1124 = vand.u32 %v1123, 4294901760
        %v1125 = vsub.f32 %v1123, %v1124
        %v1126 = vand.u32 %v1125, 4294901760
        %1127 = vmatprep.subr.mxu0 %v1126
        %v1128 = vand.u32 %v420, 4294901760
        %v1129 = vsub.f32 %v420, %v1128
        %v1130 = vand.u32 %v1129, 4294901760
        %v1131 = vsub.f32 %v1129, %v1130
        %v1132 = vand.u32 %v1131, 4294901760
        %1133 = vmatpush1.msra.mxu0 %v1132
        %v1134 = vand.u32 %v1029, 4294901760
        %v1135 = vsub.f32 %v1029, %v1134
        %v1136 = vand.u32 %v1135, 4294901760
        %v1137 = vsub.f32 %v1135, %v1136
        %v1138 = vand.u32 %v1137, 4294901760
        %1139 = vmatprep.subr.mxu0 %v1138
        %v1140 = vand.u32 %v1026, 4294901760
        %v1141 = vsub.f32 %v1026, %v1140
        %v1142 = vand.u32 %v1141, 4294901760
        %v1143 = vsub.f32 %v1141, %v1142
        %v1144 = vand.u32 %v1143, 4294901760
        %1145 = vmatpush1.msra.mxu0 %v1144
        %1146 = vmatprep.subr.mxu0 0.0
        %1147 = vmatpush1.msra.mxu0 0.0
        %1148 = vmatprep.subr.mxu0 0.0
        %1149 = vmatpush1.msra.mxu0 0.0
        %1150 = vmatprep.subr.mxu0 0.0
        %1151 = vmatpush1.msra.mxu0 0.0
        %1152 = vmatprep.subr.mxu0 0.0
        %1153 = vmatpush1.msra.mxu0 0.0
        %1154 = vmatprep.subr.mxu0 0.0
        %1155 = vmatpush1.msra.mxu0 0.0
        %1156 = vmatprep.subr.mxu0 0.0
        %1157 = vmatpush1.msra.mxu0 0.0
        %1158 = vmatprep.subr.mxu0 0.0
        %1159 = vmatpush1.msra.mxu0 0.0
        %1160 = vmatprep.subr.mxu0 0.0
        %1161 = vmatpush1.msra.mxu0 0.0
        %1162 = vmatprep.subr.mxu0 0.0
        %1163 = vmatpush1.msra.mxu0 0.0
        %1164 = vmatprep.subr.mxu0 0.0
        %1165 = vmatpush1.msra.mxu0 0.0
        %1166 = vmatprep.subr.mxu0 0.0
        %1167 = vmatpush1.msra.mxu0 0.0
        %1168 = vmatprep.subr.mxu0 0.0
        %1169 = vmatpush1.msra.mxu0 0.0
        %1170 = vmatprep.subr.mxu0 0.0
        %1171 = vmatpush1.msra.mxu0 0.0
        %1172 = vmatprep.subr.mxu0 0.0
        %1173 = vmatpush1.msra.mxu0 0.0
        %1174 = vmatprep.subr.mxu0 0.0
        %1175 = vmatpush1.msra.mxu0 0.0
        %1176 = vmatprep.subr.mxu0 0.0
        %1177 = vmatpush1.msra.mxu0 0.0
        %1178 = vmatprep.subr.mxu0 0.0
        %1179 = vmatpush1.msra.mxu0 0.0
        %1180 = vmatprep.subr.mxu0 0.0
        %1181 = vmatpush1.msra.mxu0 0.0
        %1182 = vmatprep.subr.mxu0 0.0
        %1183 = vmatpush1.msra.mxu0 0.0
        %1184 = vmatprep.subr.mxu0 0.0
        %1185 = vmatpush1.msra.mxu0 0.0
        %1186 = vmatprep.subr.mxu0 0.0
        %1187 = vmatpush1.msra.mxu0 0.0
        %1188 = vmatprep.subr.mxu0 0.0
        %1189 = vmatpush1.msra.mxu0 0.0
        %1190 = vmatprep.subr.mxu0 0.0
        %1191 = vmatpush1.msra.mxu0 0.0
        %1192 = vmatprep.subr.mxu0 0.0
        %1193 = vmatpush1.msra.mxu0 0.0
        %1194 = vmatprep.subr.mxu0 0.0
        %1195 = vmatpush1.msra.mxu0 0.0
        %1196 = vmatprep.subr.mxu0 0.0
        %1197 = vmatpush1.msra.mxu0 0.0
        %1198 = vmatprep.subr.mxu0 0.0
        %1199 = vmatpush1.msra.mxu0 0.0
        %1200 = vmatprep.subr.mxu0 0.0
        %1201 = vmatpush1.msra.mxu0 0.0
        %1202 = vmatprep.subr.mxu0 0.0
        %1203 = vmatpush1.msra.mxu0 0.0
        %1204 = vmatprep.subr.mxu0 0.0
        %1205 = vmatpush1.msra.mxu0 0.0
        %1206 = vmatprep.mubr.f32.mxu0 0.0
        %v1207 = vand.u32 %v1020, 4294901760
        %1208 = vmatmul.mubr.f32.gmra.mrb[0].mxu0 %v1207
        %v1209 = vpop.f32.mrb[0].mxu0
        %v1210 = vadd.f32 %v1107, %v1209
        %v1211 = vpop.f32.mrb[0].mxu0
        %v1212 = vadd.f32 %v1109, %v1211
        %1213 = vmatprep.mubr.f32.mxu0 0.0
        %v1214 = vand.u32 %v1023, 4294901760
        %1215 = vmatmul.mubr.f32.gmra.mrb[0].mxu0 %v1214
        %v1216 = vpop.f32.mrb[0].mxu0
        %v1217 = vadd.f32 %v1118, %v1216
        %v1218 = vpop.f32.mrb[0].mxu0
        %v1219 = vadd.f32 %v1120, %v1218
        %1220 = vdwg.mxu0
        %v1221 = vand.u32 %v421, 4294901760
        %v1222 = vsub.f32 %v421, %v1221
        %1223 = vmatprep.subr.mxu0 %v1222
        %v1224 = vand.u32 %v420, 4294901760
        %v1225 = vsub.f32 %v420, %v1224
        %1226 = vmatpush1.msra.mxu0 %v1225
        %v1227 = vand.u32 %v1029, 4294901760
        %v1228 = vsub.f32 %v1029, %v1227
        %1229 = vmatprep.subr.mxu0 %v1228
        %v1230 = vand.u32 %v1026, 4294901760
        %v1231 = vsub.f32 %v1026, %v1230
        %1232 = vmatpush1.msra.mxu0 %v1231
        %1233 = vmatprep.subr.mxu0 0.0
        %1234 = vmatpush1.msra.mxu0 0.0
        %1235 = vmatprep.subr.mxu0 0.0
        %1236 = vmatpush1.msra.mxu0 0.0
        %1237 = vmatprep.subr.mxu0 0.0
        %1238 = vmatpush1.msra.mxu0 0.0
        %1239 = vmatprep.subr.mxu0 0.0
        %1240 = vmatpush1.msra.mxu0 0.0
        %1241 = vmatprep.subr.mxu0 0.0
        %1242 = vmatpush1.msra.mxu0 0.0
        %1243 = vmatprep.subr.mxu0 0.0
        %1244 = vmatpush1.msra.mxu0 0.0
        %1245 = vmatprep.subr.mxu0 0.0
        %1246 = vmatpush1.msra.mxu0 0.0
        %1247 = vmatprep.subr.mxu0 0.0
        %1248 = vmatpush1.msra.mxu0 0.0
        %1249 = vmatprep.subr.mxu0 0.0
        %1250 = vmatpush1.msra.mxu0 0.0
        %1251 = vmatprep.subr.mxu0 0.0
        %1252 = vmatpush1.msra.mxu0 0.0
        %1253 = vmatprep.subr.mxu0 0.0
        %1254 = vmatpush1.msra.mxu0 0.0
        %1255 = vmatprep.subr.mxu0 0.0
        %1256 = vmatpush1.msra.mxu0 0.0
        %1257 = vmatprep.subr.mxu0 0.0
        %1258 = vmatpush1.msra.mxu0 0.0
        %1259 = vmatprep.subr.mxu0 0.0
        %1260 = vmatpush1.msra.mxu0 0.0
        %1261 = vmatprep.subr.mxu0 0.0
        %1262 = vmatpush1.msra.mxu0 0.0
        %1263 = vmatprep.subr.mxu0 0.0
        %1264 = vmatpush1.msra.mxu0 0.0
        %1265 = vmatprep.subr.mxu0 0.0
        %1266 = vmatpush1.msra.mxu0 0.0
        %1267 = vmatprep.subr.mxu0 0.0
        %1268 = vmatpush1.msra.mxu0 0.0
        %1269 = vmatprep.subr.mxu0 0.0
        %1270 = vmatpush1.msra.mxu0 0.0
        %1271 = vmatprep.subr.mxu0 0.0
        %1272 = vmatpush1.msra.mxu0 0.0
        %1273 = vmatprep.subr.mxu0 0.0
        %1274 = vmatpush1.msra.mxu0 0.0
        %1275 = vmatprep.subr.mxu0 0.0
        %1276 = vmatpush1.msra.mxu0 0.0
        %1277 = vmatprep.subr.mxu0 0.0
        %1278 = vmatpush1.msra.mxu0 0.0
        %1279 = vmatprep.subr.mxu0 0.0
        %1280 = vmatpush1.msra.mxu0 0.0
        %1281 = vmatprep.subr.mxu0 0.0
        %1282 = vmatpush1.msra.mxu0 0.0
        %1283 = vmatprep.subr.mxu0 0.0
        %1284 = vmatpush1.msra.mxu0 0.0
        %1285 = vmatprep.subr.mxu0 0.0
        %1286 = vmatpush1.msra.mxu0 0.0
        %1287 = vmatprep.subr.mxu0 0.0
        %1288 = vmatpush1.msra.mxu0 0.0
        %1289 = vmatprep.subr.mxu0 0.0
        %1290 = vmatpush1.msra.mxu0 0.0
        %1291 = vmatprep.subr.mxu0 0.0
        %1292 = vmatpush1.msra.mxu0 0.0
        %1293 = vmatprep.mubr.f32.mxu0 0.0
        %v1294 = vand.u32 %v1020, 4294901760
        %v1295 = vsub.f32 %v1020, %v1294
        %1296 = vmatmul.mubr.f32.gmra.mrb[0].mxu0 %v1295
        %v1297 = vpop.f32.mrb[0].mxu0
        %v1298 = vadd.f32 %v1210, %v1297
        %v1299 = vpop.f32.mrb[0].mxu0
        %v1300 = vadd.f32 %v1212, %v1299
        %1301 = vmatprep.mubr.f32.mxu0 0.0
        %v1302 = vand.u32 %v1023, 4294901760
        %v1303 = vsub.f32 %v1023, %v1302
        %1304 = vmatmul.mubr.f32.gmra.mrb[0].mxu0 %v1303
        %v1305 = vpop.f32.mrb[0].mxu0
        %v1306 = vadd.f32 %v1217, %v1305
        %v1307 = vpop.f32.mrb[0].mxu0
        %v1308 = vadd.f32 %v1219, %v1307
        %1309 = vdwg.mxu0
        %v1310 = vand.u32 %v421, 4294901760
        %1311 = vmatprep.subr.mxu0 %v1310
        %v1312 = vand.u32 %v420, 4294901760
        %1313 = vmatpush1.msra.mxu0 %v1312
        %v1314 = vand.u32 %v1029, 4294901760
        %1315 = vmatprep.subr.mxu0 %v1314
        %v1316 = vand.u32 %v1026, 4294901760
        %1317 = vmatpush1.msra.mxu0 %v1316
        %1318 = vmatprep.subr.mxu0 0.0
        %1319 = vmatpush1.msra.mxu0 0.0
        %1320 = vmatprep.subr.mxu0 0.0
        %1321 = vmatpush1.msra.mxu0 0.0
        %1322 = vmatprep.subr.mxu0 0.0
        %1323 = vmatpush1.msra.mxu0 0.0
        %1324 = vmatprep.subr.mxu0 0.0
        %1325 = vmatpush1.msra.mxu0 0.0
        %1326 = vmatprep.subr.mxu0 0.0
        %1327 = vmatpush1.msra.mxu0 0.0
        %1328 = vmatprep.subr.mxu0 0.0
        %1329 = vmatpush1.msra.mxu0 0.0
        %1330 = vmatprep.subr.mxu0 0.0
        %1331 = vmatpush1.msra.mxu0 0.0
        %1332 = vmatprep.subr.mxu0 0.0
        %1333 = vmatpush1.msra.mxu0 0.0
        %1334 = vmatprep.subr.mxu0 0.0
        %1335 = vmatpush1.msra.mxu0 0.0
        %1336 = vmatprep.subr.mxu0 0.0
        %1337 = vmatpush1.msra.mxu0 0.0
        %1338 = vmatprep.subr.mxu0 0.0
        %1339 = vmatpush1.msra.mxu0 0.0
        %1340 = vmatprep.subr.mxu0 0.0
        %1341 = vmatpush1.msra.mxu0 0.0
        %1342 = vmatprep.subr.mxu0 0.0
        %1343 = vmatpush1.msra.mxu0 0.0
        %1344 = vmatprep.subr.mxu0 0.0
        %1345 = vmatpush1.msra.mxu0 0.0
        %1346 = vmatprep.subr.mxu0 0.0
        %1347 = vmatpush1.msra.mxu0 0.0
        %1348 = vmatprep.subr.mxu0 0.0
        %1349 = vmatpush1.msra.mxu0 0.0
        %1350 = vmatprep.subr.mxu0 0.0
        %1351 = vmatpush1.msra.mxu0 0.0
        %1352 = vmatprep.subr.mxu0 0.0
        %1353 = vmatpush1.msra.mxu0 0.0
        %1354 = vmatprep.subr.mxu0 0.0
        %1355 = vmatpush1.msra.mxu0 0.0
        %1356 = vmatprep.subr.mxu0 0.0
        %1357 = vmatpush1.msra.mxu0 0.0
        %1358 = vmatprep.subr.mxu0 0.0
        %1359 = vmatpush1.msra.mxu0 0.0
        %1360 = vmatprep.subr.mxu0 0.0
        %1361 = vmatpush1.msra.mxu0 0.0
        %1362 = vmatprep.subr.mxu0 0.0
        %1363 = vmatpush1.msra.mxu0 0.0
        %1364 = vmatprep.subr.mxu0 0.0
        %1365 = vmatpush1.msra.mxu0 0.0
        %1366 = vmatprep.subr.mxu0 0.0
        %1367 = vmatpush1.msra.mxu0 0.0
        %1368 = vmatprep.subr.mxu0 0.0
        %1369 = vmatpush1.msra.mxu0 0.0
        %1370 = vmatprep.subr.mxu0 0.0
        %1371 = vmatpush1.msra.mxu0 0.0
        %1372 = vmatprep.subr.mxu0 0.0
        %1373 = vmatpush1.msra.mxu0 0.0
        %1374 = vmatprep.subr.mxu0 0.0
        %1375 = vmatpush1.msra.mxu0 0.0
        %1376 = vmatprep.subr.mxu0 0.0
        %1377 = vmatpush1.msra.mxu0 0.0
        %1378 = vmatprep.mubr.f32.mxu0 0.0
        %v1379 = vand.u32 %v1020, 4294901760
        %v1380 = vsub.f32 %v1020, %v1379
        %v1381 = vand.u32 %v1380, 4294901760
        %1382 = vmatmul.mubr.f32.gmra.mrb[0].mxu0 %v1381
        %v1383 = vpop.f32.mrb[0].mxu0
        %v1384 = vadd.f32 %v1298, %v1383
        %v1385 = vpop.f32.mrb[0].mxu0
        %v1386 = vadd.f32 %v1300, %v1385
        %1387 = vmatprep.mubr.f32.mxu0 0.0
        %v1388 = vand.u32 %v1023, 4294901760
        %v1389 = vsub.f32 %v1023, %v1388
        %v1390 = vand.u32 %v1389, 4294901760
        %1391 = vmatmul.mubr.f32.gmra.mrb[0].mxu0 %v1390
        %v1392 = vpop.f32.mrb[0].mxu0
        %v1393 = vadd.f32 %v1306, %v1392
        %v1394 = vpop.f32.mrb[0].mxu0
        %v1395 = vadd.f32 %v1308, %v1394
        %1396 = vdwg.mxu0
        %v1397 = vand.u32 %v421, 4294901760
        %v1398 = vsub.f32 %v421, %v1397
        %v1399 = vand.u32 %v1398, 4294901760
        %1400 = vmatprep.subr.mxu0 %v1399
        %v1401 = vand.u32 %v420, 4294901760
        %v1402 = vsub.f32 %v420, %v1401
        %v1403 = vand.u32 %v1402, 4294901760
        %1404 = vmatpush1.msra.mxu0 %v1403
        %v1405 = vand.u32 %v1029, 4294901760
        %v1406 = vsub.f32 %v1029, %v1405
        %v1407 = vand.u32 %v1406, 4294901760
        %1408 = vmatprep.subr.mxu0 %v1407
        %v1409 = vand.u32 %v1026, 4294901760
        %v1410 = vsub.f32 %v1026, %v1409
        %v1411 = vand.u32 %v1410, 4294901760
        %1412 = vmatpush1.msra.mxu0 %v1411
        %1413 = vmatprep.subr.mxu0 0.0
        %1414 = vmatpush1.msra.mxu0 0.0
        %1415 = vmatprep.subr.mxu0 0.0
        %1416 = vmatpush1.msra.mxu0 0.0
        %1417 = vmatprep.subr.mxu0 0.0
        %1418 = vmatpush1.msra.mxu0 0.0
        %1419 = vmatprep.subr.mxu0 0.0
        %1420 = vmatpush1.msra.mxu0 0.0
        %1421 = vmatprep.subr.mxu0 0.0
        %1422 = vmatpush1.msra.mxu0 0.0
        %1423 = vmatprep.subr.mxu0 0.0
        %1424 = vmatpush1.msra.mxu0 0.0
        %1425 = vmatprep.subr.mxu0 0.0
        %1426 = vmatpush1.msra.mxu0 0.0
        %1427 = vmatprep.subr.mxu0 0.0
        %1428 = vmatpush1.msra.mxu0 0.0
        %1429 = vmatprep.subr.mxu0 0.0
        %1430 = vmatpush1.msra.mxu0 0.0
        %1431 = vmatprep.subr.mxu0 0.0
        %1432 = vmatpush1.msra.mxu0 0.0
        %1433 = vmatprep.subr.mxu0 0.0
        %1434 = vmatpush1.msra.mxu0 0.0
        %1435 = vmatprep.subr.mxu0 0.0
        %1436 = vmatpush1.msra.mxu0 0.0
        %1437 = vmatprep.subr.mxu0 0.0
        %1438 = vmatpush1.msra.mxu0 0.0
        %1439 = vmatprep.subr.mxu0 0.0
        %1440 = vmatpush1.msra.mxu0 0.0
        %1441 = vmatprep.subr.mxu0 0.0
        %1442 = vmatpush1.msra.mxu0 0.0
        %1443 = vmatprep.subr.mxu0 0.0
        %1444 = vmatpush1.msra.mxu0 0.0
        %1445 = vmatprep.subr.mxu0 0.0
        %1446 = vmatpush1.msra.mxu0 0.0
        %1447 = vmatprep.subr.mxu0 0.0
        %1448 = vmatpush1.msra.mxu0 0.0
        %1449 = vmatprep.subr.mxu0 0.0
        %1450 = vmatpush1.msra.mxu0 0.0
        %1451 = vmatprep.subr.mxu0 0.0
        %1452 = vmatpush1.msra.mxu0 0.0
        %1453 = vmatprep.subr.mxu0 0.0
        %1454 = vmatpush1.msra.mxu0 0.0
        %1455 = vmatprep.subr.mxu0 0.0
        %1456 = vmatpush1.msra.mxu0 0.0
        %1457 = vmatprep.subr.mxu0 0.0
        %1458 = vmatpush1.msra.mxu0 0.0
        %1459 = vmatprep.subr.mxu0 0.0
        %1460 = vmatpush1.msra.mxu0 0.0
        %1461 = vmatprep.subr.mxu0 0.0
        %1462 = vmatpush1.msra.mxu0 0.0
        %1463 = vmatprep.subr.mxu0 0.0
        %1464 = vmatpush1.msra.mxu0 0.0
        %1465 = vmatprep.subr.mxu0 0.0
        %1466 = vmatpush1.msra.mxu0 0.0
        %1467 = vmatprep.subr.mxu0 0.0
        %1468 = vmatpush1.msra.mxu0 0.0
        %1469 = vmatprep.subr.mxu0 0.0
        %1470 = vmatpush1.msra.mxu0 0.0
        %1471 = vmatprep.subr.mxu0 0.0
        %1472 = vmatpush1.msra.mxu0 0.0
        %1473 = vmatprep.mubr.f32.mxu0 0.0
        %v1474 = vand.u32 %v1020, 4294901760
        %1475 = vmatmul.mubr.f32.gmra.mrb[0].mxu0 %v1474
        %v1476 = vpop.f32.mrb[0].mxu0
        %v1477 = vadd.f32 %v1384, %v1476
        %v1478 = vpop.f32.mrb[0].mxu0
        %v1479 = vadd.f32 %v1386, %v1478
        %1480 = vmatprep.mubr.f32.mxu0 0.0
        %v1481 = vand.u32 %v1023, 4294901760
        %1482 = vmatmul.mubr.f32.gmra.mrb[0].mxu0 %v1481
        %v1483 = vpop.f32.mrb[0].mxu0
        %v1484 = vadd.f32 %v1393, %v1483
        %v1485 = vpop.f32.mrb[0].mxu0
        %v1486 = vadd.f32 %v1395, %v1485
        %1487 = vdwg.mxu0
        %v1488 = vand.u32 %v421, 4294901760
        %1489 = vmatprep.subr.mxu0 %v1488
        %v1490 = vand.u32 %v420, 4294901760
        %1491 = vmatpush1.msra.mxu0 %v1490
        %v1492 = vand.u32 %v1029, 4294901760
        %1493 = vmatprep.subr.mxu0 %v1492
        %v1494 = vand.u32 %v1026, 4294901760
        %1495 = vmatpush1.msra.mxu0 %v1494
        %1496 = vmatprep.subr.mxu0 0.0
        %1497 = vmatpush1.msra.mxu0 0.0
        %1498 = vmatprep.subr.mxu0 0.0
        %1499 = vmatpush1.msra.mxu0 0.0
        %1500 = vmatprep.subr.mxu0 0.0
        %1501 = vmatpush1.msra.mxu0 0.0
        %1502 = vmatprep.subr.mxu0 0.0
        %1503 = vmatpush1.msra.mxu0 0.0
        %1504 = vmatprep.subr.mxu0 0.0
        %1505 = vmatpush1.msra.mxu0 0.0
        %1506 = vmatprep.subr.mxu0 0.0
        %1507 = vmatpush1.msra.mxu0 0.0
        %1508 = vmatprep.subr.mxu0 0.0
        %1509 = vmatpush1.msra.mxu0 0.0
        %1510 = vmatprep.subr.mxu0 0.0
        %1511 = vmatpush1.msra.mxu0 0.0
        %1512 = vmatprep.subr.mxu0 0.0
        %1513 = vmatpush1.msra.mxu0 0.0
        %1514 = vmatprep.subr.mxu0 0.0
        %1515 = vmatpush1.msra.mxu0 0.0
        %1516 = vmatprep.subr.mxu0 0.0
        %1517 = vmatpush1.msra.mxu0 0.0
        %1518 = vmatprep.subr.mxu0 0.0
        %1519 = vmatpush1.msra.mxu0 0.0
        %1520 = vmatprep.subr.mxu0 0.0
        %1521 = vmatpush1.msra.mxu0 0.0
        %1522 = vmatprep.subr.mxu0 0.0
        %1523 = vmatpush1.msra.mxu0 0.0
        %1524 = vmatprep.subr.mxu0 0.0
        %1525 = vmatpush1.msra.mxu0 0.0
        %1526 = vmatprep.subr.mxu0 0.0
        %1527 = vmatpush1.msra.mxu0 0.0
        %1528 = vmatprep.subr.mxu0 0.0
        %1529 = vmatpush1.msra.mxu0 0.0
        %1530 = vmatprep.subr.mxu0 0.0
        %1531 = vmatpush1.msra.mxu0 0.0
        %1532 = vmatprep.subr.mxu0 0.0
        %1533 = vmatpush1.msra.mxu0 0.0
        %1534 = vmatprep.subr.mxu0 0.0
        %1535 = vmatpush1.msra.mxu0 0.0
        %1536 = vmatprep.subr.mxu0 0.0
        %1537 = vmatpush1.msra.mxu0 0.0
        %1538 = vmatprep.subr.mxu0 0.0
        %1539 = vmatpush1.msra.mxu0 0.0
        %1540 = vmatprep.subr.mxu0 0.0
        %1541 = vmatpush1.msra.mxu0 0.0
        %1542 = vmatprep.subr.mxu0 0.0
        %1543 = vmatpush1.msra.mxu0 0.0
        %1544 = vmatprep.subr.mxu0 0.0
        %1545 = vmatpush1.msra.mxu0 0.0
        %1546 = vmatprep.subr.mxu0 0.0
        %1547 = vmatpush1.msra.mxu0 0.0
        %1548 = vmatprep.subr.mxu0 0.0
        %1549 = vmatpush1.msra.mxu0 0.0
        %1550 = vmatprep.subr.mxu0 0.0
        %1551 = vmatpush1.msra.mxu0 0.0
        %1552 = vmatprep.subr.mxu0 0.0
        %1553 = vmatpush1.msra.mxu0 0.0
        %1554 = vmatprep.subr.mxu0 0.0
        %1555 = vmatpush1.msra.mxu0 0.0
        %1556 = vmatprep.mubr.f32.mxu0 0.0
        %v1557 = vand.u32 %v1020, 4294901760
        %1558 = vmatmul.mubr.f32.gmra.mrb[0].mxu0 %v1557
        %v1559 = vpop.f32.mrb[0].mxu0
        %v1560 = vadd.f32 %v1477, %v1559
        %v1561 = vpop.f32.mrb[0].mxu0
        %v1562 = vadd.f32 %v1479, %v1561
        %1563 = vmatprep.mubr.f32.mxu0 0.0
        %v1564 = vand.u32 %v1023, 4294901760
        %1565 = vmatmul.mubr.f32.gmra.mrb[0].mxu0 %v1564
        %v1566 = vpop.f32.mrb[0].mxu0
        %v1567 = vadd.f32 %v1484, %v1566
        %v1568 = vpop.f32.mrb[0].mxu0
        %v1569 = vadd.f32 %v1486, %v1568
        %1570 = vdwg.mxu0
        %1571 = vrot.lane.b32.xlu0 %v382, 15
        %v1572 = vpop.permute.xlu0 %1571
        %1573 = vrot.lane.b32.xlu0 %v384, 15
        %v1574 = vpop.permute.xlu0 %1573
        %1577 = vrot.lane.b32.xlu0 %v381, 15
        %v1578 = vpop.permute.xlu0 %1577
        %1579 = vrot.lane.b32.xlu0 %v383, 15
        %v1580 = vpop.permute.xlu0 %1579
        %vm1581 = vcmask 121856
        %v1582 = vsel %vm1581, %v1578, %v1572
        %v1583 = vsel %vm1581, %v1580, %v1574
        %v1588 = vsel %vm1581, %v1572, %v1578
        %v1589 = vsel %vm1581, %v1574, %v1580
        %s1590 = scalar_lea.vmem %s2, 2
        %v1591 = vld [vmem:[%s1590] ss:$8 sm:$0x3]
        %v1593 = vlaneseq
        %v1594 = vshrl.u32 %v1593, 7
        %v1595 = vsub.s32 0, %v1594
        %v1596 = vrot.slane %v1591, %v1595
        %v1597 = vlaneseq
        %v1598 = vshrl.u32 %v1597, 7
        %v1599 = vsub.s32 1, %v1598
        %v1600 = vrot.slane %v1591, %v1599
        %v1603 = vmul.f32 %v1588, %v1596
        %v1604 = vmul.f32 %v1582, %v1600
        %v1605 = vmul.f32 %v1589, %v1596
        %v1606 = vmul.f32 %v1583, %v1600
        %s1607 = scalar_lea.vmem [#allocation2], 32
        %v1608 = vld [vmem:[%s1607] sm:$0xff]
        %v1609 = vld [vmem:[%s1607 + $0x8] sm:$0xf]
        %v1611 = vsel %vm465, %v1608, 0
        %v1614 = vsel %vm465, %v1609, 0
        %v1617 = vsel %vm472, %v1605, 0
        %v1620 = vsel %vm472, %v1606, 0
        %v1622 = vand.u32 %v1604, 4294901760
        %1623 = vmatprep.subr.mxu0 %v1622
        %v1624 = vand.u32 %v1603, 4294901760
        %1625 = vmatpush1.msra.mxu0 %v1624
        %v1626 = vand.u32 %v1620, 4294901760
        %1627 = vmatprep.subr.mxu0 %v1626
        %v1628 = vand.u32 %v1617, 4294901760
        %1629 = vmatpush1.msra.mxu0 %v1628
        %1630 = vmatprep.subr.mxu0 0.0
        %1631 = vmatpush1.msra.mxu0 0.0
        %1632 = vmatprep.subr.mxu0 0.0
        %1633 = vmatpush1.msra.mxu0 0.0
        %1634 = vmatprep.subr.mxu0 0.0
        %1635 = vmatpush1.msra.mxu0 0.0
        %1636 = vmatprep.subr.mxu0 0.0
        %1637 = vmatpush1.msra.mxu0 0.0
        %1638 = vmatprep.subr.mxu0 0.0
        %1639 = vmatpush1.msra.mxu0 0.0
        %1640 = vmatprep.subr.mxu0 0.0
        %1641 = vmatpush1.msra.mxu0 0.0
        %1642 = vmatprep.subr.mxu0 0.0
        %1643 = vmatpush1.msra.mxu0 0.0
        %1644 = vmatprep.subr.mxu0 0.0
        %1645 = vmatpush1.msra.mxu0 0.0
        %1646 = vmatprep.subr.mxu0 0.0
        %1647 = vmatpush1.msra.mxu0 0.0
        %1648 = vmatprep.subr.mxu0 0.0
        %1649 = vmatpush1.msra.mxu0 0.0
        %1650 = vmatprep.subr.mxu0 0.0
        %1651 = vmatpush1.msra.mxu0 0.0
        %1652 = vmatprep.subr.mxu0 0.0
        %1653 = vmatpush1.msra.mxu0 0.0
        %1654 = vmatprep.subr.mxu0 0.0
        %1655 = vmatpush1.msra.mxu0 0.0
        %1656 = vmatprep.subr.mxu0 0.0
        %1657 = vmatpush1.msra.mxu0 0.0
        %1658 = vmatprep.subr.mxu0 0.0
        %1659 = vmatpush1.msra.mxu0 0.0
        %1660 = vmatprep.subr.mxu0 0.0
        %1661 = vmatpush1.msra.mxu0 0.0
        %1662 = vmatprep.subr.mxu0 0.0
        %1663 = vmatpush1.msra.mxu0 0.0
        %1664 = vmatprep.subr.mxu0 0.0
        %1665 = vmatpush1.msra.mxu0 0.0
        %1666 = vmatprep.subr.mxu0 0.0
        %1667 = vmatpush1.msra.mxu0 0.0
        %1668 = vmatprep.subr.mxu0 0.0
        %1669 = vmatpush1.msra.mxu0 0.0
        %1670 = vmatprep.subr.mxu0 0.0
        %1671 = vmatpush1.msra.mxu0 0.0
        %1672 = vmatprep.subr.mxu0 0.0
        %1673 = vmatpush1.msra.mxu0 0.0
        %1674 = vmatprep.subr.mxu0 0.0
        %1675 = vmatpush1.msra.mxu0 0.0
        %1676 = vmatprep.subr.mxu0 0.0
        %1677 = vmatpush1.msra.mxu0 0.0
        %1678 = vmatprep.subr.mxu0 0.0
        %1679 = vmatpush1.msra.mxu0 0.0
        %1680 = vmatprep.subr.mxu0 0.0
        %1681 = vmatpush1.msra.mxu0 0.0
        %1682 = vmatprep.subr.mxu0 0.0
        %1683 = vmatpush1.msra.mxu0 0.0
        %1684 = vmatprep.subr.mxu0 0.0
        %1685 = vmatpush1.msra.mxu0 0.0
        %1686 = vmatprep.subr.mxu0 0.0
        %1687 = vmatpush1.msra.mxu0 0.0
        %1688 = vmatprep.subr.mxu0 0.0
        %1689 = vmatpush1.msra.mxu0 0.0
        %1690 = vmatprep.mubr.f32.mxu0 0.0
        %v1691 = vand.u32 %v1611, 4294901760
        %v1692 = vsub.f32 %v1611, %v1691
        %v1693 = vand.u32 %v1692, 4294901760
        %v1694 = vsub.f32 %v1692, %v1693
        %v1695 = vand.u32 %v1694, 4294901760
        %1696 = vmatmul.mubr.f32.gmra.mrb[0].mxu0 %v1695
        %v1697 = vpop.f32.mrb[0].mxu0
        %v1698 = vadd.f32 0.0, %v1697
        %v1699 = vpop.f32.mrb[0].mxu0
        %v1700 = vadd.f32 0.0, %v1699
        %1701 = vmatprep.mubr.f32.mxu0 0.0
        %v1702 = vand.u32 %v1614, 4294901760
        %v1703 = vsub.f32 %v1614, %v1702
        %v1704 = vand.u32 %v1703, 4294901760
        %v1705 = vsub.f32 %v1703, %v1704
        %v1706 = vand.u32 %v1705, 4294901760
        %1707 = vmatmul.mubr.f32.gmra.mrb[0].mxu0 %v1706
        %v1708 = vpop.f32.mrb[0].mxu0
        %v1709 = vadd.f32 0.0, %v1708
        %v1710 = vpop.f32.mrb[0].mxu0
        %v1711 = vadd.f32 0.0, %v1710
        %1712 = vdwg.mxu0
        %v1713 = vand.u32 %v1604, 4294901760
        %v1714 = vsub.f32 %v1604, %v1713
        %v1715 = vand.u32 %v1714, 4294901760
        %v1716 = vsub.f32 %v1714, %v1715
        %v1717 = vand.u32 %v1716, 4294901760
        %1718 = vmatprep.subr.mxu0 %v1717
        %v1719 = vand.u32 %v1603, 4294901760
        %v1720 = vsub.f32 %v1603, %v1719
        %v1721 = vand.u32 %v1720, 4294901760
        %v1722 = vsub.f32 %v1720, %v1721
        %v1723 = vand.u32 %v1722, 4294901760
        %1724 = vmatpush1.msra.mxu0 %v1723
        %v1725 = vand.u32 %v1620, 4294901760
        %v1726 = vsub.f32 %v1620, %v1725
        %v1727 = vand.u32 %v1726, 4294901760
        %v1728 = vsub.f32 %v1726, %v1727
        %v1729 = vand.u32 %v1728, 4294901760
        %1730 = vmatprep.subr.mxu0 %v1729
        %v1731 = vand.u32 %v1617, 4294901760
        %v1732 = vsub.f32 %v1617, %v1731
        %v1733 = vand.u32 %v1732, 4294901760
        %v1734 = vsub.f32 %v1732, %v1733
        %v1735 = vand.u32 %v1734, 4294901760
        %1736 = vmatpush1.msra.mxu0 %v1735
        %1737 = vmatprep.subr.mxu0 0.0
        %1738 = vmatpush1.msra.mxu0 0.0
        %1739 = vmatprep.subr.mxu0 0.0
        %1740 = vmatpush1.msra.mxu0 0.0
        %1741 = vmatprep.subr.mxu0 0.0
        %1742 = vmatpush1.msra.mxu0 0.0
        %1743 = vmatprep.subr.mxu0 0.0
        %1744 = vmatpush1.msra.mxu0 0.0
        %1745 = vmatprep.subr.mxu0 0.0
        %1746 = vmatpush1.msra.mxu0 0.0
        %1747 = vmatprep.subr.mxu0 0.0
        %1748 = vmatpush1.msra.mxu0 0.0
        %1749 = vmatprep.subr.mxu0 0.0
        %1750 = vmatpush1.msra.mxu0 0.0
        %1751 = vmatprep.subr.mxu0 0.0
        %1752 = vmatpush1.msra.mxu0 0.0
        %1753 = vmatprep.subr.mxu0 0.0
        %1754 = vmatpush1.msra.mxu0 0.0
        %1755 = vmatprep.subr.mxu0 0.0
        %1756 = vmatpush1.msra.mxu0 0.0
        %1757 = vmatprep.subr.mxu0 0.0
        %1758 = vmatpush1.msra.mxu0 0.0
        %1759 = vmatprep.subr.mxu0 0.0
        %1760 = vmatpush1.msra.mxu0 0.0
        %1761 = vmatprep.subr.mxu0 0.0
        %1762 = vmatpush1.msra.mxu0 0.0
        %1763 = vmatprep.subr.mxu0 0.0
        %1764 = vmatpush1.msra.mxu0 0.0
        %1765 = vmatprep.subr.mxu0 0.0
        %1766 = vmatpush1.msra.mxu0 0.0
        %1767 = vmatprep.subr.mxu0 0.0
        %1768 = vmatpush1.msra.mxu0 0.0
        %1769 = vmatprep.subr.mxu0 0.0
        %1770 = vmatpush1.msra.mxu0 0.0
        %1771 = vmatprep.subr.mxu0 0.0
        %1772 = vmatpush1.msra.mxu0 0.0
        %1773 = vmatprep.subr.mxu0 0.0
        %1774 = vmatpush1.msra.mxu0 0.0
        %1775 = vmatprep.subr.mxu0 0.0
        %1776 = vmatpush1.msra.mxu0 0.0
        %1777 = vmatprep.subr.mxu0 0.0
        %1778 = vmatpush1.msra.mxu0 0.0
        %1779 = vmatprep.subr.mxu0 0.0
        %1780 = vmatpush1.msra.mxu0 0.0
        %1781 = vmatprep.subr.mxu0 0.0
        %1782 = vmatpush1.msra.mxu0 0.0
        %1783 = vmatprep.subr.mxu0 0.0
        %1784 = vmatpush1.msra.mxu0 0.0
        %1785 = vmatprep.subr.mxu0 0.0
        %1786 = vmatpush1.msra.mxu0 0.0
        %1787 = vmatprep.subr.mxu0 0.0
        %1788 = vmatpush1.msra.mxu0 0.0
        %1789 = vmatprep.subr.mxu0 0.0
        %1790 = vmatpush1.msra.mxu0 0.0
        %1791 = vmatprep.subr.mxu0 0.0
        %1792 = vmatpush1.msra.mxu0 0.0
        %1793 = vmatprep.subr.mxu0 0.0
        %1794 = vmatpush1.msra.mxu0 0.0
        %1795 = vmatprep.subr.mxu0 0.0
        %1796 = vmatpush1.msra.mxu0 0.0
        %1797 = vmatprep.mubr.f32.mxu0 0.0
        %v1798 = vand.u32 %v1611, 4294901760
        %1799 = vmatmul.mubr.f32.gmra.mrb[0].mxu0 %v1798
        %v1800 = vpop.f32.mrb[0].mxu0
        %v1801 = vadd.f32 %v1698, %v1800
        %v1802 = vpop.f32.mrb[0].mxu0
        %v1803 = vadd.f32 %v1700, %v1802
        %1804 = vmatprep.mubr.f32.mxu0 0.0
        %v1805 = vand.u32 %v1614, 4294901760
        %1806 = vmatmul.mubr.f32.gmra.mrb[0].mxu0 %v1805
        %v1807 = vpop.f32.mrb[0].mxu0
        %v1808 = vadd.f32 %v1709, %v1807
        %v1809 = vpop.f32.mrb[0].mxu0
        %v1810 = vadd.f32 %v1711, %v1809
        %1811 = vdwg.mxu0
        %v1812 = vand.u32 %v1604, 4294901760
        %v1813 = vsub.f32 %v1604, %v1812
        %1814 = vmatprep.subr.mxu0 %v1813
        %v1815 = vand.u32 %v1603, 4294901760
        %v1816 = vsub.f32 %v1603, %v1815
        %1817 = vmatpush1.msra.mxu0 %v1816
        %v1818 = vand.u32 %v1620, 4294901760
        %v1819 = vsub.f32 %v1620, %v1818
        %1820 = vmatprep.subr.mxu0 %v1819
        %v1821 = vand.u32 %v1617, 4294901760
        %v1822 = vsub.f32 %v1617, %v1821
        %1823 = vmatpush1.msra.mxu0 %v1822
        %1824 = vmatprep.subr.mxu0 0.0
        %1825 = vmatpush1.msra.mxu0 0.0
        %1826 = vmatprep.subr.mxu0 0.0
        %1827 = vmatpush1.msra.mxu0 0.0
        %1828 = vmatprep.subr.mxu0 0.0
        %1829 = vmatpush1.msra.mxu0 0.0
        %1830 = vmatprep.subr.mxu0 0.0
        %1831 = vmatpush1.msra.mxu0 0.0
        %1832 = vmatprep.subr.mxu0 0.0
        %1833 = vmatpush1.msra.mxu0 0.0
        %1834 = vmatprep.subr.mxu0 0.0
        %1835 = vmatpush1.msra.mxu0 0.0
        %1836 = vmatprep.subr.mxu0 0.0
        %1837 = vmatpush1.msra.mxu0 0.0
        %1838 = vmatprep.subr.mxu0 0.0
        %1839 = vmatpush1.msra.mxu0 0.0
        %1840 = vmatprep.subr.mxu0 0.0
        %1841 = vmatpush1.msra.mxu0 0.0
        %1842 = vmatprep.subr.mxu0 0.0
        %1843 = vmatpush1.msra.mxu0 0.0
        %1844 = vmatprep.subr.mxu0 0.0
        %1845 = vmatpush1.msra.mxu0 0.0
        %1846 = vmatprep.subr.mxu0 0.0
        %1847 = vmatpush1.msra.mxu0 0.0
        %1848 = vmatprep.subr.mxu0 0.0
        %1849 = vmatpush1.msra.mxu0 0.0
        %1850 = vmatprep.subr.mxu0 0.0
        %1851 = vmatpush1.msra.mxu0 0.0
        %1852 = vmatprep.subr.mxu0 0.0
        %1853 = vmatpush1.msra.mxu0 0.0
        %1854 = vmatprep.subr.mxu0 0.0
        %1855 = vmatpush1.msra.mxu0 0.0
        %1856 = vmatprep.subr.mxu0 0.0
        %1857 = vmatpush1.msra.mxu0 0.0
        %1858 = vmatprep.subr.mxu0 0.0
        %1859 = vmatpush1.msra.mxu0 0.0
        %1860 = vmatprep.subr.mxu0 0.0
        %1861 = vmatpush1.msra.mxu0 0.0
        %1862 = vmatprep.subr.mxu0 0.0
        %1863 = vmatpush1.msra.mxu0 0.0
        %1864 = vmatprep.subr.mxu0 0.0
        %1865 = vmatpush1.msra.mxu0 0.0
        %1866 = vmatprep.subr.mxu0 0.0
        %1867 = vmatpush1.msra.mxu0 0.0
        %1868 = vmatprep.subr.mxu0 0.0
        %1869 = vmatpush1.msra.mxu0 0.0
        %1870 = vmatprep.subr.mxu0 0.0
        %1871 = vmatpush1.msra.mxu0 0.0
        %1872 = vmatprep.subr.mxu0 0.0
        %1873 = vmatpush1.msra.mxu0 0.0
        %1874 = vmatprep.subr.mxu0 0.0
        %1875 = vmatpush1.msra.mxu0 0.0
        %1876 = vmatprep.subr.mxu0 0.0
        %1877 = vmatpush1.msra.mxu0 0.0
        %1878 = vmatprep.subr.mxu0 0.0
        %1879 = vmatpush1.msra.mxu0 0.0
        %1880 = vmatprep.subr.mxu0 0.0
        %1881 = vmatpush1.msra.mxu0 0.0
        %1882 = vmatprep.subr.mxu0 0.0
        %1883 = vmatpush1.msra.mxu0 0.0
        %1884 = vmatprep.mubr.f32.mxu0 0.0
        %v1885 = vand.u32 %v1611, 4294901760
        %v1886 = vsub.f32 %v1611, %v1885
        %1887 = vmatmul.mubr.f32.gmra.mrb[0].mxu0 %v1886
        %v1888 = vpop.f32.mrb[0].mxu0
        %v1889 = vadd.f32 %v1801, %v1888
        %v1890 = vpop.f32.mrb[0].mxu0
        %v1891 = vadd.f32 %v1803, %v1890
        %1892 = vmatprep.mubr.f32.mxu0 0.0
        %v1893 = vand.u32 %v1614, 4294901760
        %v1894 = vsub.f32 %v1614, %v1893
        %1895 = vmatmul.mubr.f32.gmra.mrb[0].mxu0 %v1894
        %v1896 = vpop.f32.mrb[0].mxu0
        %v1897 = vadd.f32 %v1808, %v1896
        %v1898 = vpop.f32.mrb[0].mxu0
        %v1899 = vadd.f32 %v1810, %v1898
        %1900 = vdwg.mxu0
        %v1901 = vand.u32 %v1604, 4294901760
        %1902 = vmatprep.subr.mxu0 %v1901
        %v1903 = vand.u32 %v1603, 4294901760
        %1904 = vmatpush1.msra.mxu0 %v1903
        %v1905 = vand.u32 %v1620, 4294901760
        %1906 = vmatprep.subr.mxu0 %v1905
        %v1907 = vand.u32 %v1617, 4294901760
        %1908 = vmatpush1.msra.mxu0 %v1907
        %1909 = vmatprep.subr.mxu0 0.0
        %1910 = vmatpush1.msra.mxu0 0.0
        %1911 = vmatprep.subr.mxu0 0.0
        %1912 = vmatpush1.msra.mxu0 0.0
        %1913 = vmatprep.subr.mxu0 0.0
        %1914 = vmatpush1.msra.mxu0 0.0
        %1915 = vmatprep.subr.mxu0 0.0
        %1916 = vmatpush1.msra.mxu0 0.0
        %1917 = vmatprep.subr.mxu0 0.0
        %1918 = vmatpush1.msra.mxu0 0.0
        %1919 = vmatprep.subr.mxu0 0.0
        %1920 = vmatpush1.msra.mxu0 0.0
        %1921 = vmatprep.subr.mxu0 0.0
        %1922 = vmatpush1.msra.mxu0 0.0
        %1923 = vmatprep.subr.mxu0 0.0
        %1924 = vmatpush1.msra.mxu0 0.0
        %1925 = vmatprep.subr.mxu0 0.0
        %1926 = vmatpush1.msra.mxu0 0.0
        %1927 = vmatprep.subr.mxu0 0.0
        %1928 = vmatpush1.msra.mxu0 0.0
        %1929 = vmatprep.subr.mxu0 0.0
        %1930 = vmatpush1.msra.mxu0 0.0
        %1931 = vmatprep.subr.mxu0 0.0
        %1932 = vmatpush1.msra.mxu0 0.0
        %1933 = vmatprep.subr.mxu0 0.0
        %1934 = vmatpush1.msra.mxu0 0.0
        %1935 = vmatprep.subr.mxu0 0.0
        %1936 = vmatpush1.msra.mxu0 0.0
        %1937 = vmatprep.subr.mxu0 0.0
        %1938 = vmatpush1.msra.mxu0 0.0
        %1939 = vmatprep.subr.mxu0 0.0
        %1940 = vmatpush1.msra.mxu0 0.0
        %1941 = vmatprep.subr.mxu0 0.0
        %1942 = vmatpush1.msra.mxu0 0.0
        %1943 = vmatprep.subr.mxu0 0.0
        %1944 = vmatpush1.msra.mxu0 0.0
        %1945 = vmatprep.subr.mxu0 0.0
        %1946 = vmatpush1.msra.mxu0 0.0
        %1947 = vmatprep.subr.mxu0 0.0
        %1948 = vmatpush1.msra.mxu0 0.0
        %1949 = vmatprep.subr.mxu0 0.0
        %1950 = vmatpush1.msra.mxu0 0.0
        %1951 = vmatprep.subr.mxu0 0.0
        %1952 = vmatpush1.msra.mxu0 0.0
        %1953 = vmatprep.subr.mxu0 0.0
        %1954 = vmatpush1.msra.mxu0 0.0
        %1955 = vmatprep.subr.mxu0 0.0
        %1956 = vmatpush1.msra.mxu0 0.0
        %1957 = vmatprep.subr.mxu0 0.0
        %1958 = vmatpush1.msra.mxu0 0.0
        %1959 = vmatprep.subr.mxu0 0.0
        %1960 = vmatpush1.msra.mxu0 0.0
        %1961 = vmatprep.subr.mxu0 0.0
        %1962 = vmatpush1.msra.mxu0 0.0
        %1963 = vmatprep.subr.mxu0 0.0
        %1964 = vmatpush1.msra.mxu0 0.0
        %1965 = vmatprep.subr.mxu0 0.0
        %1966 = vmatpush1.msra.mxu0 0.0
        %1967 = vmatprep.subr.mxu0 0.0
        %1968 = vmatpush1.msra.mxu0 0.0
        %1969 = vmatprep.mubr.f32.mxu0 0.0
        %v1970 = vand.u32 %v1611, 4294901760
        %v1971 = vsub.f32 %v1611, %v1970
        %v1972 = vand.u32 %v1971, 4294901760
        %1973 = vmatmul.mubr.f32.gmra.mrb[0].mxu0 %v1972
        %v1974 = vpop.f32.mrb[0].mxu0
        %v1975 = vadd.f32 %v1889, %v1974
        %v1976 = vpop.f32.mrb[0].mxu0
        %v1977 = vadd.f32 %v1891, %v1976
        %1978 = vmatprep.mubr.f32.mxu0 0.0
        %v1979 = vand.u32 %v1614, 4294901760
        %v1980 = vsub.f32 %v1614, %v1979
        %v1981 = vand.u32 %v1980, 4294901760
        %1982 = vmatmul.mubr.f32.gmra.mrb[0].mxu0 %v1981
        %v1983 = vpop.f32.mrb[0].mxu0
        %v1984 = vadd.f32 %v1897, %v1983
        %v1985 = vpop.f32.mrb[0].mxu0
        %v1986 = vadd.f32 %v1899, %v1985
        %1987 = vdwg.mxu0
        %v1988 = vand.u32 %v1604, 4294901760
        %v1989 = vsub.f32 %v1604, %v1988
        %v1990 = vand.u32 %v1989, 4294901760
        %1991 = vmatprep.subr.mxu0 %v1990
        %v1992 = vand.u32 %v1603, 4294901760
        %v1993 = vsub.f32 %v1603, %v1992
        %v1994 = vand.u32 %v1993, 4294901760
        %1995 = vmatpush1.msra.mxu0 %v1994
        %v1996 = vand.u32 %v1620, 4294901760
        %v1997 = vsub.f32 %v1620, %v1996
        %v1998 = vand.u32 %v1997, 4294901760
        %1999 = vmatprep.subr.mxu0 %v1998
        %v2000 = vand.u32 %v1617, 4294901760
        %v2001 = vsub.f32 %v1617, %v2000
        %v2002 = vand.u32 %v2001, 4294901760
        %2003 = vmatpush1.msra.mxu0 %v2002
        %2004 = vmatprep.subr.mxu0 0.0
        %2005 = vmatpush1.msra.mxu0 0.0
        %2006 = vmatprep.subr.mxu0 0.0
        %2007 = vmatpush1.msra.mxu0 0.0
        %2008 = vmatprep.subr.mxu0 0.0
        %2009 = vmatpush1.msra.mxu0 0.0
        %2010 = vmatprep.subr.mxu0 0.0
        %2011 = vmatpush1.msra.mxu0 0.0
        %2012 = vmatprep.subr.mxu0 0.0
        %2013 = vmatpush1.msra.mxu0 0.0
        %2014 = vmatprep.subr.mxu0 0.0
        %2015 = vmatpush1.msra.mxu0 0.0
        %2016 = vmatprep.subr.mxu0 0.0
        %2017 = vmatpush1.msra.mxu0 0.0
        %2018 = vmatprep.subr.mxu0 0.0
        %2019 = vmatpush1.msra.mxu0 0.0
        %2020 = vmatprep.subr.mxu0 0.0
        %2021 = vmatpush1.msra.mxu0 0.0
        %2022 = vmatprep.subr.mxu0 0.0
        %2023 = vmatpush1.msra.mxu0 0.0
        %2024 = vmatprep.subr.mxu0 0.0
        %2025 = vmatpush1.msra.mxu0 0.0
        %2026 = vmatprep.subr.mxu0 0.0
        %2027 = vmatpush1.msra.mxu0 0.0
        %2028 = vmatprep.subr.mxu0 0.0
        %2029 = vmatpush1.msra.mxu0 0.0
        %2030 = vmatprep.subr.mxu0 0.0
        %2031 = vmatpush1.msra.mxu0 0.0
        %2032 = vmatprep.subr.mxu0 0.0
        %2033 = vmatpush1.msra.mxu0 0.0
        %2034 = vmatprep.subr.mxu0 0.0
        %2035 = vmatpush1.msra.mxu0 0.0
        %2036 = vmatprep.subr.mxu0 0.0
        %2037 = vmatpush1.msra.mxu0 0.0
        %2038 = vmatprep.subr.mxu0 0.0
        %2039 = vmatpush1.msra.mxu0 0.0
        %2040 = vmatprep.subr.mxu0 0.0
        %2041 = vmatpush1.msra.mxu0 0.0
        %2042 = vmatprep.subr.mxu0 0.0
        %2043 = vmatpush1.msra.mxu0 0.0
        %2044 = vmatprep.subr.mxu0 0.0
        %2045 = vmatpush1.msra.mxu0 0.0
        %2046 = vmatprep.subr.mxu0 0.0
        %2047 = vmatpush1.msra.mxu0 0.0
        %2048 = vmatprep.subr.mxu0 0.0
        %2049 = vmatpush1.msra.mxu0 0.0
        %2050 = vmatprep.subr.mxu0 0.0
        %2051 = vmatpush1.msra.mxu0 0.0
        %2052 = vmatprep.subr.mxu0 0.0
        %2053 = vmatpush1.msra.mxu0 0.0
        %2054 = vmatprep.subr.mxu0 0.0
        %2055 = vmatpush1.msra.mxu0 0.0
        %2056 = vmatprep.subr.mxu0 0.0
        %2057 = vmatpush1.msra.mxu0 0.0
        %2058 = vmatprep.subr.mxu0 0.0
        %2059 = vmatpush1.msra.mxu0 0.0
        %2060 = vmatprep.subr.mxu0 0.0
        %2061 = vmatpush1.msra.mxu0 0.0
        %2062 = vmatprep.subr.mxu0 0.0
        %2063 = vmatpush1.msra.mxu0 0.0
        %2064 = vmatprep.mubr.f32.mxu0 0.0
        %v2065 = vand.u32 %v1611, 4294901760
        %2066 = vmatmul.mubr.f32.gmra.mrb[0].mxu0 %v2065
        %v2067 = vpop.f32.mrb[0].mxu0
        %v2068 = vadd.f32 %v1975, %v2067
        %v2069 = vpop.f32.mrb[0].mxu0
        %v2070 = vadd.f32 %v1977, %v2069
        %2071 = vmatprep.mubr.f32.mxu0 0.0
        %v2072 = vand.u32 %v1614, 4294901760
        %2073 = vmatmul.mubr.f32.gmra.mrb[0].mxu0 %v2072
        %v2074 = vpop.f32.mrb[0].mxu0
        %v2075 = vadd.f32 %v1984, %v2074
        %v2076 = vpop.f32.mrb[0].mxu0
        %v2077 = vadd.f32 %v1986, %v2076
        %2078 = vdwg.mxu0
        %v2079 = vand.u32 %v1604, 4294901760
        %2080 = vmatprep.subr.mxu0 %v2079
        %v2081 = vand.u32 %v1603, 4294901760
        %2082 = vmatpush1.msra.mxu0 %v2081
        %v2083 = vand.u32 %v1620, 4294901760
        %2084 = vmatprep.subr.mxu0 %v2083
        %v2085 = vand.u32 %v1617, 4294901760
        %2086 = vmatpush1.msra.mxu0 %v2085
        %2087 = vmatprep.subr.mxu0 0.0
        %2088 = vmatpush1.msra.mxu0 0.0
        %2089 = vmatprep.subr.mxu0 0.0
        %2090 = vmatpush1.msra.mxu0 0.0
        %2091 = vmatprep.subr.mxu0 0.0
        %2092 = vmatpush1.msra.mxu0 0.0
        %2093 = vmatprep.subr.mxu0 0.0
        %2094 = vmatpush1.msra.mxu0 0.0
        %2095 = vmatprep.subr.mxu0 0.0
        %2096 = vmatpush1.msra.mxu0 0.0
        %2097 = vmatprep.subr.mxu0 0.0
        %2098 = vmatpush1.msra.mxu0 0.0
        %2099 = vmatprep.subr.mxu0 0.0
        %2100 = vmatpush1.msra.mxu0 0.0
        %2101 = vmatprep.subr.mxu0 0.0
        %2102 = vmatpush1.msra.mxu0 0.0
        %2103 = vmatprep.subr.mxu0 0.0
        %2104 = vmatpush1.msra.mxu0 0.0
        %2105 = vmatprep.subr.mxu0 0.0
        %2106 = vmatpush1.msra.mxu0 0.0
        %2107 = vmatprep.subr.mxu0 0.0
        %2108 = vmatpush1.msra.mxu0 0.0
        %2109 = vmatprep.subr.mxu0 0.0
        %2110 = vmatpush1.msra.mxu0 0.0
        %2111 = vmatprep.subr.mxu0 0.0
        %2112 = vmatpush1.msra.mxu0 0.0
        %2113 = vmatprep.subr.mxu0 0.0
        %2114 = vmatpush1.msra.mxu0 0.0
        %2115 = vmatprep.subr.mxu0 0.0
        %2116 = vmatpush1.msra.mxu0 0.0
        %2117 = vmatprep.subr.mxu0 0.0
        %2118 = vmatpush1.msra.mxu0 0.0
        %2119 = vmatprep.subr.mxu0 0.0
        %2120 = vmatpush1.msra.mxu0 0.0
        %2121 = vmatprep.subr.mxu0 0.0
        %2122 = vmatpush1.msra.mxu0 0.0
        %2123 = vmatprep.subr.mxu0 0.0
        %2124 = vmatpush1.msra.mxu0 0.0
        %2125 = vmatprep.subr.mxu0 0.0
        %2126 = vmatpush1.msra.mxu0 0.0
        %2127 = vmatprep.subr.mxu0 0.0
        %2128 = vmatpush1.msra.mxu0 0.0
        %2129 = vmatprep.subr.mxu0 0.0
        %2130 = vmatpush1.msra.mxu0 0.0
        %2131 = vmatprep.subr.mxu0 0.0
        %2132 = vmatpush1.msra.mxu0 0.0
        %2133 = vmatprep.subr.mxu0 0.0
        %2134 = vmatpush1.msra.mxu0 0.0
        %2135 = vmatprep.subr.mxu0 0.0
        %2136 = vmatpush1.msra.mxu0 0.0
        %2137 = vmatprep.subr.mxu0 0.0
        %2138 = vmatpush1.msra.mxu0 0.0
        %2139 = vmatprep.subr.mxu0 0.0
        %2140 = vmatpush1.msra.mxu0 0.0
        %2141 = vmatprep.subr.mxu0 0.0
        %2142 = vmatpush1.msra.mxu0 0.0
        %2143 = vmatprep.subr.mxu0 0.0
        %2144 = vmatpush1.msra.mxu0 0.0
        %2145 = vmatprep.subr.mxu0 0.0
        %2146 = vmatpush1.msra.mxu0 0.0
        %2147 = vmatprep.mubr.f32.mxu0 0.0
        %v2148 = vand.u32 %v1611, 4294901760
        %2149 = vmatmul.mubr.f32.gmra.mrb[0].mxu0 %v2148
        %v2150 = vpop.f32.mrb[0].mxu0
        %v2151 = vadd.f32 %v2068, %v2150
        %v2152 = vpop.f32.mrb[0].mxu0
        %v2153 = vadd.f32 %v2070, %v2152
        %2154 = vmatprep.mubr.f32.mxu0 0.0
        %v2155 = vand.u32 %v1614, 4294901760
        %2156 = vmatmul.mubr.f32.gmra.mrb[0].mxu0 %v2155
        %v2157 = vpop.f32.mrb[0].mxu0
        %v2158 = vadd.f32 %v2075, %v2157
        %v2159 = vpop.f32.mrb[0].mxu0
        %v2160 = vadd.f32 %v2077, %v2159
        %2161 = vdwg.mxu0
        %v2162 = vadd.f32 %v1560, %v2151
        %v2163 = vadd.f32 %v1562, %v2153
        %v2164 = vadd.f32 %v1567, %v2158
        %v2165 = vadd.f32 %v1569, %v2160
        %2166 = vrot.lane.b32.xlu0 %v382, 1
        %v2167 = vpop.permute.xlu0 %2166
        %2168 = vrot.lane.b32.xlu0 %v384, 1
        %v2169 = vpop.permute.xlu0 %2168
        %2172 = vrot.lane.b32.xlu0 %v381, 1
        %v2173 = vpop.permute.xlu0 %2172
        %2174 = vrot.lane.b32.xlu0 %v383, 1
        %v2175 = vpop.permute.xlu0 %2174
        %vm2176 = vcmask 7168
        %v2177 = vsel %vm2176, %v2173, %v2167
        %v2178 = vsel %vm2176, %v2175, %v2169
        %v2183 = vsel %vm2176, %v2167, %v2173
        %v2184 = vsel %vm2176, %v2169, %v2175
        %s2185 = scalar_lea.vmem %s2, 3
        %v2186 = vld [vmem:[%s2185] ss:$8 sm:$0x3]
        %v2188 = vlaneseq
        %v2189 = vshrl.u32 %v2188, 7
        %v2190 = vsub.s32 0, %v2189
        %v2191 = vrot.slane %v2186, %v2190
        %v2192 = vlaneseq
        %v2193 = vshrl.u32 %v2192, 7
        %v2194 = vsub.s32 1, %v2193
        %v2195 = vrot.slane %v2186, %v2194
        %v2198 = vmul.f32 %v2183, %v2191
        %v2199 = vmul.f32 %v2177, %v2195
        %v2200 = vmul.f32 %v2184, %v2191
        %v2201 = vmul.f32 %v2178, %v2195
        %s2202 = scalar_lea.vmem [#allocation2], 48
        %v2203 = vld [vmem:[%s2202] sm:$0xff]
        %v2204 = vld [vmem:[%s2202 + $0x8] sm:$0xf]
        %v2206 = vsel %vm465, %v2203, 0
        %v2209 = vsel %vm465, %v2204, 0
        %v2212 = vsel %vm472, %v2200, 0
        %v2215 = vsel %vm472, %v2201, 0
        %v2217 = vand.u32 %v2199, 4294901760
        %2218 = vmatprep.subr.mxu0 %v2217
        %v2219 = vand.u32 %v2198, 4294901760
        %2220 = vmatpush1.msra.mxu0 %v2219
        %v2221 = vand.u32 %v2215, 4294901760
        %2222 = vmatprep.subr.mxu0 %v2221
        %v2223 = vand.u32 %v2212, 4294901760
        %2224 = vmatpush1.msra.mxu0 %v2223
        %2225 = vmatprep.subr.mxu0 0.0
        %2226 = vmatpush1.msra.mxu0 0.0
        %2227 = vmatprep.subr.mxu0 0.0
        %2228 = vmatpush1.msra.mxu0 0.0
        %2229 = vmatprep.subr.mxu0 0.0
        %2230 = vmatpush1.msra.mxu0 0.0
        %2231 = vmatprep.subr.mxu0 0.0
        %2232 = vmatpush1.msra.mxu0 0.0
        %2233 = vmatprep.subr.mxu0 0.0
        %2234 = vmatpush1.msra.mxu0 0.0
        %2235 = vmatprep.subr.mxu0 0.0
        %2236 = vmatpush1.msra.mxu0 0.0
        %2237 = vmatprep.subr.mxu0 0.0
        %2238 = vmatpush1.msra.mxu0 0.0
        %2239 = vmatprep.subr.mxu0 0.0
        %2240 = vmatpush1.msra.mxu0 0.0
        %2241 = vmatprep.subr.mxu0 0.0
        %2242 = vmatpush1.msra.mxu0 0.0
        %2243 = vmatprep.subr.mxu0 0.0
        %2244 = vmatpush1.msra.mxu0 0.0
        %2245 = vmatprep.subr.mxu0 0.0
        %2246 = vmatpush1.msra.mxu0 0.0
        %2247 = vmatprep.subr.mxu0 0.0
        %2248 = vmatpush1.msra.mxu0 0.0
        %2249 = vmatprep.subr.mxu0 0.0
        %2250 = vmatpush1.msra.mxu0 0.0
        %2251 = vmatprep.subr.mxu0 0.0
        %2252 = vmatpush1.msra.mxu0 0.0
        %2253 = vmatprep.subr.mxu0 0.0
        %2254 = vmatpush1.msra.mxu0 0.0
        %2255 = vmatprep.subr.mxu0 0.0
        %2256 = vmatpush1.msra.mxu0 0.0
        %2257 = vmatprep.subr.mxu0 0.0
        %2258 = vmatpush1.msra.mxu0 0.0
        %2259 = vmatprep.subr.mxu0 0.0
        %2260 = vmatpush1.msra.mxu0 0.0
        %2261 = vmatprep.subr.mxu0 0.0
        %2262 = vmatpush1.msra.mxu0 0.0
        %2263 = vmatprep.subr.mxu0 0.0
        %2264 = vmatpush1.msra.mxu0 0.0
        %2265 = vmatprep.subr.mxu0 0.0
        %2266 = vmatpush1.msra.mxu0 0.0
        %2267 = vmatprep.subr.mxu0 0.0
        %2268 = vmatpush1.msra.mxu0 0.0
        %2269 = vmatprep.subr.mxu0 0.0
        %2270 = vmatpush1.msra.mxu0 0.0
        %2271 = vmatprep.subr.mxu0 0.0
        %2272 = vmatpush1.msra.mxu0 0.0
        %2273 = vmatprep.subr.mxu0 0.0
        %2274 = vmatpush1.msra.mxu0 0.0
        %2275 = vmatprep.subr.mxu0 0.0
        %2276 = vmatpush1.msra.mxu0 0.0
        %2277 = vmatprep.subr.mxu0 0.0
        %2278 = vmatpush1.msra.mxu0 0.0
        %2279 = vmatprep.subr.mxu0 0.0
        %2280 = vmatpush1.msra.mxu0 0.0
        %2281 = vmatprep.subr.mxu0 0.0
        %2282 = vmatpush1.msra.mxu0 0.0
        %2283 = vmatprep.subr.mxu0 0.0
        %2284 = vmatpush1.msra.mxu0 0.0
        %2285 = vmatprep.mubr.f32.mxu0 0.0
        %v2286 = vand.u32 %v2206, 4294901760
        %v2287 = vsub.f32 %v2206, %v2286
        %v2288 = vand.u32 %v2287, 4294901760
        %v2289 = vsub.f32 %v2287, %v2288
        %v2290 = vand.u32 %v2289, 4294901760
        %2291 = vmatmul.mubr.f32.gmra.mrb[0].mxu0 %v2290
        %v2292 = vpop.f32.mrb[0].mxu0
        %v2293 = vadd.f32 0.0, %v2292
        %v2294 = vpop.f32.mrb[0].mxu0
        %v2295 = vadd.f32 0.0, %v2294
        %2296 = vmatprep.mubr.f32.mxu0 0.0
        %v2297 = vand.u32 %v2209, 4294901760
        %v2298 = vsub.f32 %v2209, %v2297
        %v2299 = vand.u32 %v2298, 4294901760
        %v2300 = vsub.f32 %v2298, %v2299
        %v2301 = vand.u32 %v2300, 4294901760
        %2302 = vmatmul.mubr.f32.gmra.mrb[0].mxu0 %v2301
        %v2303 = vpop.f32.mrb[0].mxu0
        %v2304 = vadd.f32 0.0, %v2303
        %v2305 = vpop.f32.mrb[0].mxu0
        %v2306 = vadd.f32 0.0, %v2305
        %2307 = vdwg.mxu0
        %v2308 = vand.u32 %v2199, 4294901760
        %v2309 = vsub.f32 %v2199, %v2308
        %v2310 = vand.u32 %v2309, 4294901760
        %v2311 = vsub.f32 %v2309, %v2310
        %v2312 = vand.u32 %v2311, 4294901760
        %2313 = vmatprep.subr.mxu0 %v2312
        %v2314 = vand.u32 %v2198, 4294901760
        %v2315 = vsub.f32 %v2198, %v2314
        %v2316 = vand.u32 %v2315, 4294901760
        %v2317 = vsub.f32 %v2315, %v2316
        %v2318 = vand.u32 %v2317, 4294901760
        %2319 = vmatpush1.msra.mxu0 %v2318
        %v2320 = vand.u32 %v2215, 4294901760
        %v2321 = vsub.f32 %v2215, %v2320
        %v2322 = vand.u32 %v2321, 4294901760
        %v2323 = vsub.f32 %v2321, %v2322
        %v2324 = vand.u32 %v2323, 4294901760
        %2325 = vmatprep.subr.mxu0 %v2324
        %v2326 = vand.u32 %v2212, 4294901760
        %v2327 = vsub.f32 %v2212, %v2326
        %v2328 = vand.u32 %v2327, 4294901760
        %v2329 = vsub.f32 %v2327, %v2328
        %v2330 = vand.u32 %v2329, 4294901760
        %2331 = vmatpush1.msra.mxu0 %v2330
        %2332 = vmatprep.subr.mxu0 0.0
        %2333 = vmatpush1.msra.mxu0 0.0
        %2334 = vmatprep.subr.mxu0 0.0
        %2335 = vmatpush1.msra.mxu0 0.0
        %2336 = vmatprep.subr.mxu0 0.0
        %2337 = vmatpush1.msra.mxu0 0.0
        %2338 = vmatprep.subr.mxu0 0.0
        %2339 = vmatpush1.msra.mxu0 0.0
        %2340 = vmatprep.subr.mxu0 0.0
        %2341 = vmatpush1.msra.mxu0 0.0
        %2342 = vmatprep.subr.mxu0 0.0
        %2343 = vmatpush1.msra.mxu0 0.0
        %2344 = vmatprep.subr.mxu0 0.0
        %2345 = vmatpush1.msra.mxu0 0.0
        %2346 = vmatprep.subr.mxu0 0.0
        %2347 = vmatpush1.msra.mxu0 0.0
        %2348 = vmatprep.subr.mxu0 0.0
        %2349 = vmatpush1.msra.mxu0 0.0
        %2350 = vmatprep.subr.mxu0 0.0
        %2351 = vmatpush1.msra.mxu0 0.0
        %2352 = vmatprep.subr.mxu0 0.0
        %2353 = vmatpush1.msra.mxu0 0.0
        %2354 = vmatprep.subr.mxu0 0.0
        %2355 = vmatpush1.msra.mxu0 0.0
        %2356 = vmatprep.subr.mxu0 0.0
        %2357 = vmatpush1.msra.mxu0 0.0
        %2358 = vmatprep.subr.mxu0 0.0
        %2359 = vmatpush1.msra.mxu0 0.0
        %2360 = vmatprep.subr.mxu0 0.0
        %2361 = vmatpush1.msra.mxu0 0.0
        %2362 = vmatprep.subr.mxu0 0.0
        %2363 = vmatpush1.msra.mxu0 0.0
        %2364 = vmatprep.subr.mxu0 0.0
        %2365 = vmatpush1.msra.mxu0 0.0
        %2366 = vmatprep.subr.mxu0 0.0
        %2367 = vmatpush1.msra.mxu0 0.0
        %2368 = vmatprep.subr.mxu0 0.0
        %2369 = vmatpush1.msra.mxu0 0.0
        %2370 = vmatprep.subr.mxu0 0.0
        %2371 = vmatpush1.msra.mxu0 0.0
        %2372 = vmatprep.subr.mxu0 0.0
        %2373 = vmatpush1.msra.mxu0 0.0
        %2374 = vmatprep.subr.mxu0 0.0
        %2375 = vmatpush1.msra.mxu0 0.0
        %2376 = vmatprep.subr.mxu0 0.0
        %2377 = vmatpush1.msra.mxu0 0.0
        %2378 = vmatprep.subr.mxu0 0.0
        %2379 = vmatpush1.msra.mxu0 0.0
        %2380 = vmatprep.subr.mxu0 0.0
        %2381 = vmatpush1.msra.mxu0 0.0
        %2382 = vmatprep.subr.mxu0 0.0
        %2383 = vmatpush1.msra.mxu0 0.0
        %2384 = vmatprep.subr.mxu0 0.0
        %2385 = vmatpush1.msra.mxu0 0.0
        %2386 = vmatprep.subr.mxu0 0.0
        %2387 = vmatpush1.msra.mxu0 0.0
        %2388 = vmatprep.subr.mxu0 0.0
        %2389 = vmatpush1.msra.mxu0 0.0
        %2390 = vmatprep.subr.mxu0 0.0
        %2391 = vmatpush1.msra.mxu0 0.0
        %2392 = vmatprep.mubr.f32.mxu0 0.0
        %v2393 = vand.u32 %v2206, 4294901760
        %2394 = vmatmul.mubr.f32.gmra.mrb[0].mxu0 %v2393
        %v2395 = vpop.f32.mrb[0].mxu0
        %v2396 = vadd.f32 %v2293, %v2395
        %v2397 = vpop.f32.mrb[0].mxu0
        %v2398 = vadd.f32 %v2295, %v2397
        %2399 = vmatprep.mubr.f32.mxu0 0.0
        %v2400 = vand.u32 %v2209, 4294901760
        %2401 = vmatmul.mubr.f32.gmra.mrb[0].mxu0 %v2400
        %v2402 = vpop.f32.mrb[0].mxu0
        %v2403 = vadd.f32 %v2304, %v2402
        %v2404 = vpop.f32.mrb[0].mxu0
        %v2405 = vadd.f32 %v2306, %v2404
        %2406 = vdwg.mxu0
        %v2407 = vand.u32 %v2199, 4294901760
        %v2408 = vsub.f32 %v2199, %v2407
        %2409 = vmatprep.subr.mxu0 %v2408
        %v2410 = vand.u32 %v2198, 4294901760
        %v2411 = vsub.f32 %v2198, %v2410
        %2412 = vmatpush1.msra.mxu0 %v2411
        %v2413 = vand.u32 %v2215, 4294901760
        %v2414 = vsub.f32 %v2215, %v2413
        %2415 = vmatprep.subr.mxu0 %v2414
        %v2416 = vand.u32 %v2212, 4294901760
        %v2417 = vsub.f32 %v2212, %v2416
        %2418 = vmatpush1.msra.mxu0 %v2417
        %2419 = vmatprep.subr.mxu0 0.0
        %2420 = vmatpush1.msra.mxu0 0.0
        %2421 = vmatprep.subr.mxu0 0.0
        %2422 = vmatpush1.msra.mxu0 0.0
        %2423 = vmatprep.subr.mxu0 0.0
        %2424 = vmatpush1.msra.mxu0 0.0
        %2425 = vmatprep.subr.mxu0 0.0
        %2426 = vmatpush1.msra.mxu0 0.0
        %2427 = vmatprep.subr.mxu0 0.0
        %2428 = vmatpush1.msra.mxu0 0.0
        %2429 = vmatprep.subr.mxu0 0.0
        %2430 = vmatpush1.msra.mxu0 0.0
        %2431 = vmatprep.subr.mxu0 0.0
        %2432 = vmatpush1.msra.mxu0 0.0
        %2433 = vmatprep.subr.mxu0 0.0
        %2434 = vmatpush1.msra.mxu0 0.0
        %2435 = vmatprep.subr.mxu0 0.0
        %2436 = vmatpush1.msra.mxu0 0.0
        %2437 = vmatprep.subr.mxu0 0.0
        %2438 = vmatpush1.msra.mxu0 0.0
        %2439 = vmatprep.subr.mxu0 0.0
        %2440 = vmatpush1.msra.mxu0 0.0
        %2441 = vmatprep.subr.mxu0 0.0
        %2442 = vmatpush1.msra.mxu0 0.0
        %2443 = vmatprep.subr.mxu0 0.0
        %2444 = vmatpush1.msra.mxu0 0.0
        %2445 = vmatprep.subr.mxu0 0.0
        %2446 = vmatpush1.msra.mxu0 0.0
        %2447 = vmatprep.subr.mxu0 0.0
        %2448 = vmatpush1.msra.mxu0 0.0
        %2449 = vmatprep.subr.mxu0 0.0
        %2450 = vmatpush1.msra.mxu0 0.0
        %2451 = vmatprep.subr.mxu0 0.0
        %2452 = vmatpush1.msra.mxu0 0.0
        %2453 = vmatprep.subr.mxu0 0.0
        %2454 = vmatpush1.msra.mxu0 0.0
        %2455 = vmatprep.subr.mxu0 0.0
        %2456 = vmatpush1.msra.mxu0 0.0
        %2457 = vmatprep.subr.mxu0 0.0
        %2458 = vmatpush1.msra.mxu0 0.0
        %2459 = vmatprep.subr.mxu0 0.0
        %2460 = vmatpush1.msra.mxu0 0.0
        %2461 = vmatprep.subr.mxu0 0.0
        %2462 = vmatpush1.msra.mxu0 0.0
        %2463 = vmatprep.subr.mxu0 0.0
        %2464 = vmatpush1.msra.mxu0 0.0
        %2465 = vmatprep.subr.mxu0 0.0
        %2466 = vmatpush1.msra.mxu0 0.0
        %2467 = vmatprep.subr.mxu0 0.0
        %2468 = vmatpush1.msra.mxu0 0.0
        %2469 = vmatprep.subr.mxu0 0.0
        %2470 = vmatpush1.msra.mxu0 0.0
        %2471 = vmatprep.subr.mxu0 0.0
        %2472 = vmatpush1.msra.mxu0 0.0
        %2473 = vmatprep.subr.mxu0 0.0
        %2474 = vmatpush1.msra.mxu0 0.0
        %2475 = vmatprep.subr.mxu0 0.0
        %2476 = vmatpush1.msra.mxu0 0.0
        %2477 = vmatprep.subr.mxu0 0.0
        %2478 = vmatpush1.msra.mxu0 0.0
        %2479 = vmatprep.mubr.f32.mxu0 0.0
        %v2480 = vand.u32 %v2206, 4294901760
        %v2481 = vsub.f32 %v2206, %v2480
        %2482 = vmatmul.mubr.f32.gmra.mrb[0].mxu0 %v2481
        %v2483 = vpop.f32.mrb[0].mxu0
        %v2484 = vadd.f32 %v2396, %v2483
        %v2485 = vpop.f32.mrb[0].mxu0
        %v2486 = vadd.f32 %v2398, %v2485
        %2487 = vmatprep.mubr.f32.mxu0 0.0
        %v2488 = vand.u32 %v2209, 4294901760
        %v2489 = vsub.f32 %v2209, %v2488
        %2490 = vmatmul.mubr.f32.gmra.mrb[0].mxu0 %v2489
        %v2491 = vpop.f32.mrb[0].mxu0
        %v2492 = vadd.f32 %v2403, %v2491
        %v2493 = vpop.f32.mrb[0].mxu0
        %v2494 = vadd.f32 %v2405, %v2493
        %2495 = vdwg.mxu0
        %v2496 = vand.u32 %v2199, 4294901760
        %2497 = vmatprep.subr.mxu0 %v2496
        %v2498 = vand.u32 %v2198, 4294901760
        %2499 = vmatpush1.msra.mxu0 %v2498
        %v2500 = vand.u32 %v2215, 4294901760
        %2501 = vmatprep.subr.mxu0 %v2500
        %v2502 = vand.u32 %v2212, 4294901760
        %2503 = vmatpush1.msra.mxu0 %v2502
        %2504 = vmatprep.subr.mxu0 0.0
        %2505 = vmatpush1.msra.mxu0 0.0
        %2506 = vmatprep.subr.mxu0 0.0
        %2507 = vmatpush1.msra.mxu0 0.0
        %2508 = vmatprep.subr.mxu0 0.0
        %2509 = vmatpush1.msra.mxu0 0.0
        %2510 = vmatprep.subr.mxu0 0.0
        %2511 = vmatpush1.msra.mxu0 0.0
        %2512 = vmatprep.subr.mxu0 0.0
        %2513 = vmatpush1.msra.mxu0 0.0
        %2514 = vmatprep.subr.mxu0 0.0
        %2515 = vmatpush1.msra.mxu0 0.0
        %2516 = vmatprep.subr.mxu0 0.0
        %2517 = vmatpush1.msra.mxu0 0.0
        %2518 = vmatprep.subr.mxu0 0.0
        %2519 = vmatpush1.msra.mxu0 0.0
        %2520 = vmatprep.subr.mxu0 0.0
        %2521 = vmatpush1.msra.mxu0 0.0
        %2522 = vmatprep.subr.mxu0 0.0
        %2523 = vmatpush1.msra.mxu0 0.0
        %2524 = vmatprep.subr.mxu0 0.0
        %2525 = vmatpush1.msra.mxu0 0.0
        %2526 = vmatprep.subr.mxu0 0.0
        %2527 = vmatpush1.msra.mxu0 0.0
        %2528 = vmatprep.subr.mxu0 0.0
        %2529 = vmatpush1.msra.mxu0 0.0
        %2530 = vmatprep.subr.mxu0 0.0
        %2531 = vmatpush1.msra.mxu0 0.0
        %2532 = vmatprep.subr.mxu0 0.0
        %2533 = vmatpush1.msra.mxu0 0.0
        %2534 = vmatprep.subr.mxu0 0.0
        %2535 = vmatpush1.msra.mxu0 0.0
        %2536 = vmatprep.subr.mxu0 0.0
        %2537 = vmatpush1.msra.mxu0 0.0
        %2538 = vmatprep.subr.mxu0 0.0
        %2539 = vmatpush1.msra.mxu0 0.0
        %2540 = vmatprep.subr.mxu0 0.0
        %2541 = vmatpush1.msra.mxu0 0.0
        %2542 = vmatprep.subr.mxu0 0.0
        %2543 = vmatpush1.msra.mxu0 0.0
        %2544 = vmatprep.subr.mxu0 0.0
        %2545 = vmatpush1.msra.mxu0 0.0
        %2546 = vmatprep.subr.mxu0 0.0
        %2547 = vmatpush1.msra.mxu0 0.0
        %2548 = vmatprep.subr.mxu0 0.0
        %2549 = vmatpush1.msra.mxu0 0.0
        %2550 = vmatprep.subr.mxu0 0.0
        %2551 = vmatpush1.msra.mxu0 0.0
        %2552 = vmatprep.subr.mxu0 0.0
        %2553 = vmatpush1.msra.mxu0 0.0
        %2554 = vmatprep.subr.mxu0 0.0
        %2555 = vmatpush1.msra.mxu0 0.0
        %2556 = vmatprep.subr.mxu0 0.0
        %2557 = vmatpush1.msra.mxu0 0.0
        %2558 = vmatprep.subr.mxu0 0.0
        %2559 = vmatpush1.msra.mxu0 0.0
        %2560 = vmatprep.subr.mxu0 0.0
        %2561 = vmatpush1.msra.mxu0 0.0
        %2562 = vmatprep.subr.mxu0 0.0
        %2563 = vmatpush1.msra.mxu0 0.0
        %2564 = vmatprep.mubr.f32.mxu0 0.0
        %v2565 = vand.u32 %v2206, 4294901760
        %v2566 = vsub.f32 %v2206, %v2565
        %v2567 = vand.u32 %v2566, 4294901760
        %2568 = vmatmul.mubr.f32.gmra.mrb[0].mxu0 %v2567
        %v2569 = vpop.f32.mrb[0].mxu0
        %v2570 = vadd.f32 %v2484, %v2569
        %v2571 = vpop.f32.mrb[0].mxu0
        %v2572 = vadd.f32 %v2486, %v2571
        %2573 = vmatprep.mubr.f32.mxu0 0.0
        %v2574 = vand.u32 %v2209, 4294901760
        %v2575 = vsub.f32 %v2209, %v2574
        %v2576 = vand.u32 %v2575, 4294901760
        %2577 = vmatmul.mubr.f32.gmra.mrb[0].mxu0 %v2576
        %v2578 = vpop.f32.mrb[0].mxu0
        %v2579 = vadd.f32 %v2492, %v2578
        %v2580 = vpop.f32.mrb[0].mxu0
        %v2581 = vadd.f32 %v2494, %v2580
        %2582 = vdwg.mxu0
        %v2583 = vand.u32 %v2199, 4294901760
        %v2584 = vsub.f32 %v2199, %v2583
        %v2585 = vand.u32 %v2584, 4294901760
        %2586 = vmatprep.subr.mxu0 %v2585
        %v2587 = vand.u32 %v2198, 4294901760
        %v2588 = vsub.f32 %v2198, %v2587
        %v2589 = vand.u32 %v2588, 4294901760
        %2590 = vmatpush1.msra.mxu0 %v2589
        %v2591 = vand.u32 %v2215, 4294901760
        %v2592 = vsub.f32 %v2215, %v2591
        %v2593 = vand.u32 %v2592, 4294901760
        %2594 = vmatprep.subr.mxu0 %v2593
        %v2595 = vand.u32 %v2212, 4294901760
        %v2596 = vsub.f32 %v2212, %v2595
        %v2597 = vand.u32 %v2596, 4294901760
        %2598 = vmatpush1.msra.mxu0 %v2597
        %2599 = vmatprep.subr.mxu0 0.0
        %2600 = vmatpush1.msra.mxu0 0.0
        %2601 = vmatprep.subr.mxu0 0.0
        %2602 = vmatpush1.msra.mxu0 0.0
        %2603 = vmatprep.subr.mxu0 0.0
        %2604 = vmatpush1.msra.mxu0 0.0
        %2605 = vmatprep.subr.mxu0 0.0
        %2606 = vmatpush1.msra.mxu0 0.0
        %2607 = vmatprep.subr.mxu0 0.0
        %2608 = vmatpush1.msra.mxu0 0.0
        %2609 = vmatprep.subr.mxu0 0.0
        %2610 = vmatpush1.msra.mxu0 0.0
        %2611 = vmatprep.subr.mxu0 0.0
        %2612 = vmatpush1.msra.mxu0 0.0
        %2613 = vmatprep.subr.mxu0 0.0
        %2614 = vmatpush1.msra.mxu0 0.0
        %2615 = vmatprep.subr.mxu0 0.0
        %2616 = vmatpush1.msra.mxu0 0.0
        %2617 = vmatprep.subr.mxu0 0.0
        %2618 = vmatpush1.msra.mxu0 0.0
        %2619 = vmatprep.subr.mxu0 0.0
        %2620 = vmatpush1.msra.mxu0 0.0
        %2621 = vmatprep.subr.mxu0 0.0
        %2622 = vmatpush1.msra.mxu0 0.0
        %2623 = vmatprep.subr.mxu0 0.0
        %2624 = vmatpush1.msra.mxu0 0.0
        %2625 = vmatprep.subr.mxu0 0.0
        %2626 = vmatpush1.msra.mxu0 0.0
        %2627 = vmatprep.subr.mxu0 0.0
        %2628 = vmatpush1.msra.mxu0 0.0
        %2629 = vmatprep.subr.mxu0 0.0
        %2630 = vmatpush1.msra.mxu0 0.0
        %2631 = vmatprep.subr.mxu0 0.0
        %2632 = vmatpush1.msra.mxu0 0.0
        %2633 = vmatprep.subr.mxu0 0.0
        %2634 = vmatpush1.msra.mxu0 0.0
        %2635 = vmatprep.subr.mxu0 0.0
        %2636 = vmatpush1.msra.mxu0 0.0
        %2637 = vmatprep.subr.mxu0 0.0
        %2638 = vmatpush1.msra.mxu0 0.0
        %2639 = vmatprep.subr.mxu0 0.0
        %2640 = vmatpush1.msra.mxu0 0.0
        %2641 = vmatprep.subr.mxu0 0.0
        %2642 = vmatpush1.msra.mxu0 0.0
        %2643 = vmatprep.subr.mxu0 0.0
        %2644 = vmatpush1.msra.mxu0 0.0
        %2645 = vmatprep.subr.mxu0 0.0
        %2646 = vmatpush1.msra.mxu0 0.0
        %2647 = vmatprep.subr.mxu0 0.0
        %2648 = vmatpush1.msra.mxu0 0.0
        %2649 = vmatprep.subr.mxu0 0.0
        %2650 = vmatpush1.msra.mxu0 0.0
        %2651 = vmatprep.subr.mxu0 0.0
        %2652 = vmatpush1.msra.mxu0 0.0
        %2653 = vmatprep.subr.mxu0 0.0
        %2654 = vmatpush1.msra.mxu0 0.0
        %2655 = vmatprep.subr.mxu0 0.0
        %2656 = vmatpush1.msra.mxu0 0.0
        %2657 = vmatprep.subr.mxu0 0.0
        %2658 = vmatpush1.msra.mxu0 0.0
        %2659 = vmatprep.mubr.f32.mxu0 0.0
        %v2660 = vand.u32 %v2206, 4294901760
        %2661 = vmatmul.mubr.f32.gmra.mrb[0].mxu0 %v2660
        %v2662 = vpop.f32.mrb[0].mxu0
        %v2663 = vadd.f32 %v2570, %v2662
        %v2664 = vpop.f32.mrb[0].mxu0
        %v2665 = vadd.f32 %v2572, %v2664
        %2666 = vmatprep.mubr.f32.mxu0 0.0
        %v2667 = vand.u32 %v2209, 4294901760
        %2668 = vmatmul.mubr.f32.gmra.mrb[0].mxu0 %v2667
        %v2669 = vpop.f32.mrb[0].mxu0
        %v2670 = vadd.f32 %v2579, %v2669
        %v2671 = vpop.f32.mrb[0].mxu0
        %v2672 = vadd.f32 %v2581, %v2671
        %2673 = vdwg.mxu0
        %v2674 = vand.u32 %v2199, 4294901760
        %2675 = vmatprep.subr.mxu0 %v2674
        %v2676 = vand.u32 %v2198, 4294901760
        %2677 = vmatpush1.msra.mxu0 %v2676
        %v2678 = vand.u32 %v2215, 4294901760
        %2679 = vmatprep.subr.mxu0 %v2678
        %v2680 = vand.u32 %v2212, 4294901760
        %2681 = vmatpush1.msra.mxu0 %v2680
        %2682 = vmatprep.subr.mxu0 0.0
        %2683 = vmatpush1.msra.mxu0 0.0
        %2684 = vmatprep.subr.mxu0 0.0
        %2685 = vmatpush1.msra.mxu0 0.0
        %2686 = vmatprep.subr.mxu0 0.0
        %2687 = vmatpush1.msra.mxu0 0.0
        %2688 = vmatprep.subr.mxu0 0.0
        %2689 = vmatpush1.msra.mxu0 0.0
        %2690 = vmatprep.subr.mxu0 0.0
        %2691 = vmatpush1.msra.mxu0 0.0
        %2692 = vmatprep.subr.mxu0 0.0
        %2693 = vmatpush1.msra.mxu0 0.0
        %2694 = vmatprep.subr.mxu0 0.0
        %2695 = vmatpush1.msra.mxu0 0.0
        %2696 = vmatprep.subr.mxu0 0.0
        %2697 = vmatpush1.msra.mxu0 0.0
        %2698 = vmatprep.subr.mxu0 0.0
        %2699 = vmatpush1.msra.mxu0 0.0
        %2700 = vmatprep.subr.mxu0 0.0
        %2701 = vmatpush1.msra.mxu0 0.0
        %2702 = vmatprep.subr.mxu0 0.0
        %2703 = vmatpush1.msra.mxu0 0.0
        %2704 = vmatprep.subr.mxu0 0.0
        %2705 = vmatpush1.msra.mxu0 0.0
        %2706 = vmatprep.subr.mxu0 0.0
        %2707 = vmatpush1.msra.mxu0 0.0
        %2708 = vmatprep.subr.mxu0 0.0
        %2709 = vmatpush1.msra.mxu0 0.0
        %2710 = vmatprep.subr.mxu0 0.0
        %2711 = vmatpush1.msra.mxu0 0.0
        %2712 = vmatprep.subr.mxu0 0.0
        %2713 = vmatpush1.msra.mxu0 0.0
        %2714 = vmatprep.subr.mxu0 0.0
        %2715 = vmatpush1.msra.mxu0 0.0
        %2716 = vmatprep.subr.mxu0 0.0
        %2717 = vmatpush1.msra.mxu0 0.0
        %2718 = vmatprep.subr.mxu0 0.0
        %2719 = vmatpush1.msra.mxu0 0.0
        %2720 = vmatprep.subr.mxu0 0.0
        %2721 = vmatpush1.msra.mxu0 0.0
        %2722 = vmatprep.subr.mxu0 0.0
        %2723 = vmatpush1.msra.mxu0 0.0
        %2724 = vmatprep.subr.mxu0 0.0
        %2725 = vmatpush1.msra.mxu0 0.0
        %2726 = vmatprep.subr.mxu0 0.0
        %2727 = vmatpush1.msra.mxu0 0.0
        %2728 = vmatprep.subr.mxu0 0.0
        %2729 = vmatpush1.msra.mxu0 0.0
        %2730 = vmatprep.subr.mxu0 0.0
        %2731 = vmatpush1.msra.mxu0 0.0
        %2732 = vmatprep.subr.mxu0 0.0
        %2733 = vmatpush1.msra.mxu0 0.0
        %2734 = vmatprep.subr.mxu0 0.0
        %2735 = vmatpush1.msra.mxu0 0.0
        %2736 = vmatprep.subr.mxu0 0.0
        %2737 = vmatpush1.msra.mxu0 0.0
        %2738 = vmatprep.subr.mxu0 0.0
        %2739 = vmatpush1.msra.mxu0 0.0
        %2740 = vmatprep.subr.mxu0 0.0
        %2741 = vmatpush1.msra.mxu0 0.0
        %2742 = vmatprep.mubr.f32.mxu0 0.0
        %v2743 = vand.u32 %v2206, 4294901760
        %2744 = vmatmul.mubr.f32.gmra.mrb[0].mxu0 %v2743
        %v2745 = vpop.f32.mrb[0].mxu0
        %v2746 = vadd.f32 %v2663, %v2745
        %v2747 = vpop.f32.mrb[0].mxu0
        %v2748 = vadd.f32 %v2665, %v2747
        %2749 = vmatprep.mubr.f32.mxu0 0.0
        %v2750 = vand.u32 %v2209, 4294901760
        %2751 = vmatmul.mubr.f32.gmra.mrb[0].mxu0 %v2750
        %v2752 = vpop.f32.mrb[0].mxu0
        %v2753 = vadd.f32 %v2670, %v2752
        %v2754 = vpop.f32.mrb[0].mxu0
        %v2755 = vadd.f32 %v2672, %v2754
        %2756 = vdwg.mxu0
        %v2757 = vadd.f32 %v2162, %v2746
        %v2758 = vadd.f32 %v2163, %v2748
        %v2759 = vadd.f32 %v2164, %v2753
        %v2760 = vadd.f32 %v2165, %v2755
        %s2761 = scalar_lea.vmem [#allocation2], 64
        %v2762 = vld [vmem:[%s2761] sm:$0xff]
        %v2763 = vld [vmem:[%s2761 + $0x8] sm:$0xf]
        %v2765 = vsel %vm465, %v2762, 0
        %v2768 = vsel %vm465, %v2763, 0
        %v2770 = vsel %vm472, %v383, 0
        %v2772 = vsel %vm472, %v384, 0
        %v2774 = vand.u32 %v382, 4294901760
        %2775 = vmatprep.subr.mxu0 %v2774
        %v2776 = vand.u32 %v381, 4294901760
        %2777 = vmatpush1.msra.mxu0 %v2776
        %v2778 = vand.u32 %v2772, 4294901760
        %2779 = vmatprep.subr.mxu0 %v2778
        %v2780 = vand.u32 %v2770, 4294901760
        %2781 = vmatpush1.msra.mxu0 %v2780
        %2782 = vmatprep.subr.mxu0 0.0
        %2783 = vmatpush1.msra.mxu0 0.0
        %2784 = vmatprep.subr.mxu0 0.0
        %2785 = vmatpush1.msra.mxu0 0.0
        %2786 = vmatprep.subr.mxu0 0.0
        %2787 = vmatpush1.msra.mxu0 0.0
        %2788 = vmatprep.subr.mxu0 0.0
        %2789 = vmatpush1.msra.mxu0 0.0
        %2790 = vmatprep.subr.mxu0 0.0
        %2791 = vmatpush1.msra.mxu0 0.0
        %2792 = vmatprep.subr.mxu0 0.0
        %2793 = vmatpush1.msra.mxu0 0.0
        %2794 = vmatprep.subr.mxu0 0.0
        %2795 = vmatpush1.msra.mxu0 0.0
        %2796 = vmatprep.subr.mxu0 0.0
        %2797 = vmatpush1.msra.mxu0 0.0
        %2798 = vmatprep.subr.mxu0 0.0
        %2799 = vmatpush1.msra.mxu0 0.0
        %2800 = vmatprep.subr.mxu0 0.0
        %2801 = vmatpush1.msra.mxu0 0.0
        %2802 = vmatprep.subr.mxu0 0.0
        %2803 = vmatpush1.msra.mxu0 0.0
        %2804 = vmatprep.subr.mxu0 0.0
        %2805 = vmatpush1.msra.mxu0 0.0
        %2806 = vmatprep.subr.mxu0 0.0
        %2807 = vmatpush1.msra.mxu0 0.0
        %2808 = vmatprep.subr.mxu0 0.0
        %2809 = vmatpush1.msra.mxu0 0.0
        %2810 = vmatprep.subr.mxu0 0.0
        %2811 = vmatpush1.msra.mxu0 0.0
        %2812 = vmatprep.subr.mxu0 0.0
        %2813 = vmatpush1.msra.mxu0 0.0
        %2814 = vmatprep.subr.mxu0 0.0
        %2815 = vmatpush1.msra.mxu0 0.0
        %2816 = vmatprep.subr.mxu0 0.0
        %2817 = vmatpush1.msra.mxu0 0.0
        %2818 = vmatprep.subr.mxu0 0.0
        %2819 = vmatpush1.msra.mxu0 0.0
        %2820 = vmatprep.subr.mxu0 0.0
        %2821 = vmatpush1.msra.mxu0 0.0
        %2822 = vmatprep.subr.mxu0 0.0
        %2823 = vmatpush1.msra.mxu0 0.0
        %2824 = vmatprep.subr.mxu0 0.0
        %2825 = vmatpush1.msra.mxu0 0.0
        %2826 = vmatprep.subr.mxu0 0.0
        %2827 = vmatpush1.msra.mxu0 0.0
        %2828 = vmatprep.subr.mxu0 0.0
        %2829 = vmatpush1.msra.mxu0 0.0
        %2830 = vmatprep.subr.mxu0 0.0
        %2831 = vmatpush1.msra.mxu0 0.0
        %2832 = vmatprep.subr.mxu0 0.0
        %2833 = vmatpush1.msra.mxu0 0.0
        %2834 = vmatprep.subr.mxu0 0.0
        %2835 = vmatpush1.msra.mxu0 0.0
        %2836 = vmatprep.subr.mxu0 0.0
        %2837 = vmatpush1.msra.mxu0 0.0
        %2838 = vmatprep.subr.mxu0 0.0
        %2839 = vmatpush1.msra.mxu0 0.0
        %2840 = vmatprep.subr.mxu0 0.0
        %2841 = vmatpush1.msra.mxu0 0.0
        %2842 = vmatprep.mubr.f32.mxu0 0.0
        %v2843 = vand.u32 %v2765, 4294901760
        %v2844 = vsub.f32 %v2765, %v2843
        %v2845 = vand.u32 %v2844, 4294901760
        %v2846 = vsub.f32 %v2844, %v2845
        %v2847 = vand.u32 %v2846, 4294901760
        %2848 = vmatmul.mubr.f32.gmra.mrb[0].mxu0 %v2847
        %v2849 = vpop.f32.mrb[0].mxu0
        %v2850 = vadd.f32 0.0, %v2849
        %v2851 = vpop.f32.mrb[0].mxu0
        %v2852 = vadd.f32 0.0, %v2851
        %2853 = vmatprep.mubr.f32.mxu0 0.0
        %v2854 = vand.u32 %v2768, 4294901760
        %v2855 = vsub.f32 %v2768, %v2854
        %v2856 = vand.u32 %v2855, 4294901760
        %v2857 = vsub.f32 %v2855, %v2856
        %v2858 = vand.u32 %v2857, 4294901760
        %2859 = vmatmul.mubr.f32.gmra.mrb[0].mxu0 %v2858
        %v2860 = vpop.f32.mrb[0].mxu0
        %v2861 = vadd.f32 0.0, %v2860
        %v2862 = vpop.f32.mrb[0].mxu0
        %v2863 = vadd.f32 0.0, %v2862
        %2864 = vdwg.mxu0
        %v2865 = vand.u32 %v382, 4294901760
        %v2866 = vsub.f32 %v382, %v2865
        %v2867 = vand.u32 %v2866, 4294901760
        %v2868 = vsub.f32 %v2866, %v2867
        %v2869 = vand.u32 %v2868, 4294901760
        %2870 = vmatprep.subr.mxu0 %v2869
        %v2871 = vand.u32 %v381, 4294901760
        %v2872 = vsub.f32 %v381, %v2871
        %v2873 = vand.u32 %v2872, 4294901760
        %v2874 = vsub.f32 %v2872, %v2873
        %v2875 = vand.u32 %v2874, 4294901760
        %2876 = vmatpush1.msra.mxu0 %v2875
        %v2877 = vand.u32 %v2772, 4294901760
        %v2878 = vsub.f32 %v2772, %v2877
        %v2879 = vand.u32 %v2878, 4294901760
        %v2880 = vsub.f32 %v2878, %v2879
        %v2881 = vand.u32 %v2880, 4294901760
        %2882 = vmatprep.subr.mxu0 %v2881
        %v2883 = vand.u32 %v2770, 4294901760
        %v2884 = vsub.f32 %v2770, %v2883
        %v2885 = vand.u32 %v2884, 4294901760
        %v2886 = vsub.f32 %v2884, %v2885
        %v2887 = vand.u32 %v2886, 4294901760
        %2888 = vmatpush1.msra.mxu0 %v2887
        %2889 = vmatprep.subr.mxu0 0.0
        %2890 = vmatpush1.msra.mxu0 0.0
        %2891 = vmatprep.subr.mxu0 0.0
        %2892 = vmatpush1.msra.mxu0 0.0
        %2893 = vmatprep.subr.mxu0 0.0
        %2894 = vmatpush1.msra.mxu0 0.0
        %2895 = vmatprep.subr.mxu0 0.0
        %2896 = vmatpush1.msra.mxu0 0.0
        %2897 = vmatprep.subr.mxu0 0.0
        %2898 = vmatpush1.msra.mxu0 0.0
        %2899 = vmatprep.subr.mxu0 0.0
        %2900 = vmatpush1.msra.mxu0 0.0
        %2901 = vmatprep.subr.mxu0 0.0
        %2902 = vmatpush1.msra.mxu0 0.0
        %2903 = vmatprep.subr.mxu0 0.0
        %2904 = vmatpush1.msra.mxu0 0.0
        %2905 = vmatprep.subr.mxu0 0.0
        %2906 = vmatpush1.msra.mxu0 0.0
        %2907 = vmatprep.subr.mxu0 0.0
        %2908 = vmatpush1.msra.mxu0 0.0
        %2909 = vmatprep.subr.mxu0 0.0
        %2910 = vmatpush1.msra.mxu0 0.0
        %2911 = vmatprep.subr.mxu0 0.0
        %2912 = vmatpush1.msra.mxu0 0.0
        %2913 = vmatprep.subr.mxu0 0.0
        %2914 = vmatpush1.msra.mxu0 0.0
        %2915 = vmatprep.subr.mxu0 0.0
        %2916 = vmatpush1.msra.mxu0 0.0
        %2917 = vmatprep.subr.mxu0 0.0
        %2918 = vmatpush1.msra.mxu0 0.0
        %2919 = vmatprep.subr.mxu0 0.0
        %2920 = vmatpush1.msra.mxu0 0.0
        %2921 = vmatprep.subr.mxu0 0.0
        %2922 = vmatpush1.msra.mxu0 0.0
        %2923 = vmatprep.subr.mxu0 0.0
        %2924 = vmatpush1.msra.mxu0 0.0
        %2925 = vmatprep.subr.mxu0 0.0
        %2926 = vmatpush1.msra.mxu0 0.0
        %2927 = vmatprep.subr.mxu0 0.0
        %2928 = vmatpush1.msra.mxu0 0.0
        %2929 = vmatprep.subr.mxu0 0.0
        %2930 = vmatpush1.msra.mxu0 0.0
        %2931 = vmatprep.subr.mxu0 0.0
        %2932 = vmatpush1.msra.mxu0 0.0
        %2933 = vmatprep.subr.mxu0 0.0
        %2934 = vmatpush1.msra.mxu0 0.0
        %2935 = vmatprep.subr.mxu0 0.0
        %2936 = vmatpush1.msra.mxu0 0.0
        %2937 = vmatprep.subr.mxu0 0.0
        %2938 = vmatpush1.msra.mxu0 0.0
        %2939 = vmatprep.subr.mxu0 0.0
        %2940 = vmatpush1.msra.mxu0 0.0
        %2941 = vmatprep.subr.mxu0 0.0
        %2942 = vmatpush1.msra.mxu0 0.0
        %2943 = vmatprep.subr.mxu0 0.0
        %2944 = vmatpush1.msra.mxu0 0.0
        %2945 = vmatprep.subr.mxu0 0.0
        %2946 = vmatpush1.msra.mxu0 0.0
        %2947 = vmatprep.subr.mxu0 0.0
        %2948 = vmatpush1.msra.mxu0 0.0
        %2949 = vmatprep.mubr.f32.mxu0 0.0
        %v2950 = vand.u32 %v2765, 4294901760
        %2951 = vmatmul.mubr.f32.gmra.mrb[0].mxu0 %v2950
        %v2952 = vpop.f32.mrb[0].mxu0
        %v2953 = vadd.f32 %v2850, %v2952
        %v2954 = vpop.f32.mrb[0].mxu0
        %v2955 = vadd.f32 %v2852, %v2954
        %2956 = vmatprep.mubr.f32.mxu0 0.0
        %v2957 = vand.u32 %v2768, 4294901760
        %2958 = vmatmul.mubr.f32.gmra.mrb[0].mxu0 %v2957
        %v2959 = vpop.f32.mrb[0].mxu0
        %v2960 = vadd.f32 %v2861, %v2959
        %v2961 = vpop.f32.mrb[0].mxu0
        %v2962 = vadd.f32 %v2863, %v2961
        %2963 = vdwg.mxu0
        %v2964 = vand.u32 %v382, 4294901760
        %v2965 = vsub.f32 %v382, %v2964
        %2966 = vmatprep.subr.mxu0 %v2965
        %v2967 = vand.u32 %v381, 4294901760
        %v2968 = vsub.f32 %v381, %v2967
        %2969 = vmatpush1.msra.mxu0 %v2968
        %v2970 = vand.u32 %v2772, 4294901760
        %v2971 = vsub.f32 %v2772, %v2970
        %2972 = vmatprep.subr.mxu0 %v2971
        %v2973 = vand.u32 %v2770, 4294901760
        %v2974 = vsub.f32 %v2770, %v2973
        %2975 = vmatpush1.msra.mxu0 %v2974
        %2976 = vmatprep.subr.mxu0 0.0
        %2977 = vmatpush1.msra.mxu0 0.0
        %2978 = vmatprep.subr.mxu0 0.0
        %2979 = vmatpush1.msra.mxu0 0.0
        %2980 = vmatprep.subr.mxu0 0.0
        %2981 = vmatpush1.msra.mxu0 0.0
        %2982 = vmatprep.subr.mxu0 0.0
        %2983 = vmatpush1.msra.mxu0 0.0
        %2984 = vmatprep.subr.mxu0 0.0
        %2985 = vmatpush1.msra.mxu0 0.0
        %2986 = vmatprep.subr.mxu0 0.0
        %2987 = vmatpush1.msra.mxu0 0.0
        %2988 = vmatprep.subr.mxu0 0.0
        %2989 = vmatpush1.msra.mxu0 0.0
        %2990 = vmatprep.subr.mxu0 0.0
        %2991 = vmatpush1.msra.mxu0 0.0
        %2992 = vmatprep.subr.mxu0 0.0
        %2993 = vmatpush1.msra.mxu0 0.0
        %2994 = vmatprep.subr.mxu0 0.0
        %2995 = vmatpush1.msra.mxu0 0.0
        %2996 = vmatprep.subr.mxu0 0.0
        %2997 = vmatpush1.msra.mxu0 0.0
        %2998 = vmatprep.subr.mxu0 0.0
        %2999 = vmatpush1.msra.mxu0 0.0
        %3000 = vmatprep.subr.mxu0 0.0
        %3001 = vmatpush1.msra.mxu0 0.0
        %3002 = vmatprep.subr.mxu0 0.0
        %3003 = vmatpush1.msra.mxu0 0.0
        %3004 = vmatprep.subr.mxu0 0.0
        %3005 = vmatpush1.msra.mxu0 0.0
        %3006 = vmatprep.subr.mxu0 0.0
        %3007 = vmatpush1.msra.mxu0 0.0
        %3008 = vmatprep.subr.mxu0 0.0
        %3009 = vmatpush1.msra.mxu0 0.0
        %3010 = vmatprep.subr.mxu0 0.0
        %3011 = vmatpush1.msra.mxu0 0.0
        %3012 = vmatprep.subr.mxu0 0.0
        %3013 = vmatpush1.msra.mxu0 0.0
        %3014 = vmatprep.subr.mxu0 0.0
        %3015 = vmatpush1.msra.mxu0 0.0
        %3016 = vmatprep.subr.mxu0 0.0
        %3017 = vmatpush1.msra.mxu0 0.0
        %3018 = vmatprep.subr.mxu0 0.0
        %3019 = vmatpush1.msra.mxu0 0.0
        %3020 = vmatprep.subr.mxu0 0.0
        %3021 = vmatpush1.msra.mxu0 0.0
        %3022 = vmatprep.subr.mxu0 0.0
        %3023 = vmatpush1.msra.mxu0 0.0
        %3024 = vmatprep.subr.mxu0 0.0
        %3025 = vmatpush1.msra.mxu0 0.0
        %3026 = vmatprep.subr.mxu0 0.0
        %3027 = vmatpush1.msra.mxu0 0.0
        %3028 = vmatprep.subr.mxu0 0.0
        %3029 = vmatpush1.msra.mxu0 0.0
        %3030 = vmatprep.subr.mxu0 0.0
        %3031 = vmatpush1.msra.mxu0 0.0
        %3032 = vmatprep.subr.mxu0 0.0
        %3033 = vmatpush1.msra.mxu0 0.0
        %3034 = vmatprep.subr.mxu0 0.0
        %3035 = vmatpush1.msra.mxu0 0.0
        %3036 = vmatprep.mubr.f32.mxu0 0.0
        %v3037 = vand.u32 %v2765, 4294901760
        %v3038 = vsub.f32 %v2765, %v3037
        %3039 = vmatmul.mubr.f32.gmra.mrb[0].mxu0 %v3038
        %v3040 = vpop.f32.mrb[0].mxu0
        %v3041 = vadd.f32 %v2953, %v3040
        %v3042 = vpop.f32.mrb[0].mxu0
        %v3043 = vadd.f32 %v2955, %v3042
        %3044 = vmatprep.mubr.f32.mxu0 0.0
        %v3045 = vand.u32 %v2768, 4294901760
        %v3046 = vsub.f32 %v2768, %v3045
        %3047 = vmatmul.mubr.f32.gmra.mrb[0].mxu0 %v3046
        %v3048 = vpop.f32.mrb[0].mxu0
        %v3049 = vadd.f32 %v2960, %v3048
        %v3050 = vpop.f32.mrb[0].mxu0
        %v3051 = vadd.f32 %v2962, %v3050
        %3052 = vdwg.mxu0
        %v3053 = vand.u32 %v382, 4294901760
        %3054 = vmatprep.subr.mxu0 %v3053
        %v3055 = vand.u32 %v381, 4294901760
        %3056 = vmatpush1.msra.mxu0 %v3055
        %v3057 = vand.u32 %v2772, 4294901760
        %3058 = vmatprep.subr.mxu0 %v3057
        %v3059 = vand.u32 %v2770, 4294901760
        %3060 = vmatpush1.msra.mxu0 %v3059
        %3061 = vmatprep.subr.mxu0 0.0
        %3062 = vmatpush1.msra.mxu0 0.0
        %3063 = vmatprep.subr.mxu0 0.0
        %3064 = vmatpush1.msra.mxu0 0.0
        %3065 = vmatprep.subr.mxu0 0.0
        %3066 = vmatpush1.msra.mxu0 0.0
        %3067 = vmatprep.subr.mxu0 0.0
        %3068 = vmatpush1.msra.mxu0 0.0
        %3069 = vmatprep.subr.mxu0 0.0
        %3070 = vmatpush1.msra.mxu0 0.0
        %3071 = vmatprep.subr.mxu0 0.0
        %3072 = vmatpush1.msra.mxu0 0.0
        %3073 = vmatprep.subr.mxu0 0.0
        %3074 = vmatpush1.msra.mxu0 0.0
        %3075 = vmatprep.subr.mxu0 0.0
        %3076 = vmatpush1.msra.mxu0 0.0
        %3077 = vmatprep.subr.mxu0 0.0
        %3078 = vmatpush1.msra.mxu0 0.0
        %3079 = vmatprep.subr.mxu0 0.0
        %3080 = vmatpush1.msra.mxu0 0.0
        %3081 = vmatprep.subr.mxu0 0.0
        %3082 = vmatpush1.msra.mxu0 0.0
        %3083 = vmatprep.subr.mxu0 0.0
        %3084 = vmatpush1.msra.mxu0 0.0
        %3085 = vmatprep.subr.mxu0 0.0
        %3086 = vmatpush1.msra.mxu0 0.0
        %3087 = vmatprep.subr.mxu0 0.0
        %3088 = vmatpush1.msra.mxu0 0.0
        %3089 = vmatprep.subr.mxu0 0.0
        %3090 = vmatpush1.msra.mxu0 0.0
        %3091 = vmatprep.subr.mxu0 0.0
        %3092 = vmatpush1.msra.mxu0 0.0
        %3093 = vmatprep.subr.mxu0 0.0
        %3094 = vmatpush1.msra.mxu0 0.0
        %3095 = vmatprep.subr.mxu0 0.0
        %3096 = vmatpush1.msra.mxu0 0.0
        %3097 = vmatprep.subr.mxu0 0.0
        %3098 = vmatpush1.msra.mxu0 0.0
        %3099 = vmatprep.subr.mxu0 0.0
        %3100 = vmatpush1.msra.mxu0 0.0
        %3101 = vmatprep.subr.mxu0 0.0
        %3102 = vmatpush1.msra.mxu0 0.0
        %3103 = vmatprep.subr.mxu0 0.0
        %3104 = vmatpush1.msra.mxu0 0.0
        %3105 = vmatprep.subr.mxu0 0.0
        %3106 = vmatpush1.msra.mxu0 0.0
        %3107 = vmatprep.subr.mxu0 0.0
        %3108 = vmatpush1.msra.mxu0 0.0
        %3109 = vmatprep.subr.mxu0 0.0
        %3110 = vmatpush1.msra.mxu0 0.0
        %3111 = vmatprep.subr.mxu0 0.0
        %3112 = vmatpush1.msra.mxu0 0.0
        %3113 = vmatprep.subr.mxu0 0.0
        %3114 = vmatpush1.msra.mxu0 0.0
        %3115 = vmatprep.subr.mxu0 0.0
        %3116 = vmatpush1.msra.mxu0 0.0
        %3117 = vmatprep.subr.mxu0 0.0
        %3118 = vmatpush1.msra.mxu0 0.0
        %3119 = vmatprep.subr.mxu0 0.0
        %3120 = vmatpush1.msra.mxu0 0.0
        %3121 = vmatprep.mubr.f32.mxu0 0.0
        %v3122 = vand.u32 %v2765, 4294901760
        %v3123 = vsub.f32 %v2765, %v3122
        %v3124 = vand.u32 %v3123, 4294901760
        %3125 = vmatmul.mubr.f32.gmra.mrb[0].mxu0 %v3124
        %v3126 = vpop.f32.mrb[0].mxu0
        %v3127 = vadd.f32 %v3041, %v3126
        %v3128 = vpop.f32.mrb[0].mxu0
        %v3129 = vadd.f32 %v3043, %v3128
        %3130 = vmatprep.mubr.f32.mxu0 0.0
        %v3131 = vand.u32 %v2768, 4294901760
        %v3132 = vsub.f32 %v2768, %v3131
        %v3133 = vand.u32 %v3132, 4294901760
        %3134 = vmatmul.mubr.f32.gmra.mrb[0].mxu0 %v3133
        %v3135 = vpop.f32.mrb[0].mxu0
        %v3136 = vadd.f32 %v3049, %v3135
        %v3137 = vpop.f32.mrb[0].mxu0
        %v3138 = vadd.f32 %v3051, %v3137
        %3139 = vdwg.mxu0
        %v3140 = vand.u32 %v382, 4294901760
        %v3141 = vsub.f32 %v382, %v3140
        %v3142 = vand.u32 %v3141, 4294901760
        %3143 = vmatprep.subr.mxu0 %v3142
        %v3144 = vand.u32 %v381, 4294901760
        %v3145 = vsub.f32 %v381, %v3144
        %v3146 = vand.u32 %v3145, 4294901760
        %3147 = vmatpush1.msra.mxu0 %v3146
        %v3148 = vand.u32 %v2772, 4294901760
        %v3149 = vsub.f32 %v2772, %v3148
        %v3150 = vand.u32 %v3149, 4294901760
        %3151 = vmatprep.subr.mxu0 %v3150
        %v3152 = vand.u32 %v2770, 4294901760
        %v3153 = vsub.f32 %v2770, %v3152
        %v3154 = vand.u32 %v3153, 4294901760
        %3155 = vmatpush1.msra.mxu0 %v3154
        %3156 = vmatprep.subr.mxu0 0.0
        %3157 = vmatpush1.msra.mxu0 0.0
        %3158 = vmatprep.subr.mxu0 0.0
        %3159 = vmatpush1.msra.mxu0 0.0
        %3160 = vmatprep.subr.mxu0 0.0
        %3161 = vmatpush1.msra.mxu0 0.0
        %3162 = vmatprep.subr.mxu0 0.0
        %3163 = vmatpush1.msra.mxu0 0.0
        %3164 = vmatprep.subr.mxu0 0.0
        %3165 = vmatpush1.msra.mxu0 0.0
        %3166 = vmatprep.subr.mxu0 0.0
        %3167 = vmatpush1.msra.mxu0 0.0
        %3168 = vmatprep.subr.mxu0 0.0
        %3169 = vmatpush1.msra.mxu0 0.0
        %3170 = vmatprep.subr.mxu0 0.0
        %3171 = vmatpush1.msra.mxu0 0.0
        %3172 = vmatprep.subr.mxu0 0.0
        %3173 = vmatpush1.msra.mxu0 0.0
        %3174 = vmatprep.subr.mxu0 0.0
        %3175 = vmatpush1.msra.mxu0 0.0
        %3176 = vmatprep.subr.mxu0 0.0
        %3177 = vmatpush1.msra.mxu0 0.0
        %3178 = vmatprep.subr.mxu0 0.0
        %3179 = vmatpush1.msra.mxu0 0.0
        %3180 = vmatprep.subr.mxu0 0.0
        %3181 = vmatpush1.msra.mxu0 0.0
        %3182 = vmatprep.subr.mxu0 0.0
        %3183 = vmatpush1.msra.mxu0 0.0
        %3184 = vmatprep.subr.mxu0 0.0
        %3185 = vmatpush1.msra.mxu0 0.0
        %3186 = vmatprep.subr.mxu0 0.0
        %3187 = vmatpush1.msra.mxu0 0.0
        %3188 = vmatprep.subr.mxu0 0.0
        %3189 = vmatpush1.msra.mxu0 0.0
        %3190 = vmatprep.subr.mxu0 0.0
        %3191 = vmatpush1.msra.mxu0 0.0
        %3192 = vmatprep.subr.mxu0 0.0
        %3193 = vmatpush1.msra.mxu0 0.0
        %3194 = vmatprep.subr.mxu0 0.0
        %3195 = vmatpush1.msra.mxu0 0.0
        %3196 = vmatprep.subr.mxu0 0.0
        %3197 = vmatpush1.msra.mxu0 0.0
        %3198 = vmatprep.subr.mxu0 0.0
        %3199 = vmatpush1.msra.mxu0 0.0
        %3200 = vmatprep.subr.mxu0 0.0
        %3201 = vmatpush1.msra.mxu0 0.0
        %3202 = vmatprep.subr.mxu0 0.0
        %3203 = vmatpush1.msra.mxu0 0.0
        %3204 = vmatprep.subr.mxu0 0.0
        %3205 = vmatpush1.msra.mxu0 0.0
        %3206 = vmatprep.subr.mxu0 0.0
        %3207 = vmatpush1.msra.mxu0 0.0
        %3208 = vmatprep.subr.mxu0 0.0
        %3209 = vmatpush1.msra.mxu0 0.0
        %3210 = vmatprep.subr.mxu0 0.0
        %3211 = vmatpush1.msra.mxu0 0.0
        %3212 = vmatprep.subr.mxu0 0.0
        %3213 = vmatpush1.msra.mxu0 0.0
        %3214 = vmatprep.subr.mxu0 0.0
        %3215 = vmatpush1.msra.mxu0 0.0
        %3216 = vmatprep.mubr.f32.mxu0 0.0
        %v3217 = vand.u32 %v2765, 4294901760
        %3218 = vmatmul.mubr.f32.gmra.mrb[0].mxu0 %v3217
        %v3219 = vpop.f32.mrb[0].mxu0
        %v3220 = vadd.f32 %v3127, %v3219
        %v3221 = vpop.f32.mrb[0].mxu0
        %v3222 = vadd.f32 %v3129, %v3221
        %3223 = vmatprep.mubr.f32.mxu0 0.0
        %v3224 = vand.u32 %v2768, 4294901760
        %3225 = vmatmul.mubr.f32.gmra.mrb[0].mxu0 %v3224
        %v3226 = vpop.f32.mrb[0].mxu0
        %v3227 = vadd.f32 %v3136, %v3226
        %v3228 = vpop.f32.mrb[0].mxu0
        %v3229 = vadd.f32 %v3138, %v3228
        %3230 = vdwg.mxu0
        %v3231 = vand.u32 %v382, 4294901760
        %3232 = vmatprep.subr.mxu0 %v3231
        %v3233 = vand.u32 %v381, 4294901760
        %3234 = vmatpush1.msra.mxu0 %v3233
        %v3235 = vand.u32 %v2772, 4294901760
        %3236 = vmatprep.subr.mxu0 %v3235
        %v3237 = vand.u32 %v2770, 4294901760
        %3238 = vmatpush1.msra.mxu0 %v3237
        %3239 = vmatprep.subr.mxu0 0.0
        %3240 = vmatpush1.msra.mxu0 0.0
        %3241 = vmatprep.subr.mxu0 0.0
        %3242 = vmatpush1.msra.mxu0 0.0
        %3243 = vmatprep.subr.mxu0 0.0
        %3244 = vmatpush1.msra.mxu0 0.0
        %3245 = vmatprep.subr.mxu0 0.0
        %3246 = vmatpush1.msra.mxu0 0.0
        %3247 = vmatprep.subr.mxu0 0.0
        %3248 = vmatpush1.msra.mxu0 0.0
        %3249 = vmatprep.subr.mxu0 0.0
        %3250 = vmatpush1.msra.mxu0 0.0
        %3251 = vmatprep.subr.mxu0 0.0
        %3252 = vmatpush1.msra.mxu0 0.0
        %3253 = vmatprep.subr.mxu0 0.0
        %3254 = vmatpush1.msra.mxu0 0.0
        %3255 = vmatprep.subr.mxu0 0.0
        %3256 = vmatpush1.msra.mxu0 0.0
        %3257 = vmatprep.subr.mxu0 0.0
        %3258 = vmatpush1.msra.mxu0 0.0
        %3259 = vmatprep.subr.mxu0 0.0
        %3260 = vmatpush1.msra.mxu0 0.0
        %3261 = vmatprep.subr.mxu0 0.0
        %3262 = vmatpush1.msra.mxu0 0.0
        %3263 = vmatprep.subr.mxu0 0.0
        %3264 = vmatpush1.msra.mxu0 0.0
        %3265 = vmatprep.subr.mxu0 0.0
        %3266 = vmatpush1.msra.mxu0 0.0
        %3267 = vmatprep.subr.mxu0 0.0
        %3268 = vmatpush1.msra.mxu0 0.0
        %3269 = vmatprep.subr.mxu0 0.0
        %3270 = vmatpush1.msra.mxu0 0.0
        %3271 = vmatprep.subr.mxu0 0.0
        %3272 = vmatpush1.msra.mxu0 0.0
        %3273 = vmatprep.subr.mxu0 0.0
        %3274 = vmatpush1.msra.mxu0 0.0
        %3275 = vmatprep.subr.mxu0 0.0
        %3276 = vmatpush1.msra.mxu0 0.0
        %3277 = vmatprep.subr.mxu0 0.0
        %3278 = vmatpush1.msra.mxu0 0.0
        %3279 = vmatprep.subr.mxu0 0.0
        %3280 = vmatpush1.msra.mxu0 0.0
        %3281 = vmatprep.subr.mxu0 0.0
        %3282 = vmatpush1.msra.mxu0 0.0
        %3283 = vmatprep.subr.mxu0 0.0
        %3284 = vmatpush1.msra.mxu0 0.0
        %3285 = vmatprep.subr.mxu0 0.0
        %3286 = vmatpush1.msra.mxu0 0.0
        %3287 = vmatprep.subr.mxu0 0.0
        %3288 = vmatpush1.msra.mxu0 0.0
        %3289 = vmatprep.subr.mxu0 0.0
        %3290 = vmatpush1.msra.mxu0 0.0
        %3291 = vmatprep.subr.mxu0 0.0
        %3292 = vmatpush1.msra.mxu0 0.0
        %3293 = vmatprep.subr.mxu0 0.0
        %3294 = vmatpush1.msra.mxu0 0.0
        %3295 = vmatprep.subr.mxu0 0.0
        %3296 = vmatpush1.msra.mxu0 0.0
        %3297 = vmatprep.subr.mxu0 0.0
        %3298 = vmatpush1.msra.mxu0 0.0
        %3299 = vmatprep.mubr.f32.mxu0 0.0
        %v3300 = vand.u32 %v2765, 4294901760
        %3301 = vmatmul.mubr.f32.gmra.mrb[0].mxu0 %v3300
        %v3302 = vpop.f32.mrb[0].mxu0
        %v3303 = vadd.f32 %v3220, %v3302
        %v3304 = vpop.f32.mrb[0].mxu0
        %v3305 = vadd.f32 %v3222, %v3304
        %3306 = vmatprep.mubr.f32.mxu0 0.0
        %v3307 = vand.u32 %v2768, 4294901760
        %3308 = vmatmul.mubr.f32.gmra.mrb[0].mxu0 %v3307
        %v3309 = vpop.f32.mrb[0].mxu0
        %v3310 = vadd.f32 %v3227, %v3309
        %v3311 = vpop.f32.mrb[0].mxu0
        %v3312 = vadd.f32 %v3229, %v3311
        %3313 = vdwg.mxu0
        %v3314 = vadd.f32 %v2757, %v3303
        %v3315 = vadd.f32 %v2758, %v3305
        %v3316 = vadd.f32 %v2759, %v3310
        %v3317 = vadd.f32 %v2760, %v3312
        %3318 = vrot.lane.b32.xlu0 %v381, 127
        %v3319 = vpop.permute.xlu0 %3318
        %3320 = vrot.lane.b32.xlu0 %v382, 127
        %v3321 = vpop.permute.xlu0 %3320
        %3322 = vrot.lane.b32.xlu0 %v383, 127
        %v3323 = vpop.permute.xlu0 %3322
        %3324 = vrot.lane.b32.xlu0 %v384, 127
        %v3325 = vpop.permute.xlu0 %3324
        %vm3326 = vcmask 1039360
        %v3327 = vsel %vm3326, %v3319, %v3321
        %v3328 = vsel %vm3326, %v3323, %v3325
        %v3335 = vsel %vm3326, %v3321, %v3319
        %v3336 = vsel %vm3326, %v3325, %v3323
        %s3337 = scalar_lea.vmem %s2, 5
        %v3338 = vld [vmem:[%s3337] ss:$8 sm:$0x3]
        %v3340 = vlaneseq
        %v3341 = vshrl.u32 %v3340, 7
        %v3342 = vsub.s32 0, %v3341
        %v3343 = vrot.slane %v3338, %v3342
        %v3344 = vlaneseq
        %v3345 = vshrl.u32 %v3344, 7
        %v3346 = vsub.s32 1, %v3345
        %v3347 = vrot.slane %v3338, %v3346
        %v3350 = vmul.f32 %v3327, %v3343
        %v3351 = vmul.f32 %v3335, %v3347
        %v3352 = vmul.f32 %v3328, %v3343
        %v3353 = vmul.f32 %v3336, %v3347
        %s3354 = scalar_lea.vmem [#allocation2], 80
        %v3355 = vld [vmem:[%s3354] sm:$0xff]
        %v3356 = vld [vmem:[%s3354 + $0x8] sm:$0xf]
        %v3358 = vsel %vm465, %v3355, 0
        %v3361 = vsel %vm465, %v3356, 0
        %v3364 = vsel %vm472, %v3352, 0
        %v3367 = vsel %vm472, %v3353, 0
        %v3369 = vand.u32 %v3351, 4294901760
        %3370 = vmatprep.subr.mxu0 %v3369
        %v3371 = vand.u32 %v3350, 4294901760
        %3372 = vmatpush1.msra.mxu0 %v3371
        %v3373 = vand.u32 %v3367, 4294901760
        %3374 = vmatprep.subr.mxu0 %v3373
        %v3375 = vand.u32 %v3364, 4294901760
        %3376 = vmatpush1.msra.mxu0 %v3375
        %3377 = vmatprep.subr.mxu0 0.0
        %3378 = vmatpush1.msra.mxu0 0.0
        %3379 = vmatprep.subr.mxu0 0.0
        %3380 = vmatpush1.msra.mxu0 0.0
        %3381 = vmatprep.subr.mxu0 0.0
        %3382 = vmatpush1.msra.mxu0 0.0
        %3383 = vmatprep.subr.mxu0 0.0
        %3384 = vmatpush1.msra.mxu0 0.0
        %3385 = vmatprep.subr.mxu0 0.0
        %3386 = vmatpush1.msra.mxu0 0.0
        %3387 = vmatprep.subr.mxu0 0.0
        %3388 = vmatpush1.msra.mxu0 0.0
        %3389 = vmatprep.subr.mxu0 0.0
        %3390 = vmatpush1.msra.mxu0 0.0
        %3391 = vmatprep.subr.mxu0 0.0
        %3392 = vmatpush1.msra.mxu0 0.0
        %3393 = vmatprep.subr.mxu0 0.0
        %3394 = vmatpush1.msra.mxu0 0.0
        %3395 = vmatprep.subr.mxu0 0.0
        %3396 = vmatpush1.msra.mxu0 0.0
        %3397 = vmatprep.subr.mxu0 0.0
        %3398 = vmatpush1.msra.mxu0 0.0
        %3399 = vmatprep.subr.mxu0 0.0
        %3400 = vmatpush1.msra.mxu0 0.0
        %3401 = vmatprep.subr.mxu0 0.0
        %3402 = vmatpush1.msra.mxu0 0.0
        %3403 = vmatprep.subr.mxu0 0.0
        %3404 = vmatpush1.msra.mxu0 0.0
        %3405 = vmatprep.subr.mxu0 0.0
        %3406 = vmatpush1.msra.mxu0 0.0
        %3407 = vmatprep.subr.mxu0 0.0
        %3408 = vmatpush1.msra.mxu0 0.0
        %3409 = vmatprep.subr.mxu0 0.0
        %3410 = vmatpush1.msra.mxu0 0.0
        %3411 = vmatprep.subr.mxu0 0.0
        %3412 = vmatpush1.msra.mxu0 0.0
        %3413 = vmatprep.subr.mxu0 0.0
        %3414 = vmatpush1.msra.mxu0 0.0
        %3415 = vmatprep.subr.mxu0 0.0
        %3416 = vmatpush1.msra.mxu0 0.0
        %3417 = vmatprep.subr.mxu0 0.0
        %3418 = vmatpush1.msra.mxu0 0.0
        %3419 = vmatprep.subr.mxu0 0.0
        %3420 = vmatpush1.msra.mxu0 0.0
        %3421 = vmatprep.subr.mxu0 0.0
        %3422 = vmatpush1.msra.mxu0 0.0
        %3423 = vmatprep.subr.mxu0 0.0
        %3424 = vmatpush1.msra.mxu0 0.0
        %3425 = vmatprep.subr.mxu0 0.0
        %3426 = vmatpush1.msra.mxu0 0.0
        %3427 = vmatprep.subr.mxu0 0.0
        %3428 = vmatpush1.msra.mxu0 0.0
        %3429 = vmatprep.subr.mxu0 0.0
        %3430 = vmatpush1.msra.mxu0 0.0
        %3431 = vmatprep.subr.mxu0 0.0
        %3432 = vmatpush1.msra.mxu0 0.0
        %3433 = vmatprep.subr.mxu0 0.0
        %3434 = vmatpush1.msra.mxu0 0.0
        %3435 = vmatprep.subr.mxu0 0.0
        %3436 = vmatpush1.msra.mxu0 0.0
        %3437 = vmatprep.mubr.f32.mxu0 0.0
        %v3438 = vand.u32 %v3358, 4294901760
        %v3439 = vsub.f32 %v3358, %v3438
        %v3440 = vand.u32 %v3439, 4294901760
        %v3441 = vsub.f32 %v3439, %v3440
        %v3442 = vand.u32 %v3441, 4294901760
        %3443 = vmatmul.mubr.f32.gmra.mrb[0].mxu0 %v3442
        %v3444 = vpop.f32.mrb[0].mxu0
        %v3445 = vadd.f32 0.0, %v3444
        %v3446 = vpop.f32.mrb[0].mxu0
        %v3447 = vadd.f32 0.0, %v3446
        %3448 = vmatprep.mubr.f32.mxu0 0.0
        %v3449 = vand.u32 %v3361, 4294901760
        %v3450 = vsub.f32 %v3361, %v3449
        %v3451 = vand.u32 %v3450, 4294901760
        %v3452 = vsub.f32 %v3450, %v3451
        %v3453 = vand.u32 %v3452, 4294901760
        %3454 = vmatmul.mubr.f32.gmra.mrb[0].mxu0 %v3453
        %v3455 = vpop.f32.mrb[0].mxu0
        %v3456 = vadd.f32 0.0, %v3455
        %v3457 = vpop.f32.mrb[0].mxu0
        %v3458 = vadd.f32 0.0, %v3457
        %3459 = vdwg.mxu0
        %v3460 = vand.u32 %v3351, 4294901760
        %v3461 = vsub.f32 %v3351, %v3460
        %v3462 = vand.u32 %v3461, 4294901760
        %v3463 = vsub.f32 %v3461, %v3462
        %v3464 = vand.u32 %v3463, 4294901760
        %3465 = vmatprep.subr.mxu0 %v3464
        %v3466 = vand.u32 %v3350, 4294901760
        %v3467 = vsub.f32 %v3350, %v3466
        %v3468 = vand.u32 %v3467, 4294901760
        %v3469 = vsub.f32 %v3467, %v3468
        %v3470 = vand.u32 %v3469, 4294901760
        %3471 = vmatpush1.msra.mxu0 %v3470
        %v3472 = vand.u32 %v3367, 4294901760
        %v3473 = vsub.f32 %v3367, %v3472
        %v3474 = vand.u32 %v3473, 4294901760
        %v3475 = vsub.f32 %v3473, %v3474
        %v3476 = vand.u32 %v3475, 4294901760
        %3477 = vmatprep.subr.mxu0 %v3476
        %v3478 = vand.u32 %v3364, 4294901760
        %v3479 = vsub.f32 %v3364, %v3478
        %v3480 = vand.u32 %v3479, 4294901760
        %v3481 = vsub.f32 %v3479, %v3480
        %v3482 = vand.u32 %v3481, 4294901760
        %3483 = vmatpush1.msra.mxu0 %v3482
        %3484 = vmatprep.subr.mxu0 0.0
        %3485 = vmatpush1.msra.mxu0 0.0
        %3486 = vmatprep.subr.mxu0 0.0
        %3487 = vmatpush1.msra.mxu0 0.0
        %3488 = vmatprep.subr.mxu0 0.0
        %3489 = vmatpush1.msra.mxu0 0.0
        %3490 = vmatprep.subr.mxu0 0.0
        %3491 = vmatpush1.msra.mxu0 0.0
        %3492 = vmatprep.subr.mxu0 0.0
        %3493 = vmatpush1.msra.mxu0 0.0
        %3494 = vmatprep.subr.mxu0 0.0
        %3495 = vmatpush1.msra.mxu0 0.0
        %3496 = vmatprep.subr.mxu0 0.0
        %3497 = vmatpush1.msra.mxu0 0.0
        %3498 = vmatprep.subr.mxu0 0.0
        %3499 = vmatpush1.msra.mxu0 0.0
        %3500 = vmatprep.subr.mxu0 0.0
        %3501 = vmatpush1.msra.mxu0 0.0
        %3502 = vmatprep.subr.mxu0 0.0
        %3503 = vmatpush1.msra.mxu0 0.0
        %3504 = vmatprep.subr.mxu0 0.0
        %3505 = vmatpush1.msra.mxu0 0.0
        %3506 = vmatprep.subr.mxu0 0.0
        %3507 = vmatpush1.msra.mxu0 0.0
        %3508 = vmatprep.subr.mxu0 0.0
        %3509 = vmatpush1.msra.mxu0 0.0
        %3510 = vmatprep.subr.mxu0 0.0
        %3511 = vmatpush1.msra.mxu0 0.0
        %3512 = vmatprep.subr.mxu0 0.0
        %3513 = vmatpush1.msra.mxu0 0.0
        %3514 = vmatprep.subr.mxu0 0.0
        %3515 = vmatpush1.msra.mxu0 0.0
        %3516 = vmatprep.subr.mxu0 0.0
        %3517 = vmatpush1.msra.mxu0 0.0
        %3518 = vmatprep.subr.mxu0 0.0
        %3519 = vmatpush1.msra.mxu0 0.0
        %3520 = vmatprep.subr.mxu0 0.0
        %3521 = vmatpush1.msra.mxu0 0.0
        %3522 = vmatprep.subr.mxu0 0.0
        %3523 = vmatpush1.msra.mxu0 0.0
        %3524 = vmatprep.subr.mxu0 0.0
        %3525 = vmatpush1.msra.mxu0 0.0
        %3526 = vmatprep.subr.mxu0 0.0
        %3527 = vmatpush1.msra.mxu0 0.0
        %3528 = vmatprep.subr.mxu0 0.0
        %3529 = vmatpush1.msra.mxu0 0.0
        %3530 = vmatprep.subr.mxu0 0.0
        %3531 = vmatpush1.msra.mxu0 0.0
        %3532 = vmatprep.subr.mxu0 0.0
        %3533 = vmatpush1.msra.mxu0 0.0
        %3534 = vmatprep.subr.mxu0 0.0
        %3535 = vmatpush1.msra.mxu0 0.0
        %3536 = vmatprep.subr.mxu0 0.0
        %3537 = vmatpush1.msra.mxu0 0.0
        %3538 = vmatprep.subr.mxu0 0.0
        %3539 = vmatpush1.msra.mxu0 0.0
        %3540 = vmatprep.subr.mxu0 0.0
        %3541 = vmatpush1.msra.mxu0 0.0
        %3542 = vmatprep.subr.mxu0 0.0
        %3543 = vmatpush1.msra.mxu0 0.0
        %3544 = vmatprep.mubr.f32.mxu0 0.0
        %v3545 = vand.u32 %v3358, 4294901760
        %3546 = vmatmul.mubr.f32.gmra.mrb[0].mxu0 %v3545
        %v3547 = vpop.f32.mrb[0].mxu0
        %v3548 = vadd.f32 %v3445, %v3547
        %v3549 = vpop.f32.mrb[0].mxu0
        %v3550 = vadd.f32 %v3447, %v3549
        %3551 = vmatprep.mubr.f32.mxu0 0.0
        %v3552 = vand.u32 %v3361, 4294901760
        %3553 = vmatmul.mubr.f32.gmra.mrb[0].mxu0 %v3552
        %v3554 = vpop.f32.mrb[0].mxu0
        %v3555 = vadd.f32 %v3456, %v3554
        %v3556 = vpop.f32.mrb[0].mxu0
        %v3557 = vadd.f32 %v3458, %v3556
        %3558 = vdwg.mxu0
        %v3559 = vand.u32 %v3351, 4294901760
        %v3560 = vsub.f32 %v3351, %v3559
        %3561 = vmatprep.subr.mxu0 %v3560
        %v3562 = vand.u32 %v3350, 4294901760
        %v3563 = vsub.f32 %v3350, %v3562
        %3564 = vmatpush1.msra.mxu0 %v3563
        %v3565 = vand.u32 %v3367, 4294901760
        %v3566 = vsub.f32 %v3367, %v3565
        %3567 = vmatprep.subr.mxu0 %v3566
        %v3568 = vand.u32 %v3364, 4294901760
        %v3569 = vsub.f32 %v3364, %v3568
        %3570 = vmatpush1.msra.mxu0 %v3569
        %3571 = vmatprep.subr.mxu0 0.0
        %3572 = vmatpush1.msra.mxu0 0.0
        %3573 = vmatprep.subr.mxu0 0.0
        %3574 = vmatpush1.msra.mxu0 0.0
        %3575 = vmatprep.subr.mxu0 0.0
        %3576 = vmatpush1.msra.mxu0 0.0
        %3577 = vmatprep.subr.mxu0 0.0
        %3578 = vmatpush1.msra.mxu0 0.0
        %3579 = vmatprep.subr.mxu0 0.0
        %3580 = vmatpush1.msra.mxu0 0.0
        %3581 = vmatprep.subr.mxu0 0.0
        %3582 = vmatpush1.msra.mxu0 0.0
        %3583 = vmatprep.subr.mxu0 0.0
        %3584 = vmatpush1.msra.mxu0 0.0
        %3585 = vmatprep.subr.mxu0 0.0
        %3586 = vmatpush1.msra.mxu0 0.0
        %3587 = vmatprep.subr.mxu0 0.0
        %3588 = vmatpush1.msra.mxu0 0.0
        %3589 = vmatprep.subr.mxu0 0.0
        %3590 = vmatpush1.msra.mxu0 0.0
        %3591 = vmatprep.subr.mxu0 0.0
        %3592 = vmatpush1.msra.mxu0 0.0
        %3593 = vmatprep.subr.mxu0 0.0
        %3594 = vmatpush1.msra.mxu0 0.0
        %3595 = vmatprep.subr.mxu0 0.0
        %3596 = vmatpush1.msra.mxu0 0.0
        %3597 = vmatprep.subr.mxu0 0.0
        %3598 = vmatpush1.msra.mxu0 0.0
        %3599 = vmatprep.subr.mxu0 0.0
        %3600 = vmatpush1.msra.mxu0 0.0
        %3601 = vmatprep.subr.mxu0 0.0
        %3602 = vmatpush1.msra.mxu0 0.0
        %3603 = vmatprep.subr.mxu0 0.0
        %3604 = vmatpush1.msra.mxu0 0.0
        %3605 = vmatprep.subr.mxu0 0.0
        %3606 = vmatpush1.msra.mxu0 0.0
        %3607 = vmatprep.subr.mxu0 0.0
        %3608 = vmatpush1.msra.mxu0 0.0
        %3609 = vmatprep.subr.mxu0 0.0
        %3610 = vmatpush1.msra.mxu0 0.0
        %3611 = vmatprep.subr.mxu0 0.0
        %3612 = vmatpush1.msra.mxu0 0.0
        %3613 = vmatprep.subr.mxu0 0.0
        %3614 = vmatpush1.msra.mxu0 0.0
        %3615 = vmatprep.subr.mxu0 0.0
        %3616 = vmatpush1.msra.mxu0 0.0
        %3617 = vmatprep.subr.mxu0 0.0
        %3618 = vmatpush1.msra.mxu0 0.0
        %3619 = vmatprep.subr.mxu0 0.0
        %3620 = vmatpush1.msra.mxu0 0.0
        %3621 = vmatprep.subr.mxu0 0.0
        %3622 = vmatpush1.msra.mxu0 0.0
        %3623 = vmatprep.subr.mxu0 0.0
        %3624 = vmatpush1.msra.mxu0 0.0
        %3625 = vmatprep.subr.mxu0 0.0
        %3626 = vmatpush1.msra.mxu0 0.0
        %3627 = vmatprep.subr.mxu0 0.0
        %3628 = vmatpush1.msra.mxu0 0.0
        %3629 = vmatprep.subr.mxu0 0.0
        %3630 = vmatpush1.msra.mxu0 0.0
        %3631 = vmatprep.mubr.f32.mxu0 0.0
        %v3632 = vand.u32 %v3358, 4294901760
        %v3633 = vsub.f32 %v3358, %v3632
        %3634 = vmatmul.mubr.f32.gmra.mrb[0].mxu0 %v3633
        %v3635 = vpop.f32.mrb[0].mxu0
        %v3636 = vadd.f32 %v3548, %v3635
        %v3637 = vpop.f32.mrb[0].mxu0
        %v3638 = vadd.f32 %v3550, %v3637
        %3639 = vmatprep.mubr.f32.mxu0 0.0
        %v3640 = vand.u32 %v3361, 4294901760
        %v3641 = vsub.f32 %v3361, %v3640
        %3642 = vmatmul.mubr.f32.gmra.mrb[0].mxu0 %v3641
        %v3643 = vpop.f32.mrb[0].mxu0
        %v3644 = vadd.f32 %v3555, %v3643
        %v3645 = vpop.f32.mrb[0].mxu0
        %v3646 = vadd.f32 %v3557, %v3645
        %3647 = vdwg.mxu0
        %v3648 = vand.u32 %v3351, 4294901760
        %3649 = vmatprep.subr.mxu0 %v3648
        %v3650 = vand.u32 %v3350, 4294901760
        %3651 = vmatpush1.msra.mxu0 %v3650
        %v3652 = vand.u32 %v3367, 4294901760
        %3653 = vmatprep.subr.mxu0 %v3652
        %v3654 = vand.u32 %v3364, 4294901760
        %3655 = vmatpush1.msra.mxu0 %v3654
        %3656 = vmatprep.subr.mxu0 0.0
        %3657 = vmatpush1.msra.mxu0 0.0
        %3658 = vmatprep.subr.mxu0 0.0
        %3659 = vmatpush1.msra.mxu0 0.0
        %3660 = vmatprep.subr.mxu0 0.0
        %3661 = vmatpush1.msra.mxu0 0.0
        %3662 = vmatprep.subr.mxu0 0.0
        %3663 = vmatpush1.msra.mxu0 0.0
        %3664 = vmatprep.subr.mxu0 0.0
        %3665 = vmatpush1.msra.mxu0 0.0
        %3666 = vmatprep.subr.mxu0 0.0
        %3667 = vmatpush1.msra.mxu0 0.0
        %3668 = vmatprep.subr.mxu0 0.0
        %3669 = vmatpush1.msra.mxu0 0.0
        %3670 = vmatprep.subr.mxu0 0.0
        %3671 = vmatpush1.msra.mxu0 0.0
        %3672 = vmatprep.subr.mxu0 0.0
        %3673 = vmatpush1.msra.mxu0 0.0
        %3674 = vmatprep.subr.mxu0 0.0
        %3675 = vmatpush1.msra.mxu0 0.0
        %3676 = vmatprep.subr.mxu0 0.0
        %3677 = vmatpush1.msra.mxu0 0.0
        %3678 = vmatprep.subr.mxu0 0.0
        %3679 = vmatpush1.msra.mxu0 0.0
        %3680 = vmatprep.subr.mxu0 0.0
        %3681 = vmatpush1.msra.mxu0 0.0
        %3682 = vmatprep.subr.mxu0 0.0
        %3683 = vmatpush1.msra.mxu0 0.0
        %3684 = vmatprep.subr.mxu0 0.0
        %3685 = vmatpush1.msra.mxu0 0.0
        %3686 = vmatprep.subr.mxu0 0.0
        %3687 = vmatpush1.msra.mxu0 0.0
        %3688 = vmatprep.subr.mxu0 0.0
        %3689 = vmatpush1.msra.mxu0 0.0
        %3690 = vmatprep.subr.mxu0 0.0
        %3691 = vmatpush1.msra.mxu0 0.0
        %3692 = vmatprep.subr.mxu0 0.0
        %3693 = vmatpush1.msra.mxu0 0.0
        %3694 = vmatprep.subr.mxu0 0.0
        %3695 = vmatpush1.msra.mxu0 0.0
        %3696 = vmatprep.subr.mxu0 0.0
        %3697 = vmatpush1.msra.mxu0 0.0
        %3698 = vmatprep.subr.mxu0 0.0
        %3699 = vmatpush1.msra.mxu0 0.0
        %3700 = vmatprep.subr.mxu0 0.0
        %3701 = vmatpush1.msra.mxu0 0.0
        %3702 = vmatprep.subr.mxu0 0.0
        %3703 = vmatpush1.msra.mxu0 0.0
        %3704 = vmatprep.subr.mxu0 0.0
        %3705 = vmatpush1.msra.mxu0 0.0
        %3706 = vmatprep.subr.mxu0 0.0
        %3707 = vmatpush1.msra.mxu0 0.0
        %3708 = vmatprep.subr.mxu0 0.0
        %3709 = vmatpush1.msra.mxu0 0.0
        %3710 = vmatprep.subr.mxu0 0.0
        %3711 = vmatpush1.msra.mxu0 0.0
        %3712 = vmatprep.subr.mxu0 0.0
        %3713 = vmatpush1.msra.mxu0 0.0
        %3714 = vmatprep.subr.mxu0 0.0
        %3715 = vmatpush1.msra.mxu0 0.0
        %3716 = vmatprep.mubr.f32.mxu0 0.0
        %v3717 = vand.u32 %v3358, 4294901760
        %v3718 = vsub.f32 %v3358, %v3717
        %v3719 = vand.u32 %v3718, 4294901760
        %3720 = vmatmul.mubr.f32.gmra.mrb[0].mxu0 %v3719
        %v3721 = vpop.f32.mrb[0].mxu0
        %v3722 = vadd.f32 %v3636, %v3721
        %v3723 = vpop.f32.mrb[0].mxu0
        %v3724 = vadd.f32 %v3638, %v3723
        %3725 = vmatprep.mubr.f32.mxu0 0.0
        %v3726 = vand.u32 %v3361, 4294901760
        %v3727 = vsub.f32 %v3361, %v3726
        %v3728 = vand.u32 %v3727, 4294901760
        %3729 = vmatmul.mubr.f32.gmra.mrb[0].mxu0 %v3728
        %v3730 = vpop.f32.mrb[0].mxu0
        %v3731 = vadd.f32 %v3644, %v3730
        %v3732 = vpop.f32.mrb[0].mxu0
        %v3733 = vadd.f32 %v3646, %v3732
        %3734 = vdwg.mxu0
        %v3735 = vand.u32 %v3351, 4294901760
        %v3736 = vsub.f32 %v3351, %v3735
        %v3737 = vand.u32 %v3736, 4294901760
        %3738 = vmatprep.subr.mxu0 %v3737
        %v3739 = vand.u32 %v3350, 4294901760
        %v3740 = vsub.f32 %v3350, %v3739
        %v3741 = vand.u32 %v3740, 4294901760
        %3742 = vmatpush1.msra.mxu0 %v3741
        %v3743 = vand.u32 %v3367, 4294901760
        %v3744 = vsub.f32 %v3367, %v3743
        %v3745 = vand.u32 %v3744, 4294901760
        %3746 = vmatprep.subr.mxu0 %v3745
        %v3747 = vand.u32 %v3364, 4294901760
        %v3748 = vsub.f32 %v3364, %v3747
        %v3749 = vand.u32 %v3748, 4294901760
        %3750 = vmatpush1.msra.mxu0 %v3749
        %3751 = vmatprep.subr.mxu0 0.0
        %3752 = vmatpush1.msra.mxu0 0.0
        %3753 = vmatprep.subr.mxu0 0.0
        %3754 = vmatpush1.msra.mxu0 0.0
        %3755 = vmatprep.subr.mxu0 0.0
        %3756 = vmatpush1.msra.mxu0 0.0
        %3757 = vmatprep.subr.mxu0 0.0
        %3758 = vmatpush1.msra.mxu0 0.0
        %3759 = vmatprep.subr.mxu0 0.0
        %3760 = vmatpush1.msra.mxu0 0.0
        %3761 = vmatprep.subr.mxu0 0.0
        %3762 = vmatpush1.msra.mxu0 0.0
        %3763 = vmatprep.subr.mxu0 0.0
        %3764 = vmatpush1.msra.mxu0 0.0
        %3765 = vmatprep.subr.mxu0 0.0
        %3766 = vmatpush1.msra.mxu0 0.0
        %3767 = vmatprep.subr.mxu0 0.0
        %3768 = vmatpush1.msra.mxu0 0.0
        %3769 = vmatprep.subr.mxu0 0.0
        %3770 = vmatpush1.msra.mxu0 0.0
        %3771 = vmatprep.subr.mxu0 0.0
        %3772 = vmatpush1.msra.mxu0 0.0
        %3773 = vmatprep.subr.mxu0 0.0
        %3774 = vmatpush1.msra.mxu0 0.0
        %3775 = vmatprep.subr.mxu0 0.0
        %3776 = vmatpush1.msra.mxu0 0.0
        %3777 = vmatprep.subr.mxu0 0.0
        %3778 = vmatpush1.msra.mxu0 0.0
        %3779 = vmatprep.subr.mxu0 0.0
        %3780 = vmatpush1.msra.mxu0 0.0
        %3781 = vmatprep.subr.mxu0 0.0
        %3782 = vmatpush1.msra.mxu0 0.0
        %3783 = vmatprep.subr.mxu0 0.0
        %3784 = vmatpush1.msra.mxu0 0.0
        %3785 = vmatprep.subr.mxu0 0.0
        %3786 = vmatpush1.msra.mxu0 0.0
        %3787 = vmatprep.subr.mxu0 0.0
        %3788 = vmatpush1.msra.mxu0 0.0
        %3789 = vmatprep.subr.mxu0 0.0
        %3790 = vmatpush1.msra.mxu0 0.0
        %3791 = vmatprep.subr.mxu0 0.0
        %3792 = vmatpush1.msra.mxu0 0.0
        %3793 = vmatprep.subr.mxu0 0.0
        %3794 = vmatpush1.msra.mxu0 0.0
        %3795 = vmatprep.subr.mxu0 0.0
        %3796 = vmatpush1.msra.mxu0 0.0
        %3797 = vmatprep.subr.mxu0 0.0
        %3798 = vmatpush1.msra.mxu0 0.0
        %3799 = vmatprep.subr.mxu0 0.0
        %3800 = vmatpush1.msra.mxu0 0.0
        %3801 = vmatprep.subr.mxu0 0.0
        %3802 = vmatpush1.msra.mxu0 0.0
        %3803 = vmatprep.subr.mxu0 0.0
        %3804 = vmatpush1.msra.mxu0 0.0
        %3805 = vmatprep.subr.mxu0 0.0
        %3806 = vmatpush1.msra.mxu0 0.0
        %3807 = vmatprep.subr.mxu0 0.0
        %3808 = vmatpush1.msra.mxu0 0.0
        %3809 = vmatprep.subr.mxu0 0.0
        %3810 = vmatpush1.msra.mxu0 0.0
        %3811 = vmatprep.mubr.f32.mxu0 0.0
        %v3812 = vand.u32 %v3358, 4294901760
        %3813 = vmatmul.mubr.f32.gmra.mrb[0].mxu0 %v3812
        %v3814 = vpop.f32.mrb[0].mxu0
        %v3815 = vadd.f32 %v3722, %v3814
        %v3816 = vpop.f32.mrb[0].mxu0
        %v3817 = vadd.f32 %v3724, %v3816
        %3818 = vmatprep.mubr.f32.mxu0 0.0
        %v3819 = vand.u32 %v3361, 4294901760
        %3820 = vmatmul.mubr.f32.gmra.mrb[0].mxu0 %v3819
        %v3821 = vpop.f32.mrb[0].mxu0
        %v3822 = vadd.f32 %v3731, %v3821
        %v3823 = vpop.f32.mrb[0].mxu0
        %v3824 = vadd.f32 %v3733, %v3823
        %3825 = vdwg.mxu0
        %v3826 = vand.u32 %v3351, 4294901760
        %3827 = vmatprep.subr.mxu0 %v3826
        %v3828 = vand.u32 %v3350, 4294901760
        %3829 = vmatpush1.msra.mxu0 %v3828
        %v3830 = vand.u32 %v3367, 4294901760
        %3831 = vmatprep.subr.mxu0 %v3830
        %v3832 = vand.u32 %v3364, 4294901760
        %3833 = vmatpush1.msra.mxu0 %v3832
        %3834 = vmatprep.subr.mxu0 0.0
        %3835 = vmatpush1.msra.mxu0 0.0
        %3836 = vmatprep.subr.mxu0 0.0
        %3837 = vmatpush1.msra.mxu0 0.0
        %3838 = vmatprep.subr.mxu0 0.0
        %3839 = vmatpush1.msra.mxu0 0.0
        %3840 = vmatprep.subr.mxu0 0.0
        %3841 = vmatpush1.msra.mxu0 0.0
        %3842 = vmatprep.subr.mxu0 0.0
        %3843 = vmatpush1.msra.mxu0 0.0
        %3844 = vmatprep.subr.mxu0 0.0
        %3845 = vmatpush1.msra.mxu0 0.0
        %3846 = vmatprep.subr.mxu0 0.0
        %3847 = vmatpush1.msra.mxu0 0.0
        %3848 = vmatprep.subr.mxu0 0.0
        %3849 = vmatpush1.msra.mxu0 0.0
        %3850 = vmatprep.subr.mxu0 0.0
        %3851 = vmatpush1.msra.mxu0 0.0
        %3852 = vmatprep.subr.mxu0 0.0
        %3853 = vmatpush1.msra.mxu0 0.0
        %3854 = vmatprep.subr.mxu0 0.0
        %3855 = vmatpush1.msra.mxu0 0.0
        %3856 = vmatprep.subr.mxu0 0.0
        %3857 = vmatpush1.msra.mxu0 0.0
        %3858 = vmatprep.subr.mxu0 0.0
        %3859 = vmatpush1.msra.mxu0 0.0
        %3860 = vmatprep.subr.mxu0 0.0
        %3861 = vmatpush1.msra.mxu0 0.0
        %3862 = vmatprep.subr.mxu0 0.0
        %3863 = vmatpush1.msra.mxu0 0.0
        %3864 = vmatprep.subr.mxu0 0.0
        %3865 = vmatpush1.msra.mxu0 0.0
        %3866 = vmatprep.subr.mxu0 0.0
        %3867 = vmatpush1.msra.mxu0 0.0
        %3868 = vmatprep.subr.mxu0 0.0
        %3869 = vmatpush1.msra.mxu0 0.0
        %3870 = vmatprep.subr.mxu0 0.0
        %3871 = vmatpush1.msra.mxu0 0.0
        %3872 = vmatprep.subr.mxu0 0.0
        %3873 = vmatpush1.msra.mxu0 0.0
        %3874 = vmatprep.subr.mxu0 0.0
        %3875 = vmatpush1.msra.mxu0 0.0
        %3876 = vmatprep.subr.mxu0 0.0
        %3877 = vmatpush1.msra.mxu0 0.0
        %3878 = vmatprep.subr.mxu0 0.0
        %3879 = vmatpush1.msra.mxu0 0.0
        %3880 = vmatprep.subr.mxu0 0.0
        %3881 = vmatpush1.msra.mxu0 0.0
        %3882 = vmatprep.subr.mxu0 0.0
        %3883 = vmatpush1.msra.mxu0 0.0
        %3884 = vmatprep.subr.mxu0 0.0
        %3885 = vmatpush1.msra.mxu0 0.0
        %3886 = vmatprep.subr.mxu0 0.0
        %3887 = vmatpush1.msra.mxu0 0.0
        %3888 = vmatprep.subr.mxu0 0.0
        %3889 = vmatpush1.msra.mxu0 0.0
        %3890 = vmatprep.subr.mxu0 0.0
        %3891 = vmatpush1.msra.mxu0 0.0
        %3892 = vmatprep.subr.mxu0 0.0
        %3893 = vmatpush1.msra.mxu0 0.0
        %3894 = vmatprep.mubr.f32.mxu0 0.0
        %v3895 = vand.u32 %v3358, 4294901760
        %3896 = vmatmul.mubr.f32.gmra.mrb[0].mxu0 %v3895
        %v3897 = vpop.f32.mrb[0].mxu0
        %v3898 = vadd.f32 %v3815, %v3897
        %v3899 = vpop.f32.mrb[0].mxu0
        %v3900 = vadd.f32 %v3817, %v3899
        %3901 = vmatprep.mubr.f32.mxu0 0.0
        %v3902 = vand.u32 %v3361, 4294901760
        %3903 = vmatmul.mubr.f32.gmra.mrb[0].mxu0 %v3902
        %v3904 = vpop.f32.mrb[0].mxu0
        %v3905 = vadd.f32 %v3822, %v3904
        %v3906 = vpop.f32.mrb[0].mxu0
        %v3907 = vadd.f32 %v3824, %v3906
        %3908 = vdwg.mxu0
        %v3909 = vadd.f32 %v3314, %v3898
        %v3910 = vadd.f32 %v3315, %v3900
        %v3911 = vadd.f32 %v3316, %v3905
        %v3912 = vadd.f32 %v3317, %v3907
        %3913 = vrot.lane.b32.xlu0 %v381, 113
        %v3914 = vpop.permute.xlu0 %3913
        %3915 = vrot.lane.b32.xlu0 %v382, 113
        %v3916 = vpop.permute.xlu0 %3915
        %3917 = vrot.lane.b32.xlu0 %v383, 113
        %v3918 = vpop.permute.xlu0 %3917
        %3919 = vrot.lane.b32.xlu0 %v384, 113
        %v3920 = vpop.permute.xlu0 %3919
        %vm3921 = vcmask 924672
        %v3922 = vsel %vm3921, %v3914, %v3916
        %v3923 = vsel %vm3921, %v3918, %v3920
        %v3930 = vsel %vm3921, %v3916, %v3914
        %v3931 = vsel %vm3921, %v3920, %v3918
        %s3932 = scalar_lea.vmem %s2, 6
        %v3933 = vld [vmem:[%s3932] ss:$8 sm:$0x3]
        %v3935 = vlaneseq
        %v3936 = vshrl.u32 %v3935, 7
        %v3937 = vsub.s32 0, %v3936
        %v3938 = vrot.slane %v3933, %v3937
        %v3939 = vlaneseq
        %v3940 = vshrl.u32 %v3939, 7
        %v3941 = vsub.s32 1, %v3940
        %v3942 = vrot.slane %v3933, %v3941
        %v3945 = vmul.f32 %v3922, %v3938
        %v3946 = vmul.f32 %v3930, %v3942
        %v3947 = vmul.f32 %v3923, %v3938
        %v3948 = vmul.f32 %v3931, %v3942
        %s3949 = scalar_lea.vmem [#allocation2], 96
        %v3950 = vld [vmem:[%s3949] sm:$0xff]
        %v3951 = vld [vmem:[%s3949 + $0x8] sm:$0xf]
        %v3953 = vsel %vm465, %v3950, 0
        %v3956 = vsel %vm465, %v3951, 0
        %v3959 = vsel %vm472, %v3947, 0
        %v3962 = vsel %vm472, %v3948, 0
        %v3964 = vand.u32 %v3946, 4294901760
        %3965 = vmatprep.subr.mxu0 %v3964
        %v3966 = vand.u32 %v3945, 4294901760
        %3967 = vmatpush1.msra.mxu0 %v3966
        %v3968 = vand.u32 %v3962, 4294901760
        %3969 = vmatprep.subr.mxu0 %v3968
        %v3970 = vand.u32 %v3959, 4294901760
        %3971 = vmatpush1.msra.mxu0 %v3970
        %3972 = vmatprep.subr.mxu0 0.0
        %3973 = vmatpush1.msra.mxu0 0.0
        %3974 = vmatprep.subr.mxu0 0.0
        %3975 = vmatpush1.msra.mxu0 0.0
        %3976 = vmatprep.subr.mxu0 0.0
        %3977 = vmatpush1.msra.mxu0 0.0
        %3978 = vmatprep.subr.mxu0 0.0
        %3979 = vmatpush1.msra.mxu0 0.0
        %3980 = vmatprep.subr.mxu0 0.0
        %3981 = vmatpush1.msra.mxu0 0.0
        %3982 = vmatprep.subr.mxu0 0.0
        %3983 = vmatpush1.msra.mxu0 0.0
        %3984 = vmatprep.subr.mxu0 0.0
        %3985 = vmatpush1.msra.mxu0 0.0
        %3986 = vmatprep.subr.mxu0 0.0
        %3987 = vmatpush1.msra.mxu0 0.0
        %3988 = vmatprep.subr.mxu0 0.0
        %3989 = vmatpush1.msra.mxu0 0.0
        %3990 = vmatprep.subr.mxu0 0.0
        %3991 = vmatpush1.msra.mxu0 0.0
        %3992 = vmatprep.subr.mxu0 0.0
        %3993 = vmatpush1.msra.mxu0 0.0
        %3994 = vmatprep.subr.mxu0 0.0
        %3995 = vmatpush1.msra.mxu0 0.0
        %3996 = vmatprep.subr.mxu0 0.0
        %3997 = vmatpush1.msra.mxu0 0.0
        %3998 = vmatprep.subr.mxu0 0.0
        %3999 = vmatpush1.msra.mxu0 0.0
        %4000 = vmatprep.subr.mxu0 0.0
        %4001 = vmatpush1.msra.mxu0 0.0
        %4002 = vmatprep.subr.mxu0 0.0
        %4003 = vmatpush1.msra.mxu0 0.0
        %4004 = vmatprep.subr.mxu0 0.0
        %4005 = vmatpush1.msra.mxu0 0.0
        %4006 = vmatprep.subr.mxu0 0.0
        %4007 = vmatpush1.msra.mxu0 0.0
        %4008 = vmatprep.subr.mxu0 0.0
        %4009 = vmatpush1.msra.mxu0 0.0
        %4010 = vmatprep.subr.mxu0 0.0
        %4011 = vmatpush1.msra.mxu0 0.0
        %4012 = vmatprep.subr.mxu0 0.0
        %4013 = vmatpush1.msra.mxu0 0.0
        %4014 = vmatprep.subr.mxu0 0.0
        %4015 = vmatpush1.msra.mxu0 0.0
        %4016 = vmatprep.subr.mxu0 0.0
        %4017 = vmatpush1.msra.mxu0 0.0
        %4018 = vmatprep.subr.mxu0 0.0
        %4019 = vmatpush1.msra.mxu0 0.0
        %4020 = vmatprep.subr.mxu0 0.0
        %4021 = vmatpush1.msra.mxu0 0.0
        %4022 = vmatprep.subr.mxu0 0.0
        %4023 = vmatpush1.msra.mxu0 0.0
        %4024 = vmatprep.subr.mxu0 0.0
        %4025 = vmatpush1.msra.mxu0 0.0
        %4026 = vmatprep.subr.mxu0 0.0
        %4027 = vmatpush1.msra.mxu0 0.0
        %4028 = vmatprep.subr.mxu0 0.0
        %4029 = vmatpush1.msra.mxu0 0.0
        %4030 = vmatprep.subr.mxu0 0.0
        %4031 = vmatpush1.msra.mxu0 0.0
        %4032 = vmatprep.mubr.f32.mxu0 0.0
        %v4033 = vand.u32 %v3953, 4294901760
        %v4034 = vsub.f32 %v3953, %v4033
        %v4035 = vand.u32 %v4034, 4294901760
        %v4036 = vsub.f32 %v4034, %v4035
        %v4037 = vand.u32 %v4036, 4294901760
        %4038 = vmatmul.mubr.f32.gmra.mrb[0].mxu0 %v4037
        %v4039 = vpop.f32.mrb[0].mxu0
        %v4040 = vadd.f32 0.0, %v4039
        %v4041 = vpop.f32.mrb[0].mxu0
        %v4042 = vadd.f32 0.0, %v4041
        %4043 = vmatprep.mubr.f32.mxu0 0.0
        %v4044 = vand.u32 %v3956, 4294901760
        %v4045 = vsub.f32 %v3956, %v4044
        %v4046 = vand.u32 %v4045, 4294901760
        %v4047 = vsub.f32 %v4045, %v4046
        %v4048 = vand.u32 %v4047, 4294901760
        %4049 = vmatmul.mubr.f32.gmra.mrb[0].mxu0 %v4048
        %v4050 = vpop.f32.mrb[0].mxu0
        %v4051 = vadd.f32 0.0, %v4050
        %v4052 = vpop.f32.mrb[0].mxu0
        %v4053 = vadd.f32 0.0, %v4052
        %4054 = vdwg.mxu0
        %v4055 = vand.u32 %v3946, 4294901760
        %v4056 = vsub.f32 %v3946, %v4055
        %v4057 = vand.u32 %v4056, 4294901760
        %v4058 = vsub.f32 %v4056, %v4057
        %v4059 = vand.u32 %v4058, 4294901760
        %4060 = vmatprep.subr.mxu0 %v4059
        %v4061 = vand.u32 %v3945, 4294901760
        %v4062 = vsub.f32 %v3945, %v4061
        %v4063 = vand.u32 %v4062, 4294901760
        %v4064 = vsub.f32 %v4062, %v4063
        %v4065 = vand.u32 %v4064, 4294901760
        %4066 = vmatpush1.msra.mxu0 %v4065
        %v4067 = vand.u32 %v3962, 4294901760
        %v4068 = vsub.f32 %v3962, %v4067
        %v4069 = vand.u32 %v4068, 4294901760
        %v4070 = vsub.f32 %v4068, %v4069
        %v4071 = vand.u32 %v4070, 4294901760
        %4072 = vmatprep.subr.mxu0 %v4071
        %v4073 = vand.u32 %v3959, 4294901760
        %v4074 = vsub.f32 %v3959, %v4073
        %v4075 = vand.u32 %v4074, 4294901760
        %v4076 = vsub.f32 %v4074, %v4075
        %v4077 = vand.u32 %v4076, 4294901760
        %4078 = vmatpush1.msra.mxu0 %v4077
        %4079 = vmatprep.subr.mxu0 0.0
        %4080 = vmatpush1.msra.mxu0 0.0
        %4081 = vmatprep.subr.mxu0 0.0
        %4082 = vmatpush1.msra.mxu0 0.0
        %4083 = vmatprep.subr.mxu0 0.0
        %4084 = vmatpush1.msra.mxu0 0.0
        %4085 = vmatprep.subr.mxu0 0.0
        %4086 = vmatpush1.msra.mxu0 0.0
        %4087 = vmatprep.subr.mxu0 0.0
        %4088 = vmatpush1.msra.mxu0 0.0
        %4089 = vmatprep.subr.mxu0 0.0
        %4090 = vmatpush1.msra.mxu0 0.0
        %4091 = vmatprep.subr.mxu0 0.0
        %4092 = vmatpush1.msra.mxu0 0.0
        %4093 = vmatprep.subr.mxu0 0.0
        %4094 = vmatpush1.msra.mxu0 0.0
        %4095 = vmatprep.subr.mxu0 0.0
        %4096 = vmatpush1.msra.mxu0 0.0
        %4097 = vmatprep.subr.mxu0 0.0
        %4098 = vmatpush1.msra.mxu0 0.0
        %4099 = vmatprep.subr.mxu0 0.0
        %4100 = vmatpush1.msra.mxu0 0.0
        %4101 = vmatprep.subr.mxu0 0.0
        %4102 = vmatpush1.msra.mxu0 0.0
        %4103 = vmatprep.subr.mxu0 0.0
        %4104 = vmatpush1.msra.mxu0 0.0
        %4105 = vmatprep.subr.mxu0 0.0
        %4106 = vmatpush1.msra.mxu0 0.0
        %4107 = vmatprep.subr.mxu0 0.0
        %4108 = vmatpush1.msra.mxu0 0.0
        %4109 = vmatprep.subr.mxu0 0.0
        %4110 = vmatpush1.msra.mxu0 0.0
        %4111 = vmatprep.subr.mxu0 0.0
        %4112 = vmatpush1.msra.mxu0 0.0
        %4113 = vmatprep.subr.mxu0 0.0
        %4114 = vmatpush1.msra.mxu0 0.0
        %4115 = vmatprep.subr.mxu0 0.0
        %4116 = vmatpush1.msra.mxu0 0.0
        %4117 = vmatprep.subr.mxu0 0.0
        %4118 = vmatpush1.msra.mxu0 0.0
        %4119 = vmatprep.subr.mxu0 0.0
        %4120 = vmatpush1.msra.mxu0 0.0
        %4121 = vmatprep.subr.mxu0 0.0
        %4122 = vmatpush1.msra.mxu0 0.0
        %4123 = vmatprep.subr.mxu0 0.0
        %4124 = vmatpush1.msra.mxu0 0.0
        %4125 = vmatprep.subr.mxu0 0.0
        %4126 = vmatpush1.msra.mxu0 0.0
        %4127 = vmatprep.subr.mxu0 0.0
        %4128 = vmatpush1.msra.mxu0 0.0
        %4129 = vmatprep.subr.mxu0 0.0
        %4130 = vmatpush1.msra.mxu0 0.0
        %4131 = vmatprep.subr.mxu0 0.0
        %4132 = vmatpush1.msra.mxu0 0.0
        %4133 = vmatprep.subr.mxu0 0.0
        %4134 = vmatpush1.msra.mxu0 0.0
        %4135 = vmatprep.subr.mxu0 0.0
        %4136 = vmatpush1.msra.mxu0 0.0
        %4137 = vmatprep.subr.mxu0 0.0
        %4138 = vmatpush1.msra.mxu0 0.0
        %4139 = vmatprep.mubr.f32.mxu0 0.0
        %v4140 = vand.u32 %v3953, 4294901760
        %4141 = vmatmul.mubr.f32.gmra.mrb[0].mxu0 %v4140
        %v4142 = vpop.f32.mrb[0].mxu0
        %v4143 = vadd.f32 %v4040, %v4142
        %v4144 = vpop.f32.mrb[0].mxu0
        %v4145 = vadd.f32 %v4042, %v4144
        %4146 = vmatprep.mubr.f32.mxu0 0.0
        %v4147 = vand.u32 %v3956, 4294901760
        %4148 = vmatmul.mubr.f32.gmra.mrb[0].mxu0 %v4147
        %v4149 = vpop.f32.mrb[0].mxu0
        %v4150 = vadd.f32 %v4051, %v4149
        %v4151 = vpop.f32.mrb[0].mxu0
        %v4152 = vadd.f32 %v4053, %v4151
        %4153 = vdwg.mxu0
        %v4154 = vand.u32 %v3946, 4294901760
        %v4155 = vsub.f32 %v3946, %v4154
        %4156 = vmatprep.subr.mxu0 %v4155
        %v4157 = vand.u32 %v3945, 4294901760
        %v4158 = vsub.f32 %v3945, %v4157
        %4159 = vmatpush1.msra.mxu0 %v4158
        %v4160 = vand.u32 %v3962, 4294901760
        %v4161 = vsub.f32 %v3962, %v4160
        %4162 = vmatprep.subr.mxu0 %v4161
        %v4163 = vand.u32 %v3959, 4294901760
        %v4164 = vsub.f32 %v3959, %v4163
        %4165 = vmatpush1.msra.mxu0 %v4164
        %4166 = vmatprep.subr.mxu0 0.0
        %4167 = vmatpush1.msra.mxu0 0.0
        %4168 = vmatprep.subr.mxu0 0.0
        %4169 = vmatpush1.msra.mxu0 0.0
        %4170 = vmatprep.subr.mxu0 0.0
        %4171 = vmatpush1.msra.mxu0 0.0
        %4172 = vmatprep.subr.mxu0 0.0
        %4173 = vmatpush1.msra.mxu0 0.0
        %4174 = vmatprep.subr.mxu0 0.0
        %4175 = vmatpush1.msra.mxu0 0.0
        %4176 = vmatprep.subr.mxu0 0.0
        %4177 = vmatpush1.msra.mxu0 0.0
        %4178 = vmatprep.subr.mxu0 0.0
        %4179 = vmatpush1.msra.mxu0 0.0
        %4180 = vmatprep.subr.mxu0 0.0
        %4181 = vmatpush1.msra.mxu0 0.0
        %4182 = vmatprep.subr.mxu0 0.0
        %4183 = vmatpush1.msra.mxu0 0.0
        %4184 = vmatprep.subr.mxu0 0.0
        %4185 = vmatpush1.msra.mxu0 0.0
        %4186 = vmatprep.subr.mxu0 0.0
        %4187 = vmatpush1.msra.mxu0 0.0
        %4188 = vmatprep.subr.mxu0 0.0
        %4189 = vmatpush1.msra.mxu0 0.0
        %4190 = vmatprep.subr.mxu0 0.0
        %4191 = vmatpush1.msra.mxu0 0.0
        %4192 = vmatprep.subr.mxu0 0.0
        %4193 = vmatpush1.msra.mxu0 0.0
        %4194 = vmatprep.subr.mxu0 0.0
        %4195 = vmatpush1.msra.mxu0 0.0
        %4196 = vmatprep.subr.mxu0 0.0
        %4197 = vmatpush1.msra.mxu0 0.0
        %4198 = vmatprep.subr.mxu0 0.0
        %4199 = vmatpush1.msra.mxu0 0.0
        %4200 = vmatprep.subr.mxu0 0.0
        %4201 = vmatpush1.msra.mxu0 0.0
        %4202 = vmatprep.subr.mxu0 0.0
        %4203 = vmatpush1.msra.mxu0 0.0
        %4204 = vmatprep.subr.mxu0 0.0
        %4205 = vmatpush1.msra.mxu0 0.0
        %4206 = vmatprep.subr.mxu0 0.0
        %4207 = vmatpush1.msra.mxu0 0.0
        %4208 = vmatprep.subr.mxu0 0.0
        %4209 = vmatpush1.msra.mxu0 0.0
        %4210 = vmatprep.subr.mxu0 0.0
        %4211 = vmatpush1.msra.mxu0 0.0
        %4212 = vmatprep.subr.mxu0 0.0
        %4213 = vmatpush1.msra.mxu0 0.0
        %4214 = vmatprep.subr.mxu0 0.0
        %4215 = vmatpush1.msra.mxu0 0.0
        %4216 = vmatprep.subr.mxu0 0.0
        %4217 = vmatpush1.msra.mxu0 0.0
        %4218 = vmatprep.subr.mxu0 0.0
        %4219 = vmatpush1.msra.mxu0 0.0
        %4220 = vmatprep.subr.mxu0 0.0
        %4221 = vmatpush1.msra.mxu0 0.0
        %4222 = vmatprep.subr.mxu0 0.0
        %4223 = vmatpush1.msra.mxu0 0.0
        %4224 = vmatprep.subr.mxu0 0.0
        %4225 = vmatpush1.msra.mxu0 0.0
        %4226 = vmatprep.mubr.f32.mxu0 0.0
        %v4227 = vand.u32 %v3953, 4294901760
        %v4228 = vsub.f32 %v3953, %v4227
        %4229 = vmatmul.mubr.f32.gmra.mrb[0].mxu0 %v4228
        %v4230 = vpop.f32.mrb[0].mxu0
        %v4231 = vadd.f32 %v4143, %v4230
        %v4232 = vpop.f32.mrb[0].mxu0
        %v4233 = vadd.f32 %v4145, %v4232
        %4234 = vmatprep.mubr.f32.mxu0 0.0
        %v4235 = vand.u32 %v3956, 4294901760
        %v4236 = vsub.f32 %v3956, %v4235
        %4237 = vmatmul.mubr.f32.gmra.mrb[0].mxu0 %v4236
        %v4238 = vpop.f32.mrb[0].mxu0
        %v4239 = vadd.f32 %v4150, %v4238
        %v4240 = vpop.f32.mrb[0].mxu0
        %v4241 = vadd.f32 %v4152, %v4240
        %4242 = vdwg.mxu0
        %v4243 = vand.u32 %v3946, 4294901760
        %4244 = vmatprep.subr.mxu0 %v4243
        %v4245 = vand.u32 %v3945, 4294901760
        %4246 = vmatpush1.msra.mxu0 %v4245
        %v4247 = vand.u32 %v3962, 4294901760
        %4248 = vmatprep.subr.mxu0 %v4247
        %v4249 = vand.u32 %v3959, 4294901760
        %4250 = vmatpush1.msra.mxu0 %v4249
        %4251 = vmatprep.subr.mxu0 0.0
        %4252 = vmatpush1.msra.mxu0 0.0
        %4253 = vmatprep.subr.mxu0 0.0
        %4254 = vmatpush1.msra.mxu0 0.0
        %4255 = vmatprep.subr.mxu0 0.0
        %4256 = vmatpush1.msra.mxu0 0.0
        %4257 = vmatprep.subr.mxu0 0.0
        %4258 = vmatpush1.msra.mxu0 0.0
        %4259 = vmatprep.subr.mxu0 0.0
        %4260 = vmatpush1.msra.mxu0 0.0
        %4261 = vmatprep.subr.mxu0 0.0
        %4262 = vmatpush1.msra.mxu0 0.0
        %4263 = vmatprep.subr.mxu0 0.0
        %4264 = vmatpush1.msra.mxu0 0.0
        %4265 = vmatprep.subr.mxu0 0.0
        %4266 = vmatpush1.msra.mxu0 0.0
        %4267 = vmatprep.subr.mxu0 0.0
        %4268 = vmatpush1.msra.mxu0 0.0
        %4269 = vmatprep.subr.mxu0 0.0
        %4270 = vmatpush1.msra.mxu0 0.0
        %4271 = vmatprep.subr.mxu0 0.0
        %4272 = vmatpush1.msra.mxu0 0.0
        %4273 = vmatprep.subr.mxu0 0.0
        %4274 = vmatpush1.msra.mxu0 0.0
        %4275 = vmatprep.subr.mxu0 0.0
        %4276 = vmatpush1.msra.mxu0 0.0
        %4277 = vmatprep.subr.mxu0 0.0
        %4278 = vmatpush1.msra.mxu0 0.0
        %4279 = vmatprep.subr.mxu0 0.0
        %4280 = vmatpush1.msra.mxu0 0.0
        %4281 = vmatprep.subr.mxu0 0.0
        %4282 = vmatpush1.msra.mxu0 0.0
        %4283 = vmatprep.subr.mxu0 0.0
        %4284 = vmatpush1.msra.mxu0 0.0
        %4285 = vmatprep.subr.mxu0 0.0
        %4286 = vmatpush1.msra.mxu0 0.0
        %4287 = vmatprep.subr.mxu0 0.0
        %4288 = vmatpush1.msra.mxu0 0.0
        %4289 = vmatprep.subr.mxu0 0.0
        %4290 = vmatpush1.msra.mxu0 0.0
        %4291 = vmatprep.subr.mxu0 0.0
        %4292 = vmatpush1.msra.mxu0 0.0
        %4293 = vmatprep.subr.mxu0 0.0
        %4294 = vmatpush1.msra.mxu0 0.0
        %4295 = vmatprep.subr.mxu0 0.0
        %4296 = vmatpush1.msra.mxu0 0.0
        %4297 = vmatprep.subr.mxu0 0.0
        %4298 = vmatpush1.msra.mxu0 0.0
        %4299 = vmatprep.subr.mxu0 0.0
        %4300 = vmatpush1.msra.mxu0 0.0
        %4301 = vmatprep.subr.mxu0 0.0
        %4302 = vmatpush1.msra.mxu0 0.0
        %4303 = vmatprep.subr.mxu0 0.0
        %4304 = vmatpush1.msra.mxu0 0.0
        %4305 = vmatprep.subr.mxu0 0.0
        %4306 = vmatpush1.msra.mxu0 0.0
        %4307 = vmatprep.subr.mxu0 0.0
        %4308 = vmatpush1.msra.mxu0 0.0
        %4309 = vmatprep.subr.mxu0 0.0
        %4310 = vmatpush1.msra.mxu0 0.0
        %4311 = vmatprep.mubr.f32.mxu0 0.0
        %v4312 = vand.u32 %v3953, 4294901760
        %v4313 = vsub.f32 %v3953, %v4312
        %v4314 = vand.u32 %v4313, 4294901760
        %4315 = vmatmul.mubr.f32.gmra.mrb[0].mxu0 %v4314
        %v4316 = vpop.f32.mrb[0].mxu0
        %v4317 = vadd.f32 %v4231, %v4316
        %v4318 = vpop.f32.mrb[0].mxu0
        %v4319 = vadd.f32 %v4233, %v4318
        %4320 = vmatprep.mubr.f32.mxu0 0.0
        %v4321 = vand.u32 %v3956, 4294901760
        %v4322 = vsub.f32 %v3956, %v4321
        %v4323 = vand.u32 %v4322, 4294901760
        %4324 = vmatmul.mubr.f32.gmra.mrb[0].mxu0 %v4323
        %v4325 = vpop.f32.mrb[0].mxu0
        %v4326 = vadd.f32 %v4239, %v4325
        %v4327 = vpop.f32.mrb[0].mxu0
        %v4328 = vadd.f32 %v4241, %v4327
        %4329 = vdwg.mxu0
        %v4330 = vand.u32 %v3946, 4294901760
        %v4331 = vsub.f32 %v3946, %v4330
        %v4332 = vand.u32 %v4331, 4294901760
        %4333 = vmatprep.subr.mxu0 %v4332
        %v4334 = vand.u32 %v3945, 4294901760
        %v4335 = vsub.f32 %v3945, %v4334
        %v4336 = vand.u32 %v4335, 4294901760
        %4337 = vmatpush1.msra.mxu0 %v4336
        %v4338 = vand.u32 %v3962, 4294901760
        %v4339 = vsub.f32 %v3962, %v4338
        %v4340 = vand.u32 %v4339, 4294901760
        %4341 = vmatprep.subr.mxu0 %v4340
        %v4342 = vand.u32 %v3959, 4294901760
        %v4343 = vsub.f32 %v3959, %v4342
        %v4344 = vand.u32 %v4343, 4294901760
        %4345 = vmatpush1.msra.mxu0 %v4344
        %4346 = vmatprep.subr.mxu0 0.0
        %4347 = vmatpush1.msra.mxu0 0.0
        %4348 = vmatprep.subr.mxu0 0.0
        %4349 = vmatpush1.msra.mxu0 0.0
        %4350 = vmatprep.subr.mxu0 0.0
        %4351 = vmatpush1.msra.mxu0 0.0
        %4352 = vmatprep.subr.mxu0 0.0
        %4353 = vmatpush1.msra.mxu0 0.0
        %4354 = vmatprep.subr.mxu0 0.0
        %4355 = vmatpush1.msra.mxu0 0.0
        %4356 = vmatprep.subr.mxu0 0.0
        %4357 = vmatpush1.msra.mxu0 0.0
        %4358 = vmatprep.subr.mxu0 0.0
        %4359 = vmatpush1.msra.mxu0 0.0
        %4360 = vmatprep.subr.mxu0 0.0
        %4361 = vmatpush1.msra.mxu0 0.0
        %4362 = vmatprep.subr.mxu0 0.0
        %4363 = vmatpush1.msra.mxu0 0.0
        %4364 = vmatprep.subr.mxu0 0.0
        %4365 = vmatpush1.msra.mxu0 0.0
        %4366 = vmatprep.subr.mxu0 0.0
        %4367 = vmatpush1.msra.mxu0 0.0
        %4368 = vmatprep.subr.mxu0 0.0
        %4369 = vmatpush1.msra.mxu0 0.0
        %4370 = vmatprep.subr.mxu0 0.0
        %4371 = vmatpush1.msra.mxu0 0.0
        %4372 = vmatprep.subr.mxu0 0.0
        %4373 = vmatpush1.msra.mxu0 0.0
        %4374 = vmatprep.subr.mxu0 0.0
        %4375 = vmatpush1.msra.mxu0 0.0
        %4376 = vmatprep.subr.mxu0 0.0
        %4377 = vmatpush1.msra.mxu0 0.0
        %4378 = vmatprep.subr.mxu0 0.0
        %4379 = vmatpush1.msra.mxu0 0.0
        %4380 = vmatprep.subr.mxu0 0.0
        %4381 = vmatpush1.msra.mxu0 0.0
        %4382 = vmatprep.subr.mxu0 0.0
        %4383 = vmatpush1.msra.mxu0 0.0
        %4384 = vmatprep.subr.mxu0 0.0
        %4385 = vmatpush1.msra.mxu0 0.0
        %4386 = vmatprep.subr.mxu0 0.0
        %4387 = vmatpush1.msra.mxu0 0.0
        %4388 = vmatprep.subr.mxu0 0.0
        %4389 = vmatpush1.msra.mxu0 0.0
        %4390 = vmatprep.subr.mxu0 0.0
        %4391 = vmatpush1.msra.mxu0 0.0
        %4392 = vmatprep.subr.mxu0 0.0
        %4393 = vmatpush1.msra.mxu0 0.0
        %4394 = vmatprep.subr.mxu0 0.0
        %4395 = vmatpush1.msra.mxu0 0.0
        %4396 = vmatprep.subr.mxu0 0.0
        %4397 = vmatpush1.msra.mxu0 0.0
        %4398 = vmatprep.subr.mxu0 0.0
        %4399 = vmatpush1.msra.mxu0 0.0
        %4400 = vmatprep.subr.mxu0 0.0
        %4401 = vmatpush1.msra.mxu0 0.0
        %4402 = vmatprep.subr.mxu0 0.0
        %4403 = vmatpush1.msra.mxu0 0.0
        %4404 = vmatprep.subr.mxu0 0.0
        %4405 = vmatpush1.msra.mxu0 0.0
        %4406 = vmatprep.mubr.f32.mxu0 0.0
        %v4407 = vand.u32 %v3953, 4294901760
        %4408 = vmatmul.mubr.f32.gmra.mrb[0].mxu0 %v4407
        %v4409 = vpop.f32.mrb[0].mxu0
        %v4410 = vadd.f32 %v4317, %v4409
        %v4411 = vpop.f32.mrb[0].mxu0
        %v4412 = vadd.f32 %v4319, %v4411
        %4413 = vmatprep.mubr.f32.mxu0 0.0
        %v4414 = vand.u32 %v3956, 4294901760
        %4415 = vmatmul.mubr.f32.gmra.mrb[0].mxu0 %v4414
        %v4416 = vpop.f32.mrb[0].mxu0
        %v4417 = vadd.f32 %v4326, %v4416
        %v4418 = vpop.f32.mrb[0].mxu0
        %v4419 = vadd.f32 %v4328, %v4418
        %4420 = vdwg.mxu0
        %v4421 = vand.u32 %v3946, 4294901760
        %4422 = vmatprep.subr.mxu0 %v4421
        %v4423 = vand.u32 %v3945, 4294901760
        %4424 = vmatpush1.msra.mxu0 %v4423
        %v4425 = vand.u32 %v3962, 4294901760
        %4426 = vmatprep.subr.mxu0 %v4425
        %v4427 = vand.u32 %v3959, 4294901760
        %4428 = vmatpush1.msra.mxu0 %v4427
        %4429 = vmatprep.subr.mxu0 0.0
        %4430 = vmatpush1.msra.mxu0 0.0
        %4431 = vmatprep.subr.mxu0 0.0
        %4432 = vmatpush1.msra.mxu0 0.0
        %4433 = vmatprep.subr.mxu0 0.0
        %4434 = vmatpush1.msra.mxu0 0.0
        %4435 = vmatprep.subr.mxu0 0.0
        %4436 = vmatpush1.msra.mxu0 0.0
        %4437 = vmatprep.subr.mxu0 0.0
        %4438 = vmatpush1.msra.mxu0 0.0
        %4439 = vmatprep.subr.mxu0 0.0
        %4440 = vmatpush1.msra.mxu0 0.0
        %4441 = vmatprep.subr.mxu0 0.0
        %4442 = vmatpush1.msra.mxu0 0.0
        %4443 = vmatprep.subr.mxu0 0.0
        %4444 = vmatpush1.msra.mxu0 0.0
        %4445 = vmatprep.subr.mxu0 0.0
        %4446 = vmatpush1.msra.mxu0 0.0
        %4447 = vmatprep.subr.mxu0 0.0
        %4448 = vmatpush1.msra.mxu0 0.0
        %4449 = vmatprep.subr.mxu0 0.0
        %4450 = vmatpush1.msra.mxu0 0.0
        %4451 = vmatprep.subr.mxu0 0.0
        %4452 = vmatpush1.msra.mxu0 0.0
        %4453 = vmatprep.subr.mxu0 0.0
        %4454 = vmatpush1.msra.mxu0 0.0
        %4455 = vmatprep.subr.mxu0 0.0
        %4456 = vmatpush1.msra.mxu0 0.0
        %4457 = vmatprep.subr.mxu0 0.0
        %4458 = vmatpush1.msra.mxu0 0.0
        %4459 = vmatprep.subr.mxu0 0.0
        %4460 = vmatpush1.msra.mxu0 0.0
        %4461 = vmatprep.subr.mxu0 0.0
        %4462 = vmatpush1.msra.mxu0 0.0
        %4463 = vmatprep.subr.mxu0 0.0
        %4464 = vmatpush1.msra.mxu0 0.0
        %4465 = vmatprep.subr.mxu0 0.0
        %4466 = vmatpush1.msra.mxu0 0.0
        %4467 = vmatprep.subr.mxu0 0.0
        %4468 = vmatpush1.msra.mxu0 0.0
        %4469 = vmatprep.subr.mxu0 0.0
        %4470 = vmatpush1.msra.mxu0 0.0
        %4471 = vmatprep.subr.mxu0 0.0
        %4472 = vmatpush1.msra.mxu0 0.0
        %4473 = vmatprep.subr.mxu0 0.0
        %4474 = vmatpush1.msra.mxu0 0.0
        %4475 = vmatprep.subr.mxu0 0.0
        %4476 = vmatpush1.msra.mxu0 0.0
        %4477 = vmatprep.subr.mxu0 0.0
        %4478 = vmatpush1.msra.mxu0 0.0
        %4479 = vmatprep.subr.mxu0 0.0
        %4480 = vmatpush1.msra.mxu0 0.0
        %4481 = vmatprep.subr.mxu0 0.0
        %4482 = vmatpush1.msra.mxu0 0.0
        %4483 = vmatprep.subr.mxu0 0.0
        %4484 = vmatpush1.msra.mxu0 0.0
        %4485 = vmatprep.subr.mxu0 0.0
        %4486 = vmatpush1.msra.mxu0 0.0
        %4487 = vmatprep.subr.mxu0 0.0
        %4488 = vmatpush1.msra.mxu0 0.0
        %4489 = vmatprep.mubr.f32.mxu0 0.0
        %v4490 = vand.u32 %v3953, 4294901760
        %4491 = vmatmul.mubr.f32.gmra.mrb[0].mxu0 %v4490
        %v4492 = vpop.f32.mrb[0].mxu0
        %v4493 = vadd.f32 %v4410, %v4492
        %v4494 = vpop.f32.mrb[0].mxu0
        %v4495 = vadd.f32 %v4412, %v4494
        %4496 = vmatprep.mubr.f32.mxu0 0.0
        %v4497 = vand.u32 %v3956, 4294901760
        %4498 = vmatmul.mubr.f32.gmra.mrb[0].mxu0 %v4497
        %v4499 = vpop.f32.mrb[0].mxu0
        %v4500 = vadd.f32 %v4417, %v4499
        %v4501 = vpop.f32.mrb[0].mxu0
        %v4502 = vadd.f32 %v4419, %v4501
        %4503 = vdwg.mxu0
        %v4504 = vadd.f32 %v3909, %v4493
        %v4505 = vadd.f32 %v3910, %v4495
        %v4506 = vadd.f32 %v3911, %v4500
        %v4507 = vadd.f32 %v3912, %v4502
        %4508 = vrot.lane.b32.xlu0 %v381, 112
        %v4509 = vpop.permute.xlu0 %4508
        %4510 = vrot.lane.b32.xlu0 %v382, 112
        %v4511 = vpop.permute.xlu0 %4510
        %4512 = vrot.lane.b32.xlu0 %v383, 112
        %v4513 = vpop.permute.xlu0 %4512
        %4514 = vrot.lane.b32.xlu0 %v384, 112
        %v4515 = vpop.permute.xlu0 %4514
        %vm4516 = vcmask 916480
        %v4517 = vsel %vm4516, %v4509, %v4511
        %v4518 = vsel %vm4516, %v4513, %v4515
        %v4525 = vsel %vm4516, %v4511, %v4509
        %v4526 = vsel %vm4516, %v4515, %v4513
        %s4527 = scalar_lea.vmem %s2, 7
        %v4528 = vld [vmem:[%s4527] ss:$8 sm:$0x3]
        %v4530 = vlaneseq
        %v4531 = vshrl.u32 %v4530, 7
        %v4532 = vsub.s32 0, %v4531
        %v4533 = vrot.slane %v4528, %v4532
        %v4534 = vlaneseq
        %v4535 = vshrl.u32 %v4534, 7
        %v4536 = vsub.s32 1, %v4535
        %v4537 = vrot.slane %v4528, %v4536
        %v4540 = vmul.f32 %v4517, %v4533
        %v4541 = vmul.f32 %v4525, %v4537
        %v4542 = vmul.f32 %v4518, %v4533
        %v4543 = vmul.f32 %v4526, %v4537
        %s4544 = scalar_lea.vmem [#allocation2], 112
        %v4545 = vld [vmem:[%s4544] sm:$0xff]
        %v4546 = vld [vmem:[%s4544 + $0x8] sm:$0xf]
        %v4548 = vsel %vm465, %v4545, 0
        %v4551 = vsel %vm465, %v4546, 0
        %v4554 = vsel %vm472, %v4542, 0
        %v4557 = vsel %vm472, %v4543, 0
        %v4559 = vand.u32 %v4541, 4294901760
        %4560 = vmatprep.subr.mxu0 %v4559
        %v4561 = vand.u32 %v4540, 4294901760
        %4562 = vmatpush1.msra.mxu0 %v4561
        %v4563 = vand.u32 %v4557, 4294901760
        %4564 = vmatprep.subr.mxu0 %v4563
        %v4565 = vand.u32 %v4554, 4294901760
        %4566 = vmatpush1.msra.mxu0 %v4565
        %4567 = vmatprep.subr.mxu0 0.0
        %4568 = vmatpush1.msra.mxu0 0.0
        %4569 = vmatprep.subr.mxu0 0.0
        %4570 = vmatpush1.msra.mxu0 0.0
        %4571 = vmatprep.subr.mxu0 0.0
        %4572 = vmatpush1.msra.mxu0 0.0
        %4573 = vmatprep.subr.mxu0 0.0
        %4574 = vmatpush1.msra.mxu0 0.0
        %4575 = vmatprep.subr.mxu0 0.0
        %4576 = vmatpush1.msra.mxu0 0.0
        %4577 = vmatprep.subr.mxu0 0.0
        %4578 = vmatpush1.msra.mxu0 0.0
        %4579 = vmatprep.subr.mxu0 0.0
        %4580 = vmatpush1.msra.mxu0 0.0
        %4581 = vmatprep.subr.mxu0 0.0
        %4582 = vmatpush1.msra.mxu0 0.0
        %4583 = vmatprep.subr.mxu0 0.0
        %4584 = vmatpush1.msra.mxu0 0.0
        %4585 = vmatprep.subr.mxu0 0.0
        %4586 = vmatpush1.msra.mxu0 0.0
        %4587 = vmatprep.subr.mxu0 0.0
        %4588 = vmatpush1.msra.mxu0 0.0
        %4589 = vmatprep.subr.mxu0 0.0
        %4590 = vmatpush1.msra.mxu0 0.0
        %4591 = vmatprep.subr.mxu0 0.0
        %4592 = vmatpush1.msra.mxu0 0.0
        %4593 = vmatprep.subr.mxu0 0.0
        %4594 = vmatpush1.msra.mxu0 0.0
        %4595 = vmatprep.subr.mxu0 0.0
        %4596 = vmatpush1.msra.mxu0 0.0
        %4597 = vmatprep.subr.mxu0 0.0
        %4598 = vmatpush1.msra.mxu0 0.0
        %4599 = vmatprep.subr.mxu0 0.0
        %4600 = vmatpush1.msra.mxu0 0.0
        %4601 = vmatprep.subr.mxu0 0.0
        %4602 = vmatpush1.msra.mxu0 0.0
        %4603 = vmatprep.subr.mxu0 0.0
        %4604 = vmatpush1.msra.mxu0 0.0
        %4605 = vmatprep.subr.mxu0 0.0
        %4606 = vmatpush1.msra.mxu0 0.0
        %4607 = vmatprep.subr.mxu0 0.0
        %4608 = vmatpush1.msra.mxu0 0.0
        %4609 = vmatprep.subr.mxu0 0.0
        %4610 = vmatpush1.msra.mxu0 0.0
        %4611 = vmatprep.subr.mxu0 0.0
        %4612 = vmatpush1.msra.mxu0 0.0
        %4613 = vmatprep.subr.mxu0 0.0
        %4614 = vmatpush1.msra.mxu0 0.0
        %4615 = vmatprep.subr.mxu0 0.0
        %4616 = vmatpush1.msra.mxu0 0.0
        %4617 = vmatprep.subr.mxu0 0.0
        %4618 = vmatpush1.msra.mxu0 0.0
        %4619 = vmatprep.subr.mxu0 0.0
        %4620 = vmatpush1.msra.mxu0 0.0
        %4621 = vmatprep.subr.mxu0 0.0
        %4622 = vmatpush1.msra.mxu0 0.0
        %4623 = vmatprep.subr.mxu0 0.0
        %4624 = vmatpush1.msra.mxu0 0.0
        %4625 = vmatprep.subr.mxu0 0.0
        %4626 = vmatpush1.msra.mxu0 0.0
        %4627 = vmatprep.mubr.f32.mxu0 0.0
        %v4628 = vand.u32 %v4548, 4294901760
        %v4629 = vsub.f32 %v4548, %v4628
        %v4630 = vand.u32 %v4629, 4294901760
        %v4631 = vsub.f32 %v4629, %v4630
        %v4632 = vand.u32 %v4631, 4294901760
        %4633 = vmatmul.mubr.f32.gmra.mrb[0].mxu0 %v4632
        %v4634 = vpop.f32.mrb[0].mxu0
        %v4635 = vadd.f32 0.0, %v4634
        %v4636 = vpop.f32.mrb[0].mxu0
        %v4637 = vadd.f32 0.0, %v4636
        %4638 = vmatprep.mubr.f32.mxu0 0.0
        %v4639 = vand.u32 %v4551, 4294901760
        %v4640 = vsub.f32 %v4551, %v4639
        %v4641 = vand.u32 %v4640, 4294901760
        %v4642 = vsub.f32 %v4640, %v4641
        %v4643 = vand.u32 %v4642, 4294901760
        %4644 = vmatmul.mubr.f32.gmra.mrb[0].mxu0 %v4643
        %v4645 = vpop.f32.mrb[0].mxu0
        %v4646 = vadd.f32 0.0, %v4645
        %v4647 = vpop.f32.mrb[0].mxu0
        %v4648 = vadd.f32 0.0, %v4647
        %4649 = vdwg.mxu0
        %v4650 = vand.u32 %v4541, 4294901760
        %v4651 = vsub.f32 %v4541, %v4650
        %v4652 = vand.u32 %v4651, 4294901760
        %v4653 = vsub.f32 %v4651, %v4652
        %v4654 = vand.u32 %v4653, 4294901760
        %4655 = vmatprep.subr.mxu0 %v4654
        %v4656 = vand.u32 %v4540, 4294901760
        %v4657 = vsub.f32 %v4540, %v4656
        %v4658 = vand.u32 %v4657, 4294901760
        %v4659 = vsub.f32 %v4657, %v4658
        %v4660 = vand.u32 %v4659, 4294901760
        %4661 = vmatpush1.msra.mxu0 %v4660
        %v4662 = vand.u32 %v4557, 4294901760
        %v4663 = vsub.f32 %v4557, %v4662
        %v4664 = vand.u32 %v4663, 4294901760
        %v4665 = vsub.f32 %v4663, %v4664
        %v4666 = vand.u32 %v4665, 4294901760
        %4667 = vmatprep.subr.mxu0 %v4666
        %v4668 = vand.u32 %v4554, 4294901760
        %v4669 = vsub.f32 %v4554, %v4668
        %v4670 = vand.u32 %v4669, 4294901760
        %v4671 = vsub.f32 %v4669, %v4670
        %v4672 = vand.u32 %v4671, 4294901760
        %4673 = vmatpush1.msra.mxu0 %v4672
        %4674 = vmatprep.subr.mxu0 0.0
        %4675 = vmatpush1.msra.mxu0 0.0
        %4676 = vmatprep.subr.mxu0 0.0
        %4677 = vmatpush1.msra.mxu0 0.0
        %4678 = vmatprep.subr.mxu0 0.0
        %4679 = vmatpush1.msra.mxu0 0.0
        %4680 = vmatprep.subr.mxu0 0.0
        %4681 = vmatpush1.msra.mxu0 0.0
        %4682 = vmatprep.subr.mxu0 0.0
        %4683 = vmatpush1.msra.mxu0 0.0
        %4684 = vmatprep.subr.mxu0 0.0
        %4685 = vmatpush1.msra.mxu0 0.0
        %4686 = vmatprep.subr.mxu0 0.0
        %4687 = vmatpush1.msra.mxu0 0.0
        %4688 = vmatprep.subr.mxu0 0.0
        %4689 = vmatpush1.msra.mxu0 0.0
        %4690 = vmatprep.subr.mxu0 0.0
        %4691 = vmatpush1.msra.mxu0 0.0
        %4692 = vmatprep.subr.mxu0 0.0
        %4693 = vmatpush1.msra.mxu0 0.0
        %4694 = vmatprep.subr.mxu0 0.0
        %4695 = vmatpush1.msra.mxu0 0.0
        %4696 = vmatprep.subr.mxu0 0.0
        %4697 = vmatpush1.msra.mxu0 0.0
        %4698 = vmatprep.subr.mxu0 0.0
        %4699 = vmatpush1.msra.mxu0 0.0
        %4700 = vmatprep.subr.mxu0 0.0
        %4701 = vmatpush1.msra.mxu0 0.0
        %4702 = vmatprep.subr.mxu0 0.0
        %4703 = vmatpush1.msra.mxu0 0.0
        %4704 = vmatprep.subr.mxu0 0.0
        %4705 = vmatpush1.msra.mxu0 0.0
        %4706 = vmatprep.subr.mxu0 0.0
        %4707 = vmatpush1.msra.mxu0 0.0
        %4708 = vmatprep.subr.mxu0 0.0
        %4709 = vmatpush1.msra.mxu0 0.0
        %4710 = vmatprep.subr.mxu0 0.0
        %4711 = vmatpush1.msra.mxu0 0.0
        %4712 = vmatprep.subr.mxu0 0.0
        %4713 = vmatpush1.msra.mxu0 0.0
        %4714 = vmatprep.subr.mxu0 0.0
        %4715 = vmatpush1.msra.mxu0 0.0
        %4716 = vmatprep.subr.mxu0 0.0
        %4717 = vmatpush1.msra.mxu0 0.0
        %4718 = vmatprep.subr.mxu0 0.0
        %4719 = vmatpush1.msra.mxu0 0.0
        %4720 = vmatprep.subr.mxu0 0.0
        %4721 = vmatpush1.msra.mxu0 0.0
        %4722 = vmatprep.subr.mxu0 0.0
        %4723 = vmatpush1.msra.mxu0 0.0
        %4724 = vmatprep.subr.mxu0 0.0
        %4725 = vmatpush1.msra.mxu0 0.0
        %4726 = vmatprep.subr.mxu0 0.0
        %4727 = vmatpush1.msra.mxu0 0.0
        %4728 = vmatprep.subr.mxu0 0.0
        %4729 = vmatpush1.msra.mxu0 0.0
        %4730 = vmatprep.subr.mxu0 0.0
        %4731 = vmatpush1.msra.mxu0 0.0
        %4732 = vmatprep.subr.mxu0 0.0
        %4733 = vmatpush1.msra.mxu0 0.0
        %4734 = vmatprep.mubr.f32.mxu0 0.0
        %v4735 = vand.u32 %v4548, 4294901760
        %4736 = vmatmul.mubr.f32.gmra.mrb[0].mxu0 %v4735
        %v4737 = vpop.f32.mrb[0].mxu0
        %v4738 = vadd.f32 %v4635, %v4737
        %v4739 = vpop.f32.mrb[0].mxu0
        %v4740 = vadd.f32 %v4637, %v4739
        %4741 = vmatprep.mubr.f32.mxu0 0.0
        %v4742 = vand.u32 %v4551, 4294901760
        %4743 = vmatmul.mubr.f32.gmra.mrb[0].mxu0 %v4742
        %v4744 = vpop.f32.mrb[0].mxu0
        %v4745 = vadd.f32 %v4646, %v4744
        %v4746 = vpop.f32.mrb[0].mxu0
        %v4747 = vadd.f32 %v4648, %v4746
        %4748 = vdwg.mxu0
        %v4749 = vand.u32 %v4541, 4294901760
        %v4750 = vsub.f32 %v4541, %v4749
        %4751 = vmatprep.subr.mxu0 %v4750
        %v4752 = vand.u32 %v4540, 4294901760
        %v4753 = vsub.f32 %v4540, %v4752
        %4754 = vmatpush1.msra.mxu0 %v4753
        %v4755 = vand.u32 %v4557, 4294901760
        %v4756 = vsub.f32 %v4557, %v4755
        %4757 = vmatprep.subr.mxu0 %v4756
        %v4758 = vand.u32 %v4554, 4294901760
        %v4759 = vsub.f32 %v4554, %v4758
        %4760 = vmatpush1.msra.mxu0 %v4759
        %4761 = vmatprep.subr.mxu0 0.0
        %4762 = vmatpush1.msra.mxu0 0.0
        %4763 = vmatprep.subr.mxu0 0.0
        %4764 = vmatpush1.msra.mxu0 0.0
        %4765 = vmatprep.subr.mxu0 0.0
        %4766 = vmatpush1.msra.mxu0 0.0
        %4767 = vmatprep.subr.mxu0 0.0
        %4768 = vmatpush1.msra.mxu0 0.0
        %4769 = vmatprep.subr.mxu0 0.0
        %4770 = vmatpush1.msra.mxu0 0.0
        %4771 = vmatprep.subr.mxu0 0.0
        %4772 = vmatpush1.msra.mxu0 0.0
        %4773 = vmatprep.subr.mxu0 0.0
        %4774 = vmatpush1.msra.mxu0 0.0
        %4775 = vmatprep.subr.mxu0 0.0
        %4776 = vmatpush1.msra.mxu0 0.0
        %4777 = vmatprep.subr.mxu0 0.0
        %4778 = vmatpush1.msra.mxu0 0.0
        %4779 = vmatprep.subr.mxu0 0.0
        %4780 = vmatpush1.msra.mxu0 0.0
        %4781 = vmatprep.subr.mxu0 0.0
        %4782 = vmatpush1.msra.mxu0 0.0
        %4783 = vmatprep.subr.mxu0 0.0
        %4784 = vmatpush1.msra.mxu0 0.0
        %4785 = vmatprep.subr.mxu0 0.0
        %4786 = vmatpush1.msra.mxu0 0.0
        %4787 = vmatprep.subr.mxu0 0.0
        %4788 = vmatpush1.msra.mxu0 0.0
        %4789 = vmatprep.subr.mxu0 0.0
        %4790 = vmatpush1.msra.mxu0 0.0
        %4791 = vmatprep.subr.mxu0 0.0
        %4792 = vmatpush1.msra.mxu0 0.0
        %4793 = vmatprep.subr.mxu0 0.0
        %4794 = vmatpush1.msra.mxu0 0.0
        %4795 = vmatprep.subr.mxu0 0.0
        %4796 = vmatpush1.msra.mxu0 0.0
        %4797 = vmatprep.subr.mxu0 0.0
        %4798 = vmatpush1.msra.mxu0 0.0
        %4799 = vmatprep.subr.mxu0 0.0
        %4800 = vmatpush1.msra.mxu0 0.0
        %4801 = vmatprep.subr.mxu0 0.0
        %4802 = vmatpush1.msra.mxu0 0.0
        %4803 = vmatprep.subr.mxu0 0.0
        %4804 = vmatpush1.msra.mxu0 0.0
        %4805 = vmatprep.subr.mxu0 0.0
        %4806 = vmatpush1.msra.mxu0 0.0
        %4807 = vmatprep.subr.mxu0 0.0
        %4808 = vmatpush1.msra.mxu0 0.0
        %4809 = vmatprep.subr.mxu0 0.0
        %4810 = vmatpush1.msra.mxu0 0.0
        %4811 = vmatprep.subr.mxu0 0.0
        %4812 = vmatpush1.msra.mxu0 0.0
        %4813 = vmatprep.subr.mxu0 0.0
        %4814 = vmatpush1.msra.mxu0 0.0
        %4815 = vmatprep.subr.mxu0 0.0
        %4816 = vmatpush1.msra.mxu0 0.0
        %4817 = vmatprep.subr.mxu0 0.0
        %4818 = vmatpush1.msra.mxu0 0.0
        %4819 = vmatprep.subr.mxu0 0.0
        %4820 = vmatpush1.msra.mxu0 0.0
        %4821 = vmatprep.mubr.f32.mxu0 0.0
        %v4822 = vand.u32 %v4548, 4294901760
        %v4823 = vsub.f32 %v4548, %v4822
        %4824 = vmatmul.mubr.f32.gmra.mrb[0].mxu0 %v4823
        %v4825 = vpop.f32.mrb[0].mxu0
        %v4826 = vadd.f32 %v4738, %v4825
        %v4827 = vpop.f32.mrb[0].mxu0
        %v4828 = vadd.f32 %v4740, %v4827
        %4829 = vmatprep.mubr.f32.mxu0 0.0
        %v4830 = vand.u32 %v4551, 4294901760
        %v4831 = vsub.f32 %v4551, %v4830
        %4832 = vmatmul.mubr.f32.gmra.mrb[0].mxu0 %v4831
        %v4833 = vpop.f32.mrb[0].mxu0
        %v4834 = vadd.f32 %v4745, %v4833
        %v4835 = vpop.f32.mrb[0].mxu0
        %v4836 = vadd.f32 %v4747, %v4835
        %4837 = vdwg.mxu0
        %v4838 = vand.u32 %v4541, 4294901760
        %4839 = vmatprep.subr.mxu0 %v4838
        %v4840 = vand.u32 %v4540, 4294901760
        %4841 = vmatpush1.msra.mxu0 %v4840
        %v4842 = vand.u32 %v4557, 4294901760
        %4843 = vmatprep.subr.mxu0 %v4842
        %v4844 = vand.u32 %v4554, 4294901760
        %4845 = vmatpush1.msra.mxu0 %v4844
        %4846 = vmatprep.subr.mxu0 0.0
        %4847 = vmatpush1.msra.mxu0 0.0
        %4848 = vmatprep.subr.mxu0 0.0
        %4849 = vmatpush1.msra.mxu0 0.0
        %4850 = vmatprep.subr.mxu0 0.0
        %4851 = vmatpush1.msra.mxu0 0.0
        %4852 = vmatprep.subr.mxu0 0.0
        %4853 = vmatpush1.msra.mxu0 0.0
        %4854 = vmatprep.subr.mxu0 0.0
        %4855 = vmatpush1.msra.mxu0 0.0
        %4856 = vmatprep.subr.mxu0 0.0
        %4857 = vmatpush1.msra.mxu0 0.0
        %4858 = vmatprep.subr.mxu0 0.0
        %4859 = vmatpush1.msra.mxu0 0.0
        %4860 = vmatprep.subr.mxu0 0.0
        %4861 = vmatpush1.msra.mxu0 0.0
        %4862 = vmatprep.subr.mxu0 0.0
        %4863 = vmatpush1.msra.mxu0 0.0
        %4864 = vmatprep.subr.mxu0 0.0
        %4865 = vmatpush1.msra.mxu0 0.0
        %4866 = vmatprep.subr.mxu0 0.0
        %4867 = vmatpush1.msra.mxu0 0.0
        %4868 = vmatprep.subr.mxu0 0.0
        %4869 = vmatpush1.msra.mxu0 0.0
        %4870 = vmatprep.subr.mxu0 0.0
        %4871 = vmatpush1.msra.mxu0 0.0
        %4872 = vmatprep.subr.mxu0 0.0
        %4873 = vmatpush1.msra.mxu0 0.0
        %4874 = vmatprep.subr.mxu0 0.0
        %4875 = vmatpush1.msra.mxu0 0.0
        %4876 = vmatprep.subr.mxu0 0.0
        %4877 = vmatpush1.msra.mxu0 0.0
        %4878 = vmatprep.subr.mxu0 0.0
        %4879 = vmatpush1.msra.mxu0 0.0
        %4880 = vmatprep.subr.mxu0 0.0
        %4881 = vmatpush1.msra.mxu0 0.0
        %4882 = vmatprep.subr.mxu0 0.0
        %4883 = vmatpush1.msra.mxu0 0.0
        %4884 = vmatprep.subr.mxu0 0.0
        %4885 = vmatpush1.msra.mxu0 0.0
        %4886 = vmatprep.subr.mxu0 0.0
        %4887 = vmatpush1.msra.mxu0 0.0
        %4888 = vmatprep.subr.mxu0 0.0
        %4889 = vmatpush1.msra.mxu0 0.0
        %4890 = vmatprep.subr.mxu0 0.0
        %4891 = vmatpush1.msra.mxu0 0.0
        %4892 = vmatprep.subr.mxu0 0.0
        %4893 = vmatpush1.msra.mxu0 0.0
        %4894 = vmatprep.subr.mxu0 0.0
        %4895 = vmatpush1.msra.mxu0 0.0
        %4896 = vmatprep.subr.mxu0 0.0
        %4897 = vmatpush1.msra.mxu0 0.0
        %4898 = vmatprep.subr.mxu0 0.0
        %4899 = vmatpush1.msra.mxu0 0.0
        %4900 = vmatprep.subr.mxu0 0.0
        %4901 = vmatpush1.msra.mxu0 0.0
        %4902 = vmatprep.subr.mxu0 0.0
        %4903 = vmatpush1.msra.mxu0 0.0
        %4904 = vmatprep.subr.mxu0 0.0
        %4905 = vmatpush1.msra.mxu0 0.0
        %4906 = vmatprep.mubr.f32.mxu0 0.0
        %v4907 = vand.u32 %v4548, 4294901760
        %v4908 = vsub.f32 %v4548, %v4907
        %v4909 = vand.u32 %v4908, 4294901760
        %4910 = vmatmul.mubr.f32.gmra.mrb[0].mxu0 %v4909
        %v4911 = vpop.f32.mrb[0].mxu0
        %v4912 = vadd.f32 %v4826, %v4911
        %v4913 = vpop.f32.mrb[0].mxu0
        %v4914 = vadd.f32 %v4828, %v4913
        %4915 = vmatprep.mubr.f32.mxu0 0.0
        %v4916 = vand.u32 %v4551, 4294901760
        %v4917 = vsub.f32 %v4551, %v4916
        %v4918 = vand.u32 %v4917, 4294901760
        %4919 = vmatmul.mubr.f32.gmra.mrb[0].mxu0 %v4918
        %v4920 = vpop.f32.mrb[0].mxu0
        %v4921 = vadd.f32 %v4834, %v4920
        %v4922 = vpop.f32.mrb[0].mxu0
        %v4923 = vadd.f32 %v4836, %v4922
        %4924 = vdwg.mxu0
        %v4925 = vand.u32 %v4541, 4294901760
        %v4926 = vsub.f32 %v4541, %v4925
        %v4927 = vand.u32 %v4926, 4294901760
        %4928 = vmatprep.subr.mxu0 %v4927
        %v4929 = vand.u32 %v4540, 4294901760
        %v4930 = vsub.f32 %v4540, %v4929
        %v4931 = vand.u32 %v4930, 4294901760
        %4932 = vmatpush1.msra.mxu0 %v4931
        %v4933 = vand.u32 %v4557, 4294901760
        %v4934 = vsub.f32 %v4557, %v4933
        %v4935 = vand.u32 %v4934, 4294901760
        %4936 = vmatprep.subr.mxu0 %v4935
        %v4937 = vand.u32 %v4554, 4294901760
        %v4938 = vsub.f32 %v4554, %v4937
        %v4939 = vand.u32 %v4938, 4294901760
        %4940 = vmatpush1.msra.mxu0 %v4939
        %4941 = vmatprep.subr.mxu0 0.0
        %4942 = vmatpush1.msra.mxu0 0.0
        %4943 = vmatprep.subr.mxu0 0.0
        %4944 = vmatpush1.msra.mxu0 0.0
        %4945 = vmatprep.subr.mxu0 0.0
        %4946 = vmatpush1.msra.mxu0 0.0
        %4947 = vmatprep.subr.mxu0 0.0
        %4948 = vmatpush1.msra.mxu0 0.0
        %4949 = vmatprep.subr.mxu0 0.0
        %4950 = vmatpush1.msra.mxu0 0.0
        %4951 = vmatprep.subr.mxu0 0.0
        %4952 = vmatpush1.msra.mxu0 0.0
        %4953 = vmatprep.subr.mxu0 0.0
        %4954 = vmatpush1.msra.mxu0 0.0
        %4955 = vmatprep.subr.mxu0 0.0
        %4956 = vmatpush1.msra.mxu0 0.0
        %4957 = vmatprep.subr.mxu0 0.0
        %4958 = vmatpush1.msra.mxu0 0.0
        %4959 = vmatprep.subr.mxu0 0.0
        %4960 = vmatpush1.msra.mxu0 0.0
        %4961 = vmatprep.subr.mxu0 0.0
        %4962 = vmatpush1.msra.mxu0 0.0
        %4963 = vmatprep.subr.mxu0 0.0
        %4964 = vmatpush1.msra.mxu0 0.0
        %4965 = vmatprep.subr.mxu0 0.0
        %4966 = vmatpush1.msra.mxu0 0.0
        %4967 = vmatprep.subr.mxu0 0.0
        %4968 = vmatpush1.msra.mxu0 0.0
        %4969 = vmatprep.subr.mxu0 0.0
        %4970 = vmatpush1.msra.mxu0 0.0
        %4971 = vmatprep.subr.mxu0 0.0
        %4972 = vmatpush1.msra.mxu0 0.0
        %4973 = vmatprep.subr.mxu0 0.0
        %4974 = vmatpush1.msra.mxu0 0.0
        %4975 = vmatprep.subr.mxu0 0.0
        %4976 = vmatpush1.msra.mxu0 0.0
        %4977 = vmatprep.subr.mxu0 0.0
        %4978 = vmatpush1.msra.mxu0 0.0
        %4979 = vmatprep.subr.mxu0 0.0
        %4980 = vmatpush1.msra.mxu0 0.0
        %4981 = vmatprep.subr.mxu0 0.0
        %4982 = vmatpush1.msra.mxu0 0.0
        %4983 = vmatprep.subr.mxu0 0.0
        %4984 = vmatpush1.msra.mxu0 0.0
        %4985 = vmatprep.subr.mxu0 0.0
        %4986 = vmatpush1.msra.mxu0 0.0
        %4987 = vmatprep.subr.mxu0 0.0
        %4988 = vmatpush1.msra.mxu0 0.0
        %4989 = vmatprep.subr.mxu0 0.0
        %4990 = vmatpush1.msra.mxu0 0.0
        %4991 = vmatprep.subr.mxu0 0.0
        %4992 = vmatpush1.msra.mxu0 0.0
        %4993 = vmatprep.subr.mxu0 0.0
        %4994 = vmatpush1.msra.mxu0 0.0
        %4995 = vmatprep.subr.mxu0 0.0
        %4996 = vmatpush1.msra.mxu0 0.0
        %4997 = vmatprep.subr.mxu0 0.0
        %4998 = vmatpush1.msra.mxu0 0.0
        %4999 = vmatprep.subr.mxu0 0.0
        %5000 = vmatpush1.msra.mxu0 0.0
        %5001 = vmatprep.mubr.f32.mxu0 0.0
        %v5002 = vand.u32 %v4548, 4294901760
        %5003 = vmatmul.mubr.f32.gmra.mrb[0].mxu0 %v5002
        %v5004 = vpop.f32.mrb[0].mxu0
        %v5005 = vadd.f32 %v4912, %v5004
        %v5006 = vpop.f32.mrb[0].mxu0
        %v5007 = vadd.f32 %v4914, %v5006
        %5008 = vmatprep.mubr.f32.mxu0 0.0
        %v5009 = vand.u32 %v4551, 4294901760
        %5010 = vmatmul.mubr.f32.gmra.mrb[0].mxu0 %v5009
        %v5011 = vpop.f32.mrb[0].mxu0
        %v5012 = vadd.f32 %v4921, %v5011
        %v5013 = vpop.f32.mrb[0].mxu0
        %v5014 = vadd.f32 %v4923, %v5013
        %5015 = vdwg.mxu0
        %v5016 = vand.u32 %v4541, 4294901760
        %5017 = vmatprep.subr.mxu0 %v5016
        %v5018 = vand.u32 %v4540, 4294901760
        %5019 = vmatpush1.msra.mxu0 %v5018
        %v5020 = vand.u32 %v4557, 4294901760
        %5021 = vmatprep.subr.mxu0 %v5020
        %v5022 = vand.u32 %v4554, 4294901760
        %5023 = vmatpush1.msra.mxu0 %v5022
        %5024 = vmatprep.subr.mxu0 0.0
        %5025 = vmatpush1.msra.mxu0 0.0
        %5026 = vmatprep.subr.mxu0 0.0
        %5027 = vmatpush1.msra.mxu0 0.0
        %5028 = vmatprep.subr.mxu0 0.0
        %5029 = vmatpush1.msra.mxu0 0.0
        %5030 = vmatprep.subr.mxu0 0.0
        %5031 = vmatpush1.msra.mxu0 0.0
        %5032 = vmatprep.subr.mxu0 0.0
        %5033 = vmatpush1.msra.mxu0 0.0
        %5034 = vmatprep.subr.mxu0 0.0
        %5035 = vmatpush1.msra.mxu0 0.0
        %5036 = vmatprep.subr.mxu0 0.0
        %5037 = vmatpush1.msra.mxu0 0.0
        %5038 = vmatprep.subr.mxu0 0.0
        %5039 = vmatpush1.msra.mxu0 0.0
        %5040 = vmatprep.subr.mxu0 0.0
        %5041 = vmatpush1.msra.mxu0 0.0
        %5042 = vmatprep.subr.mxu0 0.0
        %5043 = vmatpush1.msra.mxu0 0.0
        %5044 = vmatprep.subr.mxu0 0.0
        %5045 = vmatpush1.msra.mxu0 0.0
        %5046 = vmatprep.subr.mxu0 0.0
        %5047 = vmatpush1.msra.mxu0 0.0
        %5048 = vmatprep.subr.mxu0 0.0
        %5049 = vmatpush1.msra.mxu0 0.0
        %5050 = vmatprep.subr.mxu0 0.0
        %5051 = vmatpush1.msra.mxu0 0.0
        %5052 = vmatprep.subr.mxu0 0.0
        %5053 = vmatpush1.msra.mxu0 0.0
        %5054 = vmatprep.subr.mxu0 0.0
        %5055 = vmatpush1.msra.mxu0 0.0
        %5056 = vmatprep.subr.mxu0 0.0
        %5057 = vmatpush1.msra.mxu0 0.0
        %5058 = vmatprep.subr.mxu0 0.0
        %5059 = vmatpush1.msra.mxu0 0.0
        %5060 = vmatprep.subr.mxu0 0.0
        %5061 = vmatpush1.msra.mxu0 0.0
        %5062 = vmatprep.subr.mxu0 0.0
        %5063 = vmatpush1.msra.mxu0 0.0
        %5064 = vmatprep.subr.mxu0 0.0
        %5065 = vmatpush1.msra.mxu0 0.0
        %5066 = vmatprep.subr.mxu0 0.0
        %5067 = vmatpush1.msra.mxu0 0.0
        %5068 = vmatprep.subr.mxu0 0.0
        %5069 = vmatpush1.msra.mxu0 0.0
        %5070 = vmatprep.subr.mxu0 0.0
        %5071 = vmatpush1.msra.mxu0 0.0
        %5072 = vmatprep.subr.mxu0 0.0
        %5073 = vmatpush1.msra.mxu0 0.0
        %5074 = vmatprep.subr.mxu0 0.0
        %5075 = vmatpush1.msra.mxu0 0.0
        %5076 = vmatprep.subr.mxu0 0.0
        %5077 = vmatpush1.msra.mxu0 0.0
        %5078 = vmatprep.subr.mxu0 0.0
        %5079 = vmatpush1.msra.mxu0 0.0
        %5080 = vmatprep.subr.mxu0 0.0
        %5081 = vmatpush1.msra.mxu0 0.0
        %5082 = vmatprep.subr.mxu0 0.0
        %5083 = vmatpush1.msra.mxu0 0.0
        %5084 = vmatprep.mubr.f32.mxu0 0.0
        %v5085 = vand.u32 %v4548, 4294901760
        %5086 = vmatmul.mubr.f32.gmra.mrb[0].mxu0 %v5085
        %v5087 = vpop.f32.mrb[0].mxu0
        %v5088 = vadd.f32 %v5005, %v5087
        %v5089 = vpop.f32.mrb[0].mxu0
        %v5090 = vadd.f32 %v5007, %v5089
        %5091 = vmatprep.mubr.f32.mxu0 0.0
        %v5092 = vand.u32 %v4551, 4294901760
        %5093 = vmatmul.mubr.f32.gmra.mrb[0].mxu0 %v5092
        %v5094 = vpop.f32.mrb[0].mxu0
        %v5095 = vadd.f32 %v5012, %v5094
        %v5096 = vpop.f32.mrb[0].mxu0
        %v5097 = vadd.f32 %v5014, %v5096
        %5098 = vdwg.mxu0
        %v5099 = vadd.f32 %v4504, %v5088
        %v5100 = vadd.f32 %v4505, %v5090
        %v5101 = vadd.f32 %v4506, %v5095
        %v5102 = vadd.f32 %v4507, %v5097
        %5103 = vrot.lane.b32.xlu0 %v381, 111
        %v5104 = vpop.permute.xlu0 %5103
        %5105 = vrot.lane.b32.xlu0 %v382, 111
        %v5106 = vpop.permute.xlu0 %5105
        %5107 = vrot.lane.b32.xlu0 %v383, 111
        %v5108 = vpop.permute.xlu0 %5107
        %5109 = vrot.lane.b32.xlu0 %v384, 111
        %v5110 = vpop.permute.xlu0 %5109
        %vm5111 = vcmask 908288
        %v5112 = vsel %vm5111, %v5104, %v5106
        %v5113 = vsel %vm5111, %v5108, %v5110
        %v5120 = vsel %vm5111, %v5106, %v5104
        %v5121 = vsel %vm5111, %v5110, %v5108
        %s5122 = scalar_lea.vmem %s2, 16
        %v5123 = vld [vmem:[%s5122] ss:$8 sm:$0x3]
        %v5125 = vlaneseq
        %v5126 = vshrl.u32 %v5125, 7
        %v5127 = vsub.s32 0, %v5126
        %v5128 = vrot.slane %v5123, %v5127
        %v5129 = vlaneseq
        %v5130 = vshrl.u32 %v5129, 7
        %v5131 = vsub.s32 1, %v5130
        %v5132 = vrot.slane %v5123, %v5131
        %v5135 = vmul.f32 %v5112, %v5128
        %v5136 = vmul.f32 %v5120, %v5132
        %v5137 = vmul.f32 %v5113, %v5128
        %v5138 = vmul.f32 %v5121, %v5132
        %s5139 = scalar_lea.vmem [#allocation2], 128
        %v5140 = vld [vmem:[%s5139] sm:$0xff]
        %v5141 = vld [vmem:[%s5139 + $0x8] sm:$0xf]
        %v5143 = vsel %vm465, %v5140, 0
        %v5146 = vsel %vm465, %v5141, 0
        %v5149 = vsel %vm472, %v5137, 0
        %v5152 = vsel %vm472, %v5138, 0
        %v5154 = vand.u32 %v5136, 4294901760
        %5155 = vmatprep.subr.mxu0 %v5154
        %v5156 = vand.u32 %v5135, 4294901760
        %5157 = vmatpush1.msra.mxu0 %v5156
        %v5158 = vand.u32 %v5152, 4294901760
        %5159 = vmatprep.subr.mxu0 %v5158
        %v5160 = vand.u32 %v5149, 4294901760
        %5161 = vmatpush1.msra.mxu0 %v5160
        %5162 = vmatprep.subr.mxu0 0.0
        %5163 = vmatpush1.msra.mxu0 0.0
        %5164 = vmatprep.subr.mxu0 0.0
        %5165 = vmatpush1.msra.mxu0 0.0
        %5166 = vmatprep.subr.mxu0 0.0
        %5167 = vmatpush1.msra.mxu0 0.0
        %5168 = vmatprep.subr.mxu0 0.0
        %5169 = vmatpush1.msra.mxu0 0.0
        %5170 = vmatprep.subr.mxu0 0.0
        %5171 = vmatpush1.msra.mxu0 0.0
        %5172 = vmatprep.subr.mxu0 0.0
        %5173 = vmatpush1.msra.mxu0 0.0
        %5174 = vmatprep.subr.mxu0 0.0
        %5175 = vmatpush1.msra.mxu0 0.0
        %5176 = vmatprep.subr.mxu0 0.0
        %5177 = vmatpush1.msra.mxu0 0.0
        %5178 = vmatprep.subr.mxu0 0.0
        %5179 = vmatpush1.msra.mxu0 0.0
        %5180 = vmatprep.subr.mxu0 0.0
        %5181 = vmatpush1.msra.mxu0 0.0
        %5182 = vmatprep.subr.mxu0 0.0
        %5183 = vmatpush1.msra.mxu0 0.0
        %5184 = vmatprep.subr.mxu0 0.0
        %5185 = vmatpush1.msra.mxu0 0.0
        %5186 = vmatprep.subr.mxu0 0.0
        %5187 = vmatpush1.msra.mxu0 0.0
        %5188 = vmatprep.subr.mxu0 0.0
        %5189 = vmatpush1.msra.mxu0 0.0
        %5190 = vmatprep.subr.mxu0 0.0
        %5191 = vmatpush1.msra.mxu0 0.0
        %5192 = vmatprep.subr.mxu0 0.0
        %5193 = vmatpush1.msra.mxu0 0.0
        %5194 = vmatprep.subr.mxu0 0.0
        %5195 = vmatpush1.msra.mxu0 0.0
        %5196 = vmatprep.subr.mxu0 0.0
        %5197 = vmatpush1.msra.mxu0 0.0
        %5198 = vmatprep.subr.mxu0 0.0
        %5199 = vmatpush1.msra.mxu0 0.0
        %5200 = vmatprep.subr.mxu0 0.0
        %5201 = vmatpush1.msra.mxu0 0.0
        %5202 = vmatprep.subr.mxu0 0.0
        %5203 = vmatpush1.msra.mxu0 0.0
        %5204 = vmatprep.subr.mxu0 0.0
        %5205 = vmatpush1.msra.mxu0 0.0
        %5206 = vmatprep.subr.mxu0 0.0
        %5207 = vmatpush1.msra.mxu0 0.0
        %5208 = vmatprep.subr.mxu0 0.0
        %5209 = vmatpush1.msra.mxu0 0.0
        %5210 = vmatprep.subr.mxu0 0.0
        %5211 = vmatpush1.msra.mxu0 0.0
        %5212 = vmatprep.subr.mxu0 0.0
        %5213 = vmatpush1.msra.mxu0 0.0
        %5214 = vmatprep.subr.mxu0 0.0
        %5215 = vmatpush1.msra.mxu0 0.0
        %5216 = vmatprep.subr.mxu0 0.0
        %5217 = vmatpush1.msra.mxu0 0.0
        %5218 = vmatprep.subr.mxu0 0.0
        %5219 = vmatpush1.msra.mxu0 0.0
        %5220 = vmatprep.subr.mxu0 0.0
        %5221 = vmatpush1.msra.mxu0 0.0
        %5222 = vmatprep.mubr.f32.mxu0 0.0
        %v5223 = vand.u32 %v5143, 4294901760
        %v5224 = vsub.f32 %v5143, %v5223
        %v5225 = vand.u32 %v5224, 4294901760
        %v5226 = vsub.f32 %v5224, %v5225
        %v5227 = vand.u32 %v5226, 4294901760
        %5228 = vmatmul.mubr.f32.gmra.mrb[0].mxu0 %v5227
        %v5229 = vpop.f32.mrb[0].mxu0
        %v5230 = vadd.f32 0.0, %v5229
        %v5231 = vpop.f32.mrb[0].mxu0
        %v5232 = vadd.f32 0.0, %v5231
        %5233 = vmatprep.mubr.f32.mxu0 0.0
        %v5234 = vand.u32 %v5146, 4294901760
        %v5235 = vsub.f32 %v5146, %v5234
        %v5236 = vand.u32 %v5235, 4294901760
        %v5237 = vsub.f32 %v5235, %v5236
        %v5238 = vand.u32 %v5237, 4294901760
        %5239 = vmatmul.mubr.f32.gmra.mrb[0].mxu0 %v5238
        %v5240 = vpop.f32.mrb[0].mxu0
        %v5241 = vadd.f32 0.0, %v5240
        %v5242 = vpop.f32.mrb[0].mxu0
        %v5243 = vadd.f32 0.0, %v5242
        %5244 = vdwg.mxu0
        %v5245 = vand.u32 %v5136, 4294901760
        %v5246 = vsub.f32 %v5136, %v5245
        %v5247 = vand.u32 %v5246, 4294901760
        %v5248 = vsub.f32 %v5246, %v5247
        %v5249 = vand.u32 %v5248, 4294901760
        %5250 = vmatprep.subr.mxu0 %v5249
        %v5251 = vand.u32 %v5135, 4294901760
        %v5252 = vsub.f32 %v5135, %v5251
        %v5253 = vand.u32 %v5252, 4294901760
        %v5254 = vsub.f32 %v5252, %v5253
        %v5255 = vand.u32 %v5254, 4294901760
        %5256 = vmatpush1.msra.mxu0 %v5255
        %v5257 = vand.u32 %v5152, 4294901760
        %v5258 = vsub.f32 %v5152, %v5257
        %v5259 = vand.u32 %v5258, 4294901760
        %v5260 = vsub.f32 %v5258, %v5259
        %v5261 = vand.u32 %v5260, 4294901760
        %5262 = vmatprep.subr.mxu0 %v5261
        %v5263 = vand.u32 %v5149, 4294901760
        %v5264 = vsub.f32 %v5149, %v5263
        %v5265 = vand.u32 %v5264, 4294901760
        %v5266 = vsub.f32 %v5264, %v5265
        %v5267 = vand.u32 %v5266, 4294901760
        %5268 = vmatpush1.msra.mxu0 %v5267
        %5269 = vmatprep.subr.mxu0 0.0
        %5270 = vmatpush1.msra.mxu0 0.0
        %5271 = vmatprep.subr.mxu0 0.0
        %5272 = vmatpush1.msra.mxu0 0.0
        %5273 = vmatprep.subr.mxu0 0.0
        %5274 = vmatpush1.msra.mxu0 0.0
        %5275 = vmatprep.subr.mxu0 0.0
        %5276 = vmatpush1.msra.mxu0 0.0
        %5277 = vmatprep.subr.mxu0 0.0
        %5278 = vmatpush1.msra.mxu0 0.0
        %5279 = vmatprep.subr.mxu0 0.0
        %5280 = vmatpush1.msra.mxu0 0.0
        %5281 = vmatprep.subr.mxu0 0.0
        %5282 = vmatpush1.msra.mxu0 0.0
        %5283 = vmatprep.subr.mxu0 0.0
        %5284 = vmatpush1.msra.mxu0 0.0
        %5285 = vmatprep.subr.mxu0 0.0
        %5286 = vmatpush1.msra.mxu0 0.0
        %5287 = vmatprep.subr.mxu0 0.0
        %5288 = vmatpush1.msra.mxu0 0.0
        %5289 = vmatprep.subr.mxu0 0.0
        %5290 = vmatpush1.msra.mxu0 0.0
        %5291 = vmatprep.subr.mxu0 0.0
        %5292 = vmatpush1.msra.mxu0 0.0
        %5293 = vmatprep.subr.mxu0 0.0
        %5294 = vmatpush1.msra.mxu0 0.0
        %5295 = vmatprep.subr.mxu0 0.0
        %5296 = vmatpush1.msra.mxu0 0.0
        %5297 = vmatprep.subr.mxu0 0.0
        %5298 = vmatpush1.msra.mxu0 0.0
        %5299 = vmatprep.subr.mxu0 0.0
        %5300 = vmatpush1.msra.mxu0 0.0
        %5301 = vmatprep.subr.mxu0 0.0
        %5302 = vmatpush1.msra.mxu0 0.0
        %5303 = vmatprep.subr.mxu0 0.0
        %5304 = vmatpush1.msra.mxu0 0.0
        %5305 = vmatprep.subr.mxu0 0.0
        %5306 = vmatpush1.msra.mxu0 0.0
        %5307 = vmatprep.subr.mxu0 0.0
        %5308 = vmatpush1.msra.mxu0 0.0
        %5309 = vmatprep.subr.mxu0 0.0
        %5310 = vmatpush1.msra.mxu0 0.0
        %5311 = vmatprep.subr.mxu0 0.0
        %5312 = vmatpush1.msra.mxu0 0.0
        %5313 = vmatprep.subr.mxu0 0.0
        %5314 = vmatpush1.msra.mxu0 0.0
        %5315 = vmatprep.subr.mxu0 0.0
        %5316 = vmatpush1.msra.mxu0 0.0
        %5317 = vmatprep.subr.mxu0 0.0
        %5318 = vmatpush1.msra.mxu0 0.0
        %5319 = vmatprep.subr.mxu0 0.0
        %5320 = vmatpush1.msra.mxu0 0.0
        %5321 = vmatprep.subr.mxu0 0.0
        %5322 = vmatpush1.msra.mxu0 0.0
        %5323 = vmatprep.subr.mxu0 0.0
        %5324 = vmatpush1.msra.mxu0 0.0
        %5325 = vmatprep.subr.mxu0 0.0
        %5326 = vmatpush1.msra.mxu0 0.0
        %5327 = vmatprep.subr.mxu0 0.0
        %5328 = vmatpush1.msra.mxu0 0.0
        %5329 = vmatprep.mubr.f32.mxu0 0.0
        %v5330 = vand.u32 %v5143, 4294901760
        %5331 = vmatmul.mubr.f32.gmra.mrb[0].mxu0 %v5330
        %v5332 = vpop.f32.mrb[0].mxu0
        %v5333 = vadd.f32 %v5230, %v5332
        %v5334 = vpop.f32.mrb[0].mxu0
        %v5335 = vadd.f32 %v5232, %v5334
        %5336 = vmatprep.mubr.f32.mxu0 0.0
        %v5337 = vand.u32 %v5146, 4294901760
        %5338 = vmatmul.mubr.f32.gmra.mrb[0].mxu0 %v5337
        %v5339 = vpop.f32.mrb[0].mxu0
        %v5340 = vadd.f32 %v5241, %v5339
        %v5341 = vpop.f32.mrb[0].mxu0
        %v5342 = vadd.f32 %v5243, %v5341
        %5343 = vdwg.mxu0
        %v5344 = vand.u32 %v5136, 4294901760
        %v5345 = vsub.f32 %v5136, %v5344
        %5346 = vmatprep.subr.mxu0 %v5345
        %v5347 = vand.u32 %v5135, 4294901760
        %v5348 = vsub.f32 %v5135, %v5347
        %5349 = vmatpush1.msra.mxu0 %v5348
        %v5350 = vand.u32 %v5152, 4294901760
        %v5351 = vsub.f32 %v5152, %v5350
        %5352 = vmatprep.subr.mxu0 %v5351
        %v5353 = vand.u32 %v5149, 4294901760
        %v5354 = vsub.f32 %v5149, %v5353
        %5355 = vmatpush1.msra.mxu0 %v5354
        %5356 = vmatprep.subr.mxu0 0.0
        %5357 = vmatpush1.msra.mxu0 0.0
        %5358 = vmatprep.subr.mxu0 0.0
        %5359 = vmatpush1.msra.mxu0 0.0
        %5360 = vmatprep.subr.mxu0 0.0
        %5361 = vmatpush1.msra.mxu0 0.0
        %5362 = vmatprep.subr.mxu0 0.0
        %5363 = vmatpush1.msra.mxu0 0.0
        %5364 = vmatprep.subr.mxu0 0.0
        %5365 = vmatpush1.msra.mxu0 0.0
        %5366 = vmatprep.subr.mxu0 0.0
        %5367 = vmatpush1.msra.mxu0 0.0
        %5368 = vmatprep.subr.mxu0 0.0
        %5369 = vmatpush1.msra.mxu0 0.0
        %5370 = vmatprep.subr.mxu0 0.0
        %5371 = vmatpush1.msra.mxu0 0.0
        %5372 = vmatprep.subr.mxu0 0.0
        %5373 = vmatpush1.msra.mxu0 0.0
        %5374 = vmatprep.subr.mxu0 0.0
        %5375 = vmatpush1.msra.mxu0 0.0
        %5376 = vmatprep.subr.mxu0 0.0
        %5377 = vmatpush1.msra.mxu0 0.0
        %5378 = vmatprep.subr.mxu0 0.0
        %5379 = vmatpush1.msra.mxu0 0.0
        %5380 = vmatprep.subr.mxu0 0.0
        %5381 = vmatpush1.msra.mxu0 0.0
        %5382 = vmatprep.subr.mxu0 0.0
        %5383 = vmatpush1.msra.mxu0 0.0
        %5384 = vmatprep.subr.mxu0 0.0
        %5385 = vmatpush1.msra.mxu0 0.0
        %5386 = vmatprep.subr.mxu0 0.0
        %5387 = vmatpush1.msra.mxu0 0.0
        %5388 = vmatprep.subr.mxu0 0.0
        %5389 = vmatpush1.msra.mxu0 0.0
        %5390 = vmatprep.subr.mxu0 0.0
        %5391 = vmatpush1.msra.mxu0 0.0
        %5392 = vmatprep.subr.mxu0 0.0
        %5393 = vmatpush1.msra.mxu0 0.0
        %5394 = vmatprep.subr.mxu0 0.0
        %5395 = vmatpush1.msra.mxu0 0.0
        %5396 = vmatprep.subr.mxu0 0.0
        %5397 = vmatpush1.msra.mxu0 0.0
        %5398 = vmatprep.subr.mxu0 0.0
        %5399 = vmatpush1.msra.mxu0 0.0
        %5400 = vmatprep.subr.mxu0 0.0
        %5401 = vmatpush1.msra.mxu0 0.0
        %5402 = vmatprep.subr.mxu0 0.0
        %5403 = vmatpush1.msra.mxu0 0.0
        %5404 = vmatprep.subr.mxu0 0.0
        %5405 = vmatpush1.msra.mxu0 0.0
        %5406 = vmatprep.subr.mxu0 0.0
        %5407 = vmatpush1.msra.mxu0 0.0
        %5408 = vmatprep.subr.mxu0 0.0
        %5409 = vmatpush1.msra.mxu0 0.0
        %5410 = vmatprep.subr.mxu0 0.0
        %5411 = vmatpush1.msra.mxu0 0.0
        %5412 = vmatprep.subr.mxu0 0.0
        %5413 = vmatpush1.msra.mxu0 0.0
        %5414 = vmatprep.subr.mxu0 0.0
        %5415 = vmatpush1.msra.mxu0 0.0
        %5416 = vmatprep.mubr.f32.mxu0 0.0
        %v5417 = vand.u32 %v5143, 4294901760
        %v5418 = vsub.f32 %v5143, %v5417
        %5419 = vmatmul.mubr.f32.gmra.mrb[0].mxu0 %v5418
        %v5420 = vpop.f32.mrb[0].mxu0
        %v5421 = vadd.f32 %v5333, %v5420
        %v5422 = vpop.f32.mrb[0].mxu0
        %v5423 = vadd.f32 %v5335, %v5422
        %5424 = vmatprep.mubr.f32.mxu0 0.0
        %v5425 = vand.u32 %v5146, 4294901760
        %v5426 = vsub.f32 %v5146, %v5425
        %5427 = vmatmul.mubr.f32.gmra.mrb[0].mxu0 %v5426
        %v5428 = vpop.f32.mrb[0].mxu0
        %v5429 = vadd.f32 %v5340, %v5428
        %v5430 = vpop.f32.mrb[0].mxu0
        %v5431 = vadd.f32 %v5342, %v5430
        %5432 = vdwg.mxu0
        %v5433 = vand.u32 %v5136, 4294901760
        %5434 = vmatprep.subr.mxu0 %v5433
        %v5435 = vand.u32 %v5135, 4294901760
        %5436 = vmatpush1.msra.mxu0 %v5435
        %v5437 = vand.u32 %v5152, 4294901760
        %5438 = vmatprep.subr.mxu0 %v5437
        %v5439 = vand.u32 %v5149, 4294901760
        %5440 = vmatpush1.msra.mxu0 %v5439
        %5441 = vmatprep.subr.mxu0 0.0
        %5442 = vmatpush1.msra.mxu0 0.0
        %5443 = vmatprep.subr.mxu0 0.0
        %5444 = vmatpush1.msra.mxu0 0.0
        %5445 = vmatprep.subr.mxu0 0.0
        %5446 = vmatpush1.msra.mxu0 0.0
        %5447 = vmatprep.subr.mxu0 0.0
        %5448 = vmatpush1.msra.mxu0 0.0
        %5449 = vmatprep.subr.mxu0 0.0
        %5450 = vmatpush1.msra.mxu0 0.0
        %5451 = vmatprep.subr.mxu0 0.0
        %5452 = vmatpush1.msra.mxu0 0.0
        %5453 = vmatprep.subr.mxu0 0.0
        %5454 = vmatpush1.msra.mxu0 0.0
        %5455 = vmatprep.subr.mxu0 0.0
        %5456 = vmatpush1.msra.mxu0 0.0
        %5457 = vmatprep.subr.mxu0 0.0
        %5458 = vmatpush1.msra.mxu0 0.0
        %5459 = vmatprep.subr.mxu0 0.0
        %5460 = vmatpush1.msra.mxu0 0.0
        %5461 = vmatprep.subr.mxu0 0.0
        %5462 = vmatpush1.msra.mxu0 0.0
        %5463 = vmatprep.subr.mxu0 0.0
        %5464 = vmatpush1.msra.mxu0 0.0
        %5465 = vmatprep.subr.mxu0 0.0
        %5466 = vmatpush1.msra.mxu0 0.0
        %5467 = vmatprep.subr.mxu0 0.0
        %5468 = vmatpush1.msra.mxu0 0.0
        %5469 = vmatprep.subr.mxu0 0.0
        %5470 = vmatpush1.msra.mxu0 0.0
        %5471 = vmatprep.subr.mxu0 0.0
        %5472 = vmatpush1.msra.mxu0 0.0
        %5473 = vmatprep.subr.mxu0 0.0
        %5474 = vmatpush1.msra.mxu0 0.0
        %5475 = vmatprep.subr.mxu0 0.0
        %5476 = vmatpush1.msra.mxu0 0.0
        %5477 = vmatprep.subr.mxu0 0.0
        %5478 = vmatpush1.msra.mxu0 0.0
        %5479 = vmatprep.subr.mxu0 0.0
        %5480 = vmatpush1.msra.mxu0 0.0
        %5481 = vmatprep.subr.mxu0 0.0
        %5482 = vmatpush1.msra.mxu0 0.0
        %5483 = vmatprep.subr.mxu0 0.0
        %5484 = vmatpush1.msra.mxu0 0.0
        %5485 = vmatprep.subr.mxu0 0.0
        %5486 = vmatpush1.msra.mxu0 0.0
        %5487 = vmatprep.subr.mxu0 0.0
        %5488 = vmatpush1.msra.mxu0 0.0
        %5489 = vmatprep.subr.mxu0 0.0
        %5490 = vmatpush1.msra.mxu0 0.0
        %5491 = vmatprep.subr.mxu0 0.0
        %5492 = vmatpush1.msra.mxu0 0.0
        %5493 = vmatprep.subr.mxu0 0.0
        %5494 = vmatpush1.msra.mxu0 0.0
        %5495 = vmatprep.subr.mxu0 0.0
        %5496 = vmatpush1.msra.mxu0 0.0
        %5497 = vmatprep.subr.mxu0 0.0
        %5498 = vmatpush1.msra.mxu0 0.0
        %5499 = vmatprep.subr.mxu0 0.0
        %5500 = vmatpush1.msra.mxu0 0.0
        %5501 = vmatprep.mubr.f32.mxu0 0.0
        %v5502 = vand.u32 %v5143, 4294901760
        %v5503 = vsub.f32 %v5143, %v5502
        %v5504 = vand.u32 %v5503, 4294901760
        %5505 = vmatmul.mubr.f32.gmra.mrb[0].mxu0 %v5504
        %v5506 = vpop.f32.mrb[0].mxu0
        %v5507 = vadd.f32 %v5421, %v5506
        %v5508 = vpop.f32.mrb[0].mxu0
        %v5509 = vadd.f32 %v5423, %v5508
        %5510 = vmatprep.mubr.f32.mxu0 0.0
        %v5511 = vand.u32 %v5146, 4294901760
        %v5512 = vsub.f32 %v5146, %v5511
        %v5513 = vand.u32 %v5512, 4294901760
        %5514 = vmatmul.mubr.f32.gmra.mrb[0].mxu0 %v5513
        %v5515 = vpop.f32.mrb[0].mxu0
        %v5516 = vadd.f32 %v5429, %v5515
        %v5517 = vpop.f32.mrb[0].mxu0
        %v5518 = vadd.f32 %v5431, %v5517
        %5519 = vdwg.mxu0
        %v5520 = vand.u32 %v5136, 4294901760
        %v5521 = vsub.f32 %v5136, %v5520
        %v5522 = vand.u32 %v5521, 4294901760
        %5523 = vmatprep.subr.mxu0 %v5522
        %v5524 = vand.u32 %v5135, 4294901760
        %v5525 = vsub.f32 %v5135, %v5524
        %v5526 = vand.u32 %v5525, 4294901760
        %5527 = vmatpush1.msra.mxu0 %v5526
        %v5528 = vand.u32 %v5152, 4294901760
        %v5529 = vsub.f32 %v5152, %v5528
        %v5530 = vand.u32 %v5529, 4294901760
        %5531 = vmatprep.subr.mxu0 %v5530
        %v5532 = vand.u32 %v5149, 4294901760
        %v5533 = vsub.f32 %v5149, %v5532
        %v5534 = vand.u32 %v5533, 4294901760
        %5535 = vmatpush1.msra.mxu0 %v5534
        %5536 = vmatprep.subr.mxu0 0.0
        %5537 = vmatpush1.msra.mxu0 0.0
        %5538 = vmatprep.subr.mxu0 0.0
        %5539 = vmatpush1.msra.mxu0 0.0
        %5540 = vmatprep.subr.mxu0 0.0
        %5541 = vmatpush1.msra.mxu0 0.0
        %5542 = vmatprep.subr.mxu0 0.0
        %5543 = vmatpush1.msra.mxu0 0.0
        %5544 = vmatprep.subr.mxu0 0.0
        %5545 = vmatpush1.msra.mxu0 0.0
        %5546 = vmatprep.subr.mxu0 0.0
        %5547 = vmatpush1.msra.mxu0 0.0
        %5548 = vmatprep.subr.mxu0 0.0
        %5549 = vmatpush1.msra.mxu0 0.0
        %5550 = vmatprep.subr.mxu0 0.0
        %5551 = vmatpush1.msra.mxu0 0.0
        %5552 = vmatprep.subr.mxu0 0.0
        %5553 = vmatpush1.msra.mxu0 0.0
        %5554 = vmatprep.subr.mxu0 0.0
        %5555 = vmatpush1.msra.mxu0 0.0
        %5556 = vmatprep.subr.mxu0 0.0
        %5557 = vmatpush1.msra.mxu0 0.0
        %5558 = vmatprep.subr.mxu0 0.0
        %5559 = vmatpush1.msra.mxu0 0.0
        %5560 = vmatprep.subr.mxu0 0.0
        %5561 = vmatpush1.msra.mxu0 0.0
        %5562 = vmatprep.subr.mxu0 0.0
        %5563 = vmatpush1.msra.mxu0 0.0
        %5564 = vmatprep.subr.mxu0 0.0
        %5565 = vmatpush1.msra.mxu0 0.0
        %5566 = vmatprep.subr.mxu0 0.0
        %5567 = vmatpush1.msra.mxu0 0.0
        %5568 = vmatprep.subr.mxu0 0.0
        %5569 = vmatpush1.msra.mxu0 0.0
        %5570 = vmatprep.subr.mxu0 0.0
        %5571 = vmatpush1.msra.mxu0 0.0
        %5572 = vmatprep.subr.mxu0 0.0
        %5573 = vmatpush1.msra.mxu0 0.0
        %5574 = vmatprep.subr.mxu0 0.0
        %5575 = vmatpush1.msra.mxu0 0.0
        %5576 = vmatprep.subr.mxu0 0.0
        %5577 = vmatpush1.msra.mxu0 0.0
        %5578 = vmatprep.subr.mxu0 0.0
        %5579 = vmatpush1.msra.mxu0 0.0
        %5580 = vmatprep.subr.mxu0 0.0
        %5581 = vmatpush1.msra.mxu0 0.0
        %5582 = vmatprep.subr.mxu0 0.0
        %5583 = vmatpush1.msra.mxu0 0.0
        %5584 = vmatprep.subr.mxu0 0.0
        %5585 = vmatpush1.msra.mxu0 0.0
        %5586 = vmatprep.subr.mxu0 0.0
        %5587 = vmatpush1.msra.mxu0 0.0
        %5588 = vmatprep.subr.mxu0 0.0
        %5589 = vmatpush1.msra.mxu0 0.0
        %5590 = vmatprep.subr.mxu0 0.0
        %5591 = vmatpush1.msra.mxu0 0.0
        %5592 = vmatprep.subr.mxu0 0.0
        %5593 = vmatpush1.msra.mxu0 0.0
        %5594 = vmatprep.subr.mxu0 0.0
        %5595 = vmatpush1.msra.mxu0 0.0
        %5596 = vmatprep.mubr.f32.mxu0 0.0
        %v5597 = vand.u32 %v5143, 4294901760
        %5598 = vmatmul.mubr.f32.gmra.mrb[0].mxu0 %v5597
        %v5599 = vpop.f32.mrb[0].mxu0
        %v5600 = vadd.f32 %v5507, %v5599
        %v5601 = vpop.f32.mrb[0].mxu0
        %v5602 = vadd.f32 %v5509, %v5601
        %5603 = vmatprep.mubr.f32.mxu0 0.0
        %v5604 = vand.u32 %v5146, 4294901760
        %5605 = vmatmul.mubr.f32.gmra.mrb[0].mxu0 %v5604
        %v5606 = vpop.f32.mrb[0].mxu0
        %v5607 = vadd.f32 %v5516, %v5606
        %v5608 = vpop.f32.mrb[0].mxu0
        %v5609 = vadd.f32 %v5518, %v5608
        %5610 = vdwg.mxu0
        %v5611 = vand.u32 %v5136, 4294901760
        %5612 = vmatprep.subr.mxu0 %v5611
        %v5613 = vand.u32 %v5135, 4294901760
        %5614 = vmatpush1.msra.mxu0 %v5613
        %v5615 = vand.u32 %v5152, 4294901760
        %5616 = vmatprep.subr.mxu0 %v5615
        %v5617 = vand.u32 %v5149, 4294901760
        %5618 = vmatpush1.msra.mxu0 %v5617
        %5619 = vmatprep.subr.mxu0 0.0
        %5620 = vmatpush1.msra.mxu0 0.0
        %5621 = vmatprep.subr.mxu0 0.0
        %5622 = vmatpush1.msra.mxu0 0.0
        %5623 = vmatprep.subr.mxu0 0.0
        %5624 = vmatpush1.msra.mxu0 0.0
        %5625 = vmatprep.subr.mxu0 0.0
        %5626 = vmatpush1.msra.mxu0 0.0
        %5627 = vmatprep.subr.mxu0 0.0
        %5628 = vmatpush1.msra.mxu0 0.0
        %5629 = vmatprep.subr.mxu0 0.0
        %5630 = vmatpush1.msra.mxu0 0.0
        %5631 = vmatprep.subr.mxu0 0.0
        %5632 = vmatpush1.msra.mxu0 0.0
        %5633 = vmatprep.subr.mxu0 0.0
        %5634 = vmatpush1.msra.mxu0 0.0
        %5635 = vmatprep.subr.mxu0 0.0
        %5636 = vmatpush1.msra.mxu0 0.0
        %5637 = vmatprep.subr.mxu0 0.0
        %5638 = vmatpush1.msra.mxu0 0.0
        %5639 = vmatprep.subr.mxu0 0.0
        %5640 = vmatpush1.msra.mxu0 0.0
        %5641 = vmatprep.subr.mxu0 0.0
        %5642 = vmatpush1.msra.mxu0 0.0
        %5643 = vmatprep.subr.mxu0 0.0
        %5644 = vmatpush1.msra.mxu0 0.0
        %5645 = vmatprep.subr.mxu0 0.0
        %5646 = vmatpush1.msra.mxu0 0.0
        %5647 = vmatprep.subr.mxu0 0.0
        %5648 = vmatpush1.msra.mxu0 0.0
        %5649 = vmatprep.subr.mxu0 0.0
        %5650 = vmatpush1.msra.mxu0 0.0
        %5651 = vmatprep.subr.mxu0 0.0
        %5652 = vmatpush1.msra.mxu0 0.0
        %5653 = vmatprep.subr.mxu0 0.0
        %5654 = vmatpush1.msra.mxu0 0.0
        %5655 = vmatprep.subr.mxu0 0.0
        %5656 = vmatpush1.msra.mxu0 0.0
        %5657 = vmatprep.subr.mxu0 0.0
        %5658 = vmatpush1.msra.mxu0 0.0
        %5659 = vmatprep.subr.mxu0 0.0
        %5660 = vmatpush1.msra.mxu0 0.0
        %5661 = vmatprep.subr.mxu0 0.0
        %5662 = vmatpush1.msra.mxu0 0.0
        %5663 = vmatprep.subr.mxu0 0.0
        %5664 = vmatpush1.msra.mxu0 0.0
        %5665 = vmatprep.subr.mxu0 0.0
        %5666 = vmatpush1.msra.mxu0 0.0
        %5667 = vmatprep.subr.mxu0 0.0
        %5668 = vmatpush1.msra.mxu0 0.0
        %5669 = vmatprep.subr.mxu0 0.0
        %5670 = vmatpush1.msra.mxu0 0.0
        %5671 = vmatprep.subr.mxu0 0.0
        %5672 = vmatpush1.msra.mxu0 0.0
        %5673 = vmatprep.subr.mxu0 0.0
        %5674 = vmatpush1.msra.mxu0 0.0
        %5675 = vmatprep.subr.mxu0 0.0
        %5676 = vmatpush1.msra.mxu0 0.0
        %5677 = vmatprep.subr.mxu0 0.0
        %5678 = vmatpush1.msra.mxu0 0.0
        %5679 = vmatprep.mubr.f32.mxu0 0.0
        %v5680 = vand.u32 %v5143, 4294901760
        %5681 = vmatmul.mubr.f32.gmra.mrb[0].mxu0 %v5680
        %v5682 = vpop.f32.mrb[0].mxu0
        %v5683 = vadd.f32 %v5600, %v5682
        %v5684 = vpop.f32.mrb[0].mxu0
        %v5685 = vadd.f32 %v5602, %v5684
        %5686 = vmatprep.mubr.f32.mxu0 0.0
        %v5687 = vand.u32 %v5146, 4294901760
        %5688 = vmatmul.mubr.f32.gmra.mrb[0].mxu0 %v5687
        %v5689 = vpop.f32.mrb[0].mxu0
        %v5690 = vadd.f32 %v5607, %v5689
        %v5691 = vpop.f32.mrb[0].mxu0
        %v5692 = vadd.f32 %v5609, %v5691
        %5693 = vdwg.mxu0
        %v5694 = vadd.f32 %v5099, %v5683
        %v5695 = vadd.f32 %v5100, %v5685
        %v5696 = vadd.f32 %v5101, %v5690
        %v5697 = vadd.f32 %v5102, %v5692
        %v5698 = vld [vmem:[%s4] sm:$0xff]
        %v5699 = vld [vmem:[%s4 + $0x8] sm:$0xf]
        %5701 = vset.pattern.permute.xlu0 0
        %5702 = vperm.xlu0 %5701, %v5698
        %v5703 = vpop.permute.xlu0 %5702
        %5706 = vset.pattern.permute.xlu0 0
        %5707 = vperm.xlu0 %5706, %v5699
        %v5708 = vpop.permute.xlu0 %5707
        %v5710 = vadd.f32 %v5694, %v5703
        %v5711 = vadd.f32 %v5695, %v5703
        %v5712 = vadd.f32 %v5696, %v5708
        %v5713 = vadd.f32 %v5697, %v5708
        %v5714 = vld [vmem:[%s380] sm:$0xff]
        %v5715 = vld [vmem:[#allocation5] sm:$0xff]
        %v5716 = vld [vmem:[#allocation5 + $0x8] sm:$0xff]
        %v5717 = vld [vmem:[#allocation5 + $0x10] sm:$0xff]
        %v5718 = vld [vmem:[#allocation5 + $0x18] sm:$0xff]
        %v5719 = vld [vmem:[#allocation5 + $0x20] sm:$0xff]
        %v5720 = vld [vmem:[#allocation5 + $0x28] sm:$0xff]
        %v5721 = vld [vmem:[#allocation5 + $0x30] sm:$0xff]
        %v5722 = vld [vmem:[#allocation5 + $0x38] sm:$0xff]
        %v5723 = vld [vmem:[#allocation5 + $0x40] sm:$0xff]
        %v5724 = vld [vmem:[#allocation5 + $0x48] sm:$0xff]
        %v5725 = vld [vmem:[#allocation5 + $0x50] sm:$0xff]
        %v5726 = vld [vmem:[#allocation5 + $0x58] sm:$0xff]
        %v5727 = vld [vmem:[#allocation5 + $0x60] sm:$0xff]
        %v5728 = vld [vmem:[#allocation5 + $0x68] sm:$0xff]
        %v5729 = vld [vmem:[#allocation5 + $0x70] sm:$0xff]
        %v5730 = vld [vmem:[#allocation5 + $0x78] sm:$0xff]
        %v5731 = vld [vmem:[#allocation5 + $0x80] sm:$0xff]
        %v5732 = vld [vmem:[#allocation5 + $0x88] sm:$0xff]
        %v5733 = vld [vmem:[#allocation5 + $0x90] sm:$0xff]
        %v5734 = vld [vmem:[#allocation5 + $0x98] sm:$0xff]
        %v5735 = vld [vmem:[#allocation5 + $0xa0] sm:$0xff]
        %v5736 = vld [vmem:[#allocation5 + $0xa8] sm:$0xff]
        %v5737 = vld [vmem:[#allocation5 + $0xb0] sm:$0xff]
        %v5738 = vld [vmem:[#allocation5 + $0xb8] sm:$0xff]
        %v5739 = vld [vmem:[#allocation5 + $0xc0] sm:$0xff]
        %v5740 = vld [vmem:[#allocation5 + $0xc8] sm:$0xff]
        %v5741 = vld [vmem:[#allocation5 + $0xd0] sm:$0xff]
        %v5742 = vld [vmem:[#allocation5 + $0xd8] sm:$0xff]
        %v5743 = vld [vmem:[#allocation5 + $0xe0] sm:$0xff]
        %v5744 = vld [vmem:[#allocation5 + $0xe8] sm:$0xff]
        %v5745 = vld [vmem:[#allocation5 + $0xf0] sm:$0xff]
        %v5746 = vld [vmem:[#allocation5 + $0xf8] sm:$0xff]
        %v5747 = vld [vmem:[%s6] sm:$0x1]
        %v5748 = vlaneseq
        %v5749 = vshrl.u32 %v5748, 7
        %v5750 = vsub.s32 0, %v5749
        %v5751 = vrot.slane %v5747, %v5750
        %v5753 = vcombine.high %v5714, %v5714
        %5755 = vmatprep.subr.mxu0 0.0
        %v5756 = vand.u32 %v5715, 4294901760
        %5757 = vmatpush1.msra.mxu0 %v5756
        %5758 = vmatprep.subr.mxu0 0.0
        %v5759 = vand.u32 %v5716, 4294901760
        %5760 = vmatpush1.msra.mxu0 %v5759
        %5761 = vmatprep.subr.mxu0 0.0
        %v5762 = vand.u32 %v5717, 4294901760
        %5763 = vmatpush1.msra.mxu0 %v5762
        %5764 = vmatprep.subr.mxu0 0.0
        %v5765 = vand.u32 %v5718, 4294901760
        %5766 = vmatpush1.msra.mxu0 %v5765
        %5767 = vmatprep.subr.mxu0 0.0
        %v5768 = vand.u32 %v5719, 4294901760
        %5769 = vmatpush1.msra.mxu0 %v5768
        %5770 = vmatprep.subr.mxu0 0.0
        %v5771 = vand.u32 %v5720, 4294901760
        %5772 = vmatpush1.msra.mxu0 %v5771
        %5773 = vmatprep.subr.mxu0 0.0
        %v5774 = vand.u32 %v5721, 4294901760
        %5775 = vmatpush1.msra.mxu0 %v5774
        %5776 = vmatprep.subr.mxu0 0.0
        %v5777 = vand.u32 %v5722, 4294901760
        %5778 = vmatpush1.msra.mxu0 %v5777
        %5779 = vmatprep.subr.mxu0 0.0
        %v5780 = vand.u32 %v5723, 4294901760
        %5781 = vmatpush1.msra.mxu0 %v5780
        %5782 = vmatprep.subr.mxu0 0.0
        %v5783 = vand.u32 %v5724, 4294901760
        %5784 = vmatpush1.msra.mxu0 %v5783
        %5785 = vmatprep.subr.mxu0 0.0
        %v5786 = vand.u32 %v5725, 4294901760
        %5787 = vmatpush1.msra.mxu0 %v5786
        %5788 = vmatprep.subr.mxu0 0.0
        %v5789 = vand.u32 %v5726, 4294901760
        %5790 = vmatpush1.msra.mxu0 %v5789
        %5791 = vmatprep.subr.mxu0 0.0
        %v5792 = vand.u32 %v5727, 4294901760
        %5793 = vmatpush1.msra.mxu0 %v5792
        %5794 = vmatprep.subr.mxu0 0.0
        %v5795 = vand.u32 %v5728, 4294901760
        %5796 = vmatpush1.msra.mxu0 %v5795
        %5797 = vmatprep.subr.mxu0 0.0
        %v5798 = vand.u32 %v5729, 4294901760
        %5799 = vmatpush1.msra.mxu0 %v5798
        %5800 = vmatprep.subr.mxu0 0.0
        %v5801 = vand.u32 %v5730, 4294901760
        %5802 = vmatpush1.msra.mxu0 %v5801
        %5803 = vmatprep.subr.mxu0 0.0
        %v5804 = vand.u32 %v5731, 4294901760
        %5805 = vmatpush1.msra.mxu0 %v5804
        %5806 = vmatprep.subr.mxu0 0.0
        %v5807 = vand.u32 %v5732, 4294901760
        %5808 = vmatpush1.msra.mxu0 %v5807
        %5809 = vmatprep.subr.mxu0 0.0
        %v5810 = vand.u32 %v5733, 4294901760
        %5811 = vmatpush1.msra.mxu0 %v5810
        %5812 = vmatprep.subr.mxu0 0.0
        %v5813 = vand.u32 %v5734, 4294901760
        %5814 = vmatpush1.msra.mxu0 %v5813
        %5815 = vmatprep.subr.mxu0 0.0
        %v5816 = vand.u32 %v5735, 4294901760
        %5817 = vmatpush1.msra.mxu0 %v5816
        %5818 = vmatprep.subr.mxu0 0.0
        %v5819 = vand.u32 %v5736, 4294901760
        %5820 = vmatpush1.msra.mxu0 %v5819
        %5821 = vmatprep.subr.mxu0 0.0
        %v5822 = vand.u32 %v5737, 4294901760
        %5823 = vmatpush1.msra.mxu0 %v5822
        %5824 = vmatprep.subr.mxu0 0.0
        %v5825 = vand.u32 %v5738, 4294901760
        %5826 = vmatpush1.msra.mxu0 %v5825
        %5827 = vmatprep.subr.mxu0 0.0
        %v5828 = vand.u32 %v5739, 4294901760
        %5829 = vmatpush1.msra.mxu0 %v5828
        %5830 = vmatprep.subr.mxu0 0.0
        %v5831 = vand.u32 %v5740, 4294901760
        %5832 = vmatpush1.msra.mxu0 %v5831
        %5833 = vmatprep.subr.mxu0 0.0
        %v5834 = vand.u32 %v5741, 4294901760
        %5835 = vmatpush1.msra.mxu0 %v5834
        %5836 = vmatprep.subr.mxu0 0.0
        %v5837 = vand.u32 %v5742, 4294901760
        %5838 = vmatpush1.msra.mxu0 %v5837
        %5839 = vmatprep.subr.mxu0 0.0
        %v5840 = vand.u32 %v5743, 4294901760
        %5841 = vmatpush1.msra.mxu0 %v5840
        %5842 = vmatprep.subr.mxu0 0.0
        %v5843 = vand.u32 %v5744, 4294901760
        %5844 = vmatpush1.msra.mxu0 %v5843
        %5845 = vmatprep.subr.mxu0 0.0
        %v5846 = vand.u32 %v5745, 4294901760
        %5847 = vmatpush1.msra.mxu0 %v5846
        %5848 = vmatprep.subr.mxu0 0.0
        %v5849 = vand.u32 %v5746, 4294901760
        %5850 = vmatpush1.msra.mxu0 %v5849
        %v5851 = vand.u32 %v5753, 4294901760
        %v5852 = vsub.f32 %v5753, %v5851
        %v5853 = vand.u32 %v5852, 4294901760
        %v5854 = vsub.f32 %v5852, %v5853
        %v5855 = vand.u32 %v5854, 4294901760
        %5856 = vmatprep.mubr.f32.mxu0 %v5855
        %v5857 = vand.u32 %v5714, 4294901760
        %v5858 = vsub.f32 %v5714, %v5857
        %v5859 = vand.u32 %v5858, 4294901760
        %v5860 = vsub.f32 %v5858, %v5859
        %v5861 = vand.u32 %v5860, 4294901760
        %5862 = vmatmul.mubr.f32.gmra.mrb[0].mxu0 %v5861
        %v5863 = vpop.f32.mrb[0].mxu0
        %v5864 = vadd.f32 %v5751, %v5863
        %v5865 = vpop.f32.mrb[0].mxu0
        %5866 = vdwg.mxu0
        %5867 = vmatprep.subr.mxu0 0.0
        %v5868 = vand.u32 %v5715, 4294901760
        %v5869 = vsub.f32 %v5715, %v5868
        %v5870 = vand.u32 %v5869, 4294901760
        %v5871 = vsub.f32 %v5869, %v5870
        %v5872 = vand.u32 %v5871, 4294901760
        %5873 = vmatpush1.msra.mxu0 %v5872
        %5874 = vmatprep.subr.mxu0 0.0
        %v5875 = vand.u32 %v5716, 4294901760
        %v5876 = vsub.f32 %v5716, %v5875
        %v5877 = vand.u32 %v5876, 4294901760
        %v5878 = vsub.f32 %v5876, %v5877
        %v5879 = vand.u32 %v5878, 4294901760
        %5880 = vmatpush1.msra.mxu0 %v5879
        %5881 = vmatprep.subr.mxu0 0.0
        %v5882 = vand.u32 %v5717, 4294901760
        %v5883 = vsub.f32 %v5717, %v5882
        %v5884 = vand.u32 %v5883, 4294901760
        %v5885 = vsub.f32 %v5883, %v5884
        %v5886 = vand.u32 %v5885, 4294901760
        %5887 = vmatpush1.msra.mxu0 %v5886
        %5888 = vmatprep.subr.mxu0 0.0
        %v5889 = vand.u32 %v5718, 4294901760
        %v5890 = vsub.f32 %v5718, %v5889
        %v5891 = vand.u32 %v5890, 4294901760
        %v5892 = vsub.f32 %v5890, %v5891
        %v5893 = vand.u32 %v5892, 4294901760
        %5894 = vmatpush1.msra.mxu0 %v5893
        %5895 = vmatprep.subr.mxu0 0.0
        %v5896 = vand.u32 %v5719, 4294901760
        %v5897 = vsub.f32 %v5719, %v5896
        %v5898 = vand.u32 %v5897, 4294901760
        %v5899 = vsub.f32 %v5897, %v5898
        %v5900 = vand.u32 %v5899, 4294901760
        %5901 = vmatpush1.msra.mxu0 %v5900
        %5902 = vmatprep.subr.mxu0 0.0
        %v5903 = vand.u32 %v5720, 4294901760
        %v5904 = vsub.f32 %v5720, %v5903
        %v5905 = vand.u32 %v5904, 4294901760
        %v5906 = vsub.f32 %v5904, %v5905
        %v5907 = vand.u32 %v5906, 4294901760
        %5908 = vmatpush1.msra.mxu0 %v5907
        %5909 = vmatprep.subr.mxu0 0.0
        %v5910 = vand.u32 %v5721, 4294901760
        %v5911 = vsub.f32 %v5721, %v5910
        %v5912 = vand.u32 %v5911, 4294901760
        %v5913 = vsub.f32 %v5911, %v5912
        %v5914 = vand.u32 %v5913, 4294901760
        %5915 = vmatpush1.msra.mxu0 %v5914
        %5916 = vmatprep.subr.mxu0 0.0
        %v5917 = vand.u32 %v5722, 4294901760
        %v5918 = vsub.f32 %v5722, %v5917
        %v5919 = vand.u32 %v5918, 4294901760
        %v5920 = vsub.f32 %v5918, %v5919
        %v5921 = vand.u32 %v5920, 4294901760
        %5922 = vmatpush1.msra.mxu0 %v5921
        %5923 = vmatprep.subr.mxu0 0.0
        %v5924 = vand.u32 %v5723, 4294901760
        %v5925 = vsub.f32 %v5723, %v5924
        %v5926 = vand.u32 %v5925, 4294901760
        %v5927 = vsub.f32 %v5925, %v5926
        %v5928 = vand.u32 %v5927, 4294901760
        %5929 = vmatpush1.msra.mxu0 %v5928
        %5930 = vmatprep.subr.mxu0 0.0
        %v5931 = vand.u32 %v5724, 4294901760
        %v5932 = vsub.f32 %v5724, %v5931
        %v5933 = vand.u32 %v5932, 4294901760
        %v5934 = vsub.f32 %v5932, %v5933
        %v5935 = vand.u32 %v5934, 4294901760
        %5936 = vmatpush1.msra.mxu0 %v5935
        %5937 = vmatprep.subr.mxu0 0.0
        %v5938 = vand.u32 %v5725, 4294901760
        %v5939 = vsub.f32 %v5725, %v5938
        %v5940 = vand.u32 %v5939, 4294901760
        %v5941 = vsub.f32 %v5939, %v5940
        %v5942 = vand.u32 %v5941, 4294901760
        %5943 = vmatpush1.msra.mxu0 %v5942
        %5944 = vmatprep.subr.mxu0 0.0
        %v5945 = vand.u32 %v5726, 4294901760
        %v5946 = vsub.f32 %v5726, %v5945
        %v5947 = vand.u32 %v5946, 4294901760
        %v5948 = vsub.f32 %v5946, %v5947
        %v5949 = vand.u32 %v5948, 4294901760
        %5950 = vmatpush1.msra.mxu0 %v5949
        %5951 = vmatprep.subr.mxu0 0.0
        %v5952 = vand.u32 %v5727, 4294901760
        %v5953 = vsub.f32 %v5727, %v5952
        %v5954 = vand.u32 %v5953, 4294901760
        %v5955 = vsub.f32 %v5953, %v5954
        %v5956 = vand.u32 %v5955, 4294901760
        %5957 = vmatpush1.msra.mxu0 %v5956
        %5958 = vmatprep.subr.mxu0 0.0
        %v5959 = vand.u32 %v5728, 4294901760
        %v5960 = vsub.f32 %v5728, %v5959
        %v5961 = vand.u32 %v5960, 4294901760
        %v5962 = vsub.f32 %v5960, %v5961
        %v5963 = vand.u32 %v5962, 4294901760
        %5964 = vmatpush1.msra.mxu0 %v5963
        %5965 = vmatprep.subr.mxu0 0.0
        %v5966 = vand.u32 %v5729, 4294901760
        %v5967 = vsub.f32 %v5729, %v5966
        %v5968 = vand.u32 %v5967, 4294901760
        %v5969 = vsub.f32 %v5967, %v5968
        %v5970 = vand.u32 %v5969, 4294901760
        %5971 = vmatpush1.msra.mxu0 %v5970
        %5972 = vmatprep.subr.mxu0 0.0
        %v5973 = vand.u32 %v5730, 4294901760
        %v5974 = vsub.f32 %v5730, %v5973
        %v5975 = vand.u32 %v5974, 4294901760
        %v5976 = vsub.f32 %v5974, %v5975
        %v5977 = vand.u32 %v5976, 4294901760
        %5978 = vmatpush1.msra.mxu0 %v5977
        %5979 = vmatprep.subr.mxu0 0.0
        %v5980 = vand.u32 %v5731, 4294901760
        %v5981 = vsub.f32 %v5731, %v5980
        %v5982 = vand.u32 %v5981, 4294901760
        %v5983 = vsub.f32 %v5981, %v5982
        %v5984 = vand.u32 %v5983, 4294901760
        %5985 = vmatpush1.msra.mxu0 %v5984
        %5986 = vmatprep.subr.mxu0 0.0
        %v5987 = vand.u32 %v5732, 4294901760
        %v5988 = vsub.f32 %v5732, %v5987
        %v5989 = vand.u32 %v5988, 4294901760
        %v5990 = vsub.f32 %v5988, %v5989
        %v5991 = vand.u32 %v5990, 4294901760
        %5992 = vmatpush1.msra.mxu0 %v5991
        %5993 = vmatprep.subr.mxu0 0.0
        %v5994 = vand.u32 %v5733, 4294901760
        %v5995 = vsub.f32 %v5733, %v5994
        %v5996 = vand.u32 %v5995, 4294901760
        %v5997 = vsub.f32 %v5995, %v5996
        %v5998 = vand.u32 %v5997, 4294901760
        %5999 = vmatpush1.msra.mxu0 %v5998
        %6000 = vmatprep.subr.mxu0 0.0
        %v6001 = vand.u32 %v5734, 4294901760
        %v6002 = vsub.f32 %v5734, %v6001
        %v6003 = vand.u32 %v6002, 4294901760
        %v6004 = vsub.f32 %v6002, %v6003
        %v6005 = vand.u32 %v6004, 4294901760
        %6006 = vmatpush1.msra.mxu0 %v6005
        %6007 = vmatprep.subr.mxu0 0.0
        %v6008 = vand.u32 %v5735, 4294901760
        %v6009 = vsub.f32 %v5735, %v6008
        %v6010 = vand.u32 %v6009, 4294901760
        %v6011 = vsub.f32 %v6009, %v6010
        %v6012 = vand.u32 %v6011, 4294901760
        %6013 = vmatpush1.msra.mxu0 %v6012
        %6014 = vmatprep.subr.mxu0 0.0
        %v6015 = vand.u32 %v5736, 4294901760
        %v6016 = vsub.f32 %v5736, %v6015
        %v6017 = vand.u32 %v6016, 4294901760
        %v6018 = vsub.f32 %v6016, %v6017
        %v6019 = vand.u32 %v6018, 4294901760
        %6020 = vmatpush1.msra.mxu0 %v6019
        %6021 = vmatprep.subr.mxu0 0.0
        %v6022 = vand.u32 %v5737, 4294901760
        %v6023 = vsub.f32 %v5737, %v6022
        %v6024 = vand.u32 %v6023, 4294901760
        %v6025 = vsub.f32 %v6023, %v6024
        %v6026 = vand.u32 %v6025, 4294901760
        %6027 = vmatpush1.msra.mxu0 %v6026
        %6028 = vmatprep.subr.mxu0 0.0
        %v6029 = vand.u32 %v5738, 4294901760
        %v6030 = vsub.f32 %v5738, %v6029
        %v6031 = vand.u32 %v6030, 4294901760
        %v6032 = vsub.f32 %v6030, %v6031
        %v6033 = vand.u32 %v6032, 4294901760
        %6034 = vmatpush1.msra.mxu0 %v6033
        %6035 = vmatprep.subr.mxu0 0.0
        %v6036 = vand.u32 %v5739, 4294901760
        %v6037 = vsub.f32 %v5739, %v6036
        %v6038 = vand.u32 %v6037, 4294901760
        %v6039 = vsub.f32 %v6037, %v6038
        %v6040 = vand.u32 %v6039, 4294901760
        %6041 = vmatpush1.msra.mxu0 %v6040
        %6042 = vmatprep.subr.mxu0 0.0
        %v6043 = vand.u32 %v5740, 4294901760
        %v6044 = vsub.f32 %v5740, %v6043
        %v6045 = vand.u32 %v6044, 4294901760
        %v6046 = vsub.f32 %v6044, %v6045
        %v6047 = vand.u32 %v6046, 4294901760
        %6048 = vmatpush1.msra.mxu0 %v6047
        %6049 = vmatprep.subr.mxu0 0.0
        %v6050 = vand.u32 %v5741, 4294901760
        %v6051 = vsub.f32 %v5741, %v6050
        %v6052 = vand.u32 %v6051, 4294901760
        %v6053 = vsub.f32 %v6051, %v6052
        %v6054 = vand.u32 %v6053, 4294901760
        %6055 = vmatpush1.msra.mxu0 %v6054
        %6056 = vmatprep.subr.mxu0 0.0
        %v6057 = vand.u32 %v5742, 4294901760
        %v6058 = vsub.f32 %v5742, %v6057
        %v6059 = vand.u32 %v6058, 4294901760
        %v6060 = vsub.f32 %v6058, %v6059
        %v6061 = vand.u32 %v6060, 4294901760
        %6062 = vmatpush1.msra.mxu0 %v6061
        %6063 = vmatprep.subr.mxu0 0.0
        %v6064 = vand.u32 %v5743, 4294901760
        %v6065 = vsub.f32 %v5743, %v6064
        %v6066 = vand.u32 %v6065, 4294901760
        %v6067 = vsub.f32 %v6065, %v6066
        %v6068 = vand.u32 %v6067, 4294901760
        %6069 = vmatpush1.msra.mxu0 %v6068
        %6070 = vmatprep.subr.mxu0 0.0
        %v6071 = vand.u32 %v5744, 4294901760
        %v6072 = vsub.f32 %v5744, %v6071
        %v6073 = vand.u32 %v6072, 4294901760
        %v6074 = vsub.f32 %v6072, %v6073
        %v6075 = vand.u32 %v6074, 4294901760
        %6076 = vmatpush1.msra.mxu0 %v6075
        %6077 = vmatprep.subr.mxu0 0.0
        %v6078 = vand.u32 %v5745, 4294901760
        %v6079 = vsub.f32 %v5745, %v6078
        %v6080 = vand.u32 %v6079, 4294901760
        %v6081 = vsub.f32 %v6079, %v6080
        %v6082 = vand.u32 %v6081, 4294901760
        %6083 = vmatpush1.msra.mxu0 %v6082
        %6084 = vmatprep.subr.mxu0 0.0
        %v6085 = vand.u32 %v5746, 4294901760
        %v6086 = vsub.f32 %v5746, %v6085
        %v6087 = vand.u32 %v6086, 4294901760
        %v6088 = vsub.f32 %v6086, %v6087
        %v6089 = vand.u32 %v6088, 4294901760
        %6090 = vmatpush1.msra.mxu0 %v6089
        %v6091 = vand.u32 %v5753, 4294901760
        %6092 = vmatprep.mubr.f32.mxu0 %v6091
        %v6093 = vand.u32 %v5714, 4294901760
        %6094 = vmatmul.mubr.f32.gmra.mrb[0].mxu0 %v6093
        %v6095 = vpop.f32.mrb[0].mxu0
        %v6096 = vadd.f32 %v5864, %v6095
        %v6097 = vpop.f32.mrb[0].mxu0
        %6098 = vdwg.mxu0
        %6099 = vmatprep.subr.mxu0 0.0
        %v6100 = vand.u32 %v5715, 4294901760
        %v6101 = vsub.f32 %v5715, %v6100
        %6102 = vmatpush1.msra.mxu0 %v6101
        %6103 = vmatprep.subr.mxu0 0.0
        %v6104 = vand.u32 %v5716, 4294901760
        %v6105 = vsub.f32 %v5716, %v6104
        %6106 = vmatpush1.msra.mxu0 %v6105
        %6107 = vmatprep.subr.mxu0 0.0
        %v6108 = vand.u32 %v5717, 4294901760
        %v6109 = vsub.f32 %v5717, %v6108
        %6110 = vmatpush1.msra.mxu0 %v6109
        %6111 = vmatprep.subr.mxu0 0.0
        %v6112 = vand.u32 %v5718, 4294901760
        %v6113 = vsub.f32 %v5718, %v6112
        %6114 = vmatpush1.msra.mxu0 %v6113
        %6115 = vmatprep.subr.mxu0 0.0
        %v6116 = vand.u32 %v5719, 4294901760
        %v6117 = vsub.f32 %v5719, %v6116
        %6118 = vmatpush1.msra.mxu0 %v6117
        %6119 = vmatprep.subr.mxu0 0.0
        %v6120 = vand.u32 %v5720, 4294901760
        %v6121 = vsub.f32 %v5720, %v6120
        %6122 = vmatpush1.msra.mxu0 %v6121
        %6123 = vmatprep.subr.mxu0 0.0
        %v6124 = vand.u32 %v5721, 4294901760
        %v6125 = vsub.f32 %v5721, %v6124
        %6126 = vmatpush1.msra.mxu0 %v6125
        %6127 = vmatprep.subr.mxu0 0.0
        %v6128 = vand.u32 %v5722, 4294901760
        %v6129 = vsub.f32 %v5722, %v6128
        %6130 = vmatpush1.msra.mxu0 %v6129
        %6131 = vmatprep.subr.mxu0 0.0
        %v6132 = vand.u32 %v5723, 4294901760
        %v6133 = vsub.f32 %v5723, %v6132
        %6134 = vmatpush1.msra.mxu0 %v6133
        %6135 = vmatprep.subr.mxu0 0.0
        %v6136 = vand.u32 %v5724, 4294901760
        %v6137 = vsub.f32 %v5724, %v6136
        %6138 = vmatpush1.msra.mxu0 %v6137
        %6139 = vmatprep.subr.mxu0 0.0
        %v6140 = vand.u32 %v5725, 4294901760
        %v6141 = vsub.f32 %v5725, %v6140
        %6142 = vmatpush1.msra.mxu0 %v6141
        %6143 = vmatprep.subr.mxu0 0.0
        %v6144 = vand.u32 %v5726, 4294901760
        %v6145 = vsub.f32 %v5726, %v6144
        %6146 = vmatpush1.msra.mxu0 %v6145
        %6147 = vmatprep.subr.mxu0 0.0
        %v6148 = vand.u32 %v5727, 4294901760
        %v6149 = vsub.f32 %v5727, %v6148
        %6150 = vmatpush1.msra.mxu0 %v6149
        %6151 = vmatprep.subr.mxu0 0.0
        %v6152 = vand.u32 %v5728, 4294901760
        %v6153 = vsub.f32 %v5728, %v6152
        %6154 = vmatpush1.msra.mxu0 %v6153
        %6155 = vmatprep.subr.mxu0 0.0
        %v6156 = vand.u32 %v5729, 4294901760
        %v6157 = vsub.f32 %v5729, %v6156
        %6158 = vmatpush1.msra.mxu0 %v6157
        %6159 = vmatprep.subr.mxu0 0.0
        %v6160 = vand.u32 %v5730, 4294901760
        %v6161 = vsub.f32 %v5730, %v6160
        %6162 = vmatpush1.msra.mxu0 %v6161
        %6163 = vmatprep.subr.mxu0 0.0
        %v6164 = vand.u32 %v5731, 4294901760
        %v6165 = vsub.f32 %v5731, %v6164
        %6166 = vmatpush1.msra.mxu0 %v6165
        %6167 = vmatprep.subr.mxu0 0.0
        %v6168 = vand.u32 %v5732, 4294901760
        %v6169 = vsub.f32 %v5732, %v6168
        %6170 = vmatpush1.msra.mxu0 %v6169
        %6171 = vmatprep.subr.mxu0 0.0
        %v6172 = vand.u32 %v5733, 4294901760
        %v6173 = vsub.f32 %v5733, %v6172
        %6174 = vmatpush1.msra.mxu0 %v6173
        %6175 = vmatprep.subr.mxu0 0.0
        %v6176 = vand.u32 %v5734, 4294901760
        %v6177 = vsub.f32 %v5734, %v6176
        %6178 = vmatpush1.msra.mxu0 %v6177
        %6179 = vmatprep.subr.mxu0 0.0
        %v6180 = vand.u32 %v5735, 4294901760
        %v6181 = vsub.f32 %v5735, %v6180
        %6182 = vmatpush1.msra.mxu0 %v6181
        %6183 = vmatprep.subr.mxu0 0.0
        %v6184 = vand.u32 %v5736, 4294901760
        %v6185 = vsub.f32 %v5736, %v6184
        %6186 = vmatpush1.msra.mxu0 %v6185
        %6187 = vmatprep.subr.mxu0 0.0
        %v6188 = vand.u32 %v5737, 4294901760
        %v6189 = vsub.f32 %v5737, %v6188
        %6190 = vmatpush1.msra.mxu0 %v6189
        %6191 = vmatprep.subr.mxu0 0.0
        %v6192 = vand.u32 %v5738, 4294901760
        %v6193 = vsub.f32 %v5738, %v6192
        %6194 = vmatpush1.msra.mxu0 %v6193
        %6195 = vmatprep.subr.mxu0 0.0
        %v6196 = vand.u32 %v5739, 4294901760
        %v6197 = vsub.f32 %v5739, %v6196
        %6198 = vmatpush1.msra.mxu0 %v6197
        %6199 = vmatprep.subr.mxu0 0.0
        %v6200 = vand.u32 %v5740, 4294901760
        %v6201 = vsub.f32 %v5740, %v6200
        %6202 = vmatpush1.msra.mxu0 %v6201
        %6203 = vmatprep.subr.mxu0 0.0
        %v6204 = vand.u32 %v5741, 4294901760
        %v6205 = vsub.f32 %v5741, %v6204
        %6206 = vmatpush1.msra.mxu0 %v6205
        %6207 = vmatprep.subr.mxu0 0.0
        %v6208 = vand.u32 %v5742, 4294901760
        %v6209 = vsub.f32 %v5742, %v6208
        %6210 = vmatpush1.msra.mxu0 %v6209
        %6211 = vmatprep.subr.mxu0 0.0
        %v6212 = vand.u32 %v5743, 4294901760
        %v6213 = vsub.f32 %v5743, %v6212
        %6214 = vmatpush1.msra.mxu0 %v6213
        %6215 = vmatprep.subr.mxu0 0.0
        %v6216 = vand.u32 %v5744, 4294901760
        %v6217 = vsub.f32 %v5744, %v6216
        %6218 = vmatpush1.msra.mxu0 %v6217
        %6219 = vmatprep.subr.mxu0 0.0
        %v6220 = vand.u32 %v5745, 4294901760
        %v6221 = vsub.f32 %v5745, %v6220
        %6222 = vmatpush1.msra.mxu0 %v6221
        %6223 = vmatprep.subr.mxu0 0.0
        %v6224 = vand.u32 %v5746, 4294901760
        %v6225 = vsub.f32 %v5746, %v6224
        %6226 = vmatpush1.msra.mxu0 %v6225
        %v6227 = vand.u32 %v5753, 4294901760
        %v6228 = vsub.f32 %v5753, %v6227
        %6229 = vmatprep.mubr.f32.mxu0 %v6228
        %v6230 = vand.u32 %v5714, 4294901760
        %v6231 = vsub.f32 %v5714, %v6230
        %6232 = vmatmul.mubr.f32.gmra.mrb[0].mxu0 %v6231
        %v6233 = vpop.f32.mrb[0].mxu0
        %v6234 = vadd.f32 %v6096, %v6233
        %v6235 = vpop.f32.mrb[0].mxu0
        %6236 = vdwg.mxu0
        %6237 = vmatprep.subr.mxu0 0.0
        %v6238 = vand.u32 %v5715, 4294901760
        %6239 = vmatpush1.msra.mxu0 %v6238
        %6240 = vmatprep.subr.mxu0 0.0
        %v6241 = vand.u32 %v5716, 4294901760
        %6242 = vmatpush1.msra.mxu0 %v6241
        %6243 = vmatprep.subr.mxu0 0.0
        %v6244 = vand.u32 %v5717, 4294901760
        %6245 = vmatpush1.msra.mxu0 %v6244
        %6246 = vmatprep.subr.mxu0 0.0
        %v6247 = vand.u32 %v5718, 4294901760
        %6248 = vmatpush1.msra.mxu0 %v6247
        %6249 = vmatprep.subr.mxu0 0.0
        %v6250 = vand.u32 %v5719, 4294901760
        %6251 = vmatpush1.msra.mxu0 %v6250
        %6252 = vmatprep.subr.mxu0 0.0
        %v6253 = vand.u32 %v5720, 4294901760
        %6254 = vmatpush1.msra.mxu0 %v6253
        %6255 = vmatprep.subr.mxu0 0.0
        %v6256 = vand.u32 %v5721, 4294901760
        %6257 = vmatpush1.msra.mxu0 %v6256
        %6258 = vmatprep.subr.mxu0 0.0
        %v6259 = vand.u32 %v5722, 4294901760
        %6260 = vmatpush1.msra.mxu0 %v6259
        %6261 = vmatprep.subr.mxu0 0.0
        %v6262 = vand.u32 %v5723, 4294901760
        %6263 = vmatpush1.msra.mxu0 %v6262
        %6264 = vmatprep.subr.mxu0 0.0
        %v6265 = vand.u32 %v5724, 4294901760
        %6266 = vmatpush1.msra.mxu0 %v6265
        %6267 = vmatprep.subr.mxu0 0.0
        %v6268 = vand.u32 %v5725, 4294901760
        %6269 = vmatpush1.msra.mxu0 %v6268
        %6270 = vmatprep.subr.mxu0 0.0
        %v6271 = vand.u32 %v5726, 4294901760
        %6272 = vmatpush1.msra.mxu0 %v6271
        %6273 = vmatprep.subr.mxu0 0.0
        %v6274 = vand.u32 %v5727, 4294901760
        %6275 = vmatpush1.msra.mxu0 %v6274
        %6276 = vmatprep.subr.mxu0 0.0
        %v6277 = vand.u32 %v5728, 4294901760
        %6278 = vmatpush1.msra.mxu0 %v6277
        %6279 = vmatprep.subr.mxu0 0.0
        %v6280 = vand.u32 %v5729, 4294901760
        %6281 = vmatpush1.msra.mxu0 %v6280
        %6282 = vmatprep.subr.mxu0 0.0
        %v6283 = vand.u32 %v5730, 4294901760
        %6284 = vmatpush1.msra.mxu0 %v6283
        %6285 = vmatprep.subr.mxu0 0.0
        %v6286 = vand.u32 %v5731, 4294901760
        %6287 = vmatpush1.msra.mxu0 %v6286
        %6288 = vmatprep.subr.mxu0 0.0
        %v6289 = vand.u32 %v5732, 4294901760
        %6290 = vmatpush1.msra.mxu0 %v6289
        %6291 = vmatprep.subr.mxu0 0.0
        %v6292 = vand.u32 %v5733, 4294901760
        %6293 = vmatpush1.msra.mxu0 %v6292
        %6294 = vmatprep.subr.mxu0 0.0
        %v6295 = vand.u32 %v5734, 4294901760
        %6296 = vmatpush1.msra.mxu0 %v6295
        %6297 = vmatprep.subr.mxu0 0.0
        %v6298 = vand.u32 %v5735, 4294901760
        %6299 = vmatpush1.msra.mxu0 %v6298
        %6300 = vmatprep.subr.mxu0 0.0
        %v6301 = vand.u32 %v5736, 4294901760
        %6302 = vmatpush1.msra.mxu0 %v6301
        %6303 = vmatprep.subr.mxu0 0.0
        %v6304 = vand.u32 %v5737, 4294901760
        %6305 = vmatpush1.msra.mxu0 %v6304
        %6306 = vmatprep.subr.mxu0 0.0
        %v6307 = vand.u32 %v5738, 4294901760
        %6308 = vmatpush1.msra.mxu0 %v6307
        %6309 = vmatprep.subr.mxu0 0.0
        %v6310 = vand.u32 %v5739, 4294901760
        %6311 = vmatpush1.msra.mxu0 %v6310
        %6312 = vmatprep.subr.mxu0 0.0
        %v6313 = vand.u32 %v5740, 4294901760
        %6314 = vmatpush1.msra.mxu0 %v6313
        %6315 = vmatprep.subr.mxu0 0.0
        %v6316 = vand.u32 %v5741, 4294901760
        %6317 = vmatpush1.msra.mxu0 %v6316
        %6318 = vmatprep.subr.mxu0 0.0
        %v6319 = vand.u32 %v5742, 4294901760
        %6320 = vmatpush1.msra.mxu0 %v6319
        %6321 = vmatprep.subr.mxu0 0.0
        %v6322 = vand.u32 %v5743, 4294901760
        %6323 = vmatpush1.msra.mxu0 %v6322
        %6324 = vmatprep.subr.mxu0 0.0
        %v6325 = vand.u32 %v5744, 4294901760
        %6326 = vmatpush1.msra.mxu0 %v6325
        %6327 = vmatprep.subr.mxu0 0.0
        %v6328 = vand.u32 %v5745, 4294901760
        %6329 = vmatpush1.msra.mxu0 %v6328
        %6330 = vmatprep.subr.mxu0 0.0
        %v6331 = vand.u32 %v5746, 4294901760
        %6332 = vmatpush1.msra.mxu0 %v6331
        %v6333 = vand.u32 %v5753, 4294901760
        %v6334 = vsub.f32 %v5753, %v6333
        %v6335 = vand.u32 %v6334, 4294901760
        %6336 = vmatprep.mubr.f32.mxu0 %v6335
        %v6337 = vand.u32 %v5714, 4294901760
        %v6338 = vsub.f32 %v5714, %v6337
        %v6339 = vand.u32 %v6338, 4294901760
        %6340 = vmatmul.mubr.f32.gmra.mrb[0].mxu0 %v6339
        %v6341 = vpop.f32.mrb[0].mxu0
        %v6342 = vadd.f32 %v6234, %v6341
        %v6343 = vpop.f32.mrb[0].mxu0
        %6344 = vdwg.mxu0
        %6345 = vmatprep.subr.mxu0 0.0
        %v6346 = vand.u32 %v5715, 4294901760
        %v6347 = vsub.f32 %v5715, %v6346
        %v6348 = vand.u32 %v6347, 4294901760
        %6349 = vmatpush1.msra.mxu0 %v6348
        %6350 = vmatprep.subr.mxu0 0.0
        %v6351 = vand.u32 %v5716, 4294901760
        %v6352 = vsub.f32 %v5716, %v6351
        %v6353 = vand.u32 %v6352, 4294901760
        %6354 = vmatpush1.msra.mxu0 %v6353
        %6355 = vmatprep.subr.mxu0 0.0
        %v6356 = vand.u32 %v5717, 4294901760
        %v6357 = vsub.f32 %v5717, %v6356
        %v6358 = vand.u32 %v6357, 4294901760
        %6359 = vmatpush1.msra.mxu0 %v6358
        %6360 = vmatprep.subr.mxu0 0.0
        %v6361 = vand.u32 %v5718, 4294901760
        %v6362 = vsub.f32 %v5718, %v6361
        %v6363 = vand.u32 %v6362, 4294901760
        %6364 = vmatpush1.msra.mxu0 %v6363
        %6365 = vmatprep.subr.mxu0 0.0
        %v6366 = vand.u32 %v5719, 4294901760
        %v6367 = vsub.f32 %v5719, %v6366
        %v6368 = vand.u32 %v6367, 4294901760
        %6369 = vmatpush1.msra.mxu0 %v6368
        %6370 = vmatprep.subr.mxu0 0.0
        %v6371 = vand.u32 %v5720, 4294901760
        %v6372 = vsub.f32 %v5720, %v6371
        %v6373 = vand.u32 %v6372, 4294901760
        %6374 = vmatpush1.msra.mxu0 %v6373
        %6375 = vmatprep.subr.mxu0 0.0
        %v6376 = vand.u32 %v5721, 4294901760
        %v6377 = vsub.f32 %v5721, %v6376
        %v6378 = vand.u32 %v6377, 4294901760
        %6379 = vmatpush1.msra.mxu0 %v6378
        %6380 = vmatprep.subr.mxu0 0.0
        %v6381 = vand.u32 %v5722, 4294901760
        %v6382 = vsub.f32 %v5722, %v6381
        %v6383 = vand.u32 %v6382, 4294901760
        %6384 = vmatpush1.msra.mxu0 %v6383
        %6385 = vmatprep.subr.mxu0 0.0
        %v6386 = vand.u32 %v5723, 4294901760
        %v6387 = vsub.f32 %v5723, %v6386
        %v6388 = vand.u32 %v6387, 4294901760
        %6389 = vmatpush1.msra.mxu0 %v6388
        %6390 = vmatprep.subr.mxu0 0.0
        %v6391 = vand.u32 %v5724, 4294901760
        %v6392 = vsub.f32 %v5724, %v6391
        %v6393 = vand.u32 %v6392, 4294901760
        %6394 = vmatpush1.msra.mxu0 %v6393
        %6395 = vmatprep.subr.mxu0 0.0
        %v6396 = vand.u32 %v5725, 4294901760
        %v6397 = vsub.f32 %v5725, %v6396
        %v6398 = vand.u32 %v6397, 4294901760
        %6399 = vmatpush1.msra.mxu0 %v6398
        %6400 = vmatprep.subr.mxu0 0.0
        %v6401 = vand.u32 %v5726, 4294901760
        %v6402 = vsub.f32 %v5726, %v6401
        %v6403 = vand.u32 %v6402, 4294901760
        %6404 = vmatpush1.msra.mxu0 %v6403
        %6405 = vmatprep.subr.mxu0 0.0
        %v6406 = vand.u32 %v5727, 4294901760
        %v6407 = vsub.f32 %v5727, %v6406
        %v6408 = vand.u32 %v6407, 4294901760
        %6409 = vmatpush1.msra.mxu0 %v6408
        %6410 = vmatprep.subr.mxu0 0.0
        %v6411 = vand.u32 %v5728, 4294901760
        %v6412 = vsub.f32 %v5728, %v6411
        %v6413 = vand.u32 %v6412, 4294901760
        %6414 = vmatpush1.msra.mxu0 %v6413
        %6415 = vmatprep.subr.mxu0 0.0
        %v6416 = vand.u32 %v5729, 4294901760
        %v6417 = vsub.f32 %v5729, %v6416
        %v6418 = vand.u32 %v6417, 4294901760
        %6419 = vmatpush1.msra.mxu0 %v6418
        %6420 = vmatprep.subr.mxu0 0.0
        %v6421 = vand.u32 %v5730, 4294901760
        %v6422 = vsub.f32 %v5730, %v6421
        %v6423 = vand.u32 %v6422, 4294901760
        %6424 = vmatpush1.msra.mxu0 %v6423
        %6425 = vmatprep.subr.mxu0 0.0
        %v6426 = vand.u32 %v5731, 4294901760
        %v6427 = vsub.f32 %v5731, %v6426
        %v6428 = vand.u32 %v6427, 4294901760
        %6429 = vmatpush1.msra.mxu0 %v6428
        %6430 = vmatprep.subr.mxu0 0.0
        %v6431 = vand.u32 %v5732, 4294901760
        %v6432 = vsub.f32 %v5732, %v6431
        %v6433 = vand.u32 %v6432, 4294901760
        %6434 = vmatpush1.msra.mxu0 %v6433
        %6435 = vmatprep.subr.mxu0 0.0
        %v6436 = vand.u32 %v5733, 4294901760
        %v6437 = vsub.f32 %v5733, %v6436
        %v6438 = vand.u32 %v6437, 4294901760
        %6439 = vmatpush1.msra.mxu0 %v6438
        %6440 = vmatprep.subr.mxu0 0.0
        %v6441 = vand.u32 %v5734, 4294901760
        %v6442 = vsub.f32 %v5734, %v6441
        %v6443 = vand.u32 %v6442, 4294901760
        %6444 = vmatpush1.msra.mxu0 %v6443
        %6445 = vmatprep.subr.mxu0 0.0
        %v6446 = vand.u32 %v5735, 4294901760
        %v6447 = vsub.f32 %v5735, %v6446
        %v6448 = vand.u32 %v6447, 4294901760
        %6449 = vmatpush1.msra.mxu0 %v6448
        %6450 = vmatprep.subr.mxu0 0.0
        %v6451 = vand.u32 %v5736, 4294901760
        %v6452 = vsub.f32 %v5736, %v6451
        %v6453 = vand.u32 %v6452, 4294901760
        %6454 = vmatpush1.msra.mxu0 %v6453
        %6455 = vmatprep.subr.mxu0 0.0
        %v6456 = vand.u32 %v5737, 4294901760
        %v6457 = vsub.f32 %v5737, %v6456
        %v6458 = vand.u32 %v6457, 4294901760
        %6459 = vmatpush1.msra.mxu0 %v6458
        %6460 = vmatprep.subr.mxu0 0.0
        %v6461 = vand.u32 %v5738, 4294901760
        %v6462 = vsub.f32 %v5738, %v6461
        %v6463 = vand.u32 %v6462, 4294901760
        %6464 = vmatpush1.msra.mxu0 %v6463
        %6465 = vmatprep.subr.mxu0 0.0
        %v6466 = vand.u32 %v5739, 4294901760
        %v6467 = vsub.f32 %v5739, %v6466
        %v6468 = vand.u32 %v6467, 4294901760
        %6469 = vmatpush1.msra.mxu0 %v6468
        %6470 = vmatprep.subr.mxu0 0.0
        %v6471 = vand.u32 %v5740, 4294901760
        %v6472 = vsub.f32 %v5740, %v6471
        %v6473 = vand.u32 %v6472, 4294901760
        %6474 = vmatpush1.msra.mxu0 %v6473
        %6475 = vmatprep.subr.mxu0 0.0
        %v6476 = vand.u32 %v5741, 4294901760
        %v6477 = vsub.f32 %v5741, %v6476
        %v6478 = vand.u32 %v6477, 4294901760
        %6479 = vmatpush1.msra.mxu0 %v6478
        %6480 = vmatprep.subr.mxu0 0.0
        %v6481 = vand.u32 %v5742, 4294901760
        %v6482 = vsub.f32 %v5742, %v6481
        %v6483 = vand.u32 %v6482, 4294901760
        %6484 = vmatpush1.msra.mxu0 %v6483
        %6485 = vmatprep.subr.mxu0 0.0
        %v6486 = vand.u32 %v5743, 4294901760
        %v6487 = vsub.f32 %v5743, %v6486
        %v6488 = vand.u32 %v6487, 4294901760
        %6489 = vmatpush1.msra.mxu0 %v6488
        %6490 = vmatprep.subr.mxu0 0.0
        %v6491 = vand.u32 %v5744, 4294901760
        %v6492 = vsub.f32 %v5744, %v6491
        %v6493 = vand.u32 %v6492, 4294901760
        %6494 = vmatpush1.msra.mxu0 %v6493
        %6495 = vmatprep.subr.mxu0 0.0
        %v6496 = vand.u32 %v5745, 4294901760
        %v6497 = vsub.f32 %v5745, %v6496
        %v6498 = vand.u32 %v6497, 4294901760
        %6499 = vmatpush1.msra.mxu0 %v6498
        %6500 = vmatprep.subr.mxu0 0.0
        %v6501 = vand.u32 %v5746, 4294901760
        %v6502 = vsub.f32 %v5746, %v6501
        %v6503 = vand.u32 %v6502, 4294901760
        %6504 = vmatpush1.msra.mxu0 %v6503
        %v6505 = vand.u32 %v5753, 4294901760
        %6506 = vmatprep.mubr.f32.mxu0 %v6505
        %v6507 = vand.u32 %v5714, 4294901760
        %6508 = vmatmul.mubr.f32.gmra.mrb[0].mxu0 %v6507
        %v6509 = vpop.f32.mrb[0].mxu0
        %v6510 = vadd.f32 %v6342, %v6509
        %v6511 = vpop.f32.mrb[0].mxu0
        %6512 = vdwg.mxu0
        %6513 = vmatprep.subr.mxu0 0.0
        %v6514 = vand.u32 %v5715, 4294901760
        %6515 = vmatpush1.msra.mxu0 %v6514
        %6516 = vmatprep.subr.mxu0 0.0
        %v6517 = vand.u32 %v5716, 4294901760
        %6518 = vmatpush1.msra.mxu0 %v6517
        %6519 = vmatprep.subr.mxu0 0.0
        %v6520 = vand.u32 %v5717, 4294901760
        %6521 = vmatpush1.msra.mxu0 %v6520
        %6522 = vmatprep.subr.mxu0 0.0
        %v6523 = vand.u32 %v5718, 4294901760
        %6524 = vmatpush1.msra.mxu0 %v6523
        %6525 = vmatprep.subr.mxu0 0.0
        %v6526 = vand.u32 %v5719, 4294901760
        %6527 = vmatpush1.msra.mxu0 %v6526
        %6528 = vmatprep.subr.mxu0 0.0
        %v6529 = vand.u32 %v5720, 4294901760
        %6530 = vmatpush1.msra.mxu0 %v6529
        %6531 = vmatprep.subr.mxu0 0.0
        %v6532 = vand.u32 %v5721, 4294901760
        %6533 = vmatpush1.msra.mxu0 %v6532
        %6534 = vmatprep.subr.mxu0 0.0
        %v6535 = vand.u32 %v5722, 4294901760
        %6536 = vmatpush1.msra.mxu0 %v6535
        %6537 = vmatprep.subr.mxu0 0.0
        %v6538 = vand.u32 %v5723, 4294901760
        %6539 = vmatpush1.msra.mxu0 %v6538
        %6540 = vmatprep.subr.mxu0 0.0
        %v6541 = vand.u32 %v5724, 4294901760
        %6542 = vmatpush1.msra.mxu0 %v6541
        %6543 = vmatprep.subr.mxu0 0.0
        %v6544 = vand.u32 %v5725, 4294901760
        %6545 = vmatpush1.msra.mxu0 %v6544
        %6546 = vmatprep.subr.mxu0 0.0
        %v6547 = vand.u32 %v5726, 4294901760
        %6548 = vmatpush1.msra.mxu0 %v6547
        %6549 = vmatprep.subr.mxu0 0.0
        %v6550 = vand.u32 %v5727, 4294901760
        %6551 = vmatpush1.msra.mxu0 %v6550
        %6552 = vmatprep.subr.mxu0 0.0
        %v6553 = vand.u32 %v5728, 4294901760
        %6554 = vmatpush1.msra.mxu0 %v6553
        %6555 = vmatprep.subr.mxu0 0.0
        %v6556 = vand.u32 %v5729, 4294901760
        %6557 = vmatpush1.msra.mxu0 %v6556
        %6558 = vmatprep.subr.mxu0 0.0
        %v6559 = vand.u32 %v5730, 4294901760
        %6560 = vmatpush1.msra.mxu0 %v6559
        %6561 = vmatprep.subr.mxu0 0.0
        %v6562 = vand.u32 %v5731, 4294901760
        %6563 = vmatpush1.msra.mxu0 %v6562
        %6564 = vmatprep.subr.mxu0 0.0
        %v6565 = vand.u32 %v5732, 4294901760
        %6566 = vmatpush1.msra.mxu0 %v6565
        %6567 = vmatprep.subr.mxu0 0.0
        %v6568 = vand.u32 %v5733, 4294901760
        %6569 = vmatpush1.msra.mxu0 %v6568
        %6570 = vmatprep.subr.mxu0 0.0
        %v6571 = vand.u32 %v5734, 4294901760
        %6572 = vmatpush1.msra.mxu0 %v6571
        %6573 = vmatprep.subr.mxu0 0.0
        %v6574 = vand.u32 %v5735, 4294901760
        %6575 = vmatpush1.msra.mxu0 %v6574
        %6576 = vmatprep.subr.mxu0 0.0
        %v6577 = vand.u32 %v5736, 4294901760
        %6578 = vmatpush1.msra.mxu0 %v6577
        %6579 = vmatprep.subr.mxu0 0.0
        %v6580 = vand.u32 %v5737, 4294901760
        %6581 = vmatpush1.msra.mxu0 %v6580
        %6582 = vmatprep.subr.mxu0 0.0
        %v6583 = vand.u32 %v5738, 4294901760
        %6584 = vmatpush1.msra.mxu0 %v6583
        %6585 = vmatprep.subr.mxu0 0.0
        %v6586 = vand.u32 %v5739, 4294901760
        %6587 = vmatpush1.msra.mxu0 %v6586
        %6588 = vmatprep.subr.mxu0 0.0
        %v6589 = vand.u32 %v5740, 4294901760
        %6590 = vmatpush1.msra.mxu0 %v6589
        %6591 = vmatprep.subr.mxu0 0.0
        %v6592 = vand.u32 %v5741, 4294901760
        %6593 = vmatpush1.msra.mxu0 %v6592
        %6594 = vmatprep.subr.mxu0 0.0
        %v6595 = vand.u32 %v5742, 4294901760
        %6596 = vmatpush1.msra.mxu0 %v6595
        %6597 = vmatprep.subr.mxu0 0.0
        %v6598 = vand.u32 %v5743, 4294901760
        %6599 = vmatpush1.msra.mxu0 %v6598
        %6600 = vmatprep.subr.mxu0 0.0
        %v6601 = vand.u32 %v5744, 4294901760
        %6602 = vmatpush1.msra.mxu0 %v6601
        %6603 = vmatprep.subr.mxu0 0.0
        %v6604 = vand.u32 %v5745, 4294901760
        %6605 = vmatpush1.msra.mxu0 %v6604
        %6606 = vmatprep.subr.mxu0 0.0
        %v6607 = vand.u32 %v5746, 4294901760
        %6608 = vmatpush1.msra.mxu0 %v6607
        %v6609 = vand.u32 %v5753, 4294901760
        %6610 = vmatprep.mubr.f32.mxu0 %v6609
        %v6611 = vand.u32 %v5714, 4294901760
        %6612 = vmatmul.mubr.f32.gmra.mrb[0].mxu0 %v6611
        %v6613 = vpop.f32.mrb[0].mxu0
        %v6614 = vadd.f32 %v6510, %v6613
        %v6615 = vpop.f32.mrb[0].mxu0
        %6616 = vdwg.mxu0
        %v6617 = vld [vmem:[%s7] sm:$0x1]
        %v6618 = vld [vmem:[%s7 + $0x1] sm:$0x1]
        %v6619 = vsel %vm472, %v6614, 0.0
        %6620 = vadd.xlane.f32.xlu0 %v6619
        %v6621 = vpop.xlane.xlu0 %6620
        %v6622 = vrcp.pop 128.0
        %v6623 = vmul.f32 %v6621, %v6622
        %v6624 = vsub.f32 %v6614, %v6623
        %v6625 = vmul.f32 %v6624, %v6624
        %v6626 = vsel %vm472, %v6625, 0.0
        %6627 = vadd.xlane.f32.xlu0 %v6626
        %v6628 = vpop.xlane.xlu0 %6627
        %v6629 = vmul.f32 %v6628, %v6622
        %v6630 = vadd.f32 %v6629, 1e-05
        %v6631 = vrsqrt.pop %v6630
        %v6632 = vmul.f32 %v6624, %v6631
        %v6633 = vlaneseq
        %v6634 = vshrl.u32 %v6633, 7
        %v6635 = vsub.s32 0, %v6634
        %v6636 = vrot.slane %v6617, %v6635
        %v6637 = vmul.f32 %v6632, %v6636
        %v6638 = vlaneseq
        %v6639 = vshrl.u32 %v6638, 7
        %v6640 = vsub.s32 0, %v6639
        %v6641 = vrot.slane %v6618, %v6640
        %v6642 = vadd.f32 %v6637, %v6641
        %s6643 = scalar_lea.vmem [#allocation5], 256
        %v6644 = vld [vmem:[%s6643] sm:$0xff]
        %v6645 = vld [vmem:[%s6643 + $0x8] sm:$0xff]
        %v6646 = vld [vmem:[%s6643 + $0x10] sm:$0xff]
        %v6647 = vld [vmem:[%s6643 + $0x18] sm:$0xff]
        %v6648 = vld [vmem:[%s6643 + $0x20] sm:$0xff]
        %v6649 = vld [vmem:[%s6643 + $0x28] sm:$0xff]
        %v6650 = vld [vmem:[%s6643 + $0x30] sm:$0xff]
        %v6651 = vld [vmem:[%s6643 + $0x38] sm:$0xff]
        %v6652 = vld [vmem:[%s6643 + $0x40] sm:$0xff]
        %v6653 = vld [vmem:[%s6643 + $0x48] sm:$0xff]
        %v6654 = vld [vmem:[%s6643 + $0x50] sm:$0xff]
        %v6655 = vld [vmem:[%s6643 + $0x58] sm:$0xff]
        %v6656 = vld [vmem:[%s6643 + $0x60] sm:$0xff]
        %v6657 = vld [vmem:[%s6643 + $0x68] sm:$0xff]
        %v6658 = vld [vmem:[%s6643 + $0x70] sm:$0xff]
        %v6659 = vld [vmem:[%s6643 + $0x78] sm:$0xff]
        %v6660 = vld [vmem:[%s6643 + $0x80] sm:$0xff]
        %v6661 = vld [vmem:[%s6643 + $0x88] sm:$0xff]
        %v6662 = vld [vmem:[%s6643 + $0x90] sm:$0xff]
        %v6663 = vld [vmem:[%s6643 + $0x98] sm:$0xff]
        %v6664 = vld [vmem:[%s6643 + $0xa0] sm:$0xff]
        %v6665 = vld [vmem:[%s6643 + $0xa8] sm:$0xff]
        %v6666 = vld [vmem:[%s6643 + $0xb0] sm:$0xff]
        %v6667 = vld [vmem:[%s6643 + $0xb8] sm:$0xff]
        %v6668 = vld [vmem:[%s6643 + $0xc0] sm:$0xff]
        %v6669 = vld [vmem:[%s6643 + $0xc8] sm:$0xff]
        %v6670 = vld [vmem:[%s6643 + $0xd0] sm:$0xff]
        %v6671 = vld [vmem:[%s6643 + $0xd8] sm:$0xff]
        %v6672 = vld [vmem:[%s6643 + $0xe0] sm:$0xff]
        %v6673 = vld [vmem:[%s6643 + $0xe8] sm:$0xff]
        %v6674 = vld [vmem:[%s6643 + $0xf0] sm:$0xff]
        %v6675 = vld [vmem:[%s6643 + $0xf8] sm:$0xff]
        %v6676 = vld [vmem:[%s6 + $0x1] sm:$0x1]
        %v6677 = vlaneseq
        %v6678 = vshrl.u32 %v6677, 7
        %v6679 = vsub.s32 0, %v6678
        %v6680 = vrot.slane %v6676, %v6679
        %6681 = vmatprep.subr.mxu0 0.0
        %v6682 = vand.u32 %v6644, 4294901760
        %6683 = vmatpush1.msra.mxu0 %v6682
        %6684 = vmatprep.subr.mxu0 0.0
        %v6685 = vand.u32 %v6645, 4294901760
        %6686 = vmatpush1.msra.mxu0 %v6685
        %6687 = vmatprep.subr.mxu0 0.0
        %v6688 = vand.u32 %v6646, 4294901760
        %6689 = vmatpush1.msra.mxu0 %v6688
        %6690 = vmatprep.subr.mxu0 0.0
        %v6691 = vand.u32 %v6647, 4294901760
        %6692 = vmatpush1.msra.mxu0 %v6691
        %6693 = vmatprep.subr.mxu0 0.0
        %v6694 = vand.u32 %v6648, 4294901760
        %6695 = vmatpush1.msra.mxu0 %v6694
        %6696 = vmatprep.subr.mxu0 0.0
        %v6697 = vand.u32 %v6649, 4294901760
        %6698 = vmatpush1.msra.mxu0 %v6697
        %6699 = vmatprep.subr.mxu0 0.0
        %v6700 = vand.u32 %v6650, 4294901760
        %6701 = vmatpush1.msra.mxu0 %v6700
        %6702 = vmatprep.subr.mxu0 0.0
        %v6703 = vand.u32 %v6651, 4294901760
        %6704 = vmatpush1.msra.mxu0 %v6703
        %6705 = vmatprep.subr.mxu0 0.0
        %v6706 = vand.u32 %v6652, 4294901760
        %6707 = vmatpush1.msra.mxu0 %v6706
        %6708 = vmatprep.subr.mxu0 0.0
        %v6709 = vand.u32 %v6653, 4294901760
        %6710 = vmatpush1.msra.mxu0 %v6709
        %6711 = vmatprep.subr.mxu0 0.0
        %v6712 = vand.u32 %v6654, 4294901760
        %6713 = vmatpush1.msra.mxu0 %v6712
        %6714 = vmatprep.subr.mxu0 0.0
        %v6715 = vand.u32 %v6655, 4294901760
        %6716 = vmatpush1.msra.mxu0 %v6715
        %6717 = vmatprep.subr.mxu0 0.0
        %v6718 = vand.u32 %v6656, 4294901760
        %6719 = vmatpush1.msra.mxu0 %v6718
        %6720 = vmatprep.subr.mxu0 0.0
        %v6721 = vand.u32 %v6657, 4294901760
        %6722 = vmatpush1.msra.mxu0 %v6721
        %6723 = vmatprep.subr.mxu0 0.0
        %v6724 = vand.u32 %v6658, 4294901760
        %6725 = vmatpush1.msra.mxu0 %v6724
        %6726 = vmatprep.subr.mxu0 0.0
        %v6727 = vand.u32 %v6659, 4294901760
        %6728 = vmatpush1.msra.mxu0 %v6727
        %6729 = vmatprep.subr.mxu0 0.0
        %v6730 = vand.u32 %v6660, 4294901760
        %6731 = vmatpush1.msra.mxu0 %v6730
        %6732 = vmatprep.subr.mxu0 0.0
        %v6733 = vand.u32 %v6661, 4294901760
        %6734 = vmatpush1.msra.mxu0 %v6733
        %6735 = vmatprep.subr.mxu0 0.0
        %v6736 = vand.u32 %v6662, 4294901760
        %6737 = vmatpush1.msra.mxu0 %v6736
        %6738 = vmatprep.subr.mxu0 0.0
        %v6739 = vand.u32 %v6663, 4294901760
        %6740 = vmatpush1.msra.mxu0 %v6739
        %6741 = vmatprep.subr.mxu0 0.0
        %v6742 = vand.u32 %v6664, 4294901760
        %6743 = vmatpush1.msra.mxu0 %v6742
        %6744 = vmatprep.subr.mxu0 0.0
        %v6745 = vand.u32 %v6665, 4294901760
        %6746 = vmatpush1.msra.mxu0 %v6745
        %6747 = vmatprep.subr.mxu0 0.0
        %v6748 = vand.u32 %v6666, 4294901760
        %6749 = vmatpush1.msra.mxu0 %v6748
        %6750 = vmatprep.subr.mxu0 0.0
        %v6751 = vand.u32 %v6667, 4294901760
        %6752 = vmatpush1.msra.mxu0 %v6751
        %6753 = vmatprep.subr.mxu0 0.0
        %v6754 = vand.u32 %v6668, 4294901760
        %6755 = vmatpush1.msra.mxu0 %v6754
        %6756 = vmatprep.subr.mxu0 0.0
        %v6757 = vand.u32 %v6669, 4294901760
        %6758 = vmatpush1.msra.mxu0 %v6757
        %6759 = vmatprep.subr.mxu0 0.0
        %v6760 = vand.u32 %v6670, 4294901760
        %6761 = vmatpush1.msra.mxu0 %v6760
        %6762 = vmatprep.subr.mxu0 0.0
        %v6763 = vand.u32 %v6671, 4294901760
        %6764 = vmatpush1.msra.mxu0 %v6763
        %6765 = vmatprep.subr.mxu0 0.0
        %v6766 = vand.u32 %v6672, 4294901760
        %6767 = vmatpush1.msra.mxu0 %v6766
        %6768 = vmatprep.subr.mxu0 0.0
        %v6769 = vand.u32 %v6673, 4294901760
        %6770 = vmatpush1.msra.mxu0 %v6769
        %6771 = vmatprep.subr.mxu0 0.0
        %v6772 = vand.u32 %v6674, 4294901760
        %6773 = vmatpush1.msra.mxu0 %v6772
        %6774 = vmatprep.subr.mxu0 0.0
        %v6775 = vand.u32 %v6675, 4294901760
        %6776 = vmatpush1.msra.mxu0 %v6775
        %v6777 = vand.u32 %v384, 4294901760
        %v6778 = vsub.f32 %v384, %v6777
        %v6779 = vand.u32 %v6778, 4294901760
        %v6780 = vsub.f32 %v6778, %v6779
        %v6781 = vand.u32 %v6780, 4294901760
        %6782 = vmatprep.mubr.f32.mxu0 %v6781
        %v6783 = vand.u32 %v383, 4294901760
        %v6784 = vsub.f32 %v383, %v6783
        %v6785 = vand.u32 %v6784, 4294901760
        %v6786 = vsub.f32 %v6784, %v6785
        %v6787 = vand.u32 %v6786, 4294901760
        %6788 = vmatmul.mubr.f32.gmra.mrb[0].mxu0 %v6787
        %v6789 = vpop.f32.mrb[0].mxu0
        %v6790 = vadd.f32 %v6680, %v6789
        %v6791 = vpop.f32.mrb[0].mxu0
        %6792 = vdwg.mxu0
        %6793 = vmatprep.subr.mxu0 0.0
        %v6794 = vand.u32 %v6644, 4294901760
        %v6795 = vsub.f32 %v6644, %v6794
        %v6796 = vand.u32 %v6795, 4294901760
        %v6797 = vsub.f32 %v6795, %v6796
        %v6798 = vand.u32 %v6797, 4294901760
        %6799 = vmatpush1.msra.mxu0 %v6798
        %6800 = vmatprep.subr.mxu0 0.0
        %v6801 = vand.u32 %v6645, 4294901760
        %v6802 = vsub.f32 %v6645, %v6801
        %v6803 = vand.u32 %v6802, 4294901760
        %v6804 = vsub.f32 %v6802, %v6803
        %v6805 = vand.u32 %v6804, 4294901760
        %6806 = vmatpush1.msra.mxu0 %v6805
        %6807 = vmatprep.subr.mxu0 0.0
        %v6808 = vand.u32 %v6646, 4294901760
        %v6809 = vsub.f32 %v6646, %v6808
        %v6810 = vand.u32 %v6809, 4294901760
        %v6811 = vsub.f32 %v6809, %v6810
        %v6812 = vand.u32 %v6811, 4294901760
        %6813 = vmatpush1.msra.mxu0 %v6812
        %6814 = vmatprep.subr.mxu0 0.0
        %v6815 = vand.u32 %v6647, 4294901760
        %v6816 = vsub.f32 %v6647, %v6815
        %v6817 = vand.u32 %v6816, 4294901760
        %v6818 = vsub.f32 %v6816, %v6817
        %v6819 = vand.u32 %v6818, 4294901760
        %6820 = vmatpush1.msra.mxu0 %v6819
        %6821 = vmatprep.subr.mxu0 0.0
        %v6822 = vand.u32 %v6648, 4294901760
        %v6823 = vsub.f32 %v6648, %v6822
        %v6824 = vand.u32 %v6823, 4294901760
        %v6825 = vsub.f32 %v6823, %v6824
        %v6826 = vand.u32 %v6825, 4294901760
        %6827 = vmatpush1.msra.mxu0 %v6826
        %6828 = vmatprep.subr.mxu0 0.0
        %v6829 = vand.u32 %v6649, 4294901760
        %v6830 = vsub.f32 %v6649, %v6829
        %v6831 = vand.u32 %v6830, 4294901760
        %v6832 = vsub.f32 %v6830, %v6831
        %v6833 = vand.u32 %v6832, 4294901760
        %6834 = vmatpush1.msra.mxu0 %v6833
        %6835 = vmatprep.subr.mxu0 0.0
        %v6836 = vand.u32 %v6650, 4294901760
        %v6837 = vsub.f32 %v6650, %v6836
        %v6838 = vand.u32 %v6837, 4294901760
        %v6839 = vsub.f32 %v6837, %v6838
        %v6840 = vand.u32 %v6839, 4294901760
        %6841 = vmatpush1.msra.mxu0 %v6840
        %6842 = vmatprep.subr.mxu0 0.0
        %v6843 = vand.u32 %v6651, 4294901760
        %v6844 = vsub.f32 %v6651, %v6843
        %v6845 = vand.u32 %v6844, 4294901760
        %v6846 = vsub.f32 %v6844, %v6845
        %v6847 = vand.u32 %v6846, 4294901760
        %6848 = vmatpush1.msra.mxu0 %v6847
        %6849 = vmatprep.subr.mxu0 0.0
        %v6850 = vand.u32 %v6652, 4294901760
        %v6851 = vsub.f32 %v6652, %v6850
        %v6852 = vand.u32 %v6851, 4294901760
        %v6853 = vsub.f32 %v6851, %v6852
        %v6854 = vand.u32 %v6853, 4294901760
        %6855 = vmatpush1.msra.mxu0 %v6854
        %6856 = vmatprep.subr.mxu0 0.0
        %v6857 = vand.u32 %v6653, 4294901760
        %v6858 = vsub.f32 %v6653, %v6857
        %v6859 = vand.u32 %v6858, 4294901760
        %v6860 = vsub.f32 %v6858, %v6859
        %v6861 = vand.u32 %v6860, 4294901760
        %6862 = vmatpush1.msra.mxu0 %v6861
        %6863 = vmatprep.subr.mxu0 0.0
        %v6864 = vand.u32 %v6654, 4294901760
        %v6865 = vsub.f32 %v6654, %v6864
        %v6866 = vand.u32 %v6865, 4294901760
        %v6867 = vsub.f32 %v6865, %v6866
        %v6868 = vand.u32 %v6867, 4294901760
        %6869 = vmatpush1.msra.mxu0 %v6868
        %6870 = vmatprep.subr.mxu0 0.0
        %v6871 = vand.u32 %v6655, 4294901760
        %v6872 = vsub.f32 %v6655, %v6871
        %v6873 = vand.u32 %v6872, 4294901760
        %v6874 = vsub.f32 %v6872, %v6873
        %v6875 = vand.u32 %v6874, 4294901760
        %6876 = vmatpush1.msra.mxu0 %v6875
        %6877 = vmatprep.subr.mxu0 0.0
        %v6878 = vand.u32 %v6656, 4294901760
        %v6879 = vsub.f32 %v6656, %v6878
        %v6880 = vand.u32 %v6879, 4294901760
        %v6881 = vsub.f32 %v6879, %v6880
        %v6882 = vand.u32 %v6881, 4294901760
        %6883 = vmatpush1.msra.mxu0 %v6882
        %6884 = vmatprep.subr.mxu0 0.0
        %v6885 = vand.u32 %v6657, 4294901760
        %v6886 = vsub.f32 %v6657, %v6885
        %v6887 = vand.u32 %v6886, 4294901760
        %v6888 = vsub.f32 %v6886, %v6887
        %v6889 = vand.u32 %v6888, 4294901760
        %6890 = vmatpush1.msra.mxu0 %v6889
        %6891 = vmatprep.subr.mxu0 0.0
        %v6892 = vand.u32 %v6658, 4294901760
        %v6893 = vsub.f32 %v6658, %v6892
        %v6894 = vand.u32 %v6893, 4294901760
        %v6895 = vsub.f32 %v6893, %v6894
        %v6896 = vand.u32 %v6895, 4294901760
        %6897 = vmatpush1.msra.mxu0 %v6896
        %6898 = vmatprep.subr.mxu0 0.0
        %v6899 = vand.u32 %v6659, 4294901760
        %v6900 = vsub.f32 %v6659, %v6899
        %v6901 = vand.u32 %v6900, 4294901760
        %v6902 = vsub.f32 %v6900, %v6901
        %v6903 = vand.u32 %v6902, 4294901760
        %6904 = vmatpush1.msra.mxu0 %v6903
        %6905 = vmatprep.subr.mxu0 0.0
        %v6906 = vand.u32 %v6660, 4294901760
        %v6907 = vsub.f32 %v6660, %v6906
        %v6908 = vand.u32 %v6907, 4294901760
        %v6909 = vsub.f32 %v6907, %v6908
        %v6910 = vand.u32 %v6909, 4294901760
        %6911 = vmatpush1.msra.mxu0 %v6910
        %6912 = vmatprep.subr.mxu0 0.0
        %v6913 = vand.u32 %v6661, 4294901760
        %v6914 = vsub.f32 %v6661, %v6913
        %v6915 = vand.u32 %v6914, 4294901760
        %v6916 = vsub.f32 %v6914, %v6915
        %v6917 = vand.u32 %v6916, 4294901760
        %6918 = vmatpush1.msra.mxu0 %v6917
        %6919 = vmatprep.subr.mxu0 0.0
        %v6920 = vand.u32 %v6662, 4294901760
        %v6921 = vsub.f32 %v6662, %v6920
        %v6922 = vand.u32 %v6921, 4294901760
        %v6923 = vsub.f32 %v6921, %v6922
        %v6924 = vand.u32 %v6923, 4294901760
        %6925 = vmatpush1.msra.mxu0 %v6924
        %6926 = vmatprep.subr.mxu0 0.0
        %v6927 = vand.u32 %v6663, 4294901760
        %v6928 = vsub.f32 %v6663, %v6927
        %v6929 = vand.u32 %v6928, 4294901760
        %v6930 = vsub.f32 %v6928, %v6929
        %v6931 = vand.u32 %v6930, 4294901760
        %6932 = vmatpush1.msra.mxu0 %v6931
        %6933 = vmatprep.subr.mxu0 0.0
        %v6934 = vand.u32 %v6664, 4294901760
        %v6935 = vsub.f32 %v6664, %v6934
        %v6936 = vand.u32 %v6935, 4294901760
        %v6937 = vsub.f32 %v6935, %v6936
        %v6938 = vand.u32 %v6937, 4294901760
        %6939 = vmatpush1.msra.mxu0 %v6938
        %6940 = vmatprep.subr.mxu0 0.0
        %v6941 = vand.u32 %v6665, 4294901760
        %v6942 = vsub.f32 %v6665, %v6941
        %v6943 = vand.u32 %v6942, 4294901760
        %v6944 = vsub.f32 %v6942, %v6943
        %v6945 = vand.u32 %v6944, 4294901760
        %6946 = vmatpush1.msra.mxu0 %v6945
        %6947 = vmatprep.subr.mxu0 0.0
        %v6948 = vand.u32 %v6666, 4294901760
        %v6949 = vsub.f32 %v6666, %v6948
        %v6950 = vand.u32 %v6949, 4294901760
        %v6951 = vsub.f32 %v6949, %v6950
        %v6952 = vand.u32 %v6951, 4294901760
        %6953 = vmatpush1.msra.mxu0 %v6952
        %6954 = vmatprep.subr.mxu0 0.0
        %v6955 = vand.u32 %v6667, 4294901760
        %v6956 = vsub.f32 %v6667, %v6955
        %v6957 = vand.u32 %v6956, 4294901760
        %v6958 = vsub.f32 %v6956, %v6957
        %v6959 = vand.u32 %v6958, 4294901760
        %6960 = vmatpush1.msra.mxu0 %v6959
        %6961 = vmatprep.subr.mxu0 0.0
        %v6962 = vand.u32 %v6668, 4294901760
        %v6963 = vsub.f32 %v6668, %v6962
        %v6964 = vand.u32 %v6963, 4294901760
        %v6965 = vsub.f32 %v6963, %v6964
        %v6966 = vand.u32 %v6965, 4294901760
        %6967 = vmatpush1.msra.mxu0 %v6966
        %6968 = vmatprep.subr.mxu0 0.0
        %v6969 = vand.u32 %v6669, 4294901760
        %v6970 = vsub.f32 %v6669, %v6969
        %v6971 = vand.u32 %v6970, 4294901760
        %v6972 = vsub.f32 %v6970, %v6971
        %v6973 = vand.u32 %v6972, 4294901760
        %6974 = vmatpush1.msra.mxu0 %v6973
        %6975 = vmatprep.subr.mxu0 0.0
        %v6976 = vand.u32 %v6670, 4294901760
        %v6977 = vsub.f32 %v6670, %v6976
        %v6978 = vand.u32 %v6977, 4294901760
        %v6979 = vsub.f32 %v6977, %v6978
        %v6980 = vand.u32 %v6979, 4294901760
        %6981 = vmatpush1.msra.mxu0 %v6980
        %6982 = vmatprep.subr.mxu0 0.0
        %v6983 = vand.u32 %v6671, 4294901760
        %v6984 = vsub.f32 %v6671, %v6983
        %v6985 = vand.u32 %v6984, 4294901760
        %v6986 = vsub.f32 %v6984, %v6985
        %v6987 = vand.u32 %v6986, 4294901760
        %6988 = vmatpush1.msra.mxu0 %v6987
        %6989 = vmatprep.subr.mxu0 0.0
        %v6990 = vand.u32 %v6672, 4294901760
        %v6991 = vsub.f32 %v6672, %v6990
        %v6992 = vand.u32 %v6991, 4294901760
        %v6993 = vsub.f32 %v6991, %v6992
        %v6994 = vand.u32 %v6993, 4294901760
        %6995 = vmatpush1.msra.mxu0 %v6994
        %6996 = vmatprep.subr.mxu0 0.0
        %v6997 = vand.u32 %v6673, 4294901760
        %v6998 = vsub.f32 %v6673, %v6997
        %v6999 = vand.u32 %v6998, 4294901760
        %v7000 = vsub.f32 %v6998, %v6999
        %v7001 = vand.u32 %v7000, 4294901760
        %7002 = vmatpush1.msra.mxu0 %v7001
        %7003 = vmatprep.subr.mxu0 0.0
        %v7004 = vand.u32 %v6674, 4294901760
        %v7005 = vsub.f32 %v6674, %v7004
        %v7006 = vand.u32 %v7005, 4294901760
        %v7007 = vsub.f32 %v7005, %v7006
        %v7008 = vand.u32 %v7007, 4294901760
        %7009 = vmatpush1.msra.mxu0 %v7008
        %7010 = vmatprep.subr.mxu0 0.0
        %v7011 = vand.u32 %v6675, 4294901760
        %v7012 = vsub.f32 %v6675, %v7011
        %v7013 = vand.u32 %v7012, 4294901760
        %v7014 = vsub.f32 %v7012, %v7013
        %v7015 = vand.u32 %v7014, 4294901760
        %7016 = vmatpush1.msra.mxu0 %v7015
        %v7017 = vand.u32 %v384, 4294901760
        %7018 = vmatprep.mubr.f32.mxu0 %v7017
        %v7019 = vand.u32 %v383, 4294901760
        %7020 = vmatmul.mubr.f32.gmra.mrb[0].mxu0 %v7019
        %v7021 = vpop.f32.mrb[0].mxu0
        %v7022 = vadd.f32 %v6790, %v7021
        %v7023 = vpop.f32.mrb[0].mxu0
        %7024 = vdwg.mxu0
        %7025 = vmatprep.subr.mxu0 0.0
        %v7026 = vand.u32 %v6644, 4294901760
        %v7027 = vsub.f32 %v6644, %v7026
        %7028 = vmatpush1.msra.mxu0 %v7027
        %7029 = vmatprep.subr.mxu0 0.0
        %v7030 = vand.u32 %v6645, 4294901760
        %v7031 = vsub.f32 %v6645, %v7030
        %7032 = vmatpush1.msra.mxu0 %v7031
        %7033 = vmatprep.subr.mxu0 0.0
        %v7034 = vand.u32 %v6646, 4294901760
        %v7035 = vsub.f32 %v6646, %v7034
        %7036 = vmatpush1.msra.mxu0 %v7035
        %7037 = vmatprep.subr.mxu0 0.0
        %v7038 = vand.u32 %v6647, 4294901760
        %v7039 = vsub.f32 %v6647, %v7038
        %7040 = vmatpush1.msra.mxu0 %v7039
        %7041 = vmatprep.subr.mxu0 0.0
        %v7042 = vand.u32 %v6648, 4294901760
        %v7043 = vsub.f32 %v6648, %v7042
        %7044 = vmatpush1.msra.mxu0 %v7043
        %7045 = vmatprep.subr.mxu0 0.0
        %v7046 = vand.u32 %v6649, 4294901760
        %v7047 = vsub.f32 %v6649, %v7046
        %7048 = vmatpush1.msra.mxu0 %v7047
        %7049 = vmatprep.subr.mxu0 0.0
        %v7050 = vand.u32 %v6650, 4294901760
        %v7051 = vsub.f32 %v6650, %v7050
        %7052 = vmatpush1.msra.mxu0 %v7051
        %7053 = vmatprep.subr.mxu0 0.0
        %v7054 = vand.u32 %v6651, 4294901760
        %v7055 = vsub.f32 %v6651, %v7054
        %7056 = vmatpush1.msra.mxu0 %v7055
        %7057 = vmatprep.subr.mxu0 0.0
        %v7058 = vand.u32 %v6652, 4294901760
        %v7059 = vsub.f32 %v6652, %v7058
        %7060 = vmatpush1.msra.mxu0 %v7059
        %7061 = vmatprep.subr.mxu0 0.0
        %v7062 = vand.u32 %v6653, 4294901760
        %v7063 = vsub.f32 %v6653, %v7062
        %7064 = vmatpush1.msra.mxu0 %v7063
        %7065 = vmatprep.subr.mxu0 0.0
        %v7066 = vand.u32 %v6654, 4294901760
        %v7067 = vsub.f32 %v6654, %v7066
        %7068 = vmatpush1.msra.mxu0 %v7067
        %7069 = vmatprep.subr.mxu0 0.0
        %v7070 = vand.u32 %v6655, 4294901760
        %v7071 = vsub.f32 %v6655, %v7070
        %7072 = vmatpush1.msra.mxu0 %v7071
        %7073 = vmatprep.subr.mxu0 0.0
        %v7074 = vand.u32 %v6656, 4294901760
        %v7075 = vsub.f32 %v6656, %v7074
        %7076 = vmatpush1.msra.mxu0 %v7075
        %7077 = vmatprep.subr.mxu0 0.0
        %v7078 = vand.u32 %v6657, 4294901760
        %v7079 = vsub.f32 %v6657, %v7078
        %7080 = vmatpush1.msra.mxu0 %v7079
        %7081 = vmatprep.subr.mxu0 0.0
        %v7082 = vand.u32 %v6658, 4294901760
        %v7083 = vsub.f32 %v6658, %v7082
        %7084 = vmatpush1.msra.mxu0 %v7083
        %7085 = vmatprep.subr.mxu0 0.0
        %v7086 = vand.u32 %v6659, 4294901760
        %v7087 = vsub.f32 %v6659, %v7086
        %7088 = vmatpush1.msra.mxu0 %v7087
        %7089 = vmatprep.subr.mxu0 0.0
        %v7090 = vand.u32 %v6660, 4294901760
        %v7091 = vsub.f32 %v6660, %v7090
        %7092 = vmatpush1.msra.mxu0 %v7091
        %7093 = vmatprep.subr.mxu0 0.0
        %v7094 = vand.u32 %v6661, 4294901760
        %v7095 = vsub.f32 %v6661, %v7094
        %7096 = vmatpush1.msra.mxu0 %v7095
        %7097 = vmatprep.subr.mxu0 0.0
        %v7098 = vand.u32 %v6662, 4294901760
        %v7099 = vsub.f32 %v6662, %v7098
        %7100 = vmatpush1.msra.mxu0 %v7099
        %7101 = vmatprep.subr.mxu0 0.0
        %v7102 = vand.u32 %v6663, 4294901760
        %v7103 = vsub.f32 %v6663, %v7102
        %7104 = vmatpush1.msra.mxu0 %v7103
        %7105 = vmatprep.subr.mxu0 0.0
        %v7106 = vand.u32 %v6664, 4294901760
        %v7107 = vsub.f32 %v6664, %v7106
        %7108 = vmatpush1.msra.mxu0 %v7107
        %7109 = vmatprep.subr.mxu0 0.0
        %v7110 = vand.u32 %v6665, 4294901760
        %v7111 = vsub.f32 %v6665, %v7110
        %7112 = vmatpush1.msra.mxu0 %v7111
        %7113 = vmatprep.subr.mxu0 0.0
        %v7114 = vand.u32 %v6666, 4294901760
        %v7115 = vsub.f32 %v6666, %v7114
        %7116 = vmatpush1.msra.mxu0 %v7115
        %7117 = vmatprep.subr.mxu0 0.0
        %v7118 = vand.u32 %v6667, 4294901760
        %v7119 = vsub.f32 %v6667, %v7118
        %7120 = vmatpush1.msra.mxu0 %v7119
        %7121 = vmatprep.subr.mxu0 0.0
        %v7122 = vand.u32 %v6668, 4294901760
        %v7123 = vsub.f32 %v6668, %v7122
        %7124 = vmatpush1.msra.mxu0 %v7123
        %7125 = vmatprep.subr.mxu0 0.0
        %v7126 = vand.u32 %v6669, 4294901760
        %v7127 = vsub.f32 %v6669, %v7126
        %7128 = vmatpush1.msra.mxu0 %v7127
        %7129 = vmatprep.subr.mxu0 0.0
        %v7130 = vand.u32 %v6670, 4294901760
        %v7131 = vsub.f32 %v6670, %v7130
        %7132 = vmatpush1.msra.mxu0 %v7131
        %7133 = vmatprep.subr.mxu0 0.0
        %v7134 = vand.u32 %v6671, 4294901760
        %v7135 = vsub.f32 %v6671, %v7134
        %7136 = vmatpush1.msra.mxu0 %v7135
        %7137 = vmatprep.subr.mxu0 0.0
        %v7138 = vand.u32 %v6672, 4294901760
        %v7139 = vsub.f32 %v6672, %v7138
        %7140 = vmatpush1.msra.mxu0 %v7139
        %7141 = vmatprep.subr.mxu0 0.0
        %v7142 = vand.u32 %v6673, 4294901760
        %v7143 = vsub.f32 %v6673, %v7142
        %7144 = vmatpush1.msra.mxu0 %v7143
        %7145 = vmatprep.subr.mxu0 0.0
        %v7146 = vand.u32 %v6674, 4294901760
        %v7147 = vsub.f32 %v6674, %v7146
        %7148 = vmatpush1.msra.mxu0 %v7147
        %7149 = vmatprep.subr.mxu0 0.0
        %v7150 = vand.u32 %v6675, 4294901760
        %v7151 = vsub.f32 %v6675, %v7150
        %7152 = vmatpush1.msra.mxu0 %v7151
        %v7153 = vand.u32 %v384, 4294901760
        %v7154 = vsub.f32 %v384, %v7153
        %7155 = vmatprep.mubr.f32.mxu0 %v7154
        %v7156 = vand.u32 %v383, 4294901760
        %v7157 = vsub.f32 %v383, %v7156
        %7158 = vmatmul.mubr.f32.gmra.mrb[0].mxu0 %v7157
        %v7159 = vpop.f32.mrb[0].mxu0
        %v7160 = vadd.f32 %v7022, %v7159
        %v7161 = vpop.f32.mrb[0].mxu0
        %7162 = vdwg.mxu0
        %7163 = vmatprep.subr.mxu0 0.0
        %v7164 = vand.u32 %v6644, 4294901760
        %7165 = vmatpush1.msra.mxu0 %v7164
        %7166 = vmatprep.subr.mxu0 0.0
        %v7167 = vand.u32 %v6645, 4294901760
        %7168 = vmatpush1.msra.mxu0 %v7167
        %7169 = vmatprep.subr.mxu0 0.0
        %v7170 = vand.u32 %v6646, 4294901760
        %7171 = vmatpush1.msra.mxu0 %v7170
        %7172 = vmatprep.subr.mxu0 0.0
        %v7173 = vand.u32 %v6647, 4294901760
        %7174 = vmatpush1.msra.mxu0 %v7173
        %7175 = vmatprep.subr.mxu0 0.0
        %v7176 = vand.u32 %v6648, 4294901760
        %7177 = vmatpush1.msra.mxu0 %v7176
        %7178 = vmatprep.subr.mxu0 0.0
        %v7179 = vand.u32 %v6649, 4294901760
        %7180 = vmatpush1.msra.mxu0 %v7179
        %7181 = vmatprep.subr.mxu0 0.0
        %v7182 = vand.u32 %v6650, 4294901760
        %7183 = vmatpush1.msra.mxu0 %v7182
        %7184 = vmatprep.subr.mxu0 0.0
        %v7185 = vand.u32 %v6651, 4294901760
        %7186 = vmatpush1.msra.mxu0 %v7185
        %7187 = vmatprep.subr.mxu0 0.0
        %v7188 = vand.u32 %v6652, 4294901760
        %7189 = vmatpush1.msra.mxu0 %v7188
        %7190 = vmatprep.subr.mxu0 0.0
        %v7191 = vand.u32 %v6653, 4294901760
        %7192 = vmatpush1.msra.mxu0 %v7191
        %7193 = vmatprep.subr.mxu0 0.0
        %v7194 = vand.u32 %v6654, 4294901760
        %7195 = vmatpush1.msra.mxu0 %v7194
        %7196 = vmatprep.subr.mxu0 0.0
        %v7197 = vand.u32 %v6655, 4294901760
        %7198 = vmatpush1.msra.mxu0 %v7197
        %7199 = vmatprep.subr.mxu0 0.0
        %v7200 = vand.u32 %v6656, 4294901760
        %7201 = vmatpush1.msra.mxu0 %v7200
        %7202 = vmatprep.subr.mxu0 0.0
        %v7203 = vand.u32 %v6657, 4294901760
        %7204 = vmatpush1.msra.mxu0 %v7203
        %7205 = vmatprep.subr.mxu0 0.0
        %v7206 = vand.u32 %v6658, 4294901760
        %7207 = vmatpush1.msra.mxu0 %v7206
        %7208 = vmatprep.subr.mxu0 0.0
        %v7209 = vand.u32 %v6659, 4294901760
        %7210 = vmatpush1.msra.mxu0 %v7209
        %7211 = vmatprep.subr.mxu0 0.0
        %v7212 = vand.u32 %v6660, 4294901760
        %7213 = vmatpush1.msra.mxu0 %v7212
        %7214 = vmatprep.subr.mxu0 0.0
        %v7215 = vand.u32 %v6661, 4294901760
        %7216 = vmatpush1.msra.mxu0 %v7215
        %7217 = vmatprep.subr.mxu0 0.0
        %v7218 = vand.u32 %v6662, 4294901760
        %7219 = vmatpush1.msra.mxu0 %v7218
        %7220 = vmatprep.subr.mxu0 0.0
        %v7221 = vand.u32 %v6663, 4294901760
        %7222 = vmatpush1.msra.mxu0 %v7221
        %7223 = vmatprep.subr.mxu0 0.0
        %v7224 = vand.u32 %v6664, 4294901760
        %7225 = vmatpush1.msra.mxu0 %v7224
        %7226 = vmatprep.subr.mxu0 0.0
        %v7227 = vand.u32 %v6665, 4294901760
        %7228 = vmatpush1.msra.mxu0 %v7227
        %7229 = vmatprep.subr.mxu0 0.0
        %v7230 = vand.u32 %v6666, 4294901760
        %7231 = vmatpush1.msra.mxu0 %v7230
        %7232 = vmatprep.subr.mxu0 0.0
        %v7233 = vand.u32 %v6667, 4294901760
        %7234 = vmatpush1.msra.mxu0 %v7233
        %7235 = vmatprep.subr.mxu0 0.0
        %v7236 = vand.u32 %v6668, 4294901760
        %7237 = vmatpush1.msra.mxu0 %v7236
        %7238 = vmatprep.subr.mxu0 0.0
        %v7239 = vand.u32 %v6669, 4294901760
        %7240 = vmatpush1.msra.mxu0 %v7239
        %7241 = vmatprep.subr.mxu0 0.0
        %v7242 = vand.u32 %v6670, 4294901760
        %7243 = vmatpush1.msra.mxu0 %v7242
        %7244 = vmatprep.subr.mxu0 0.0
        %v7245 = vand.u32 %v6671, 4294901760
        %7246 = vmatpush1.msra.mxu0 %v7245
        %7247 = vmatprep.subr.mxu0 0.0
        %v7248 = vand.u32 %v6672, 4294901760
        %7249 = vmatpush1.msra.mxu0 %v7248
        %7250 = vmatprep.subr.mxu0 0.0
        %v7251 = vand.u32 %v6673, 4294901760
        %7252 = vmatpush1.msra.mxu0 %v7251
        %7253 = vmatprep.subr.mxu0 0.0
        %v7254 = vand.u32 %v6674, 4294901760
        %7255 = vmatpush1.msra.mxu0 %v7254
        %7256 = vmatprep.subr.mxu0 0.0
        %v7257 = vand.u32 %v6675, 4294901760
        %7258 = vmatpush1.msra.mxu0 %v7257
        %v7259 = vand.u32 %v384, 4294901760
        %v7260 = vsub.f32 %v384, %v7259
        %v7261 = vand.u32 %v7260, 4294901760
        %7262 = vmatprep.mubr.f32.mxu0 %v7261
        %v7263 = vand.u32 %v383, 4294901760
        %v7264 = vsub.f32 %v383, %v7263
        %v7265 = vand.u32 %v7264, 4294901760
        %7266 = vmatmul.mubr.f32.gmra.mrb[0].mxu0 %v7265
        %v7267 = vpop.f32.mrb[0].mxu0
        %v7268 = vadd.f32 %v7160, %v7267
        %v7269 = vpop.f32.mrb[0].mxu0
        %7270 = vdwg.mxu0
        %7271 = vmatprep.subr.mxu0 0.0
        %v7272 = vand.u32 %v6644, 4294901760
        %v7273 = vsub.f32 %v6644, %v7272
        %v7274 = vand.u32 %v7273, 4294901760
        %7275 = vmatpush1.msra.mxu0 %v7274
        %7276 = vmatprep.subr.mxu0 0.0
        %v7277 = vand.u32 %v6645, 4294901760
        %v7278 = vsub.f32 %v6645, %v7277
        %v7279 = vand.u32 %v7278, 4294901760
        %7280 = vmatpush1.msra.mxu0 %v7279
        %7281 = vmatprep.subr.mxu0 0.0
        %v7282 = vand.u32 %v6646, 4294901760
        %v7283 = vsub.f32 %v6646, %v7282
        %v7284 = vand.u32 %v7283, 4294901760
        %7285 = vmatpush1.msra.mxu0 %v7284
        %7286 = vmatprep.subr.mxu0 0.0
        %v7287 = vand.u32 %v6647, 4294901760
        %v7288 = vsub.f32 %v6647, %v7287
        %v7289 = vand.u32 %v7288, 4294901760
        %7290 = vmatpush1.msra.mxu0 %v7289
        %7291 = vmatprep.subr.mxu0 0.0
        %v7292 = vand.u32 %v6648, 4294901760
        %v7293 = vsub.f32 %v6648, %v7292
        %v7294 = vand.u32 %v7293, 4294901760
        %7295 = vmatpush1.msra.mxu0 %v7294
        %7296 = vmatprep.subr.mxu0 0.0
        %v7297 = vand.u32 %v6649, 4294901760
        %v7298 = vsub.f32 %v6649, %v7297
        %v7299 = vand.u32 %v7298, 4294901760
        %7300 = vmatpush1.msra.mxu0 %v7299
        %7301 = vmatprep.subr.mxu0 0.0
        %v7302 = vand.u32 %v6650, 4294901760
        %v7303 = vsub.f32 %v6650, %v7302
        %v7304 = vand.u32 %v7303, 4294901760
        %7305 = vmatpush1.msra.mxu0 %v7304
        %7306 = vmatprep.subr.mxu0 0.0
        %v7307 = vand.u32 %v6651, 4294901760
        %v7308 = vsub.f32 %v6651, %v7307
        %v7309 = vand.u32 %v7308, 4294901760
        %7310 = vmatpush1.msra.mxu0 %v7309
        %7311 = vmatprep.subr.mxu0 0.0
        %v7312 = vand.u32 %v6652, 4294901760
        %v7313 = vsub.f32 %v6652, %v7312
        %v7314 = vand.u32 %v7313, 4294901760
        %7315 = vmatpush1.msra.mxu0 %v7314
        %7316 = vmatprep.subr.mxu0 0.0
        %v7317 = vand.u32 %v6653, 4294901760
        %v7318 = vsub.f32 %v6653, %v7317
        %v7319 = vand.u32 %v7318, 4294901760
        %7320 = vmatpush1.msra.mxu0 %v7319
        %7321 = vmatprep.subr.mxu0 0.0
        %v7322 = vand.u32 %v6654, 4294901760
        %v7323 = vsub.f32 %v6654, %v7322
        %v7324 = vand.u32 %v7323, 4294901760
        %7325 = vmatpush1.msra.mxu0 %v7324
        %7326 = vmatprep.subr.mxu0 0.0
        %v7327 = vand.u32 %v6655, 4294901760
        %v7328 = vsub.f32 %v6655, %v7327
        %v7329 = vand.u32 %v7328, 4294901760
        %7330 = vmatpush1.msra.mxu0 %v7329
        %7331 = vmatprep.subr.mxu0 0.0
        %v7332 = vand.u32 %v6656, 4294901760
        %v7333 = vsub.f32 %v6656, %v7332
        %v7334 = vand.u32 %v7333, 4294901760
        %7335 = vmatpush1.msra.mxu0 %v7334
        %7336 = vmatprep.subr.mxu0 0.0
        %v7337 = vand.u32 %v6657, 4294901760
        %v7338 = vsub.f32 %v6657, %v7337
        %v7339 = vand.u32 %v7338, 4294901760
        %7340 = vmatpush1.msra.mxu0 %v7339
        %7341 = vmatprep.subr.mxu0 0.0
        %v7342 = vand.u32 %v6658, 4294901760
        %v7343 = vsub.f32 %v6658, %v7342
        %v7344 = vand.u32 %v7343, 4294901760
        %7345 = vmatpush1.msra.mxu0 %v7344
        %7346 = vmatprep.subr.mxu0 0.0
        %v7347 = vand.u32 %v6659, 4294901760
        %v7348 = vsub.f32 %v6659, %v7347
        %v7349 = vand.u32 %v7348, 4294901760
        %7350 = vmatpush1.msra.mxu0 %v7349
        %7351 = vmatprep.subr.mxu0 0.0
        %v7352 = vand.u32 %v6660, 4294901760
        %v7353 = vsub.f32 %v6660, %v7352
        %v7354 = vand.u32 %v7353, 4294901760
        %7355 = vmatpush1.msra.mxu0 %v7354
        %7356 = vmatprep.subr.mxu0 0.0
        %v7357 = vand.u32 %v6661, 4294901760
        %v7358 = vsub.f32 %v6661, %v7357
        %v7359 = vand.u32 %v7358, 4294901760
        %7360 = vmatpush1.msra.mxu0 %v7359
        %7361 = vmatprep.subr.mxu0 0.0
        %v7362 = vand.u32 %v6662, 4294901760
        %v7363 = vsub.f32 %v6662, %v7362
        %v7364 = vand.u32 %v7363, 4294901760
        %7365 = vmatpush1.msra.mxu0 %v7364
        %7366 = vmatprep.subr.mxu0 0.0
        %v7367 = vand.u32 %v6663, 4294901760
        %v7368 = vsub.f32 %v6663, %v7367
        %v7369 = vand.u32 %v7368, 4294901760
        %7370 = vmatpush1.msra.mxu0 %v7369
        %7371 = vmatprep.subr.mxu0 0.0
        %v7372 = vand.u32 %v6664, 4294901760
        %v7373 = vsub.f32 %v6664, %v7372
        %v7374 = vand.u32 %v7373, 4294901760
        %7375 = vmatpush1.msra.mxu0 %v7374
        %7376 = vmatprep.subr.mxu0 0.0
        %v7377 = vand.u32 %v6665, 4294901760
        %v7378 = vsub.f32 %v6665, %v7377
        %v7379 = vand.u32 %v7378, 4294901760
        %7380 = vmatpush1.msra.mxu0 %v7379
        %7381 = vmatprep.subr.mxu0 0.0
        %v7382 = vand.u32 %v6666, 4294901760
        %v7383 = vsub.f32 %v6666, %v7382
        %v7384 = vand.u32 %v7383, 4294901760
        %7385 = vmatpush1.msra.mxu0 %v7384
        %7386 = vmatprep.subr.mxu0 0.0
        %v7387 = vand.u32 %v6667, 4294901760
        %v7388 = vsub.f32 %v6667, %v7387
        %v7389 = vand.u32 %v7388, 4294901760
        %7390 = vmatpush1.msra.mxu0 %v7389
        %7391 = vmatprep.subr.mxu0 0.0
        %v7392 = vand.u32 %v6668, 4294901760
        %v7393 = vsub.f32 %v6668, %v7392
        %v7394 = vand.u32 %v7393, 4294901760
        %7395 = vmatpush1.msra.mxu0 %v7394
        %7396 = vmatprep.subr.mxu0 0.0
        %v7397 = vand.u32 %v6669, 4294901760
        %v7398 = vsub.f32 %v6669, %v7397
        %v7399 = vand.u32 %v7398, 4294901760
        %7400 = vmatpush1.msra.mxu0 %v7399
        %7401 = vmatprep.subr.mxu0 0.0
        %v7402 = vand.u32 %v6670, 4294901760
        %v7403 = vsub.f32 %v6670, %v7402
        %v7404 = vand.u32 %v7403, 4294901760
        %7405 = vmatpush1.msra.mxu0 %v7404
        %7406 = vmatprep.subr.mxu0 0.0
        %v7407 = vand.u32 %v6671, 4294901760
        %v7408 = vsub.f32 %v6671, %v7407
        %v7409 = vand.u32 %v7408, 4294901760
        %7410 = vmatpush1.msra.mxu0 %v7409
        %7411 = vmatprep.subr.mxu0 0.0
        %v7412 = vand.u32 %v6672, 4294901760
        %v7413 = vsub.f32 %v6672, %v7412
        %v7414 = vand.u32 %v7413, 4294901760
        %7415 = vmatpush1.msra.mxu0 %v7414
        %7416 = vmatprep.subr.mxu0 0.0
        %v7417 = vand.u32 %v6673, 4294901760
        %v7418 = vsub.f32 %v6673, %v7417
        %v7419 = vand.u32 %v7418, 4294901760
        %7420 = vmatpush1.msra.mxu0 %v7419
        %7421 = vmatprep.subr.mxu0 0.0
        %v7422 = vand.u32 %v6674, 4294901760
        %v7423 = vsub.f32 %v6674, %v7422
        %v7424 = vand.u32 %v7423, 4294901760
        %7425 = vmatpush1.msra.mxu0 %v7424
        %7426 = vmatprep.subr.mxu0 0.0
        %v7427 = vand.u32 %v6675, 4294901760
        %v7428 = vsub.f32 %v6675, %v7427
        %v7429 = vand.u32 %v7428, 4294901760
        %7430 = vmatpush1.msra.mxu0 %v7429
        %v7431 = vand.u32 %v384, 4294901760
        %7432 = vmatprep.mubr.f32.mxu0 %v7431
        %v7433 = vand.u32 %v383, 4294901760
        %7434 = vmatmul.mubr.f32.gmra.mrb[0].mxu0 %v7433
        %v7435 = vpop.f32.mrb[0].mxu0
        %v7436 = vadd.f32 %v7268, %v7435
        %v7437 = vpop.f32.mrb[0].mxu0
        %7438 = vdwg.mxu0
        %7439 = vmatprep.subr.mxu0 0.0
        %v7440 = vand.u32 %v6644, 4294901760
        %7441 = vmatpush1.msra.mxu0 %v7440
        %7442 = vmatprep.subr.mxu0 0.0
        %v7443 = vand.u32 %v6645, 4294901760
        %7444 = vmatpush1.msra.mxu0 %v7443
        %7445 = vmatprep.subr.mxu0 0.0
        %v7446 = vand.u32 %v6646, 4294901760
        %7447 = vmatpush1.msra.mxu0 %v7446
        %7448 = vmatprep.subr.mxu0 0.0
        %v7449 = vand.u32 %v6647, 4294901760
        %7450 = vmatpush1.msra.mxu0 %v7449
        %7451 = vmatprep.subr.mxu0 0.0
        %v7452 = vand.u32 %v6648, 4294901760
        %7453 = vmatpush1.msra.mxu0 %v7452
        %7454 = vmatprep.subr.mxu0 0.0
        %v7455 = vand.u32 %v6649, 4294901760
        %7456 = vmatpush1.msra.mxu0 %v7455
        %7457 = vmatprep.subr.mxu0 0.0
        %v7458 = vand.u32 %v6650, 4294901760
        %7459 = vmatpush1.msra.mxu0 %v7458
        %7460 = vmatprep.subr.mxu0 0.0
        %v7461 = vand.u32 %v6651, 4294901760
        %7462 = vmatpush1.msra.mxu0 %v7461
        %7463 = vmatprep.subr.mxu0 0.0
        %v7464 = vand.u32 %v6652, 4294901760
        %7465 = vmatpush1.msra.mxu0 %v7464
        %7466 = vmatprep.subr.mxu0 0.0
        %v7467 = vand.u32 %v6653, 4294901760
        %7468 = vmatpush1.msra.mxu0 %v7467
        %7469 = vmatprep.subr.mxu0 0.0
        %v7470 = vand.u32 %v6654, 4294901760
        %7471 = vmatpush1.msra.mxu0 %v7470
        %7472 = vmatprep.subr.mxu0 0.0
        %v7473 = vand.u32 %v6655, 4294901760
        %7474 = vmatpush1.msra.mxu0 %v7473
        %7475 = vmatprep.subr.mxu0 0.0
        %v7476 = vand.u32 %v6656, 4294901760
        %7477 = vmatpush1.msra.mxu0 %v7476
        %7478 = vmatprep.subr.mxu0 0.0
        %v7479 = vand.u32 %v6657, 4294901760
        %7480 = vmatpush1.msra.mxu0 %v7479
        %7481 = vmatprep.subr.mxu0 0.0
        %v7482 = vand.u32 %v6658, 4294901760
        %7483 = vmatpush1.msra.mxu0 %v7482
        %7484 = vmatprep.subr.mxu0 0.0
        %v7485 = vand.u32 %v6659, 4294901760
        %7486 = vmatpush1.msra.mxu0 %v7485
        %7487 = vmatprep.subr.mxu0 0.0
        %v7488 = vand.u32 %v6660, 4294901760
        %7489 = vmatpush1.msra.mxu0 %v7488
        %7490 = vmatprep.subr.mxu0 0.0
        %v7491 = vand.u32 %v6661, 4294901760
        %7492 = vmatpush1.msra.mxu0 %v7491
        %7493 = vmatprep.subr.mxu0 0.0
        %v7494 = vand.u32 %v6662, 4294901760
        %7495 = vmatpush1.msra.mxu0 %v7494
        %7496 = vmatprep.subr.mxu0 0.0
        %v7497 = vand.u32 %v6663, 4294901760
        %7498 = vmatpush1.msra.mxu0 %v7497
        %7499 = vmatprep.subr.mxu0 0.0
        %v7500 = vand.u32 %v6664, 4294901760
        %7501 = vmatpush1.msra.mxu0 %v7500
        %7502 = vmatprep.subr.mxu0 0.0
        %v7503 = vand.u32 %v6665, 4294901760
        %7504 = vmatpush1.msra.mxu0 %v7503
        %7505 = vmatprep.subr.mxu0 0.0
        %v7506 = vand.u32 %v6666, 4294901760
        %7507 = vmatpush1.msra.mxu0 %v7506
        %7508 = vmatprep.subr.mxu0 0.0
        %v7509 = vand.u32 %v6667, 4294901760
        %7510 = vmatpush1.msra.mxu0 %v7509
        %7511 = vmatprep.subr.mxu0 0.0
        %v7512 = vand.u32 %v6668, 4294901760
        %7513 = vmatpush1.msra.mxu0 %v7512
        %7514 = vmatprep.subr.mxu0 0.0
        %v7515 = vand.u32 %v6669, 4294901760
        %7516 = vmatpush1.msra.mxu0 %v7515
        %7517 = vmatprep.subr.mxu0 0.0
        %v7518 = vand.u32 %v6670, 4294901760
        %7519 = vmatpush1.msra.mxu0 %v7518
        %7520 = vmatprep.subr.mxu0 0.0
        %v7521 = vand.u32 %v6671, 4294901760
        %7522 = vmatpush1.msra.mxu0 %v7521
        %7523 = vmatprep.subr.mxu0 0.0
        %v7524 = vand.u32 %v6672, 4294901760
        %7525 = vmatpush1.msra.mxu0 %v7524
        %7526 = vmatprep.subr.mxu0 0.0
        %v7527 = vand.u32 %v6673, 4294901760
        %7528 = vmatpush1.msra.mxu0 %v7527
        %7529 = vmatprep.subr.mxu0 0.0
        %v7530 = vand.u32 %v6674, 4294901760
        %7531 = vmatpush1.msra.mxu0 %v7530
        %7532 = vmatprep.subr.mxu0 0.0
        %v7533 = vand.u32 %v6675, 4294901760
        %7534 = vmatpush1.msra.mxu0 %v7533
        %v7535 = vand.u32 %v384, 4294901760
        %7536 = vmatprep.mubr.f32.mxu0 %v7535
        %v7537 = vand.u32 %v383, 4294901760
        %7538 = vmatmul.mubr.f32.gmra.mrb[0].mxu0 %v7537
        %v7539 = vpop.f32.mrb[0].mxu0
        %v7540 = vadd.f32 %v7436, %v7539
        %v7541 = vpop.f32.mrb[0].mxu0
        %7542 = vdwg.mxu0
        %v7543 = vld [vmem:[%s7 + $0x2] sm:$0x1]
        %v7544 = vld [vmem:[%s7 + $0x3] sm:$0x1]
        %v7545 = vsel %vm472, %v7540, 0.0
        %7546 = vadd.xlane.f32.xlu0 %v7545
        %v7547 = vpop.xlane.xlu0 %7546
        %v7548 = vmul.f32 %v7547, %v6622
        %v7549 = vsub.f32 %v7540, %v7548
        %v7550 = vmul.f32 %v7549, %v7549
        %v7551 = vsel %vm472, %v7550, 0.0
        %7552 = vadd.xlane.f32.xlu0 %v7551
        %v7553 = vpop.xlane.xlu0 %7552
        %v7554 = vmul.f32 %v7553, %v6622
        %v7555 = vadd.f32 %v7554, 1e-05
        %v7556 = vrsqrt.pop %v7555
        %v7557 = vmul.f32 %v7549, %v7556
        %v7558 = vlaneseq
        %v7559 = vshrl.u32 %v7558, 7
        %v7560 = vsub.s32 0, %v7559
        %v7561 = vrot.slane %v7543, %v7560
        %v7562 = vmul.f32 %v7557, %v7561
        %v7563 = vlaneseq
        %v7564 = vshrl.u32 %v7563, 7
        %v7565 = vsub.s32 0, %v7564
        %v7566 = vrot.slane %v7544, %v7565
        %v7567 = vadd.f32 %v7562, %v7566
        %7568 = vmatprep.subr.mxu0 0.0
        %v7569 = vand.u32 %v7567, 4294901760
        %7570 = vmatpush1.xpose.msra.mxu0 %v7569
        %7571 = vmatprep.subr.mxu0 0.0
        %7572 = vmatpush1.xpose.msra.mxu0 0.0
        %7573 = vmatprep.subr.mxu0 0.0
        %7574 = vmatpush1.xpose.msra.mxu0 0.0
        %7575 = vmatprep.subr.mxu0 0.0
        %7576 = vmatpush1.xpose.msra.mxu0 0.0
        %7577 = vmatprep.subr.mxu0 0.0
        %7578 = vmatpush1.xpose.msra.mxu0 0.0
        %7579 = vmatprep.subr.mxu0 0.0
        %7580 = vmatpush1.xpose.msra.mxu0 0.0
        %7581 = vmatprep.subr.mxu0 0.0
        %7582 = vmatpush1.xpose.msra.mxu0 0.0
        %7583 = vmatprep.subr.mxu0 0.0
        %7584 = vmatpush1.xpose.msra.mxu0 0.0
        %7585 = vmatprep.subr.mxu0 0.0
        %7586 = vmatpush1.xpose.msra.mxu0 0.0
        %7587 = vmatprep.subr.mxu0 0.0
        %7588 = vmatpush1.xpose.msra.mxu0 0.0
        %7589 = vmatprep.subr.mxu0 0.0
        %7590 = vmatpush1.xpose.msra.mxu0 0.0
        %7591 = vmatprep.subr.mxu0 0.0
        %7592 = vmatpush1.xpose.msra.mxu0 0.0
        %7593 = vmatprep.subr.mxu0 0.0
        %7594 = vmatpush1.xpose.msra.mxu0 0.0
        %7595 = vmatprep.subr.mxu0 0.0
        %7596 = vmatpush1.xpose.msra.mxu0 0.0
        %7597 = vmatprep.subr.mxu0 0.0
        %7598 = vmatpush1.xpose.msra.mxu0 0.0
        %7599 = vmatprep.subr.mxu0 0.0
        %7600 = vmatpush1.xpose.msra.mxu0 0.0
        %7601 = vmatprep.subr.mxu0 0.0
        %7602 = vmatpush1.xpose.msra.mxu0 0.0
        %7603 = vmatprep.subr.mxu0 0.0
        %7604 = vmatpush1.xpose.msra.mxu0 0.0
        %7605 = vmatprep.subr.mxu0 0.0
        %7606 = vmatpush1.xpose.msra.mxu0 0.0
        %7607 = vmatprep.subr.mxu0 0.0
        %7608 = vmatpush1.xpose.msra.mxu0 0.0
        %7609 = vmatprep.subr.mxu0 0.0
        %7610 = vmatpush1.xpose.msra.mxu0 0.0
        %7611 = vmatprep.subr.mxu0 0.0
        %7612 = vmatpush1.xpose.msra.mxu0 0.0
        %7613 = vmatprep.subr.mxu0 0.0
        %7614 = vmatpush1.xpose.msra.mxu0 0.0
        %7615 = vmatprep.subr.mxu0 0.0
        %7616 = vmatpush1.xpose.msra.mxu0 0.0
        %7617 = vmatprep.subr.mxu0 0.0
        %7618 = vmatpush1.xpose.msra.mxu0 0.0
        %7619 = vmatprep.subr.mxu0 0.0
        %7620 = vmatpush1.xpose.msra.mxu0 0.0
        %7621 = vmatprep.subr.mxu0 0.0
        %7622 = vmatpush1.xpose.msra.mxu0 0.0
        %7623 = vmatprep.subr.mxu0 0.0
        %7624 = vmatpush1.xpose.msra.mxu0 0.0
        %7625 = vmatprep.subr.mxu0 0.0
        %7626 = vmatpush1.xpose.msra.mxu0 0.0
        %7627 = vmatprep.subr.mxu0 0.0
        %7628 = vmatpush1.xpose.msra.mxu0 0.0
        %7629 = vmatprep.subr.mxu0 0.0
        %7630 = vmatpush1.xpose.msra.mxu0 0.0
        %7631 = vmatprep.subr.mxu0 0.0
        %7632 = vmatpush1.xpose.msra.mxu0 0.0
        %7633 = vmatprep.mubr.f32.mxu0 0.0
        %v7634 = vand.u32 %v6642, 4294901760
        %v7635 = vsub.f32 %v6642, %v7634
        %v7636 = vand.u32 %v7635, 4294901760
        %v7637 = vsub.f32 %v7635, %v7636
        %v7638 = vand.u32 %v7637, 4294901760
        %7639 = vmatmul.mubr.f32.gmra.mrb[0].mxu0 %v7638
        %v7640 = vpop.f32.mrb[0].mxu0
        %v7641 = vadd.f32 0.0, %v7640
        %v7642 = vpop.f32.mrb[0].mxu0
        %7643 = vdwg.mxu0
        %7644 = vmatprep.subr.mxu0 0.0
        %v7645 = vand.u32 %v7567, 4294901760
        %v7646 = vsub.f32 %v7567, %v7645
        %v7647 = vand.u32 %v7646, 4294901760
        %v7648 = vsub.f32 %v7646, %v7647
        %v7649 = vand.u32 %v7648, 4294901760
        %7650 = vmatpush1.xpose.msra.mxu0 %v7649
        %7651 = vmatprep.subr.mxu0 0.0
        %7652 = vmatpush1.xpose.msra.mxu0 0.0
        %7653 = vmatprep.subr.mxu0 0.0
        %7654 = vmatpush1.xpose.msra.mxu0 0.0
        %7655 = vmatprep.subr.mxu0 0.0
        %7656 = vmatpush1.xpose.msra.mxu0 0.0
        %7657 = vmatprep.subr.mxu0 0.0
        %7658 = vmatpush1.xpose.msra.mxu0 0.0
        %7659 = vmatprep.subr.mxu0 0.0
        %7660 = vmatpush1.xpose.msra.mxu0 0.0
        %7661 = vmatprep.subr.mxu0 0.0
        %7662 = vmatpush1.xpose.msra.mxu0 0.0
        %7663 = vmatprep.subr.mxu0 0.0
        %7664 = vmatpush1.xpose.msra.mxu0 0.0
        %7665 = vmatprep.subr.mxu0 0.0
        %7666 = vmatpush1.xpose.msra.mxu0 0.0
        %7667 = vmatprep.subr.mxu0 0.0
        %7668 = vmatpush1.xpose.msra.mxu0 0.0
        %7669 = vmatprep.subr.mxu0 0.0
        %7670 = vmatpush1.xpose.msra.mxu0 0.0
        %7671 = vmatprep.subr.mxu0 0.0
        %7672 = vmatpush1.xpose.msra.mxu0 0.0
        %7673 = vmatprep.subr.mxu0 0.0
        %7674 = vmatpush1.xpose.msra.mxu0 0.0
        %7675 = vmatprep.subr.mxu0 0.0
        %7676 = vmatpush1.xpose.msra.mxu0 0.0
        %7677 = vmatprep.subr.mxu0 0.0
        %7678 = vmatpush1.xpose.msra.mxu0 0.0
        %7679 = vmatprep.subr.mxu0 0.0
        %7680 = vmatpush1.xpose.msra.mxu0 0.0
        %7681 = vmatprep.subr.mxu0 0.0
        %7682 = vmatpush1.xpose.msra.mxu0 0.0
        %7683 = vmatprep.subr.mxu0 0.0
        %7684 = vmatpush1.xpose.msra.mxu0 0.0
        %7685 = vmatprep.subr.mxu0 0.0
        %7686 = vmatpush1.xpose.msra.mxu0 0.0
        %7687 = vmatprep.subr.mxu0 0.0
        %7688 = vmatpush1.xpose.msra.mxu0 0.0
        %7689 = vmatprep.subr.mxu0 0.0
        %7690 = vmatpush1.xpose.msra.mxu0 0.0
        %7691 = vmatprep.subr.mxu0 0.0
        %7692 = vmatpush1.xpose.msra.mxu0 0.0
        %7693 = vmatprep.subr.mxu0 0.0
        %7694 = vmatpush1.xpose.msra.mxu0 0.0
        %7695 = vmatprep.subr.mxu0 0.0
        %7696 = vmatpush1.xpose.msra.mxu0 0.0
        %7697 = vmatprep.subr.mxu0 0.0
        %7698 = vmatpush1.xpose.msra.mxu0 0.0
        %7699 = vmatprep.subr.mxu0 0.0
        %7700 = vmatpush1.xpose.msra.mxu0 0.0
        %7701 = vmatprep.subr.mxu0 0.0
        %7702 = vmatpush1.xpose.msra.mxu0 0.0
        %7703 = vmatprep.subr.mxu0 0.0
        %7704 = vmatpush1.xpose.msra.mxu0 0.0
        %7705 = vmatprep.subr.mxu0 0.0
        %7706 = vmatpush1.xpose.msra.mxu0 0.0
        %7707 = vmatprep.subr.mxu0 0.0
        %7708 = vmatpush1.xpose.msra.mxu0 0.0
        %7709 = vmatprep.subr.mxu0 0.0
        %7710 = vmatpush1.xpose.msra.mxu0 0.0
        %7711 = vmatprep.subr.mxu0 0.0
        %7712 = vmatpush1.xpose.msra.mxu0 0.0
        %7713 = vmatprep.mubr.f32.mxu0 0.0
        %v7714 = vand.u32 %v6642, 4294901760
        %7715 = vmatmul.mubr.f32.gmra.mrb[0].mxu0 %v7714
        %v7716 = vpop.f32.mrb[0].mxu0
        %v7717 = vadd.f32 %v7641, %v7716
        %v7718 = vpop.f32.mrb[0].mxu0
        %7719 = vdwg.mxu0
        %7720 = vmatprep.subr.mxu0 0.0
        %v7721 = vand.u32 %v7567, 4294901760
        %v7722 = vsub.f32 %v7567, %v7721
        %7723 = vmatpush1.xpose.msra.mxu0 %v7722
        %7724 = vmatprep.subr.mxu0 0.0
        %7725 = vmatpush1.xpose.msra.mxu0 0.0
        %7726 = vmatprep.subr.mxu0 0.0
        %7727 = vmatpush1.xpose.msra.mxu0 0.0
        %7728 = vmatprep.subr.mxu0 0.0
        %7729 = vmatpush1.xpose.msra.mxu0 0.0
        %7730 = vmatprep.subr.mxu0 0.0
        %7731 = vmatpush1.xpose.msra.mxu0 0.0
        %7732 = vmatprep.subr.mxu0 0.0
        %7733 = vmatpush1.xpose.msra.mxu0 0.0
        %7734 = vmatprep.subr.mxu0 0.0
        %7735 = vmatpush1.xpose.msra.mxu0 0.0
        %7736 = vmatprep.subr.mxu0 0.0
        %7737 = vmatpush1.xpose.msra.mxu0 0.0
        %7738 = vmatprep.subr.mxu0 0.0
        %7739 = vmatpush1.xpose.msra.mxu0 0.0
        %7740 = vmatprep.subr.mxu0 0.0
        %7741 = vmatpush1.xpose.msra.mxu0 0.0
        %7742 = vmatprep.subr.mxu0 0.0
        %7743 = vmatpush1.xpose.msra.mxu0 0.0
        %7744 = vmatprep.subr.mxu0 0.0
        %7745 = vmatpush1.xpose.msra.mxu0 0.0
        %7746 = vmatprep.subr.mxu0 0.0
        %7747 = vmatpush1.xpose.msra.mxu0 0.0
        %7748 = vmatprep.subr.mxu0 0.0
        %7749 = vmatpush1.xpose.msra.mxu0 0.0
        %7750 = vmatprep.subr.mxu0 0.0
        %7751 = vmatpush1.xpose.msra.mxu0 0.0
        %7752 = vmatprep.subr.mxu0 0.0
        %7753 = vmatpush1.xpose.msra.mxu0 0.0
        %7754 = vmatprep.subr.mxu0 0.0
        %7755 = vmatpush1.xpose.msra.mxu0 0.0
        %7756 = vmatprep.subr.mxu0 0.0
        %7757 = vmatpush1.xpose.msra.mxu0 0.0
        %7758 = vmatprep.subr.mxu0 0.0
        %7759 = vmatpush1.xpose.msra.mxu0 0.0
        %7760 = vmatprep.subr.mxu0 0.0
        %7761 = vmatpush1.xpose.msra.mxu0 0.0
        %7762 = vmatprep.subr.mxu0 0.0
        %7763 = vmatpush1.xpose.msra.mxu0 0.0
        %7764 = vmatprep.subr.mxu0 0.0
        %7765 = vmatpush1.xpose.msra.mxu0 0.0
        %7766 = vmatprep.subr.mxu0 0.0
        %7767 = vmatpush1.xpose.msra.mxu0 0.0
        %7768 = vmatprep.subr.mxu0 0.0
        %7769 = vmatpush1.xpose.msra.mxu0 0.0
        %7770 = vmatprep.subr.mxu0 0.0
        %7771 = vmatpush1.xpose.msra.mxu0 0.0
        %7772 = vmatprep.subr.mxu0 0.0
        %7773 = vmatpush1.xpose.msra.mxu0 0.0
        %7774 = vmatprep.subr.mxu0 0.0
        %7775 = vmatpush1.xpose.msra.mxu0 0.0
        %7776 = vmatprep.subr.mxu0 0.0
        %7777 = vmatpush1.xpose.msra.mxu0 0.0
        %7778 = vmatprep.subr.mxu0 0.0
        %7779 = vmatpush1.xpose.msra.mxu0 0.0
        %7780 = vmatprep.subr.mxu0 0.0
        %7781 = vmatpush1.xpose.msra.mxu0 0.0
        %7782 = vmatprep.subr.mxu0 0.0
        %7783 = vmatpush1.xpose.msra.mxu0 0.0
        %7784 = vmatprep.subr.mxu0 0.0
        %7785 = vmatpush1.xpose.msra.mxu0 0.0
        %7786 = vmatprep.mubr.f32.mxu0 0.0
        %v7787 = vand.u32 %v6642, 4294901760
        %v7788 = vsub.f32 %v6642, %v7787
        %7789 = vmatmul.mubr.f32.gmra.mrb[0].mxu0 %v7788
        %v7790 = vpop.f32.mrb[0].mxu0
        %v7791 = vadd.f32 %v7717, %v7790
        %v7792 = vpop.f32.mrb[0].mxu0
        %7793 = vdwg.mxu0
        %7794 = vmatprep.subr.mxu0 0.0
        %v7795 = vand.u32 %v7567, 4294901760
        %7796 = vmatpush1.xpose.msra.mxu0 %v7795
        %7797 = vmatprep.subr.mxu0 0.0
        %7798 = vmatpush1.xpose.msra.mxu0 0.0
        %7799 = vmatprep.subr.mxu0 0.0
        %7800 = vmatpush1.xpose.msra.mxu0 0.0
        %7801 = vmatprep.subr.mxu0 0.0
        %7802 = vmatpush1.xpose.msra.mxu0 0.0
        %7803 = vmatprep.subr.mxu0 0.0
        %7804 = vmatpush1.xpose.msra.mxu0 0.0
        %7805 = vmatprep.subr.mxu0 0.0
        %7806 = vmatpush1.xpose.msra.mxu0 0.0
        %7807 = vmatprep.subr.mxu0 0.0
        %7808 = vmatpush1.xpose.msra.mxu0 0.0
        %7809 = vmatprep.subr.mxu0 0.0
        %7810 = vmatpush1.xpose.msra.mxu0 0.0
        %7811 = vmatprep.subr.mxu0 0.0
        %7812 = vmatpush1.xpose.msra.mxu0 0.0
        %7813 = vmatprep.subr.mxu0 0.0
        %7814 = vmatpush1.xpose.msra.mxu0 0.0
        %7815 = vmatprep.subr.mxu0 0.0
        %7816 = vmatpush1.xpose.msra.mxu0 0.0
        %7817 = vmatprep.subr.mxu0 0.0
        %7818 = vmatpush1.xpose.msra.mxu0 0.0
        %7819 = vmatprep.subr.mxu0 0.0
        %7820 = vmatpush1.xpose.msra.mxu0 0.0
        %7821 = vmatprep.subr.mxu0 0.0
        %7822 = vmatpush1.xpose.msra.mxu0 0.0
        %7823 = vmatprep.subr.mxu0 0.0
        %7824 = vmatpush1.xpose.msra.mxu0 0.0
        %7825 = vmatprep.subr.mxu0 0.0
        %7826 = vmatpush1.xpose.msra.mxu0 0.0
        %7827 = vmatprep.subr.mxu0 0.0
        %7828 = vmatpush1.xpose.msra.mxu0 0.0
        %7829 = vmatprep.subr.mxu0 0.0
        %7830 = vmatpush1.xpose.msra.mxu0 0.0
        %7831 = vmatprep.subr.mxu0 0.0
        %7832 = vmatpush1.xpose.msra.mxu0 0.0
        %7833 = vmatprep.subr.mxu0 0.0
        %7834 = vmatpush1.xpose.msra.mxu0 0.0
        %7835 = vmatprep.subr.mxu0 0.0
        %7836 = vmatpush1.xpose.msra.mxu0 0.0
        %7837 = vmatprep.subr.mxu0 0.0
        %7838 = vmatpush1.xpose.msra.mxu0 0.0
        %7839 = vmatprep.subr.mxu0 0.0
        %7840 = vmatpush1.xpose.msra.mxu0 0.0
        %7841 = vmatprep.subr.mxu0 0.0
        %7842 = vmatpush1.xpose.msra.mxu0 0.0
        %7843 = vmatprep.subr.mxu0 0.0
        %7844 = vmatpush1.xpose.msra.mxu0 0.0
        %7845 = vmatprep.subr.mxu0 0.0
        %7846 = vmatpush1.xpose.msra.mxu0 0.0
        %7847 = vmatprep.subr.mxu0 0.0
        %7848 = vmatpush1.xpose.msra.mxu0 0.0
        %7849 = vmatprep.subr.mxu0 0.0
        %7850 = vmatpush1.xpose.msra.mxu0 0.0
        %7851 = vmatprep.subr.mxu0 0.0
        %7852 = vmatpush1.xpose.msra.mxu0 0.0
        %7853 = vmatprep.subr.mxu0 0.0
        %7854 = vmatpush1.xpose.msra.mxu0 0.0
        %7855 = vmatprep.subr.mxu0 0.0
        %7856 = vmatpush1.xpose.msra.mxu0 0.0
        %7857 = vmatprep.subr.mxu0 0.0
        %7858 = vmatpush1.xpose.msra.mxu0 0.0
        %7859 = vmatprep.mubr.f32.mxu0 0.0
        %v7860 = vand.u32 %v6642, 4294901760
        %v7861 = vsub.f32 %v6642, %v7860
        %v7862 = vand.u32 %v7861, 4294901760
        %7863 = vmatmul.mubr.f32.gmra.mrb[0].mxu0 %v7862
        %v7864 = vpop.f32.mrb[0].mxu0
        %v7865 = vadd.f32 %v7791, %v7864
        %v7866 = vpop.f32.mrb[0].mxu0
        %7867 = vdwg.mxu0
        %7868 = vmatprep.subr.mxu0 0.0
        %v7869 = vand.u32 %v7567, 4294901760
        %v7870 = vsub.f32 %v7567, %v7869
        %v7871 = vand.u32 %v7870, 4294901760
        %7872 = vmatpush1.xpose.msra.mxu0 %v7871
        %7873 = vmatprep.subr.mxu0 0.0
        %7874 = vmatpush1.xpose.msra.mxu0 0.0
        %7875 = vmatprep.subr.mxu0 0.0
        %7876 = vmatpush1.xpose.msra.mxu0 0.0
        %7877 = vmatprep.subr.mxu0 0.0
        %7878 = vmatpush1.xpose.msra.mxu0 0.0
        %7879 = vmatprep.subr.mxu0 0.0
        %7880 = vmatpush1.xpose.msra.mxu0 0.0
        %7881 = vmatprep.subr.mxu0 0.0
        %7882 = vmatpush1.xpose.msra.mxu0 0.0
        %7883 = vmatprep.subr.mxu0 0.0
        %7884 = vmatpush1.xpose.msra.mxu0 0.0
        %7885 = vmatprep.subr.mxu0 0.0
        %7886 = vmatpush1.xpose.msra.mxu0 0.0
        %7887 = vmatprep.subr.mxu0 0.0
        %7888 = vmatpush1.xpose.msra.mxu0 0.0
        %7889 = vmatprep.subr.mxu0 0.0
        %7890 = vmatpush1.xpose.msra.mxu0 0.0
        %7891 = vmatprep.subr.mxu0 0.0
        %7892 = vmatpush1.xpose.msra.mxu0 0.0
        %7893 = vmatprep.subr.mxu0 0.0
        %7894 = vmatpush1.xpose.msra.mxu0 0.0
        %7895 = vmatprep.subr.mxu0 0.0
        %7896 = vmatpush1.xpose.msra.mxu0 0.0
        %7897 = vmatprep.subr.mxu0 0.0
        %7898 = vmatpush1.xpose.msra.mxu0 0.0
        %7899 = vmatprep.subr.mxu0 0.0
        %7900 = vmatpush1.xpose.msra.mxu0 0.0
        %7901 = vmatprep.subr.mxu0 0.0
        %7902 = vmatpush1.xpose.msra.mxu0 0.0
        %7903 = vmatprep.subr.mxu0 0.0
        %7904 = vmatpush1.xpose.msra.mxu0 0.0
        %7905 = vmatprep.subr.mxu0 0.0
        %7906 = vmatpush1.xpose.msra.mxu0 0.0
        %7907 = vmatprep.subr.mxu0 0.0
        %7908 = vmatpush1.xpose.msra.mxu0 0.0
        %7909 = vmatprep.subr.mxu0 0.0
        %7910 = vmatpush1.xpose.msra.mxu0 0.0
        %7911 = vmatprep.subr.mxu0 0.0
        %7912 = vmatpush1.xpose.msra.mxu0 0.0
        %7913 = vmatprep.subr.mxu0 0.0
        %7914 = vmatpush1.xpose.msra.mxu0 0.0
        %7915 = vmatprep.subr.mxu0 0.0
        %7916 = vmatpush1.xpose.msra.mxu0 0.0
        %7917 = vmatprep.subr.mxu0 0.0
        %7918 = vmatpush1.xpose.msra.mxu0 0.0
        %7919 = vmatprep.subr.mxu0 0.0
        %7920 = vmatpush1.xpose.msra.mxu0 0.0
        %7921 = vmatprep.subr.mxu0 0.0
        %7922 = vmatpush1.xpose.msra.mxu0 0.0
        %7923 = vmatprep.subr.mxu0 0.0
        %7924 = vmatpush1.xpose.msra.mxu0 0.0
        %7925 = vmatprep.subr.mxu0 0.0
        %7926 = vmatpush1.xpose.msra.mxu0 0.0
        %7927 = vmatprep.subr.mxu0 0.0
        %7928 = vmatpush1.xpose.msra.mxu0 0.0
        %7929 = vmatprep.subr.mxu0 0.0
        %7930 = vmatpush1.xpose.msra.mxu0 0.0
        %7931 = vmatprep.subr.mxu0 0.0
        %7932 = vmatpush1.xpose.msra.mxu0 0.0
        %7933 = vmatprep.subr.mxu0 0.0
        %7934 = vmatpush1.xpose.msra.mxu0 0.0
        %7935 = vmatprep.mubr.f32.mxu0 0.0
        %v7936 = vand.u32 %v6642, 4294901760
        %7937 = vmatmul.mubr.f32.gmra.mrb[0].mxu0 %v7936
        %v7938 = vpop.f32.mrb[0].mxu0
        %v7939 = vadd.f32 %v7865, %v7938
        %v7940 = vpop.f32.mrb[0].mxu0
        %7941 = vdwg.mxu0
        %7942 = vmatprep.subr.mxu0 0.0
        %v7943 = vand.u32 %v7567, 4294901760
        %7944 = vmatpush1.xpose.msra.mxu0 %v7943
        %7945 = vmatprep.subr.mxu0 0.0
        %7946 = vmatpush1.xpose.msra.mxu0 0.0
        %7947 = vmatprep.subr.mxu0 0.0
        %7948 = vmatpush1.xpose.msra.mxu0 0.0
        %7949 = vmatprep.subr.mxu0 0.0
        %7950 = vmatpush1.xpose.msra.mxu0 0.0
        %7951 = vmatprep.subr.mxu0 0.0
        %7952 = vmatpush1.xpose.msra.mxu0 0.0
        %7953 = vmatprep.subr.mxu0 0.0
        %7954 = vmatpush1.xpose.msra.mxu0 0.0
        %7955 = vmatprep.subr.mxu0 0.0
        %7956 = vmatpush1.xpose.msra.mxu0 0.0
        %7957 = vmatprep.subr.mxu0 0.0
        %7958 = vmatpush1.xpose.msra.mxu0 0.0
        %7959 = vmatprep.subr.mxu0 0.0
        %7960 = vmatpush1.xpose.msra.mxu0 0.0
        %7961 = vmatprep.subr.mxu0 0.0
        %7962 = vmatpush1.xpose.msra.mxu0 0.0
        %7963 = vmatprep.subr.mxu0 0.0
        %7964 = vmatpush1.xpose.msra.mxu0 0.0
        %7965 = vmatprep.subr.mxu0 0.0
        %7966 = vmatpush1.xpose.msra.mxu0 0.0
        %7967 = vmatprep.subr.mxu0 0.0
        %7968 = vmatpush1.xpose.msra.mxu0 0.0
        %7969 = vmatprep.subr.mxu0 0.0
        %7970 = vmatpush1.xpose.msra.mxu0 0.0
        %7971 = vmatprep.subr.mxu0 0.0
        %7972 = vmatpush1.xpose.msra.mxu0 0.0
        %7973 = vmatprep.subr.mxu0 0.0
        %7974 = vmatpush1.xpose.msra.mxu0 0.0
        %7975 = vmatprep.subr.mxu0 0.0
        %7976 = vmatpush1.xpose.msra.mxu0 0.0
        %7977 = vmatprep.subr.mxu0 0.0
        %7978 = vmatpush1.xpose.msra.mxu0 0.0
        %7979 = vmatprep.subr.mxu0 0.0
        %7980 = vmatpush1.xpose.msra.mxu0 0.0
        %7981 = vmatprep.subr.mxu0 0.0
        %7982 = vmatpush1.xpose.msra.mxu0 0.0
        %7983 = vmatprep.subr.mxu0 0.0
        %7984 = vmatpush1.xpose.msra.mxu0 0.0
        %7985 = vmatprep.subr.mxu0 0.0
        %7986 = vmatpush1.xpose.msra.mxu0 0.0
        %7987 = vmatprep.subr.mxu0 0.0
        %7988 = vmatpush1.xpose.msra.mxu0 0.0
        %7989 = vmatprep.subr.mxu0 0.0
        %7990 = vmatpush1.xpose.msra.mxu0 0.0
        %7991 = vmatprep.subr.mxu0 0.0
        %7992 = vmatpush1.xpose.msra.mxu0 0.0
        %7993 = vmatprep.subr.mxu0 0.0
        %7994 = vmatpush1.xpose.msra.mxu0 0.0
        %7995 = vmatprep.subr.mxu0 0.0
        %7996 = vmatpush1.xpose.msra.mxu0 0.0
        %7997 = vmatprep.subr.mxu0 0.0
        %7998 = vmatpush1.xpose.msra.mxu0 0.0
        %7999 = vmatprep.subr.mxu0 0.0
        %8000 = vmatpush1.xpose.msra.mxu0 0.0
        %8001 = vmatprep.subr.mxu0 0.0
        %8002 = vmatpush1.xpose.msra.mxu0 0.0
        %8003 = vmatprep.subr.mxu0 0.0
        %8004 = vmatpush1.xpose.msra.mxu0 0.0
        %8005 = vmatprep.subr.mxu0 0.0
        %8006 = vmatpush1.xpose.msra.mxu0 0.0
        %8007 = vmatprep.mubr.f32.mxu0 0.0
        %v8008 = vand.u32 %v6642, 4294901760
        %8009 = vmatmul.mubr.f32.gmra.mrb[0].mxu0 %v8008
        %v8010 = vpop.f32.mrb[0].mxu0
        %v8011 = vadd.f32 %v7939, %v8010
        %v8012 = vpop.f32.mrb[0].mxu0
        %8013 = vdwg.mxu0
        %v8014 = vmul.f32 %v8011, 0.088388346
        %vm8015 = vcmask 27648
        %v8016 = vsel %vm8015, %v8014, -inf
        %8017 = vmax.xlane.f32.xlu0 %v8016
        %v8018 = vpop.xlane.xlu0 %8017
        %v8019 = vsub.f32 %v8014, %v8018
        %v8020 = vmul.f32 %v8019, 1.442695
        %v8021 = vpow.pop %v8020
        %v8022 = vsel %vm8015, %v8021, 0.0
        %8023 = vadd.xlane.f32.xlu0 %v8022
        %v8024 = vpop.xlane.xlu0 %8023
        %v8025 = vrcp.pop %v8024
        %v8026 = vmul.f32 %v8021, %v8025
        %vm8027 = vcmask 31744
        %v8029 = vsel %vm8027, %v8026, 0
        %v8032 = vsel %vm472, %v5710, 0
        %v8035 = vsel %vm472, %v5711, 0
        %v8037 = vand.u32 %v8035, 4294901760
        %8038 = vmatprep.subr.mxu0 %v8037
        %v8039 = vand.u32 %v8032, 4294901760
        %8040 = vmatpush1.msra.mxu0 %v8039
        %8041 = vmatprep.subr.mxu0 0.0
        %8042 = vmatpush1.msra.mxu0 0.0
        %8043 = vmatprep.subr.mxu0 0.0
        %8044 = vmatpush1.msra.mxu0 0.0
        %8045 = vmatprep.subr.mxu0 0.0
        %8046 = vmatpush1.msra.mxu0 0.0
        %8047 = vmatprep.subr.mxu0 0.0
        %8048 = vmatpush1.msra.mxu0 0.0
        %8049 = vmatprep.subr.mxu0 0.0
        %8050 = vmatpush1.msra.mxu0 0.0
        %8051 = vmatprep.subr.mxu0 0.0
        %8052 = vmatpush1.msra.mxu0 0.0
        %8053 = vmatprep.subr.mxu0 0.0
        %8054 = vmatpush1.msra.mxu0 0.0
        %8055 = vmatprep.subr.mxu0 0.0
        %8056 = vmatpush1.msra.mxu0 0.0
        %8057 = vmatprep.subr.mxu0 0.0
        %8058 = vmatpush1.msra.mxu0 0.0
        %8059 = vmatprep.subr.mxu0 0.0
        %8060 = vmatpush1.msra.mxu0 0.0
        %8061 = vmatprep.subr.mxu0 0.0
        %8062 = vmatpush1.msra.mxu0 0.0
        %8063 = vmatprep.subr.mxu0 0.0
        %8064 = vmatpush1.msra.mxu0 0.0
        %8065 = vmatprep.subr.mxu0 0.0
        %8066 = vmatpush1.msra.mxu0 0.0
        %8067 = vmatprep.subr.mxu0 0.0
        %8068 = vmatpush1.msra.mxu0 0.0
        %8069 = vmatprep.subr.mxu0 0.0
        %8070 = vmatpush1.msra.mxu0 0.0
        %8071 = vmatprep.subr.mxu0 0.0
        %8072 = vmatpush1.msra.mxu0 0.0
        %8073 = vmatprep.subr.mxu0 0.0
        %8074 = vmatpush1.msra.mxu0 0.0
        %8075 = vmatprep.subr.mxu0 0.0
        %8076 = vmatpush1.msra.mxu0 0.0
        %8077 = vmatprep.subr.mxu0 0.0
        %8078 = vmatpush1.msra.mxu0 0.0
        %8079 = vmatprep.subr.mxu0 0.0
        %8080 = vmatpush1.msra.mxu0 0.0
        %8081 = vmatprep.subr.mxu0 0.0
        %8082 = vmatpush1.msra.mxu0 0.0
        %8083 = vmatprep.subr.mxu0 0.0
        %8084 = vmatpush1.msra.mxu0 0.0
        %8085 = vmatprep.subr.mxu0 0.0
        %8086 = vmatpush1.msra.mxu0 0.0
        %8087 = vmatprep.subr.mxu0 0.0
        %8088 = vmatpush1.msra.mxu0 0.0
        %8089 = vmatprep.subr.mxu0 0.0
        %8090 = vmatpush1.msra.mxu0 0.0
        %8091 = vmatprep.subr.mxu0 0.0
        %8092 = vmatpush1.msra.mxu0 0.0
        %8093 = vmatprep.subr.mxu0 0.0
        %8094 = vmatpush1.msra.mxu0 0.0
        %8095 = vmatprep.subr.mxu0 0.0
        %8096 = vmatpush1.msra.mxu0 0.0
        %8097 = vmatprep.subr.mxu0 0.0
        %8098 = vmatpush1.msra.mxu0 0.0
        %8099 = vmatprep.subr.mxu0 0.0
        %8100 = vmatpush1.msra.mxu0 0.0
        %8101 = vmatprep.subr.mxu0 0.0
        %8102 = vmatpush1.msra.mxu0 0.0
        %8103 = vmatprep.mubr.f32.mxu0 0.0
        %v8104 = vand.u32 %v8029, 4294901760
        %v8105 = vsub.f32 %v8029, %v8104
        %v8106 = vand.u32 %v8105, 4294901760
        %v8107 = vsub.f32 %v8105, %v8106
        %v8108 = vand.u32 %v8107, 4294901760
        %8109 = vmatmul.mubr.f32.gmra.mrb[0].mxu0 %v8108
        %v8110 = vpop.f32.mrb[0].mxu0
        %v8111 = vadd.f32 0.0, %v8110
        %v8112 = vpop.f32.mrb[0].mxu0
        %v8113 = vadd.f32 0.0, %v8112
        %8114 = vdwg.mxu0
        %v8115 = vand.u32 %v8035, 4294901760
        %v8116 = vsub.f32 %v8035, %v8115
        %v8117 = vand.u32 %v8116, 4294901760
        %v8118 = vsub.f32 %v8116, %v8117
        %v8119 = vand.u32 %v8118, 4294901760
        %8120 = vmatprep.subr.mxu0 %v8119
        %v8121 = vand.u32 %v8032, 4294901760
        %v8122 = vsub.f32 %v8032, %v8121
        %v8123 = vand.u32 %v8122, 4294901760
        %v8124 = vsub.f32 %v8122, %v8123
        %v8125 = vand.u32 %v8124, 4294901760
        %8126 = vmatpush1.msra.mxu0 %v8125
        %8127 = vmatprep.subr.mxu0 0.0
        %8128 = vmatpush1.msra.mxu0 0.0
        %8129 = vmatprep.subr.mxu0 0.0
        %8130 = vmatpush1.msra.mxu0 0.0
        %8131 = vmatprep.subr.mxu0 0.0
        %8132 = vmatpush1.msra.mxu0 0.0
        %8133 = vmatprep.subr.mxu0 0.0
        %8134 = vmatpush1.msra.mxu0 0.0
        %8135 = vmatprep.subr.mxu0 0.0
        %8136 = vmatpush1.msra.mxu0 0.0
        %8137 = vmatprep.subr.mxu0 0.0
        %8138 = vmatpush1.msra.mxu0 0.0
        %8139 = vmatprep.subr.mxu0 0.0
        %8140 = vmatpush1.msra.mxu0 0.0
        %8141 = vmatprep.subr.mxu0 0.0
        %8142 = vmatpush1.msra.mxu0 0.0
        %8143 = vmatprep.subr.mxu0 0.0
        %8144 = vmatpush1.msra.mxu0 0.0
        %8145 = vmatprep.subr.mxu0 0.0
        %8146 = vmatpush1.msra.mxu0 0.0
        %8147 = vmatprep.subr.mxu0 0.0
        %8148 = vmatpush1.msra.mxu0 0.0
        %8149 = vmatprep.subr.mxu0 0.0
        %8150 = vmatpush1.msra.mxu0 0.0
        %8151 = vmatprep.subr.mxu0 0.0
        %8152 = vmatpush1.msra.mxu0 0.0
        %8153 = vmatprep.subr.mxu0 0.0
        %8154 = vmatpush1.msra.mxu0 0.0
        %8155 = vmatprep.subr.mxu0 0.0
        %8156 = vmatpush1.msra.mxu0 0.0
        %8157 = vmatprep.subr.mxu0 0.0
        %8158 = vmatpush1.msra.mxu0 0.0
        %8159 = vmatprep.subr.mxu0 0.0
        %8160 = vmatpush1.msra.mxu0 0.0
        %8161 = vmatprep.subr.mxu0 0.0
        %8162 = vmatpush1.msra.mxu0 0.0
        %8163 = vmatprep.subr.mxu0 0.0
        %8164 = vmatpush1.msra.mxu0 0.0
        %8165 = vmatprep.subr.mxu0 0.0
        %8166 = vmatpush1.msra.mxu0 0.0
        %8167 = vmatprep.subr.mxu0 0.0
        %8168 = vmatpush1.msra.mxu0 0.0
        %8169 = vmatprep.subr.mxu0 0.0
        %8170 = vmatpush1.msra.mxu0 0.0
        %8171 = vmatprep.subr.mxu0 0.0
        %8172 = vmatpush1.msra.mxu0 0.0
        %8173 = vmatprep.subr.mxu0 0.0
        %8174 = vmatpush1.msra.mxu0 0.0
        %8175 = vmatprep.subr.mxu0 0.0
        %8176 = vmatpush1.msra.mxu0 0.0
        %8177 = vmatprep.subr.mxu0 0.0
        %8178 = vmatpush1.msra.mxu0 0.0
        %8179 = vmatprep.subr.mxu0 0.0
        %8180 = vmatpush1.msra.mxu0 0.0
        %8181 = vmatprep.subr.mxu0 0.0
        %8182 = vmatpush1.msra.mxu0 0.0
        %8183 = vmatprep.subr.mxu0 0.0
        %8184 = vmatpush1.msra.mxu0 0.0
        %8185 = vmatprep.subr.mxu0 0.0
        %8186 = vmatpush1.msra.mxu0 0.0
        %8187 = vmatprep.subr.mxu0 0.0
        %8188 = vmatpush1.msra.mxu0 0.0
        %8189 = vmatprep.mubr.f32.mxu0 0.0
        %v8190 = vand.u32 %v8029, 4294901760
        %8191 = vmatmul.mubr.f32.gmra.mrb[0].mxu0 %v8190
        %v8192 = vpop.f32.mrb[0].mxu0
        %v8193 = vadd.f32 %v8111, %v8192
        %v8194 = vpop.f32.mrb[0].mxu0
        %v8195 = vadd.f32 %v8113, %v8194
        %8196 = vdwg.mxu0
        %v8197 = vand.u32 %v8035, 4294901760
        %v8198 = vsub.f32 %v8035, %v8197
        %8199 = vmatprep.subr.mxu0 %v8198
        %v8200 = vand.u32 %v8032, 4294901760
        %v8201 = vsub.f32 %v8032, %v8200
        %8202 = vmatpush1.msra.mxu0 %v8201
        %8203 = vmatprep.subr.mxu0 0.0
        %8204 = vmatpush1.msra.mxu0 0.0
        %8205 = vmatprep.subr.mxu0 0.0
        %8206 = vmatpush1.msra.mxu0 0.0
        %8207 = vmatprep.subr.mxu0 0.0
        %8208 = vmatpush1.msra.mxu0 0.0
        %8209 = vmatprep.subr.mxu0 0.0
        %8210 = vmatpush1.msra.mxu0 0.0
        %8211 = vmatprep.subr.mxu0 0.0
        %8212 = vmatpush1.msra.mxu0 0.0
        %8213 = vmatprep.subr.mxu0 0.0
        %8214 = vmatpush1.msra.mxu0 0.0
        %8215 = vmatprep.subr.mxu0 0.0
        %8216 = vmatpush1.msra.mxu0 0.0
        %8217 = vmatprep.subr.mxu0 0.0
        %8218 = vmatpush1.msra.mxu0 0.0
        %8219 = vmatprep.subr.mxu0 0.0
        %8220 = vmatpush1.msra.mxu0 0.0
        %8221 = vmatprep.subr.mxu0 0.0
        %8222 = vmatpush1.msra.mxu0 0.0
        %8223 = vmatprep.subr.mxu0 0.0
        %8224 = vmatpush1.msra.mxu0 0.0
        %8225 = vmatprep.subr.mxu0 0.0
        %8226 = vmatpush1.msra.mxu0 0.0
        %8227 = vmatprep.subr.mxu0 0.0
        %8228 = vmatpush1.msra.mxu0 0.0
        %8229 = vmatprep.subr.mxu0 0.0
        %8230 = vmatpush1.msra.mxu0 0.0
        %8231 = vmatprep.subr.mxu0 0.0
        %8232 = vmatpush1.msra.mxu0 0.0
        %8233 = vmatprep.subr.mxu0 0.0
        %8234 = vmatpush1.msra.mxu0 0.0
        %8235 = vmatprep.subr.mxu0 0.0
        %8236 = vmatpush1.msra.mxu0 0.0
        %8237 = vmatprep.subr.mxu0 0.0
        %8238 = vmatpush1.msra.mxu0 0.0
        %8239 = vmatprep.subr.mxu0 0.0
        %8240 = vmatpush1.msra.mxu0 0.0
        %8241 = vmatprep.subr.mxu0 0.0
        %8242 = vmatpush1.msra.mxu0 0.0
        %8243 = vmatprep.subr.mxu0 0.0
        %8244 = vmatpush1.msra.mxu0 0.0
        %8245 = vmatprep.subr.mxu0 0.0
        %8246 = vmatpush1.msra.mxu0 0.0
        %8247 = vmatprep.subr.mxu0 0.0
        %8248 = vmatpush1.msra.mxu0 0.0
        %8249 = vmatprep.subr.mxu0 0.0
        %8250 = vmatpush1.msra.mxu0 0.0
        %8251 = vmatprep.subr.mxu0 0.0
        %8252 = vmatpush1.msra.mxu0 0.0
        %8253 = vmatprep.subr.mxu0 0.0
        %8254 = vmatpush1.msra.mxu0 0.0
        %8255 = vmatprep.subr.mxu0 0.0
        %8256 = vmatpush1.msra.mxu0 0.0
        %8257 = vmatprep.subr.mxu0 0.0
        %8258 = vmatpush1.msra.mxu0 0.0
        %8259 = vmatprep.subr.mxu0 0.0
        %8260 = vmatpush1.msra.mxu0 0.0
        %8261 = vmatprep.subr.mxu0 0.0
        %8262 = vmatpush1.msra.mxu0 0.0
        %8263 = vmatprep.subr.mxu0 0.0
        %8264 = vmatpush1.msra.mxu0 0.0
        %8265 = vmatprep.mubr.f32.mxu0 0.0
        %v8266 = vand.u32 %v8029, 4294901760
        %v8267 = vsub.f32 %v8029, %v8266
        %8268 = vmatmul.mubr.f32.gmra.mrb[0].mxu0 %v8267
        %v8269 = vpop.f32.mrb[0].mxu0
        %v8270 = vadd.f32 %v8193, %v8269
        %v8271 = vpop.f32.mrb[0].mxu0
        %v8272 = vadd.f32 %v8195, %v8271
        %8273 = vdwg.mxu0
        %v8274 = vand.u32 %v8035, 4294901760
        %8275 = vmatprep.subr.mxu0 %v8274
        %v8276 = vand.u32 %v8032, 4294901760
        %8277 = vmatpush1.msra.mxu0 %v8276
        %8278 = vmatprep.subr.mxu0 0.0
        %8279 = vmatpush1.msra.mxu0 0.0
        %8280 = vmatprep.subr.mxu0 0.0
        %8281 = vmatpush1.msra.mxu0 0.0
        %8282 = vmatprep.subr.mxu0 0.0
        %8283 = vmatpush1.msra.mxu0 0.0
        %8284 = vmatprep.subr.mxu0 0.0
        %8285 = vmatpush1.msra.mxu0 0.0
        %8286 = vmatprep.subr.mxu0 0.0
        %8287 = vmatpush1.msra.mxu0 0.0
        %8288 = vmatprep.subr.mxu0 0.0
        %8289 = vmatpush1.msra.mxu0 0.0
        %8290 = vmatprep.subr.mxu0 0.0
        %8291 = vmatpush1.msra.mxu0 0.0
        %8292 = vmatprep.subr.mxu0 0.0
        %8293 = vmatpush1.msra.mxu0 0.0
        %8294 = vmatprep.subr.mxu0 0.0
        %8295 = vmatpush1.msra.mxu0 0.0
        %8296 = vmatprep.subr.mxu0 0.0
        %8297 = vmatpush1.msra.mxu0 0.0
        %8298 = vmatprep.subr.mxu0 0.0
        %8299 = vmatpush1.msra.mxu0 0.0
        %8300 = vmatprep.subr.mxu0 0.0
        %8301 = vmatpush1.msra.mxu0 0.0
        %8302 = vmatprep.subr.mxu0 0.0
        %8303 = vmatpush1.msra.mxu0 0.0
        %8304 = vmatprep.subr.mxu0 0.0
        %8305 = vmatpush1.msra.mxu0 0.0
        %8306 = vmatprep.subr.mxu0 0.0
        %8307 = vmatpush1.msra.mxu0 0.0
        %8308 = vmatprep.subr.mxu0 0.0
        %8309 = vmatpush1.msra.mxu0 0.0
        %8310 = vmatprep.subr.mxu0 0.0
        %8311 = vmatpush1.msra.mxu0 0.0
        %8312 = vmatprep.subr.mxu0 0.0
        %8313 = vmatpush1.msra.mxu0 0.0
        %8314 = vmatprep.subr.mxu0 0.0
        %8315 = vmatpush1.msra.mxu0 0.0
        %8316 = vmatprep.subr.mxu0 0.0
        %8317 = vmatpush1.msra.mxu0 0.0
        %8318 = vmatprep.subr.mxu0 0.0
        %8319 = vmatpush1.msra.mxu0 0.0
        %8320 = vmatprep.subr.mxu0 0.0
        %8321 = vmatpush1.msra.mxu0 0.0
        %8322 = vmatprep.subr.mxu0 0.0
        %8323 = vmatpush1.msra.mxu0 0.0
        %8324 = vmatprep.subr.mxu0 0.0
        %8325 = vmatpush1.msra.mxu0 0.0
        %8326 = vmatprep.subr.mxu0 0.0
        %8327 = vmatpush1.msra.mxu0 0.0
        %8328 = vmatprep.subr.mxu0 0.0
        %8329 = vmatpush1.msra.mxu0 0.0
        %8330 = vmatprep.subr.mxu0 0.0
        %8331 = vmatpush1.msra.mxu0 0.0
        %8332 = vmatprep.subr.mxu0 0.0
        %8333 = vmatpush1.msra.mxu0 0.0
        %8334 = vmatprep.subr.mxu0 0.0
        %8335 = vmatpush1.msra.mxu0 0.0
        %8336 = vmatprep.subr.mxu0 0.0
        %8337 = vmatpush1.msra.mxu0 0.0
        %8338 = vmatprep.subr.mxu0 0.0
        %8339 = vmatpush1.msra.mxu0 0.0
        %8340 = vmatprep.mubr.f32.mxu0 0.0
        %v8341 = vand.u32 %v8029, 4294901760
        %v8342 = vsub.f32 %v8029, %v8341
        %v8343 = vand.u32 %v8342, 4294901760
        %8344 = vmatmul.mubr.f32.gmra.mrb[0].mxu0 %v8343
        %v8345 = vpop.f32.mrb[0].mxu0
        %v8346 = vadd.f32 %v8270, %v8345
        %v8347 = vpop.f32.mrb[0].mxu0
        %v8348 = vadd.f32 %v8272, %v8347
        %8349 = vdwg.mxu0
        %v8350 = vand.u32 %v8035, 4294901760
        %v8351 = vsub.f32 %v8035, %v8350
        %v8352 = vand.u32 %v8351, 4294901760
        %8353 = vmatprep.subr.mxu0 %v8352
        %v8354 = vand.u32 %v8032, 4294901760
        %v8355 = vsub.f32 %v8032, %v8354
        %v8356 = vand.u32 %v8355, 4294901760
        %8357 = vmatpush1.msra.mxu0 %v8356
        %8358 = vmatprep.subr.mxu0 0.0
        %8359 = vmatpush1.msra.mxu0 0.0
        %8360 = vmatprep.subr.mxu0 0.0
        %8361 = vmatpush1.msra.mxu0 0.0
        %8362 = vmatprep.subr.mxu0 0.0
        %8363 = vmatpush1.msra.mxu0 0.0
        %8364 = vmatprep.subr.mxu0 0.0
        %8365 = vmatpush1.msra.mxu0 0.0
        %8366 = vmatprep.subr.mxu0 0.0
        %8367 = vmatpush1.msra.mxu0 0.0
        %8368 = vmatprep.subr.mxu0 0.0
        %8369 = vmatpush1.msra.mxu0 0.0
        %8370 = vmatprep.subr.mxu0 0.0
        %8371 = vmatpush1.msra.mxu0 0.0
        %8372 = vmatprep.subr.mxu0 0.0
        %8373 = vmatpush1.msra.mxu0 0.0
        %8374 = vmatprep.subr.mxu0 0.0
        %8375 = vmatpush1.msra.mxu0 0.0
        %8376 = vmatprep.subr.mxu0 0.0
        %8377 = vmatpush1.msra.mxu0 0.0
        %8378 = vmatprep.subr.mxu0 0.0
        %8379 = vmatpush1.msra.mxu0 0.0
        %8380 = vmatprep.subr.mxu0 0.0
        %8381 = vmatpush1.msra.mxu0 0.0
        %8382 = vmatprep.subr.mxu0 0.0
        %8383 = vmatpush1.msra.mxu0 0.0
        %8384 = vmatprep.subr.mxu0 0.0
        %8385 = vmatpush1.msra.mxu0 0.0
        %8386 = vmatprep.subr.mxu0 0.0
        %8387 = vmatpush1.msra.mxu0 0.0
        %8388 = vmatprep.subr.mxu0 0.0
        %8389 = vmatpush1.msra.mxu0 0.0
        %8390 = vmatprep.subr.mxu0 0.0
        %8391 = vmatpush1.msra.mxu0 0.0
        %8392 = vmatprep.subr.mxu0 0.0
        %8393 = vmatpush1.msra.mxu0 0.0
        %8394 = vmatprep.subr.mxu0 0.0
        %8395 = vmatpush1.msra.mxu0 0.0
        %8396 = vmatprep.subr.mxu0 0.0
        %8397 = vmatpush1.msra.mxu0 0.0
        %8398 = vmatprep.subr.mxu0 0.0
        %8399 = vmatpush1.msra.mxu0 0.0
        %8400 = vmatprep.subr.mxu0 0.0
        %8401 = vmatpush1.msra.mxu0 0.0
        %8402 = vmatprep.subr.mxu0 0.0
        %8403 = vmatpush1.msra.mxu0 0.0
        %8404 = vmatprep.subr.mxu0 0.0
        %8405 = vmatpush1.msra.mxu0 0.0
        %8406 = vmatprep.subr.mxu0 0.0
        %8407 = vmatpush1.msra.mxu0 0.0
        %8408 = vmatprep.subr.mxu0 0.0
        %8409 = vmatpush1.msra.mxu0 0.0
        %8410 = vmatprep.subr.mxu0 0.0
        %8411 = vmatpush1.msra.mxu0 0.0
        %8412 = vmatprep.subr.mxu0 0.0
        %8413 = vmatpush1.msra.mxu0 0.0
        %8414 = vmatprep.subr.mxu0 0.0
        %8415 = vmatpush1.msra.mxu0 0.0
        %8416 = vmatprep.subr.mxu0 0.0
        %8417 = vmatpush1.msra.mxu0 0.0
        %8418 = vmatprep.subr.mxu0 0.0
        %8419 = vmatpush1.msra.mxu0 0.0
        %8420 = vmatprep.mubr.f32.mxu0 0.0
        %v8421 = vand.u32 %v8029, 4294901760
        %8422 = vmatmul.mubr.f32.gmra.mrb[0].mxu0 %v8421
        %v8423 = vpop.f32.mrb[0].mxu0
        %v8424 = vadd.f32 %v8346, %v8423
        %v8425 = vpop.f32.mrb[0].mxu0
        %v8426 = vadd.f32 %v8348, %v8425
        %8427 = vdwg.mxu0
        %v8428 = vand.u32 %v8035, 4294901760
        %8429 = vmatprep.subr.mxu0 %v8428
        %v8430 = vand.u32 %v8032, 4294901760
        %8431 = vmatpush1.msra.mxu0 %v8430
        %8432 = vmatprep.subr.mxu0 0.0
        %8433 = vmatpush1.msra.mxu0 0.0
        %8434 = vmatprep.subr.mxu0 0.0
        %8435 = vmatpush1.msra.mxu0 0.0
        %8436 = vmatprep.subr.mxu0 0.0
        %8437 = vmatpush1.msra.mxu0 0.0
        %8438 = vmatprep.subr.mxu0 0.0
        %8439 = vmatpush1.msra.mxu0 0.0
        %8440 = vmatprep.subr.mxu0 0.0
        %8441 = vmatpush1.msra.mxu0 0.0
        %8442 = vmatprep.subr.mxu0 0.0
        %8443 = vmatpush1.msra.mxu0 0.0
        %8444 = vmatprep.subr.mxu0 0.0
        %8445 = vmatpush1.msra.mxu0 0.0
        %8446 = vmatprep.subr.mxu0 0.0
        %8447 = vmatpush1.msra.mxu0 0.0
        %8448 = vmatprep.subr.mxu0 0.0
        %8449 = vmatpush1.msra.mxu0 0.0
        %8450 = vmatprep.subr.mxu0 0.0
        %8451 = vmatpush1.msra.mxu0 0.0
        %8452 = vmatprep.subr.mxu0 0.0
        %8453 = vmatpush1.msra.mxu0 0.0
        %8454 = vmatprep.subr.mxu0 0.0
        %8455 = vmatpush1.msra.mxu0 0.0
        %8456 = vmatprep.subr.mxu0 0.0
        %8457 = vmatpush1.msra.mxu0 0.0
        %8458 = vmatprep.subr.mxu0 0.0
        %8459 = vmatpush1.msra.mxu0 0.0
        %8460 = vmatprep.subr.mxu0 0.0
        %8461 = vmatpush1.msra.mxu0 0.0
        %8462 = vmatprep.subr.mxu0 0.0
        %8463 = vmatpush1.msra.mxu0 0.0
        %8464 = vmatprep.subr.mxu0 0.0
        %8465 = vmatpush1.msra.mxu0 0.0
        %8466 = vmatprep.subr.mxu0 0.0
        %8467 = vmatpush1.msra.mxu0 0.0
        %8468 = vmatprep.subr.mxu0 0.0
        %8469 = vmatpush1.msra.mxu0 0.0
        %8470 = vmatprep.subr.mxu0 0.0
        %8471 = vmatpush1.msra.mxu0 0.0
        %8472 = vmatprep.subr.mxu0 0.0
        %8473 = vmatpush1.msra.mxu0 0.0
        %8474 = vmatprep.subr.mxu0 0.0
        %8475 = vmatpush1.msra.mxu0 0.0
        %8476 = vmatprep.subr.mxu0 0.0
        %8477 = vmatpush1.msra.mxu0 0.0
        %8478 = vmatprep.subr.mxu0 0.0
        %8479 = vmatpush1.msra.mxu0 0.0
        %8480 = vmatprep.subr.mxu0 0.0
        %8481 = vmatpush1.msra.mxu0 0.0
        %8482 = vmatprep.subr.mxu0 0.0
        %8483 = vmatpush1.msra.mxu0 0.0
        %8484 = vmatprep.subr.mxu0 0.0
        %8485 = vmatpush1.msra.mxu0 0.0
        %8486 = vmatprep.subr.mxu0 0.0
        %8487 = vmatpush1.msra.mxu0 0.0
        %8488 = vmatprep.subr.mxu0 0.0
        %8489 = vmatpush1.msra.mxu0 0.0
        %8490 = vmatprep.subr.mxu0 0.0
        %8491 = vmatpush1.msra.mxu0 0.0
        %8492 = vmatprep.subr.mxu0 0.0
        %8493 = vmatpush1.msra.mxu0 0.0
        %8494 = vmatprep.mubr.f32.mxu0 0.0
        %v8495 = vand.u32 %v8029, 4294901760
        %8496 = vmatmul.mubr.f32.gmra.mrb[0].mxu0 %v8495
        %v8497 = vpop.f32.mrb[0].mxu0
        %v8498 = vadd.f32 %v8424, %v8497
        %v8499 = vpop.f32.mrb[0].mxu0
        %v8500 = vadd.f32 %v8426, %v8499
        %8501 = vdwg.mxu0
        %v8502 = vrot.slane %v5710, 4
        %v8503 = vrot.slane %v5711, 4
        %v8504 = vsel %vm472, %v8502, 0
        %v8506 = vsel %vm472, %v8503, 0
        %v8508 = vand.u32 %v8506, 4294901760
        %8509 = vmatprep.subr.mxu0 %v8508
        %v8510 = vand.u32 %v8504, 4294901760
        %8511 = vmatpush1.msra.mxu0 %v8510
        %8512 = vmatprep.subr.mxu0 0.0
        %8513 = vmatpush1.msra.mxu0 0.0
        %8514 = vmatprep.subr.mxu0 0.0
        %8515 = vmatpush1.msra.mxu0 0.0
        %8516 = vmatprep.subr.mxu0 0.0
        %8517 = vmatpush1.msra.mxu0 0.0
        %8518 = vmatprep.subr.mxu0 0.0
        %8519 = vmatpush1.msra.mxu0 0.0
        %8520 = vmatprep.subr.mxu0 0.0
        %8521 = vmatpush1.msra.mxu0 0.0
        %8522 = vmatprep.subr.mxu0 0.0
        %8523 = vmatpush1.msra.mxu0 0.0
        %8524 = vmatprep.subr.mxu0 0.0
        %8525 = vmatpush1.msra.mxu0 0.0
        %8526 = vmatprep.subr.mxu0 0.0
        %8527 = vmatpush1.msra.mxu0 0.0
        %8528 = vmatprep.subr.mxu0 0.0
        %8529 = vmatpush1.msra.mxu0 0.0
        %8530 = vmatprep.subr.mxu0 0.0
        %8531 = vmatpush1.msra.mxu0 0.0
        %8532 = vmatprep.subr.mxu0 0.0
        %8533 = vmatpush1.msra.mxu0 0.0
        %8534 = vmatprep.subr.mxu0 0.0
        %8535 = vmatpush1.msra.mxu0 0.0
        %8536 = vmatprep.subr.mxu0 0.0
        %8537 = vmatpush1.msra.mxu0 0.0
        %8538 = vmatprep.subr.mxu0 0.0
        %8539 = vmatpush1.msra.mxu0 0.0
        %8540 = vmatprep.subr.mxu0 0.0
        %8541 = vmatpush1.msra.mxu0 0.0
        %8542 = vmatprep.subr.mxu0 0.0
        %8543 = vmatpush1.msra.mxu0 0.0
        %8544 = vmatprep.subr.mxu0 0.0
        %8545 = vmatpush1.msra.mxu0 0.0
        %8546 = vmatprep.subr.mxu0 0.0
        %8547 = vmatpush1.msra.mxu0 0.0
        %8548 = vmatprep.subr.mxu0 0.0
        %8549 = vmatpush1.msra.mxu0 0.0
        %8550 = vmatprep.subr.mxu0 0.0
        %8551 = vmatpush1.msra.mxu0 0.0
        %8552 = vmatprep.subr.mxu0 0.0
        %8553 = vmatpush1.msra.mxu0 0.0
        %8554 = vmatprep.subr.mxu0 0.0
        %8555 = vmatpush1.msra.mxu0 0.0
        %8556 = vmatprep.subr.mxu0 0.0
        %8557 = vmatpush1.msra.mxu0 0.0
        %8558 = vmatprep.subr.mxu0 0.0
        %8559 = vmatpush1.msra.mxu0 0.0
        %8560 = vmatprep.subr.mxu0 0.0
        %8561 = vmatpush1.msra.mxu0 0.0
        %8562 = vmatprep.subr.mxu0 0.0
        %8563 = vmatpush1.msra.mxu0 0.0
        %8564 = vmatprep.subr.mxu0 0.0
        %8565 = vmatpush1.msra.mxu0 0.0
        %8566 = vmatprep.subr.mxu0 0.0
        %8567 = vmatpush1.msra.mxu0 0.0
        %8568 = vmatprep.subr.mxu0 0.0
        %8569 = vmatpush1.msra.mxu0 0.0
        %8570 = vmatprep.subr.mxu0 0.0
        %8571 = vmatpush1.msra.mxu0 0.0
        %8572 = vmatprep.subr.mxu0 0.0
        %8573 = vmatpush1.msra.mxu0 0.0
        %8574 = vmatprep.mubr.f32.mxu0 0.0
        %v8575 = vand.u32 %v8029, 4294901760
        %v8576 = vsub.f32 %v8029, %v8575
        %v8577 = vand.u32 %v8576, 4294901760
        %v8578 = vsub.f32 %v8576, %v8577
        %v8579 = vand.u32 %v8578, 4294901760
        %8580 = vmatmul.mubr.f32.gmra.mrb[0].mxu0 %v8579
        %v8581 = vpop.f32.mrb[0].mxu0
        %v8582 = vadd.f32 0.0, %v8581
        %v8583 = vpop.f32.mrb[0].mxu0
        %v8584 = vadd.f32 0.0, %v8583
        %8585 = vdwg.mxu0
        %v8586 = vand.u32 %v8506, 4294901760
        %v8587 = vsub.f32 %v8506, %v8586
        %v8588 = vand.u32 %v8587, 4294901760
        %v8589 = vsub.f32 %v8587, %v8588
        %v8590 = vand.u32 %v8589, 4294901760
        %8591 = vmatprep.subr.mxu0 %v8590
        %v8592 = vand.u32 %v8504, 4294901760
        %v8593 = vsub.f32 %v8504, %v8592
        %v8594 = vand.u32 %v8593, 4294901760
        %v8595 = vsub.f32 %v8593, %v8594
        %v8596 = vand.u32 %v8595, 4294901760
        %8597 = vmatpush1.msra.mxu0 %v8596
        %8598 = vmatprep.subr.mxu0 0.0
        %8599 = vmatpush1.msra.mxu0 0.0
        %8600 = vmatprep.subr.mxu0 0.0
        %8601 = vmatpush1.msra.mxu0 0.0
        %8602 = vmatprep.subr.mxu0 0.0
        %8603 = vmatpush1.msra.mxu0 0.0
        %8604 = vmatprep.subr.mxu0 0.0
        %8605 = vmatpush1.msra.mxu0 0.0
        %8606 = vmatprep.subr.mxu0 0.0
        %8607 = vmatpush1.msra.mxu0 0.0
        %8608 = vmatprep.subr.mxu0 0.0
        %8609 = vmatpush1.msra.mxu0 0.0
        %8610 = vmatprep.subr.mxu0 0.0
        %8611 = vmatpush1.msra.mxu0 0.0
        %8612 = vmatprep.subr.mxu0 0.0
        %8613 = vmatpush1.msra.mxu0 0.0
        %8614 = vmatprep.subr.mxu0 0.0
        %8615 = vmatpush1.msra.mxu0 0.0
        %8616 = vmatprep.subr.mxu0 0.0
        %8617 = vmatpush1.msra.mxu0 0.0
        %8618 = vmatprep.subr.mxu0 0.0
        %8619 = vmatpush1.msra.mxu0 0.0
        %8620 = vmatprep.subr.mxu0 0.0
        %8621 = vmatpush1.msra.mxu0 0.0
        %8622 = vmatprep.subr.mxu0 0.0
        %8623 = vmatpush1.msra.mxu0 0.0
        %8624 = vmatprep.subr.mxu0 0.0
        %8625 = vmatpush1.msra.mxu0 0.0
        %8626 = vmatprep.subr.mxu0 0.0
        %8627 = vmatpush1.msra.mxu0 0.0
        %8628 = vmatprep.subr.mxu0 0.0
        %8629 = vmatpush1.msra.mxu0 0.0
        %8630 = vmatprep.subr.mxu0 0.0
        %8631 = vmatpush1.msra.mxu0 0.0
        %8632 = vmatprep.subr.mxu0 0.0
        %8633 = vmatpush1.msra.mxu0 0.0
        %8634 = vmatprep.subr.mxu0 0.0
        %8635 = vmatpush1.msra.mxu0 0.0
        %8636 = vmatprep.subr.mxu0 0.0
        %8637 = vmatpush1.msra.mxu0 0.0
        %8638 = vmatprep.subr.mxu0 0.0
        %8639 = vmatpush1.msra.mxu0 0.0
        %8640 = vmatprep.subr.mxu0 0.0
        %8641 = vmatpush1.msra.mxu0 0.0
        %8642 = vmatprep.subr.mxu0 0.0
        %8643 = vmatpush1.msra.mxu0 0.0
        %8644 = vmatprep.subr.mxu0 0.0
        %8645 = vmatpush1.msra.mxu0 0.0
        %8646 = vmatprep.subr.mxu0 0.0
        %8647 = vmatpush1.msra.mxu0 0.0
        %8648 = vmatprep.subr.mxu0 0.0
        %8649 = vmatpush1.msra.mxu0 0.0
        %8650 = vmatprep.subr.mxu0 0.0
        %8651 = vmatpush1.msra.mxu0 0.0
        %8652 = vmatprep.subr.mxu0 0.0
        %8653 = vmatpush1.msra.mxu0 0.0
        %8654 = vmatprep.subr.mxu0 0.0
        %8655 = vmatpush1.msra.mxu0 0.0
        %8656 = vmatprep.subr.mxu0 0.0
        %8657 = vmatpush1.msra.mxu0 0.0
        %8658 = vmatprep.subr.mxu0 0.0
        %8659 = vmatpush1.msra.mxu0 0.0
        %8660 = vmatprep.mubr.f32.mxu0 0.0
        %v8661 = vand.u32 %v8029, 4294901760
        %8662 = vmatmul.mubr.f32.gmra.mrb[0].mxu0 %v8661
        %v8663 = vpop.f32.mrb[0].mxu0
        %v8664 = vadd.f32 %v8582, %v8663
        %v8665 = vpop.f32.mrb[0].mxu0
        %v8666 = vadd.f32 %v8584, %v8665
        %8667 = vdwg.mxu0
        %v8668 = vand.u32 %v8506, 4294901760
        %v8669 = vsub.f32 %v8506, %v8668
        %8670 = vmatprep.subr.mxu0 %v8669
        %v8671 = vand.u32 %v8504, 4294901760
        %v8672 = vsub.f32 %v8504, %v8671
        %8673 = vmatpush1.msra.mxu0 %v8672
        %8674 = vmatprep.subr.mxu0 0.0
        %8675 = vmatpush1.msra.mxu0 0.0
        %8676 = vmatprep.subr.mxu0 0.0
        %8677 = vmatpush1.msra.mxu0 0.0
        %8678 = vmatprep.subr.mxu0 0.0
        %8679 = vmatpush1.msra.mxu0 0.0
        %8680 = vmatprep.subr.mxu0 0.0
        %8681 = vmatpush1.msra.mxu0 0.0
        %8682 = vmatprep.subr.mxu0 0.0
        %8683 = vmatpush1.msra.mxu0 0.0
        %8684 = vmatprep.subr.mxu0 0.0
        %8685 = vmatpush1.msra.mxu0 0.0
        %8686 = vmatprep.subr.mxu0 0.0
        %8687 = vmatpush1.msra.mxu0 0.0
        %8688 = vmatprep.subr.mxu0 0.0
        %8689 = vmatpush1.msra.mxu0 0.0
        %8690 = vmatprep.subr.mxu0 0.0
        %8691 = vmatpush1.msra.mxu0 0.0
        %8692 = vmatprep.subr.mxu0 0.0
        %8693 = vmatpush1.msra.mxu0 0.0
        %8694 = vmatprep.subr.mxu0 0.0
        %8695 = vmatpush1.msra.mxu0 0.0
        %8696 = vmatprep.subr.mxu0 0.0
        %8697 = vmatpush1.msra.mxu0 0.0
        %8698 = vmatprep.subr.mxu0 0.0
        %8699 = vmatpush1.msra.mxu0 0.0
        %8700 = vmatprep.subr.mxu0 0.0
        %8701 = vmatpush1.msra.mxu0 0.0
        %8702 = vmatprep.subr.mxu0 0.0
        %8703 = vmatpush1.msra.mxu0 0.0
        %8704 = vmatprep.subr.mxu0 0.0
        %8705 = vmatpush1.msra.mxu0 0.0
        %8706 = vmatprep.subr.mxu0 0.0
        %8707 = vmatpush1.msra.mxu0 0.0
        %8708 = vmatprep.subr.mxu0 0.0
        %8709 = vmatpush1.msra.mxu0 0.0
        %8710 = vmatprep.subr.mxu0 0.0
        %8711 = vmatpush1.msra.mxu0 0.0
        %8712 = vmatprep.subr.mxu0 0.0
        %8713 = vmatpush1.msra.mxu0 0.0
        %8714 = vmatprep.subr.mxu0 0.0
        %8715 = vmatpush1.msra.mxu0 0.0
        %8716 = vmatprep.subr.mxu0 0.0
        %8717 = vmatpush1.msra.mxu0 0.0
        %8718 = vmatprep.subr.mxu0 0.0
        %8719 = vmatpush1.msra.mxu0 0.0
        %8720 = vmatprep.subr.mxu0 0.0
        %8721 = vmatpush1.msra.mxu0 0.0
        %8722 = vmatprep.subr.mxu0 0.0
        %8723 = vmatpush1.msra.mxu0 0.0
        %8724 = vmatprep.subr.mxu0 0.0
        %8725 = vmatpush1.msra.mxu0 0.0
        %8726 = vmatprep.subr.mxu0 0.0
        %8727 = vmatpush1.msra.mxu0 0.0
        %8728 = vmatprep.subr.mxu0 0.0
        %8729 = vmatpush1.msra.mxu0 0.0
        %8730 = vmatprep.subr.mxu0 0.0
        %8731 = vmatpush1.msra.mxu0 0.0
        %8732 = vmatprep.subr.mxu0 0.0
        %8733 = vmatpush1.msra.mxu0 0.0
        %8734 = vmatprep.subr.mxu0 0.0
        %8735 = vmatpush1.msra.mxu0 0.0
        %8736 = vmatprep.mubr.f32.mxu0 0.0
        %v8737 = vand.u32 %v8029, 4294901760
        %v8738 = vsub.f32 %v8029, %v8737
        %8739 = vmatmul.mubr.f32.gmra.mrb[0].mxu0 %v8738
        %v8740 = vpop.f32.mrb[0].mxu0
        %v8741 = vadd.f32 %v8664, %v8740
        %v8742 = vpop.f32.mrb[0].mxu0
        %v8743 = vadd.f32 %v8666, %v8742
        %8744 = vdwg.mxu0
        %v8745 = vand.u32 %v8506, 4294901760
        %8746 = vmatprep.subr.mxu0 %v8745
        %v8747 = vand.u32 %v8504, 4294901760
        %8748 = vmatpush1.msra.mxu0 %v8747
        %8749 = vmatprep.subr.mxu0 0.0
        %8750 = vmatpush1.msra.mxu0 0.0
        %8751 = vmatprep.subr.mxu0 0.0
        %8752 = vmatpush1.msra.mxu0 0.0
        %8753 = vmatprep.subr.mxu0 0.0
        %8754 = vmatpush1.msra.mxu0 0.0
        %8755 = vmatprep.subr.mxu0 0.0
        %8756 = vmatpush1.msra.mxu0 0.0
        %8757 = vmatprep.subr.mxu0 0.0
        %8758 = vmatpush1.msra.mxu0 0.0
        %8759 = vmatprep.subr.mxu0 0.0
        %8760 = vmatpush1.msra.mxu0 0.0
        %8761 = vmatprep.subr.mxu0 0.0
        %8762 = vmatpush1.msra.mxu0 0.0
        %8763 = vmatprep.subr.mxu0 0.0
        %8764 = vmatpush1.msra.mxu0 0.0
        %8765 = vmatprep.subr.mxu0 0.0
        %8766 = vmatpush1.msra.mxu0 0.0
        %8767 = vmatprep.subr.mxu0 0.0
        %8768 = vmatpush1.msra.mxu0 0.0
        %8769 = vmatprep.subr.mxu0 0.0
        %8770 = vmatpush1.msra.mxu0 0.0
        %8771 = vmatprep.subr.mxu0 0.0
        %8772 = vmatpush1.msra.mxu0 0.0
        %8773 = vmatprep.subr.mxu0 0.0
        %8774 = vmatpush1.msra.mxu0 0.0
        %8775 = vmatprep.subr.mxu0 0.0
        %8776 = vmatpush1.msra.mxu0 0.0
        %8777 = vmatprep.subr.mxu0 0.0
        %8778 = vmatpush1.msra.mxu0 0.0
        %8779 = vmatprep.subr.mxu0 0.0
        %8780 = vmatpush1.msra.mxu0 0.0
        %8781 = vmatprep.subr.mxu0 0.0
        %8782 = vmatpush1.msra.mxu0 0.0
        %8783 = vmatprep.subr.mxu0 0.0
        %8784 = vmatpush1.msra.mxu0 0.0
        %8785 = vmatprep.subr.mxu0 0.0
        %8786 = vmatpush1.msra.mxu0 0.0
        %8787 = vmatprep.subr.mxu0 0.0
        %8788 = vmatpush1.msra.mxu0 0.0
        %8789 = vmatprep.subr.mxu0 0.0
        %8790 = vmatpush1.msra.mxu0 0.0
        %8791 = vmatprep.subr.mxu0 0.0
        %8792 = vmatpush1.msra.mxu0 0.0
        %8793 = vmatprep.subr.mxu0 0.0
        %8794 = vmatpush1.msra.mxu0 0.0
        %8795 = vmatprep.subr.mxu0 0.0
        %8796 = vmatpush1.msra.mxu0 0.0
        %8797 = vmatprep.subr.mxu0 0.0
        %8798 = vmatpush1.msra.mxu0 0.0
        %8799 = vmatprep.subr.mxu0 0.0
        %8800 = vmatpush1.msra.mxu0 0.0
        %8801 = vmatprep.subr.mxu0 0.0
        %8802 = vmatpush1.msra.mxu0 0.0
        %8803 = vmatprep.subr.mxu0 0.0
        %8804 = vmatpush1.msra.mxu0 0.0
        %8805 = vmatprep.subr.mxu0 0.0
        %8806 = vmatpush1.msra.mxu0 0.0
        %8807 = vmatprep.subr.mxu0 0.0
        %8808 = vmatpush1.msra.mxu0 0.0
        %8809 = vmatprep.subr.mxu0 0.0
        %8810 = vmatpush1.msra.mxu0 0.0
        %8811 = vmatprep.mubr.f32.mxu0 0.0
        %v8812 = vand.u32 %v8029, 4294901760
        %v8813 = vsub.f32 %v8029, %v8812
        %v8814 = vand.u32 %v8813, 4294901760
        %8815 = vmatmul.mubr.f32.gmra.mrb[0].mxu0 %v8814
        %v8816 = vpop.f32.mrb[0].mxu0
        %v8817 = vadd.f32 %v8741, %v8816
        %v8818 = vpop.f32.mrb[0].mxu0
        %v8819 = vadd.f32 %v8743, %v8818
        %8820 = vdwg.mxu0
        %v8821 = vand.u32 %v8506, 4294901760
        %v8822 = vsub.f32 %v8506, %v8821
        %v8823 = vand.u32 %v8822, 4294901760
        %8824 = vmatprep.subr.mxu0 %v8823
        %v8825 = vand.u32 %v8504, 4294901760
        %v8826 = vsub.f32 %v8504, %v8825
        %v8827 = vand.u32 %v8826, 4294901760
        %8828 = vmatpush1.msra.mxu0 %v8827
        %8829 = vmatprep.subr.mxu0 0.0
        %8830 = vmatpush1.msra.mxu0 0.0
        %8831 = vmatprep.subr.mxu0 0.0
        %8832 = vmatpush1.msra.mxu0 0.0
        %8833 = vmatprep.subr.mxu0 0.0
        %8834 = vmatpush1.msra.mxu0 0.0
        %8835 = vmatprep.subr.mxu0 0.0
        %8836 = vmatpush1.msra.mxu0 0.0
        %8837 = vmatprep.subr.mxu0 0.0
        %8838 = vmatpush1.msra.mxu0 0.0
        %8839 = vmatprep.subr.mxu0 0.0
        %8840 = vmatpush1.msra.mxu0 0.0
        %8841 = vmatprep.subr.mxu0 0.0
        %8842 = vmatpush1.msra.mxu0 0.0
        %8843 = vmatprep.subr.mxu0 0.0
        %8844 = vmatpush1.msra.mxu0 0.0
        %8845 = vmatprep.subr.mxu0 0.0
        %8846 = vmatpush1.msra.mxu0 0.0
        %8847 = vmatprep.subr.mxu0 0.0
        %8848 = vmatpush1.msra.mxu0 0.0
        %8849 = vmatprep.subr.mxu0 0.0
        %8850 = vmatpush1.msra.mxu0 0.0
        %8851 = vmatprep.subr.mxu0 0.0
        %8852 = vmatpush1.msra.mxu0 0.0
        %8853 = vmatprep.subr.mxu0 0.0
        %8854 = vmatpush1.msra.mxu0 0.0
        %8855 = vmatprep.subr.mxu0 0.0
        %8856 = vmatpush1.msra.mxu0 0.0
        %8857 = vmatprep.subr.mxu0 0.0
        %8858 = vmatpush1.msra.mxu0 0.0
        %8859 = vmatprep.subr.mxu0 0.0
        %8860 = vmatpush1.msra.mxu0 0.0
        %8861 = vmatprep.subr.mxu0 0.0
        %8862 = vmatpush1.msra.mxu0 0.0
        %8863 = vmatprep.subr.mxu0 0.0
        %8864 = vmatpush1.msra.mxu0 0.0
        %8865 = vmatprep.subr.mxu0 0.0
        %8866 = vmatpush1.msra.mxu0 0.0
        %8867 = vmatprep.subr.mxu0 0.0
        %8868 = vmatpush1.msra.mxu0 0.0
        %8869 = vmatprep.subr.mxu0 0.0
        %8870 = vmatpush1.msra.mxu0 0.0
        %8871 = vmatprep.subr.mxu0 0.0
        %8872 = vmatpush1.msra.mxu0 0.0
        %8873 = vmatprep.subr.mxu0 0.0
        %8874 = vmatpush1.msra.mxu0 0.0
        %8875 = vmatprep.subr.mxu0 0.0
        %8876 = vmatpush1.msra.mxu0 0.0
        %8877 = vmatprep.subr.mxu0 0.0
        %8878 = vmatpush1.msra.mxu0 0.0
        %8879 = vmatprep.subr.mxu0 0.0
        %8880 = vmatpush1.msra.mxu0 0.0
        %8881 = vmatprep.subr.mxu0 0.0
        %8882 = vmatpush1.msra.mxu0 0.0
        %8883 = vmatprep.subr.mxu0 0.0
        %8884 = vmatpush1.msra.mxu0 0.0
        %8885 = vmatprep.subr.mxu0 0.0
        %8886 = vmatpush1.msra.mxu0 0.0
        %8887 = vmatprep.subr.mxu0 0.0
        %8888 = vmatpush1.msra.mxu0 0.0
        %8889 = vmatprep.subr.mxu0 0.0
        %8890 = vmatpush1.msra.mxu0 0.0
        %8891 = vmatprep.mubr.f32.mxu0 0.0
        %v8892 = vand.u32 %v8029, 4294901760
        %8893 = vmatmul.mubr.f32.gmra.mrb[0].mxu0 %v8892
        %v8894 = vpop.f32.mrb[0].mxu0
        %v8895 = vadd.f32 %v8817, %v8894
        %v8896 = vpop.f32.mrb[0].mxu0
        %v8897 = vadd.f32 %v8819, %v8896
        %8898 = vdwg.mxu0
        %v8899 = vand.u32 %v8506, 4294901760
        %8900 = vmatprep.subr.mxu0 %v8899
        %v8901 = vand.u32 %v8504, 4294901760
        %8902 = vmatpush1.msra.mxu0 %v8901
        %8903 = vmatprep.subr.mxu0 0.0
        %8904 = vmatpush1.msra.mxu0 0.0
        %8905 = vmatprep.subr.mxu0 0.0
        %8906 = vmatpush1.msra.mxu0 0.0
        %8907 = vmatprep.subr.mxu0 0.0
        %8908 = vmatpush1.msra.mxu0 0.0
        %8909 = vmatprep.subr.mxu0 0.0
        %8910 = vmatpush1.msra.mxu0 0.0
        %8911 = vmatprep.subr.mxu0 0.0
        %8912 = vmatpush1.msra.mxu0 0.0
        %8913 = vmatprep.subr.mxu0 0.0
        %8914 = vmatpush1.msra.mxu0 0.0
        %8915 = vmatprep.subr.mxu0 0.0
        %8916 = vmatpush1.msra.mxu0 0.0
        %8917 = vmatprep.subr.mxu0 0.0
        %8918 = vmatpush1.msra.mxu0 0.0
        %8919 = vmatprep.subr.mxu0 0.0
        %8920 = vmatpush1.msra.mxu0 0.0
        %8921 = vmatprep.subr.mxu0 0.0
        %8922 = vmatpush1.msra.mxu0 0.0
        %8923 = vmatprep.subr.mxu0 0.0
        %8924 = vmatpush1.msra.mxu0 0.0
        %8925 = vmatprep.subr.mxu0 0.0
        %8926 = vmatpush1.msra.mxu0 0.0
        %8927 = vmatprep.subr.mxu0 0.0
        %8928 = vmatpush1.msra.mxu0 0.0
        %8929 = vmatprep.subr.mxu0 0.0
        %8930 = vmatpush1.msra.mxu0 0.0
        %8931 = vmatprep.subr.mxu0 0.0
        %8932 = vmatpush1.msra.mxu0 0.0
        %8933 = vmatprep.subr.mxu0 0.0
        %8934 = vmatpush1.msra.mxu0 0.0
        %8935 = vmatprep.subr.mxu0 0.0
        %8936 = vmatpush1.msra.mxu0 0.0
        %8937 = vmatprep.subr.mxu0 0.0
        %8938 = vmatpush1.msra.mxu0 0.0
        %8939 = vmatprep.subr.mxu0 0.0
        %8940 = vmatpush1.msra.mxu0 0.0
        %8941 = vmatprep.subr.mxu0 0.0
        %8942 = vmatpush1.msra.mxu0 0.0
        %8943 = vmatprep.subr.mxu0 0.0
        %8944 = vmatpush1.msra.mxu0 0.0
        %8945 = vmatprep.subr.mxu0 0.0
        %8946 = vmatpush1.msra.mxu0 0.0
        %8947 = vmatprep.subr.mxu0 0.0
        %8948 = vmatpush1.msra.mxu0 0.0
        %8949 = vmatprep.subr.mxu0 0.0
        %8950 = vmatpush1.msra.mxu0 0.0
        %8951 = vmatprep.subr.mxu0 0.0
        %8952 = vmatpush1.msra.mxu0 0.0
        %8953 = vmatprep.subr.mxu0 0.0
        %8954 = vmatpush1.msra.mxu0 0.0
        %8955 = vmatprep.subr.mxu0 0.0
        %8956 = vmatpush1.msra.mxu0 0.0
        %8957 = vmatprep.subr.mxu0 0.0
        %8958 = vmatpush1.msra.mxu0 0.0
        %8959 = vmatprep.subr.mxu0 0.0
        %8960 = vmatpush1.msra.mxu0 0.0
        %8961 = vmatprep.subr.mxu0 0.0
        %8962 = vmatpush1.msra.mxu0 0.0
        %8963 = vmatprep.subr.mxu0 0.0
        %8964 = vmatpush1.msra.mxu0 0.0
        %8965 = vmatprep.mubr.f32.mxu0 0.0
        %v8966 = vand.u32 %v8029, 4294901760
        %8967 = vmatmul.mubr.f32.gmra.mrb[0].mxu0 %v8966
        %v8968 = vpop.f32.mrb[0].mxu0
        %v8969 = vadd.f32 %v8895, %v8968
        %v8970 = vpop.f32.mrb[0].mxu0
        %v8971 = vadd.f32 %v8897, %v8970
        %8972 = vdwg.mxu0
        %v8974 = vsel %vm472, %v5712, 0
        %v8977 = vsel %vm472, %v5713, 0
        %v8979 = vand.u32 %v8977, 4294901760
        %8980 = vmatprep.subr.mxu0 %v8979
        %v8981 = vand.u32 %v8974, 4294901760
        %8982 = vmatpush1.msra.mxu0 %v8981
        %8983 = vmatprep.subr.mxu0 0.0
        %8984 = vmatpush1.msra.mxu0 0.0
        %8985 = vmatprep.subr.mxu0 0.0
        %8986 = vmatpush1.msra.mxu0 0.0
        %8987 = vmatprep.subr.mxu0 0.0
        %8988 = vmatpush1.msra.mxu0 0.0
        %8989 = vmatprep.subr.mxu0 0.0
        %8990 = vmatpush1.msra.mxu0 0.0
        %8991 = vmatprep.subr.mxu0 0.0
        %8992 = vmatpush1.msra.mxu0 0.0
        %8993 = vmatprep.subr.mxu0 0.0
        %8994 = vmatpush1.msra.mxu0 0.0
        %8995 = vmatprep.subr.mxu0 0.0
        %8996 = vmatpush1.msra.mxu0 0.0
        %8997 = vmatprep.subr.mxu0 0.0
        %8998 = vmatpush1.msra.mxu0 0.0
        %8999 = vmatprep.subr.mxu0 0.0
        %9000 = vmatpush1.msra.mxu0 0.0
        %9001 = vmatprep.subr.mxu0 0.0
        %9002 = vmatpush1.msra.mxu0 0.0
        %9003 = vmatprep.subr.mxu0 0.0
        %9004 = vmatpush1.msra.mxu0 0.0
        %9005 = vmatprep.subr.mxu0 0.0
        %9006 = vmatpush1.msra.mxu0 0.0
        %9007 = vmatprep.subr.mxu0 0.0
        %9008 = vmatpush1.msra.mxu0 0.0
        %9009 = vmatprep.subr.mxu0 0.0
        %9010 = vmatpush1.msra.mxu0 0.0
        %9011 = vmatprep.subr.mxu0 0.0
        %9012 = vmatpush1.msra.mxu0 0.0
        %9013 = vmatprep.subr.mxu0 0.0
        %9014 = vmatpush1.msra.mxu0 0.0
        %9015 = vmatprep.subr.mxu0 0.0
        %9016 = vmatpush1.msra.mxu0 0.0
        %9017 = vmatprep.subr.mxu0 0.0
        %9018 = vmatpush1.msra.mxu0 0.0
        %9019 = vmatprep.subr.mxu0 0.0
        %9020 = vmatpush1.msra.mxu0 0.0
        %9021 = vmatprep.subr.mxu0 0.0
        %9022 = vmatpush1.msra.mxu0 0.0
        %9023 = vmatprep.subr.mxu0 0.0
        %9024 = vmatpush1.msra.mxu0 0.0
        %9025 = vmatprep.subr.mxu0 0.0
        %9026 = vmatpush1.msra.mxu0 0.0
        %9027 = vmatprep.subr.mxu0 0.0
        %9028 = vmatpush1.msra.mxu0 0.0
        %9029 = vmatprep.subr.mxu0 0.0
        %9030 = vmatpush1.msra.mxu0 0.0
        %9031 = vmatprep.subr.mxu0 0.0
        %9032 = vmatpush1.msra.mxu0 0.0
        %9033 = vmatprep.subr.mxu0 0.0
        %9034 = vmatpush1.msra.mxu0 0.0
        %9035 = vmatprep.subr.mxu0 0.0
        %9036 = vmatpush1.msra.mxu0 0.0
        %9037 = vmatprep.subr.mxu0 0.0
        %9038 = vmatpush1.msra.mxu0 0.0
        %9039 = vmatprep.subr.mxu0 0.0
        %9040 = vmatpush1.msra.mxu0 0.0
        %9041 = vmatprep.subr.mxu0 0.0
        %9042 = vmatpush1.msra.mxu0 0.0
        %9043 = vmatprep.subr.mxu0 0.0
        %9044 = vmatpush1.msra.mxu0 0.0
        %9045 = vmatprep.mubr.f32.mxu0 0.0
        %v9046 = vand.u32 %v8029, 4294901760
        %v9047 = vsub.f32 %v8029, %v9046
        %v9048 = vand.u32 %v9047, 4294901760
        %v9049 = vsub.f32 %v9047, %v9048
        %v9050 = vand.u32 %v9049, 4294901760
        %9051 = vmatmul.mubr.f32.gmra.mrb[0].mxu0 %v9050
        %v9052 = vpop.f32.mrb[0].mxu0
        %v9053 = vadd.f32 0.0, %v9052
        %v9054 = vpop.f32.mrb[0].mxu0
        %v9055 = vadd.f32 0.0, %v9054
        %9056 = vdwg.mxu0
        %v9057 = vand.u32 %v8977, 4294901760
        %v9058 = vsub.f32 %v8977, %v9057
        %v9059 = vand.u32 %v9058, 4294901760
        %v9060 = vsub.f32 %v9058, %v9059
        %v9061 = vand.u32 %v9060, 4294901760
        %9062 = vmatprep.subr.mxu0 %v9061
        %v9063 = vand.u32 %v8974, 4294901760
        %v9064 = vsub.f32 %v8974, %v9063
        %v9065 = vand.u32 %v9064, 4294901760
        %v9066 = vsub.f32 %v9064, %v9065
        %v9067 = vand.u32 %v9066, 4294901760
        %9068 = vmatpush1.msra.mxu0 %v9067
        %9069 = vmatprep.subr.mxu0 0.0
        %9070 = vmatpush1.msra.mxu0 0.0
        %9071 = vmatprep.subr.mxu0 0.0
        %9072 = vmatpush1.msra.mxu0 0.0
        %9073 = vmatprep.subr.mxu0 0.0
        %9074 = vmatpush1.msra.mxu0 0.0
        %9075 = vmatprep.subr.mxu0 0.0
        %9076 = vmatpush1.msra.mxu0 0.0
        %9077 = vmatprep.subr.mxu0 0.0
        %9078 = vmatpush1.msra.mxu0 0.0
        %9079 = vmatprep.subr.mxu0 0.0
        %9080 = vmatpush1.msra.mxu0 0.0
        %9081 = vmatprep.subr.mxu0 0.0
        %9082 = vmatpush1.msra.mxu0 0.0
        %9083 = vmatprep.subr.mxu0 0.0
        %9084 = vmatpush1.msra.mxu0 0.0
        %9085 = vmatprep.subr.mxu0 0.0
        %9086 = vmatpush1.msra.mxu0 0.0
        %9087 = vmatprep.subr.mxu0 0.0
        %9088 = vmatpush1.msra.mxu0 0.0
        %9089 = vmatprep.subr.mxu0 0.0
        %9090 = vmatpush1.msra.mxu0 0.0
        %9091 = vmatprep.subr.mxu0 0.0
        %9092 = vmatpush1.msra.mxu0 0.0
        %9093 = vmatprep.subr.mxu0 0.0
        %9094 = vmatpush1.msra.mxu0 0.0
        %9095 = vmatprep.subr.mxu0 0.0
        %9096 = vmatpush1.msra.mxu0 0.0
        %9097 = vmatprep.subr.mxu0 0.0
        %9098 = vmatpush1.msra.mxu0 0.0
        %9099 = vmatprep.subr.mxu0 0.0
        %9100 = vmatpush1.msra.mxu0 0.0
        %9101 = vmatprep.subr.mxu0 0.0
        %9102 = vmatpush1.msra.mxu0 0.0
        %9103 = vmatprep.subr.mxu0 0.0
        %9104 = vmatpush1.msra.mxu0 0.0
        %9105 = vmatprep.subr.mxu0 0.0
        %9106 = vmatpush1.msra.mxu0 0.0
        %9107 = vmatprep.subr.mxu0 0.0
        %9108 = vmatpush1.msra.mxu0 0.0
        %9109 = vmatprep.subr.mxu0 0.0
        %9110 = vmatpush1.msra.mxu0 0.0
        %9111 = vmatprep.subr.mxu0 0.0
        %9112 = vmatpush1.msra.mxu0 0.0
        %9113 = vmatprep.subr.mxu0 0.0
        %9114 = vmatpush1.msra.mxu0 0.0
        %9115 = vmatprep.subr.mxu0 0.0
        %9116 = vmatpush1.msra.mxu0 0.0
        %9117 = vmatprep.subr.mxu0 0.0
        %9118 = vmatpush1.msra.mxu0 0.0
        %9119 = vmatprep.subr.mxu0 0.0
        %9120 = vmatpush1.msra.mxu0 0.0
        %9121 = vmatprep.subr.mxu0 0.0
        %9122 = vmatpush1.msra.mxu0 0.0
        %9123 = vmatprep.subr.mxu0 0.0
        %9124 = vmatpush1.msra.mxu0 0.0
        %9125 = vmatprep.subr.mxu0 0.0
        %9126 = vmatpush1.msra.mxu0 0.0
        %9127 = vmatprep.subr.mxu0 0.0
        %9128 = vmatpush1.msra.mxu0 0.0
        %9129 = vmatprep.subr.mxu0 0.0
        %9130 = vmatpush1.msra.mxu0 0.0
        %9131 = vmatprep.mubr.f32.mxu0 0.0
        %v9132 = vand.u32 %v8029, 4294901760
        %9133 = vmatmul.mubr.f32.gmra.mrb[0].mxu0 %v9132
        %v9134 = vpop.f32.mrb[0].mxu0
        %v9135 = vadd.f32 %v9053, %v9134
        %v9136 = vpop.f32.mrb[0].mxu0
        %v9137 = vadd.f32 %v9055, %v9136
        %9138 = vdwg.mxu0
        %v9139 = vand.u32 %v8977, 4294901760
        %v9140 = vsub.f32 %v8977, %v9139
        %9141 = vmatprep.subr.mxu0 %v9140
        %v9142 = vand.u32 %v8974, 4294901760
        %v9143 = vsub.f32 %v8974, %v9142
        %9144 = vmatpush1.msra.mxu0 %v9143
        %9145 = vmatprep.subr.mxu0 0.0
        %9146 = vmatpush1.msra.mxu0 0.0
        %9147 = vmatprep.subr.mxu0 0.0
        %9148 = vmatpush1.msra.mxu0 0.0
        %9149 = vmatprep.subr.mxu0 0.0
        %9150 = vmatpush1.msra.mxu0 0.0
        %9151 = vmatprep.subr.mxu0 0.0
        %9152 = vmatpush1.msra.mxu0 0.0
        %9153 = vmatprep.subr.mxu0 0.0
        %9154 = vmatpush1.msra.mxu0 0.0
        %9155 = vmatprep.subr.mxu0 0.0
        %9156 = vmatpush1.msra.mxu0 0.0
        %9157 = vmatprep.subr.mxu0 0.0
        %9158 = vmatpush1.msra.mxu0 0.0
        %9159 = vmatprep.subr.mxu0 0.0
        %9160 = vmatpush1.msra.mxu0 0.0
        %9161 = vmatprep.subr.mxu0 0.0
        %9162 = vmatpush1.msra.mxu0 0.0
        %9163 = vmatprep.subr.mxu0 0.0
        %9164 = vmatpush1.msra.mxu0 0.0
        %9165 = vmatprep.subr.mxu0 0.0
        %9166 = vmatpush1.msra.mxu0 0.0
        %9167 = vmatprep.subr.mxu0 0.0
        %9168 = vmatpush1.msra.mxu0 0.0
        %9169 = vmatprep.subr.mxu0 0.0
        %9170 = vmatpush1.msra.mxu0 0.0
        %9171 = vmatprep.subr.mxu0 0.0
        %9172 = vmatpush1.msra.mxu0 0.0
        %9173 = vmatprep.subr.mxu0 0.0
        %9174 = vmatpush1.msra.mxu0 0.0
        %9175 = vmatprep.subr.mxu0 0.0
        %9176 = vmatpush1.msra.mxu0 0.0
        %9177 = vmatprep.subr.mxu0 0.0
        %9178 = vmatpush1.msra.mxu0 0.0
        %9179 = vmatprep.subr.mxu0 0.0
        %9180 = vmatpush1.msra.mxu0 0.0
        %9181 = vmatprep.subr.mxu0 0.0
        %9182 = vmatpush1.msra.mxu0 0.0
        %9183 = vmatprep.subr.mxu0 0.0
        %9184 = vmatpush1.msra.mxu0 0.0
        %9185 = vmatprep.subr.mxu0 0.0
        %9186 = vmatpush1.msra.mxu0 0.0
        %9187 = vmatprep.subr.mxu0 0.0
        %9188 = vmatpush1.msra.mxu0 0.0
        %9189 = vmatprep.subr.mxu0 0.0
        %9190 = vmatpush1.msra.mxu0 0.0
        %9191 = vmatprep.subr.mxu0 0.0
        %9192 = vmatpush1.msra.mxu0 0.0
        %9193 = vmatprep.subr.mxu0 0.0
        %9194 = vmatpush1.msra.mxu0 0.0
        %9195 = vmatprep.subr.mxu0 0.0
        %9196 = vmatpush1.msra.mxu0 0.0
        %9197 = vmatprep.subr.mxu0 0.0
        %9198 = vmatpush1.msra.mxu0 0.0
        %9199 = vmatprep.subr.mxu0 0.0
        %9200 = vmatpush1.msra.mxu0 0.0
        %9201 = vmatprep.subr.mxu0 0.0
        %9202 = vmatpush1.msra.mxu0 0.0
        %9203 = vmatprep.subr.mxu0 0.0
        %9204 = vmatpush1.msra.mxu0 0.0
        %9205 = vmatprep.subr.mxu0 0.0
        %9206 = vmatpush1.msra.mxu0 0.0
        %9207 = vmatprep.mubr.f32.mxu0 0.0
        %v9208 = vand.u32 %v8029, 4294901760
        %v9209 = vsub.f32 %v8029, %v9208
        %9210 = vmatmul.mubr.f32.gmra.mrb[0].mxu0 %v9209
        %v9211 = vpop.f32.mrb[0].mxu0
        %v9212 = vadd.f32 %v9135, %v9211
        %v9213 = vpop.f32.mrb[0].mxu0
        %v9214 = vadd.f32 %v9137, %v9213
        %9215 = vdwg.mxu0
        %v9216 = vand.u32 %v8977, 4294901760
        %9217 = vmatprep.subr.mxu0 %v9216
        %v9218 = vand.u32 %v8974, 4294901760
        %9219 = vmatpush1.msra.mxu0 %v9218
        %9220 = vmatprep.subr.mxu0 0.0
        %9221 = vmatpush1.msra.mxu0 0.0
        %9222 = vmatprep.subr.mxu0 0.0
        %9223 = vmatpush1.msra.mxu0 0.0
        %9224 = vmatprep.subr.mxu0 0.0
        %9225 = vmatpush1.msra.mxu0 0.0
        %9226 = vmatprep.subr.mxu0 0.0
        %9227 = vmatpush1.msra.mxu0 0.0
        %9228 = vmatprep.subr.mxu0 0.0
        %9229 = vmatpush1.msra.mxu0 0.0
        %9230 = vmatprep.subr.mxu0 0.0
        %9231 = vmatpush1.msra.mxu0 0.0
        %9232 = vmatprep.subr.mxu0 0.0
        %9233 = vmatpush1.msra.mxu0 0.0
        %9234 = vmatprep.subr.mxu0 0.0
        %9235 = vmatpush1.msra.mxu0 0.0
        %9236 = vmatprep.subr.mxu0 0.0
        %9237 = vmatpush1.msra.mxu0 0.0
        %9238 = vmatprep.subr.mxu0 0.0
        %9239 = vmatpush1.msra.mxu0 0.0
        %9240 = vmatprep.subr.mxu0 0.0
        %9241 = vmatpush1.msra.mxu0 0.0
        %9242 = vmatprep.subr.mxu0 0.0
        %9243 = vmatpush1.msra.mxu0 0.0
        %9244 = vmatprep.subr.mxu0 0.0
        %9245 = vmatpush1.msra.mxu0 0.0
        %9246 = vmatprep.subr.mxu0 0.0
        %9247 = vmatpush1.msra.mxu0 0.0
        %9248 = vmatprep.subr.mxu0 0.0
        %9249 = vmatpush1.msra.mxu0 0.0
        %9250 = vmatprep.subr.mxu0 0.0
        %9251 = vmatpush1.msra.mxu0 0.0
        %9252 = vmatprep.subr.mxu0 0.0
        %9253 = vmatpush1.msra.mxu0 0.0
        %9254 = vmatprep.subr.mxu0 0.0
        %9255 = vmatpush1.msra.mxu0 0.0
        %9256 = vmatprep.subr.mxu0 0.0
        %9257 = vmatpush1.msra.mxu0 0.0
        %9258 = vmatprep.subr.mxu0 0.0
        %9259 = vmatpush1.msra.mxu0 0.0
        %9260 = vmatprep.subr.mxu0 0.0
        %9261 = vmatpush1.msra.mxu0 0.0
        %9262 = vmatprep.subr.mxu0 0.0
        %9263 = vmatpush1.msra.mxu0 0.0
        %9264 = vmatprep.subr.mxu0 0.0
        %9265 = vmatpush1.msra.mxu0 0.0
        %9266 = vmatprep.subr.mxu0 0.0
        %9267 = vmatpush1.msra.mxu0 0.0
        %9268 = vmatprep.subr.mxu0 0.0
        %9269 = vmatpush1.msra.mxu0 0.0
        %9270 = vmatprep.subr.mxu0 0.0
        %9271 = vmatpush1.msra.mxu0 0.0
        %9272 = vmatprep.subr.mxu0 0.0
        %9273 = vmatpush1.msra.mxu0 0.0
        %9274 = vmatprep.subr.mxu0 0.0
        %9275 = vmatpush1.msra.mxu0 0.0
        %9276 = vmatprep.subr.mxu0 0.0
        %9277 = vmatpush1.msra.mxu0 0.0
        %9278 = vmatprep.subr.mxu0 0.0
        %9279 = vmatpush1.msra.mxu0 0.0
        %9280 = vmatprep.subr.mxu0 0.0
        %9281 = vmatpush1.msra.mxu0 0.0
        %9282 = vmatprep.mubr.f32.mxu0 0.0
        %v9283 = vand.u32 %v8029, 4294901760
        %v9284 = vsub.f32 %v8029, %v9283
        %v9285 = vand.u32 %v9284, 4294901760
        %9286 = vmatmul.mubr.f32.gmra.mrb[0].mxu0 %v9285
        %v9287 = vpop.f32.mrb[0].mxu0
        %v9288 = vadd.f32 %v9212, %v9287
        %v9289 = vpop.f32.mrb[0].mxu0
        %v9290 = vadd.f32 %v9214, %v9289
        %9291 = vdwg.mxu0
        %v9292 = vand.u32 %v8977, 4294901760
        %v9293 = vsub.f32 %v8977, %v9292
        %v9294 = vand.u32 %v9293, 4294901760
        %9295 = vmatprep.subr.mxu0 %v9294
        %v9296 = vand.u32 %v8974, 4294901760
        %v9297 = vsub.f32 %v8974, %v9296
        %v9298 = vand.u32 %v9297, 4294901760
        %9299 = vmatpush1.msra.mxu0 %v9298
        %9300 = vmatprep.subr.mxu0 0.0
        %9301 = vmatpush1.msra.mxu0 0.0
        %9302 = vmatprep.subr.mxu0 0.0
        %9303 = vmatpush1.msra.mxu0 0.0
        %9304 = vmatprep.subr.mxu0 0.0
        %9305 = vmatpush1.msra.mxu0 0.0
        %9306 = vmatprep.subr.mxu0 0.0
        %9307 = vmatpush1.msra.mxu0 0.0
        %9308 = vmatprep.subr.mxu0 0.0
        %9309 = vmatpush1.msra.mxu0 0.0
        %9310 = vmatprep.subr.mxu0 0.0
        %9311 = vmatpush1.msra.mxu0 0.0
        %9312 = vmatprep.subr.mxu0 0.0
        %9313 = vmatpush1.msra.mxu0 0.0
        %9314 = vmatprep.subr.mxu0 0.0
        %9315 = vmatpush1.msra.mxu0 0.0
        %9316 = vmatprep.subr.mxu0 0.0
        %9317 = vmatpush1.msra.mxu0 0.0
        %9318 = vmatprep.subr.mxu0 0.0
        %9319 = vmatpush1.msra.mxu0 0.0
        %9320 = vmatprep.subr.mxu0 0.0
        %9321 = vmatpush1.msra.mxu0 0.0
        %9322 = vmatprep.subr.mxu0 0.0
        %9323 = vmatpush1.msra.mxu0 0.0
        %9324 = vmatprep.subr.mxu0 0.0
        %9325 = vmatpush1.msra.mxu0 0.0
        %9326 = vmatprep.subr.mxu0 0.0
        %9327 = vmatpush1.msra.mxu0 0.0
        %9328 = vmatprep.subr.mxu0 0.0
        %9329 = vmatpush1.msra.mxu0 0.0
        %9330 = vmatprep.subr.mxu0 0.0
        %9331 = vmatpush1.msra.mxu0 0.0
        %9332 = vmatprep.subr.mxu0 0.0
        %9333 = vmatpush1.msra.mxu0 0.0
        %9334 = vmatprep.subr.mxu0 0.0
        %9335 = vmatpush1.msra.mxu0 0.0
        %9336 = vmatprep.subr.mxu0 0.0
        %9337 = vmatpush1.msra.mxu0 0.0
        %9338 = vmatprep.subr.mxu0 0.0
        %9339 = vmatpush1.msra.mxu0 0.0
        %9340 = vmatprep.subr.mxu0 0.0
        %9341 = vmatpush1.msra.mxu0 0.0
        %9342 = vmatprep.subr.mxu0 0.0
        %9343 = vmatpush1.msra.mxu0 0.0
        %9344 = vmatprep.subr.mxu0 0.0
        %9345 = vmatpush1.msra.mxu0 0.0
        %9346 = vmatprep.subr.mxu0 0.0
        %9347 = vmatpush1.msra.mxu0 0.0
        %9348 = vmatprep.subr.mxu0 0.0
        %9349 = vmatpush1.msra.mxu0 0.0
        %9350 = vmatprep.subr.mxu0 0.0
        %9351 = vmatpush1.msra.mxu0 0.0
        %9352 = vmatprep.subr.mxu0 0.0
        %9353 = vmatpush1.msra.mxu0 0.0
        %9354 = vmatprep.subr.mxu0 0.0
        %9355 = vmatpush1.msra.mxu0 0.0
        %9356 = vmatprep.subr.mxu0 0.0
        %9357 = vmatpush1.msra.mxu0 0.0
        %9358 = vmatprep.subr.mxu0 0.0
        %9359 = vmatpush1.msra.mxu0 0.0
        %9360 = vmatprep.subr.mxu0 0.0
        %9361 = vmatpush1.msra.mxu0 0.0
        %9362 = vmatprep.mubr.f32.mxu0 0.0
        %v9363 = vand.u32 %v8029, 4294901760
        %9364 = vmatmul.mubr.f32.gmra.mrb[0].mxu0 %v9363
        %v9365 = vpop.f32.mrb[0].mxu0
        %v9366 = vadd.f32 %v9288, %v9365
        %v9367 = vpop.f32.mrb[0].mxu0
        %v9368 = vadd.f32 %v9290, %v9367
        %9369 = vdwg.mxu0
        %v9370 = vand.u32 %v8977, 4294901760
        %9371 = vmatprep.subr.mxu0 %v9370
        %v9372 = vand.u32 %v8974, 4294901760
        %9373 = vmatpush1.msra.mxu0 %v9372
        %9374 = vmatprep.subr.mxu0 0.0
        %9375 = vmatpush1.msra.mxu0 0.0
        %9376 = vmatprep.subr.mxu0 0.0
        %9377 = vmatpush1.msra.mxu0 0.0
        %9378 = vmatprep.subr.mxu0 0.0
        %9379 = vmatpush1.msra.mxu0 0.0
        %9380 = vmatprep.subr.mxu0 0.0
        %9381 = vmatpush1.msra.mxu0 0.0
        %9382 = vmatprep.subr.mxu0 0.0
        %9383 = vmatpush1.msra.mxu0 0.0
        %9384 = vmatprep.subr.mxu0 0.0
        %9385 = vmatpush1.msra.mxu0 0.0
        %9386 = vmatprep.subr.mxu0 0.0
        %9387 = vmatpush1.msra.mxu0 0.0
        %9388 = vmatprep.subr.mxu0 0.0
        %9389 = vmatpush1.msra.mxu0 0.0
        %9390 = vmatprep.subr.mxu0 0.0
        %9391 = vmatpush1.msra.mxu0 0.0
        %9392 = vmatprep.subr.mxu0 0.0
        %9393 = vmatpush1.msra.mxu0 0.0
        %9394 = vmatprep.subr.mxu0 0.0
        %9395 = vmatpush1.msra.mxu0 0.0
        %9396 = vmatprep.subr.mxu0 0.0
        %9397 = vmatpush1.msra.mxu0 0.0
        %9398 = vmatprep.subr.mxu0 0.0
        %9399 = vmatpush1.msra.mxu0 0.0
        %9400 = vmatprep.subr.mxu0 0.0
        %9401 = vmatpush1.msra.mxu0 0.0
        %9402 = vmatprep.subr.mxu0 0.0
        %9403 = vmatpush1.msra.mxu0 0.0
        %9404 = vmatprep.subr.mxu0 0.0
        %9405 = vmatpush1.msra.mxu0 0.0
        %9406 = vmatprep.subr.mxu0 0.0
        %9407 = vmatpush1.msra.mxu0 0.0
        %9408 = vmatprep.subr.mxu0 0.0
        %9409 = vmatpush1.msra.mxu0 0.0
        %9410 = vmatprep.subr.mxu0 0.0
        %9411 = vmatpush1.msra.mxu0 0.0
        %9412 = vmatprep.subr.mxu0 0.0
        %9413 = vmatpush1.msra.mxu0 0.0
        %9414 = vmatprep.subr.mxu0 0.0
        %9415 = vmatpush1.msra.mxu0 0.0
        %9416 = vmatprep.subr.mxu0 0.0
        %9417 = vmatpush1.msra.mxu0 0.0
        %9418 = vmatprep.subr.mxu0 0.0
        %9419 = vmatpush1.msra.mxu0 0.0
        %9420 = vmatprep.subr.mxu0 0.0
        %9421 = vmatpush1.msra.mxu0 0.0
        %9422 = vmatprep.subr.mxu0 0.0
        %9423 = vmatpush1.msra.mxu0 0.0
        %9424 = vmatprep.subr.mxu0 0.0
        %9425 = vmatpush1.msra.mxu0 0.0
        %9426 = vmatprep.subr.mxu0 0.0
        %9427 = vmatpush1.msra.mxu0 0.0
        %9428 = vmatprep.subr.mxu0 0.0
        %9429 = vmatpush1.msra.mxu0 0.0
        %9430 = vmatprep.subr.mxu0 0.0
        %9431 = vmatpush1.msra.mxu0 0.0
        %9432 = vmatprep.subr.mxu0 0.0
        %9433 = vmatpush1.msra.mxu0 0.0
        %9434 = vmatprep.subr.mxu0 0.0
        %9435 = vmatpush1.msra.mxu0 0.0
        %9436 = vmatprep.mubr.f32.mxu0 0.0
        %v9437 = vand.u32 %v8029, 4294901760
        %9438 = vmatmul.mubr.f32.gmra.mrb[0].mxu0 %v9437
        %v9439 = vpop.f32.mrb[0].mxu0
        %v9440 = vadd.f32 %v9366, %v9439
        %v9441 = vpop.f32.mrb[0].mxu0
        %v9442 = vadd.f32 %v9368, %v9441
        %9443 = vdwg.mxu0
        %v9444 = vadd.f32 %v5710, %v8498
        %v9445 = vadd.f32 %v5711, %v8500
        %v9448 = vrot.slane %v8969, 4
        %v9449 = vrot.slane %v8971, 4
        %v9452 = vadd.f32 %v5710, %v9448
        %v9453 = vadd.f32 %v5711, %v9449
        %v9454 = vsel %vm472, %v9444, %v9452
        %v9455 = vsel %vm472, %v9445, %v9453
        %v9456 = vld [vmem:[%s8] ss:$8 sm:$0x3]
        %s9457 = scalar_lea.vmem %s8, 1
        %v9458 = vld [vmem:[%s9457] ss:$8 sm:$0x3]
        %v9459 = vadd.f32 %v9454, %v9455
        %9460 = vadd.xlane.f32.xlu0 %v9459
        %v9461 = vpop.xlane.xlu0 %9460
        %v9462 = vrcp.pop 256.0
        %v9463 = vmul.f32 %v9461, %v9462
        %v9464 = vsub.f32 %v9454, %v9463
        %v9465 = vsub.f32 %v9455, %v9463
        %v9466 = vmul.f32 %v9464, %v9464
        %v9467 = vmul.f32 %v9465, %v9465
        %v9468 = vadd.f32 %v9466, %v9467
        %9469 = vadd.xlane.f32.xlu0 %v9468
        %v9470 = vpop.xlane.xlu0 %9469
        %v9471 = vmul.f32 %v9470, %v9462
        %v9472 = vadd.f32 %v9471, 1e-05
        %v9473 = vrsqrt.pop %v9472
        %v9474 = vmul.f32 %v9464, %v9473
        %v9475 = vmul.f32 %v9465, %v9473
        %v9477 = vlaneseq
        %v9478 = vshrl.u32 %v9477, 7
        %v9479 = vsub.s32 0, %v9478
        %v9480 = vrot.slane %v9456, %v9479
        %v9481 = vlaneseq
        %v9482 = vshrl.u32 %v9481, 7
        %v9483 = vsub.s32 1, %v9482
        %v9484 = vrot.slane %v9456, %v9483
        %v9487 = vmul.f32 %v9474, %v9480
        %v9488 = vmul.f32 %v9475, %v9484
        %v9490 = vlaneseq
        %v9491 = vshrl.u32 %v9490, 7
        %v9492 = vsub.s32 0, %v9491
        %v9493 = vrot.slane %v9458, %v9492
        %v9494 = vlaneseq
        %v9495 = vshrl.u32 %v9494, 7
        %v9496 = vsub.s32 1, %v9495
        %v9497 = vrot.slane %v9458, %v9496
        %v9500 = vadd.f32 %v9487, %v9493
        %v9501 = vadd.f32 %v9488, %v9497
        %v9502 = vadd.f32 %v5712, %v9440
        %v9503 = vadd.f32 %v5713, %v9442
        %s9504 = scalar_lea.vmem %s8, 2
        %v9505 = vld [vmem:[%s9504] ss:$8 sm:$0x3]
        %s9506 = scalar_lea.vmem %s8, 3
        %v9507 = vld [vmem:[%s9506] ss:$8 sm:$0x3]
        %v9508 = vsel %vm472, %v9502, 0.0
        %v9509 = vsel %vm472, %v9503, 0.0
        %v9510 = vadd.f32 %v9508, %v9509
        %9511 = vadd.xlane.f32.xlu0 %v9510
        %v9512 = vpop.xlane.xlu0 %9511
        %v9513 = vmul.f32 %v9512, %v9462
        %v9514 = vsub.f32 %v9502, %v9513
        %v9515 = vsub.f32 %v9503, %v9513
        %v9516 = vmul.f32 %v9514, %v9514
        %v9517 = vmul.f32 %v9515, %v9515
        %v9518 = vsel %vm472, %v9516, 0.0
        %v9519 = vsel %vm472, %v9517, 0.0
        %v9520 = vadd.f32 %v9518, %v9519
        %9521 = vadd.xlane.f32.xlu0 %v9520
        %v9522 = vpop.xlane.xlu0 %9521
        %v9523 = vmul.f32 %v9522, %v9462
        %v9524 = vadd.f32 %v9523, 1e-05
        %v9525 = vrsqrt.pop %v9524
        %v9526 = vmul.f32 %v9514, %v9525
        %v9527 = vmul.f32 %v9515, %v9525
        %v9529 = vlaneseq
        %v9530 = vshrl.u32 %v9529, 7
        %v9531 = vsub.s32 0, %v9530
        %v9532 = vrot.slane %v9505, %v9531
        %v9533 = vlaneseq
        %v9534 = vshrl.u32 %v9533, 7
        %v9535 = vsub.s32 1, %v9534
        %v9536 = vrot.slane %v9505, %v9535
        %v9539 = vmul.f32 %v9526, %v9532
        %v9540 = vmul.f32 %v9527, %v9536
        %v9542 = vlaneseq
        %v9543 = vshrl.u32 %v9542, 7
        %v9544 = vsub.s32 0, %v9543
        %v9545 = vrot.slane %v9507, %v9544
        %v9546 = vlaneseq
        %v9547 = vshrl.u32 %v9546, 7
        %v9548 = vsub.s32 1, %v9547
        %v9549 = vrot.slane %v9507, %v9548
        %v9552 = vadd.f32 %v9539, %v9545
        %v9553 = vadd.f32 %v9540, %v9549
        %v9556 = vrot.slane %v9552, 4
        %v9557 = vrot.slane %v9553, 4
        %v9560 = vsel %vm472, %v9552, %v9556
        %v9561 = vsel %vm472, %v9553, %v9557
        %v9562 = vadd.f32 %v9500, %v9560
        %v9563 = vadd.f32 %v9501, %v9561
        %s9564 = scalar_lea.vmem %s8, 4
        %v9565 = vld [vmem:[%s9564] ss:$8 sm:$0x3]
        %s9566 = scalar_lea.vmem %s8, 5
        %v9567 = vld [vmem:[%s9566] ss:$8 sm:$0x3]
        %v9568 = vadd.f32 %v9562, %v9563
        %9569 = vadd.xlane.f32.xlu0 %v9568
        %v9570 = vpop.xlane.xlu0 %9569
        %v9571 = vmul.f32 %v9570, %v9462
        %v9572 = vsub.f32 %v9562, %v9571
        %v9573 = vsub.f32 %v9563, %v9571
        %v9574 = vmul.f32 %v9572, %v9572
        %v9575 = vmul.f32 %v9573, %v9573
        %v9576 = vadd.f32 %v9574, %v9575
        %9577 = vadd.xlane.f32.xlu0 %v9576
        %v9578 = vpop.xlane.xlu0 %9577
        %v9579 = vmul.f32 %v9578, %v9462
        %v9580 = vadd.f32 %v9579, 1e-05
        %v9581 = vrsqrt.pop %v9580
        %v9582 = vmul.f32 %v9572, %v9581
        %v9583 = vmul.f32 %v9573, %v9581
        %v9585 = vlaneseq
        %v9586 = vshrl.u32 %v9585, 7
        %v9587 = vsub.s32 0, %v9586
        %v9588 = vrot.slane %v9565, %v9587
        %v9589 = vlaneseq
        %v9590 = vshrl.u32 %v9589, 7
        %v9591 = vsub.s32 1, %v9590
        %v9592 = vrot.slane %v9565, %v9591
        %v9595 = vmul.f32 %v9582, %v9588
        %v9596 = vmul.f32 %v9583, %v9592
        %v9598 = vlaneseq
        %v9599 = vshrl.u32 %v9598, 7
        %v9600 = vsub.s32 0, %v9599
        %v9601 = vrot.slane %v9567, %v9600
        %v9602 = vlaneseq
        %v9603 = vshrl.u32 %v9602, 7
        %v9604 = vsub.s32 1, %v9603
        %v9605 = vrot.slane %v9567, %v9604
        %v9608 = vadd.f32 %v9595, %v9601
        %v9609 = vadd.f32 %v9596, %v9605
        %9610 = vst [vmem:[%s370] sm:$0xff] %v9608
        %9611 = vst [vmem:[%s370 + $0x8] sm:$0xff] %v9609
        %s9612 = sand.u32 %s232, 1
        %s9613 = scalar_lea.sflag [#allocation4], %s9612
        %s9614 = sand.u32 %s232, 1
        %s9615 = smul.addr %s9614, 16
        %s9616 = scalar_lea.vmem [#allocation7], %s9615
        // Predicated region
        $region65: #{tpu_custom_call.1} parent=55 // pred_check
          %p9617 = pneg %p242
        $region66: #{tpu_custom_call.1} parent=55 // pred_check_branch
          %9619 = sbr.rel (%p9617) target = $region68
        $region67: #{tpu_custom_call.1} parent=55 // pred_region
          %s9621 = ssub.s32 256, 256
          %9622 = vsyncadd %s9613, %s9621
          %s9623 = smul.addr %s25, 2
          %s9624 = smul.addr %s9623, 128
          %s9625 = scalar_lea.hbm %s9, %s9624
          %s9627 = sshll.u32 %s9616, 4
          %s9628 = int_to_ptr.vmem [resolvable:$true] %s9627
          %9630 = dma.vmem_to_hbm [thread:$0]  %s9628, 256, %s9625, %s9613
        $region68: #{tpu_custom_call.1} parent=55 // pred_fallthru
          _
      $region56: #{tpu_custom_call.1} parent=5 // pred_fallthru
        _
      %p9631 = scmp.le.s32.totalorder 2, %s20
      // Predicated region
      $region69: #{tpu_custom_call.1} parent=5 // pred_check
        %p9632 = pneg %p9631
      $region70: #{tpu_custom_call.1} parent=5 // pred_check_branch
        %9634 = sbr.rel (%p9632) target = $region72
      $region71: #{tpu_custom_call.1} parent=5 // pred_region
        %s9635 = ssub.s32 %s20, 2
        // Predicated region
        $region73: #{tpu_custom_call.1} parent=71 // pred_check
          %p9636 = pneg %p248
        $region74: #{tpu_custom_call.1} parent=71 // pred_check_branch
          %9638 = sbr.rel (%p9636) target = $region76
        $region75: #{tpu_custom_call.1} parent=71 // pred_region
          %s9639 = sand.u32 %s233, 1
          %s9640 = scalar_lea.sflag [#allocation4], %s9639
          %s9641 = sand.u32 %s233, 1
          %s9642 = smul.addr %s9641, 16
          %s9643 = scalar_lea.vmem [#allocation7], %s9642
          %9644 = dma.done %s9640, 256
        $region76: #{tpu_custom_call.1} parent=71 // pred_fallthru
          _
      $region72: #{tpu_custom_call.1} parent=5 // pred_fallthru
        _
    $region6: #{tpu_custom_call.1} parent=1 // loop_footer
      %s24 = sadd.s32 1, %s20
    $region7: #{tpu_custom_call.1} parent=1 // loop_footer_branch
      %19 = sbr.rel target = $region3
    $region8: #{tpu_custom_call.1} parent=1 // loop_exit
      _
    %9645 = vsyncpa [#allocation3], 1
    %s9646 = scalar_lea.sflag [#allocation3], 1
    %9647 = vsyncpa %s9646, 1
    %9648 = vsyncpa [#allocation6], 1
    %9649 = vsyncpa [#allocation4], 1
    %s9650 = scalar_lea.sflag [#allocation4], 1
    %9651 = vsyncpa %s9650, 1

</llo_original>
